<compile_context>
chip_gen: v6e
topology: v6e:2x2x1
jax: 0.10.0
libtpu: 0.0.40
codegen_flags: <defaults>
</compile_context>

<pallas_src>
import math
import jax
import jax.numpy as jnp
from jax.experimental import pallas as pl
from jax.experimental.pallas import tpu as pltpu

BN_EPS = 1e-5  # nn.BatchNorm2d default eps


# ---------------------------------------------------------------------------
# One VGG block inside the fused kernel:
#   Conv3x3(pad=1, no bias) + BatchNorm2d(batch stats) + ReLU [+ MaxPool2x2]*
# ---------------------------------------------------------------------------
def _conv_bn_relu_pool(x, xpad_ref, w_ref, gamma_ref, beta_ref,
                       N, H, W, Cin, Cout, n_pool):
    # x        : (N, H, W, Cin) bf16 value (stays in vregs)
    # xpad_ref : shared (N, H0+2, W0+2, Cmax) bf16 VMEM scratch; this layer uses
    #            the static corner sub-block [:, :H+2, :W+2, :Cin]
    # w_ref    : (9, Cin, Cout) bf16, tap t = 3*dh + dw
    # gamma_ref, beta_ref : (1, Cout) f32
    M = N * H * W

    # ---- SAME padding: zero ONLY the halo ring, store the activation once ---
    zrow = jnp.zeros((N, 1, W + 2, Cin), jnp.bfloat16)
    zcol = jnp.zeros((N, H, 1, Cin), jnp.bfloat16)
    xpad_ref[:, 0:1, 0:W + 2, 0:Cin] = zrow                 # top halo row
    xpad_ref[:, H + 1:H + 2, 0:W + 2, 0:Cin] = zrow         # bottom halo row
    xpad_ref[:, 1:H + 1, 0:1, 0:Cin] = zcol                 # left halo col
    xpad_ref[:, 1:H + 1, W + 1:W + 2, 0:Cin] = zcol         # right halo col
    xpad_ref[:, 1:H + 1, 1:W + 1, 0:Cin] = x                # interior (lane 0)

    # ---- direct conv: 9 tap matmuls accumulated in f32 ----------------------
    acc = None
    for t in range(9):                                      # statically unrolled
        dh, dw = divmod(t, 3)
        xs = xpad_ref[:, dh:dh + H, dw:dw + W, 0:Cin].reshape(M, Cin)
        part = jnp.dot(xs, w_ref[t], preferred_element_type=jnp.float32)
        acc = part if acc is None else acc + part           # (M, Cout) f32

    # ---- BatchNorm2d (training-mode batch stats), centered variance ---------
    inv_m = 1.0 / M
    mean = jnp.sum(acc, axis=0, keepdims=True) * inv_m
    centered = acc - mean
    var = jnp.sum(centered * centered, axis=0, keepdims=True) * inv_m
    scale = gamma_ref[...] * jax.lax.rsqrt(var + BN_EPS)
    y = jnp.maximum(centered * scale + beta_ref[...], 0.0)  # BN + ReLU
    y = y.reshape(N, H, W, Cout)

    # ---- fused MaxPool2d(kernel=2, stride=2); channel lane dim untouched ----
    for _ in range(n_pool):
        n_, h_, w_, c_ = y.shape
        yw = y.reshape(n_, h_, w_ // 2, 2, c_)
        y = jnp.maximum(yw[:, :, :, 0, :], yw[:, :, :, 1, :])
        yh = y.reshape(n_, h_ // 2, 2, w_ // 2, c_)
        y = jnp.maximum(yh[:, :, 0, :, :], yh[:, :, 1, :, :])

    return y.astype(jnp.bfloat16)


def make_fused_vgg_kernel(layer_meta, N):
    # layer_meta: list of (H, W, Cin, Cout, n_pool_after) per conv layer
    n_conv = len(layer_meta)

    def kernel(*refs):
        x_ref = refs[0]
        conv_refs = refs[1:1 + 3 * n_conv]                  # (w, gamma, beta) per conv
        wl_ref = refs[1 + 3 * n_conv]
        bl_ref = refs[2 + 3 * n_conv]
        out_ref = refs[3 + 3 * n_conv]
        xpad_ref = refs[4 + 3 * n_conv]                     # single shared scratch

        x = x_ref[...]                                      # (N, H0, W0, 3) bf16
        for li, (H, W, Cin, Cout, n_pool) in enumerate(layer_meta):
            x = _conv_bn_relu_pool(
                x, xpad_ref,
                conv_refs[3 * li], conv_refs[3 * li + 1], conv_refs[3 * li + 2],
                N, H, W, Cin, Cout, n_pool)

        # Head: AvgPool2d(2) on the final 2x2 map -> 1x1, flatten, Linear.
        c_last = x.shape[-1]
        xr = x.reshape(N, 4, c_last).astype(jnp.float32)
        pooled = jnp.mean(xr, axis=1)                       # (N, c_last) f32
        logits = jnp.dot(pooled.astype(jnp.bfloat16), wl_ref[...],
                         preferred_element_type=jnp.float32) + bl_ref[...]
        out_ref[...] = logits

    return kernel


# ---------------------------------------------------------------------------
# Wrapper: whole forward pass in a single pallas_call
# ---------------------------------------------------------------------------
def vgg_forward(x_nchw, conv_params, pools_after, classifier_params):
    x = jnp.transpose(x_nchw, (0, 2, 3, 1)).astype(jnp.bfloat16)  # NCHW -> NHWC
    N, H0, W0, Cin0 = x.shape

    layer_meta = []
    flat_inputs = [x]
    h, w, cin = H0, W0, Cin0
    c_max = cin
    for (wgt, gamma, beta), n_pool in zip(conv_params, pools_after):
        cout = wgt.shape[2]
        layer_meta.append((h, w, cin, cout, n_pool))
        flat_inputs += [wgt, gamma, beta]
        c_max = max(c_max, cin)
        cin = cout
        for _ in range(n_pool):
            h //= 2
            w //= 2
    # AvgPool2d(2) + flatten must produce exactly cfg[-1] features for Linear.
    assert h == 2 and w == 2, "feature map before AvgPool2d(2) must be 2x2"

    wl, bl = classifier_params
    num_classes = wl.shape[1]
    flat_inputs += [wl, bl]

    # ONE shared padded-activation scratch reused by every conv layer
    # (peak scratch VMEM = max layer, not sum of layers).
    scratch = [pltpu.VMEM((N, H0 + 2, W0 + 2, c_max), jnp.bfloat16)]

    # Per-generation-safe VMEM budget derived from the real footprint:
    # operands + output + scratch, with 4x headroom for intermediates, clamped
    # to [16 MiB, 56 MiB] so it fits v7x (64 MiB) and still lifts the v5e
    # 16 MiB default when needed.
    op_bytes = sum(int(a.size) * a.dtype.itemsize for a in flat_inputs)
    op_bytes += N * num_classes * 4
    scratch_bytes = N * (H0 + 2) * (W0 + 2) * c_max * 2
    vmem_limit = int(min(max(4 * (op_bytes + scratch_bytes) + (8 << 20),
                             16 << 20), 56 << 20))

    vmem_spec = pl.BlockSpec(memory_space=pltpu.MemorySpace.VMEM)
    return pl.pallas_call(
        make_fused_vgg_kernel(layer_meta, N),
        out_shape=jax.ShapeDtypeStruct((N, num_classes), jnp.float32),
        in_specs=[vmem_spec] * len(flat_inputs),
        out_specs=vmem_spec,
        scratch_shapes=scratch,
        compiler_params=pltpu.CompilerParams(vmem_limit_bytes=vmem_limit),
    )(*flat_inputs)


# ---------------------------------------------------------------------------
# Parameter init (mirrors vgg._initialize_weights; use_mask=False path)
# ---------------------------------------------------------------------------
def init_params(key, cfg, in_channels=3, num_classes=10):
    conv_params = []
    pools_after = []
    c_in = in_channels
    for v in cfg:
        if v == 'M':
            pools_after[-1] += 1
        else:
            key, kw = jax.random.split(key)
            n = 3 * 3 * v  # kernel_size[0]*kernel_size[1]*out_channels
            w4 = jax.random.normal(kw, (3, 3, c_in, v), jnp.float32) * math.sqrt(2.0 / n)
            conv_params.append((
                w4.reshape(9, c_in, v).astype(jnp.bfloat16),    # (tap, Cin, Cout)
                jnp.full((1, v), 0.5, jnp.float32),             # BN weight.fill_(0.5)
                jnp.zeros((1, v), jnp.float32),                 # BN bias.zero_()
            ))
            pools_after.append(0)
            c_in = v
    key, kl = jax.random.split(key)
    wl = (jax.random.normal(kl, (c_in, num_classes), jnp.float32) * 0.01
          ).astype(jnp.bfloat16)
    bl = jnp.zeros((1, num_classes), jnp.float32)
    return conv_params, pools_after, (wl, bl)


if __name__ == "__main__":
    # Small VGG-style cfg (same structure as defaultcfg, shrunk for the demo).
    # Input 8x8 with two 'M' pools -> 2x2 before AvgPool2d(2) -> 1x1, matching
    # classifier = Linear(cfg[-1], num_classes).  Real VGG channel counts
    # (128-512) would be lane-dense on the MXU; these demo widths are not, so
    # do not extrapolate perf numbers from this config.
    cfg = [8, 8, 'M', 16, 'M', 32]
    num_classes = 10  # dataset='cifar10'

    key = jax.random.PRNGKey(0)
    key, kx = jax.random.split(key)
    x = jax.random.normal(kx, (2, 3, 8, 8), jnp.float32)  # NCHW like PyTorch

    conv_params, pools_after, classifier_params = init_params(
        key, cfg, in_channels=3, num_classes=num_classes)

    y = vgg_forward(x, conv_params, pools_after, classifier_params)
    y = jax.block_until_ready(y)
    assert y.shape == (2, num_classes)
    assert bool(jnp.all(jnp.isfinite(y)))
    # TODO(synk): MaskedConv2d/MaskedLinear (use_mask=True), pretrained-weight
    # loading (initial_from_pretrain) and BN running-stat updates are not
    # exercised by the default forward and are not implemented.
    print("KERNEL_OK")
</pallas_src>

<mosaic_0001>
module attributes {stable_mosaic.version = 11 : i64} {
  func.func @kernel(%arg0: memref<2x8x8x3xbf16, #tpu.memory_space<vmem>>, %arg1: memref<9x3x8xbf16, #tpu.memory_space<vmem>>, %arg2: memref<1x8xf32, #tpu.memory_space<vmem>>, %arg3: memref<1x8xf32, #tpu.memory_space<vmem>>, %arg4: memref<9x8x8xbf16, #tpu.memory_space<vmem>>, %arg5: memref<1x8xf32, #tpu.memory_space<vmem>>, %arg6: memref<1x8xf32, #tpu.memory_space<vmem>>, %arg7: memref<9x8x16xbf16, #tpu.memory_space<vmem>>, %arg8: memref<1x16xf32, #tpu.memory_space<vmem>>, %arg9: memref<1x16xf32, #tpu.memory_space<vmem>>, %arg10: memref<9x16x32xbf16, #tpu.memory_space<vmem>>, %arg11: memref<1x32xf32, #tpu.memory_space<vmem>>, %arg12: memref<1x32xf32, #tpu.memory_space<vmem>>, %arg13: memref<32x10xbf16, #tpu.memory_space<vmem>>, %arg14: memref<1x10xf32, #tpu.memory_space<vmem>>, %arg15: memref<2x10xf32, #tpu.memory_space<vmem>>, %arg16: memref<2x10x10x16xbf16, #tpu.memory_space<vmem>>) attributes {dimension_semantics = [], scalar_prefetch = 0 : i64, scratch_operands = 1 : i64, tpu.core_type = #tpu.core_type<tc>} {
    %c0 = arith.constant 0 : index
    %c0_0 = arith.constant 0 : index
    %c0_1 = arith.constant 0 : index
    %c0_2 = arith.constant 0 : index
    %0 = vector.load %arg0[%c0, %c0_0, %c0_1, %c0_2] : memref<2x8x8x3xbf16, #tpu.memory_space<vmem>>, vector<2x8x8x3xbf16>
    %cst = arith.constant 0.000000e+00 : bf16
    %1 = vector.broadcast %cst : bf16 to vector<2x1x10x3xbf16>
    %cst_3 = arith.constant 0.000000e+00 : bf16
    %2 = vector.broadcast %cst_3 : bf16 to vector<2x8x1x3xbf16>
    %c0_4 = arith.constant 0 : index
    %c0_5 = arith.constant 0 : index
    %c0_6 = arith.constant 0 : index
    %c0_7 = arith.constant 0 : index
    %3 = vector.load %arg16[%c0_4, %c0_5, %c0_6, %c0_7] : memref<2x10x10x16xbf16, #tpu.memory_space<vmem>>, vector<2x1x10x3xbf16>
    tpu.vector_store %arg16[%c0_4, %c0_5, %c0_6, %c0_7], %1 {strides = array<i32>} : memref<2x10x10x16xbf16, #tpu.memory_space<vmem>>, vector<2x1x10x3xbf16>,
    %c0_8 = arith.constant 0 : index
    %c9 = arith.constant 9 : index
    %c0_9 = arith.constant 0 : index
    %c0_10 = arith.constant 0 : index
    %4 = vector.load %arg16[%c0_8, %c9, %c0_9, %c0_10] : memref<2x10x10x16xbf16, #tpu.memory_space<vmem>>, vector<2x1x10x3xbf16>
    tpu.vector_store %arg16[%c0_8, %c9, %c0_9, %c0_10], %1 {strides = array<i32>} : memref<2x10x10x16xbf16, #tpu.memory_space<vmem>>, vector<2x1x10x3xbf16>,
    %c0_11 = arith.constant 0 : index
    %c1 = arith.constant 1 : index
    %c0_12 = arith.constant 0 : index
    %c0_13 = arith.constant 0 : index
    %5 = vector.load %arg16[%c0_11, %c1, %c0_12, %c0_13] : memref<2x10x10x16xbf16, #tpu.memory_space<vmem>>, vector<2x8x1x3xbf16>
    tpu.vector_store %arg16[%c0_11, %c1, %c0_12, %c0_13], %2 {strides = array<i32>} : memref<2x10x10x16xbf16, #tpu.memory_space<vmem>>, vector<2x8x1x3xbf16>,
    %c0_14 = arith.constant 0 : index
    %c1_15 = arith.constant 1 : index
    %c9_16 = arith.constant 9 : index
    %c0_17 = arith.constant 0 : index
    %6 = vector.load %arg16[%c0_14, %c1_15, %c9_16, %c0_17] : memref<2x10x10x16xbf16, #tpu.memory_space<vmem>>, vector<2x8x1x3xbf16>
    tpu.vector_store %arg16[%c0_14, %c1_15, %c9_16, %c0_17], %2 {strides = array<i32>} : memref<2x10x10x16xbf16, #tpu.memory_space<vmem>>, vector<2x8x1x3xbf16>,
    %c0_18 = arith.constant 0 : index
    %c1_19 = arith.constant 1 : index
    %c1_20 = arith.constant 1 : index
    %c0_21 = arith.constant 0 : index
    %7 = vector.load %arg16[%c0_18, %c1_19, %c1_20, %c0_21] : memref<2x10x10x16xbf16, #tpu.memory_space<vmem>>, vector<2x8x8x3xbf16>
    tpu.vector_store %arg16[%c0_18, %c1_19, %c1_20, %c0_21], %0 {strides = array<i32>} : memref<2x10x10x16xbf16, #tpu.memory_space<vmem>>, vector<2x8x8x3xbf16>,
    %c0_22 = arith.constant 0 : index
    %c0_23 = arith.constant 0 : index
    %c0_24 = arith.constant 0 : index
    %c0_25 = arith.constant 0 : index
    %8 = vector.load %arg16[%c0_22, %c0_23, %c0_24, %c0_25] : memref<2x10x10x16xbf16, #tpu.memory_space<vmem>>, vector<2x8x8x3xbf16>
    %9 = vector.shape_cast %8 : vector<2x8x8x3xbf16> to vector<128x3xbf16>
    %c0_26 = arith.constant 0 : index
    %c0_27 = arith.constant 0 : index
    %c0_28 = arith.constant 0 : index
    %10 = vector.load %arg1[%c0_26, %c0_27, %c0_28] : memref<9x3x8xbf16, #tpu.memory_space<vmem>>, vector<1x3x8xbf16>
    %11 = vector.shape_cast %10 : vector<1x3x8xbf16> to vector<3x8xbf16>
    %cst_29 = arith.constant dense<0.000000e+00> : vector<128x8xf32>
    %12 = tpu.matmul %9, %11, %cst_29 {dimension_numbers = #tpu.dot_dimension_numbers<[1], [0], [0], [1], [0, 0, 1, 1], [], []>} : vector<128x3xbf16>, vector<3x8xbf16>, vector<128x8xf32> -> vector<128x8xf32>
    %c0_30 = arith.constant 0 : index
    %c0_31 = arith.constant 0 : index
    %c1_32 = arith.constant 1 : index
    %c0_33 = arith.constant 0 : index
    %13 = vector.load %arg16[%c0_30, %c0_31, %c1_32, %c0_33] : memref<2x10x10x16xbf16, #tpu.memory_space<vmem>>, vector<2x8x8x3xbf16>
    %14 = vector.shape_cast %13 : vector<2x8x8x3xbf16> to vector<128x3xbf16>
    %c1_34 = arith.constant 1 : index
    %c0_35 = arith.constant 0 : index
    %c0_36 = arith.constant 0 : index
    %15 = vector.load %arg1[%c1_34, %c0_35, %c0_36] : memref<9x3x8xbf16, #tpu.memory_space<vmem>>, vector<1x3x8xbf16>
    %16 = vector.shape_cast %15 : vector<1x3x8xbf16> to vector<3x8xbf16>
    %cst_37 = arith.constant dense<0.000000e+00> : vector<128x8xf32>
    %17 = tpu.matmul %14, %16, %cst_37 {dimension_numbers = #tpu.dot_dimension_numbers<[1], [0], [0], [1], [0, 0, 1, 1], [], []>} : vector<128x3xbf16>, vector<3x8xbf16>, vector<128x8xf32> -> vector<128x8xf32>
    %18 = arith.addf %12, %17 : vector<128x8xf32>
    %c0_38 = arith.constant 0 : index
    %c0_39 = arith.constant 0 : index
    %c2 = arith.constant 2 : index
    %c0_40 = arith.constant 0 : index
    %19 = vector.load %arg16[%c0_38, %c0_39, %c2, %c0_40] : memref<2x10x10x16xbf16, #tpu.memory_space<vmem>>, vector<2x8x8x3xbf16>
    %20 = vector.shape_cast %19 : vector<2x8x8x3xbf16> to vector<128x3xbf16>
    %c2_41 = arith.constant 2 : index
    %c0_42 = arith.constant 0 : index
    %c0_43 = arith.constant 0 : index
    %21 = vector.load %arg1[%c2_41, %c0_42, %c0_43] : memref<9x3x8xbf16, #tpu.memory_space<vmem>>, vector<1x3x8xbf16>
    %22 = vector.shape_cast %21 : vector<1x3x8xbf16> to vector<3x8xbf16>
    %cst_44 = arith.constant dense<0.000000e+00> : vector<128x8xf32>
    %23 = tpu.matmul %20, %22, %cst_44 {dimension_numbers = #tpu.dot_dimension_numbers<[1], [0], [0], [1], [0, 0, 1, 1], [], []>} : vector<128x3xbf16>, vector<3x8xbf16>, vector<128x8xf32> -> vector<128x8xf32>
    %24 = arith.addf %18, %23 : vector<128x8xf32>
    %c0_45 = arith.constant 0 : index
    %c1_46 = arith.constant 1 : index
    %c0_47 = arith.constant 0 : index
    %c0_48 = arith.constant 0 : index
    %25 = vector.load %arg16[%c0_45, %c1_46, %c0_47, %c0_48] : memref<2x10x10x16xbf16, #tpu.memory_space<vmem>>, vector<2x8x8x3xbf16>
    %26 = vector.shape_cast %25 : vector<2x8x8x3xbf16> to vector<128x3xbf16>
    %c3 = arith.constant 3 : index
    %c0_49 = arith.constant 0 : index
    %c0_50 = arith.constant 0 : index
    %27 = vector.load %arg1[%c3, %c0_49, %c0_50] : memref<9x3x8xbf16, #tpu.memory_space<vmem>>, vector<1x3x8xbf16>
    %28 = vector.shape_cast %27 : vector<1x3x8xbf16> to vector<3x8xbf16>
    %cst_51 = arith.constant dense<0.000000e+00> : vector<128x8xf32>
    %29 = tpu.matmul %26, %28, %cst_51 {dimension_numbers = #tpu.dot_dimension_numbers<[1], [0], [0], [1], [0, 0, 1, 1], [], []>} : vector<128x3xbf16>, vector<3x8xbf16>, vector<128x8xf32> -> vector<128x8xf32>
    %30 = arith.addf %24, %29 : vector<128x8xf32>
    %c0_52 = arith.constant 0 : index
    %c1_53 = arith.constant 1 : index
    %c1_54 = arith.constant 1 : index
    %c0_55 = arith.constant 0 : index
    %31 = vector.load %arg16[%c0_52, %c1_53, %c1_54, %c0_55] : memref<2x10x10x16xbf16, #tpu.memory_space<vmem>>, vector<2x8x8x3xbf16>
    %32 = vector.shape_cast %31 : vector<2x8x8x3xbf16> to vector<128x3xbf16>
    %c4 = arith.constant 4 : index
    %c0_56 = arith.constant 0 : index
    %c0_57 = arith.constant 0 : index
    %33 = vector.load %arg1[%c4, %c0_56, %c0_57] : memref<9x3x8xbf16, #tpu.memory_space<vmem>>, vector<1x3x8xbf16>
    %34 = vector.shape_cast %33 : vector<1x3x8xbf16> to vector<3x8xbf16>
    %cst_58 = arith.constant dense<0.000000e+00> : vector<128x8xf32>
    %35 = tpu.matmul %32, %34, %cst_58 {dimension_numbers = #tpu.dot_dimension_numbers<[1], [0], [0], [1], [0, 0, 1, 1], [], []>} : vector<128x3xbf16>, vector<3x8xbf16>, vector<128x8xf32> -> vector<128x8xf32>
    %36 = arith.addf %30, %35 : vector<128x8xf32>
    %c0_59 = arith.constant 0 : index
    %c1_60 = arith.constant 1 : index
    %c2_61 = arith.constant 2 : index
    %c0_62 = arith.constant 0 : index
    %37 = vector.load %arg16[%c0_59, %c1_60, %c2_61, %c0_62] : memref<2x10x10x16xbf16, #tpu.memory_space<vmem>>, vector<2x8x8x3xbf16>
    %38 = vector.shape_cast %37 : vector<2x8x8x3xbf16> to vector<128x3xbf16>
    %c5 = arith.constant 5 : index
    %c0_63 = arith.constant 0 : index
    %c0_64 = arith.constant 0 : index
    %39 = vector.load %arg1[%c5, %c0_63, %c0_64] : memref<9x3x8xbf16, #tpu.memory_space<vmem>>, vector<1x3x8xbf16>
    %40 = vector.shape_cast %39 : vector<1x3x8xbf16> to vector<3x8xbf16>
    %cst_65 = arith.constant dense<0.000000e+00> : vector<128x8xf32>
    %41 = tpu.matmul %38, %40, %cst_65 {dimension_numbers = #tpu.dot_dimension_numbers<[1], [0], [0], [1], [0, 0, 1, 1], [], []>} : vector<128x3xbf16>, vector<3x8xbf16>, vector<128x8xf32> -> vector<128x8xf32>
    %42 = arith.addf %36, %41 : vector<128x8xf32>
    %c0_66 = arith.constant 0 : index
    %c2_67 = arith.constant 2 : index
    %c0_68 = arith.constant 0 : index
    %c0_69 = arith.constant 0 : index
    %43 = vector.load %arg16[%c0_66, %c2_67, %c0_68, %c0_69] : memref<2x10x10x16xbf16, #tpu.memory_space<vmem>>, vector<2x8x8x3xbf16>
    %44 = vector.shape_cast %43 : vector<2x8x8x3xbf16> to vector<128x3xbf16>
    %c6 = arith.constant 6 : index
    %c0_70 = arith.constant 0 : index
    %c0_71 = arith.constant 0 : index
    %45 = vector.load %arg1[%c6, %c0_70, %c0_71] : memref<9x3x8xbf16, #tpu.memory_space<vmem>>, vector<1x3x8xbf16>
    %46 = vector.shape_cast %45 : vector<1x3x8xbf16> to vector<3x8xbf16>
    %cst_72 = arith.constant dense<0.000000e+00> : vector<128x8xf32>
    %47 = tpu.matmul %44, %46, %cst_72 {dimension_numbers = #tpu.dot_dimension_numbers<[1], [0], [0], [1], [0, 0, 1, 1], [], []>} : vector<128x3xbf16>, vector<3x8xbf16>, vector<128x8xf32> -> vector<128x8xf32>
    %48 = arith.addf %42, %47 : vector<128x8xf32>
    %c0_73 = arith.constant 0 : index
    %c2_74 = arith.constant 2 : index
    %c1_75 = arith.constant 1 : index
    %c0_76 = arith.constant 0 : index
    %49 = vector.load %arg16[%c0_73, %c2_74, %c1_75, %c0_76] : memref<2x10x10x16xbf16, #tpu.memory_space<vmem>>, vector<2x8x8x3xbf16>
    %50 = vector.shape_cast %49 : vector<2x8x8x3xbf16> to vector<128x3xbf16>
    %c7 = arith.constant 7 : index
    %c0_77 = arith.constant 0 : index
    %c0_78 = arith.constant 0 : index
    %51 = vector.load %arg1[%c7, %c0_77, %c0_78] : memref<9x3x8xbf16, #tpu.memory_space<vmem>>, vector<1x3x8xbf16>
    %52 = vector.shape_cast %51 : vector<1x3x8xbf16> to vector<3x8xbf16>
    %cst_79 = arith.constant dense<0.000000e+00> : vector<128x8xf32>
    %53 = tpu.matmul %50, %52, %cst_79 {dimension_numbers = #tpu.dot_dimension_numbers<[1], [0], [0], [1], [0, 0, 1, 1], [], []>} : vector<128x3xbf16>, vector<3x8xbf16>, vector<128x8xf32> -> vector<128x8xf32>
    %54 = arith.addf %48, %53 : vector<128x8xf32>
    %c0_80 = arith.constant 0 : index
    %c2_81 = arith.constant 2 : index
    %c2_82 = arith.constant 2 : index
    %c0_83 = arith.constant 0 : index
    %55 = vector.load %arg16[%c0_80, %c2_81, %c2_82, %c0_83] : memref<2x10x10x16xbf16, #tpu.memory_space<vmem>>, vector<2x8x8x3xbf16>
    %56 = vector.shape_cast %55 : vector<2x8x8x3xbf16> to vector<128x3xbf16>
    %c8 = arith.constant 8 : index
    %c0_84 = arith.constant 0 : index
    %c0_85 = arith.constant 0 : index
    %57 = vector.load %arg1[%c8, %c0_84, %c0_85] : memref<9x3x8xbf16, #tpu.memory_space<vmem>>, vector<1x3x8xbf16>
    %58 = vector.shape_cast %57 : vector<1x3x8xbf16> to vector<3x8xbf16>
    %cst_86 = arith.constant dense<0.000000e+00> : vector<128x8xf32>
    %59 = tpu.matmul %56, %58, %cst_86 {dimension_numbers = #tpu.dot_dimension_numbers<[1], [0], [0], [1], [0, 0, 1, 1], [], []>} : vector<128x3xbf16>, vector<3x8xbf16>, vector<128x8xf32> -> vector<128x8xf32>
    %60 = arith.addf %54, %59 : vector<128x8xf32>
    %cst_87 = arith.constant dense<0.000000e+00> : vector<8xf32>
    %61 = vector.multi_reduction <add>, %60, %cst_87 [0] : vector<128x8xf32> to vector<8xf32>
    %62 = vector.shape_cast %61 : vector<8xf32> to vector<1x8xf32>
    %cst_88 = arith.constant 7.812500e-03 : f32
    %63 = vector.broadcast %cst_88 : f32 to vector<1x8xf32>
    %64 = arith.mulf %62, %63 : vector<1x8xf32>
    %65 = vector.broadcast %64 : vector<1x8xf32> to vector<128x8xf32>
    %66 = arith.subf %60, %65 : vector<128x8xf32>
    %67 = arith.mulf %66, %66 : vector<128x8xf32>
    %cst_89 = arith.constant dense<0.000000e+00> : vector<8xf32>
    %68 = vector.multi_reduction <add>, %67, %cst_89 [0] : vector<128x8xf32> to vector<8xf32>
    %69 = vector.shape_cast %68 : vector<8xf32> to vector<1x8xf32>
    %cst_90 = arith.constant 7.812500e-03 : f32
    %70 = vector.broadcast %cst_90 : f32 to vector<1x8xf32>
    %71 = arith.mulf %69, %70 : vector<1x8xf32>
    %c0_91 = arith.constant 0 : index
    %c0_92 = arith.constant 0 : index
    %72 = vector.load %arg2[%c0_91, %c0_92] : memref<1x8xf32, #tpu.memory_space<vmem>>, vector<1x8xf32>
    %cst_93 = arith.constant 9.99999974E-6 : f32
    %73 = vector.broadcast %cst_93 : f32 to vector<1x8xf32>
    %74 = arith.addf %71, %73 : vector<1x8xf32>
    %75 = math.rsqrt %74 : vector<1x8xf32>
    %76 = arith.mulf %72, %75 : vector<1x8xf32>
    %77 = vector.broadcast %76 : vector<1x8xf32> to vector<128x8xf32>
    %78 = arith.mulf %66, %77 : vector<128x8xf32>
    %c0_94 = arith.constant 0 : index
    %c0_95 = arith.constant 0 : index
    %79 = vector.load %arg3[%c0_94, %c0_95] : memref<1x8xf32, #tpu.memory_space<vmem>>, vector<1x8xf32>
    %80 = vector.broadcast %79 : vector<1x8xf32> to vector<128x8xf32>
    %81 = arith.addf %78, %80 : vector<128x8xf32>
    %cst_96 = arith.constant 0.000000e+00 : f32
    %82 = vector.broadcast %cst_96 : f32 to vector<128x8xf32>
    %83 = arith.maximumf %81, %82 : vector<128x8xf32>
    %84 = vector.shape_cast %83 : vector<128x8xf32> to vector<2x8x8x8xf32>
    %85 = arith.truncf %84 : vector<2x8x8x8xf32> to vector<2x8x8x8xbf16>
    %cst_97 = arith.constant 0.000000e+00 : bf16
    %86 = vector.broadcast %cst_97 : bf16 to vector<2x1x10x8xbf16>
    %cst_98 = arith.constant 0.000000e+00 : bf16
    %87 = vector.broadcast %cst_98 : bf16 to vector<2x8x1x8xbf16>
    %c0_99 = arith.constant 0 : index
    %c0_100 = arith.constant 0 : index
    %c0_101 = arith.constant 0 : index
    %c0_102 = arith.constant 0 : index
    %88 = vector.load %arg16[%c0_99, %c0_100, %c0_101, %c0_102] : memref<2x10x10x16xbf16, #tpu.memory_space<vmem>>, vector<2x1x10x8xbf16>
    tpu.vector_store %arg16[%c0_99, %c0_100, %c0_101, %c0_102], %86 {strides = array<i32>} : memref<2x10x10x16xbf16, #tpu.memory_space<vmem>>, vector<2x1x10x8xbf16>,
    %c0_103 = arith.constant 0 : index
    %c9_104 = arith.constant 9 : index
    %c0_105 = arith.constant 0 : index
    %c0_106 = arith.constant 0 : index
    %89 = vector.load %arg16[%c0_103, %c9_104, %c0_105, %c0_106] : memref<2x10x10x16xbf16, #tpu.memory_space<vmem>>, vector<2x1x10x8xbf16>
    tpu.vector_store %arg16[%c0_103, %c9_104, %c0_105, %c0_106], %86 {strides = array<i32>} : memref<2x10x10x16xbf16, #tpu.memory_space<vmem>>, vector<2x1x10x8xbf16>,
    %c0_107 = arith.constant 0 : index
    %c1_108 = arith.constant 1 : index
    %c0_109 = arith.constant 0 : index
    %c0_110 = arith.constant 0 : index
    %90 = vector.load %arg16[%c0_107, %c1_108, %c0_109, %c0_110] : memref<2x10x10x16xbf16, #tpu.memory_space<vmem>>, vector<2x8x1x8xbf16>
    tpu.vector_store %arg16[%c0_107, %c1_108, %c0_109, %c0_110], %87 {strides = array<i32>} : memref<2x10x10x16xbf16, #tpu.memory_space<vmem>>, vector<2x8x1x8xbf16>,
    %c0_111 = arith.constant 0 : index
    %c1_112 = arith.constant 1 : index
    %c9_113 = arith.constant 9 : index
    %c0_114 = arith.constant 0 : index
    %91 = vector.load %arg16[%c0_111, %c1_112, %c9_113, %c0_114] : memref<2x10x10x16xbf16, #tpu.memory_space<vmem>>, vector<2x8x1x8xbf16>
    tpu.vector_store %arg16[%c0_111, %c1_112, %c9_113, %c0_114], %87 {strides = array<i32>} : memref<2x10x10x16xbf16, #tpu.memory_space<vmem>>, vector<2x8x1x8xbf16>,
    %c0_115 = arith.constant 0 : index
    %c1_116 = arith.constant 1 : index
    %c1_117 = arith.constant 1 : index
    %c0_118 = arith.constant 0 : index
    %92 = vector.load %arg16[%c0_115, %c1_116, %c1_117, %c0_118] : memref<2x10x10x16xbf16, #tpu.memory_space<vmem>>, vector<2x8x8x8xbf16>
    tpu.vector_store %arg16[%c0_115, %c1_116, %c1_117, %c0_118], %85 {strides = array<i32>} : memref<2x10x10x16xbf16, #tpu.memory_space<vmem>>, vector<2x8x8x8xbf16>,
    %c0_119 = arith.constant 0 : index
    %c0_120 = arith.constant 0 : index
    %c0_121 = arith.constant 0 : index
    %c0_122 = arith.constant 0 : index
    %93 = vector.load %arg16[%c0_119, %c0_120, %c0_121, %c0_122] : memref<2x10x10x16xbf16, #tpu.memory_space<vmem>>, vector<2x8x8x8xbf16>
    %94 = vector.shape_cast %93 : vector<2x8x8x8xbf16> to vector<128x8xbf16>
    %c0_123 = arith.constant 0 : index
    %c0_124 = arith.constant 0 : index
    %c0_125 = arith.constant 0 : index
    %95 = vector.load %arg4[%c0_123, %c0_124, %c0_125] : memref<9x8x8xbf16, #tpu.memory_space<vmem>>, vector<1x8x8xbf16>
    %96 = vector.shape_cast %95 : vector<1x8x8xbf16> to vector<8x8xbf16>
    %cst_126 = arith.constant dense<0.000000e+00> : vector<128x8xf32>
    %97 = tpu.matmul %94, %96, %cst_126 {dimension_numbers = #tpu.dot_dimension_numbers<[1], [0], [0], [1], [0, 0, 1, 1], [], []>} : vector<128x8xbf16>, vector<8x8xbf16>, vector<128x8xf32> -> vector<128x8xf32>
    %c0_127 = arith.constant 0 : index
    %c0_128 = arith.constant 0 : index
    %c1_129 = arith.constant 1 : index
    %c0_130 = arith.constant 0 : index
    %98 = vector.load %arg16[%c0_127, %c0_128, %c1_129, %c0_130] : memref<2x10x10x16xbf16, #tpu.memory_space<vmem>>, vector<2x8x8x8xbf16>
    %99 = vector.shape_cast %98 : vector<2x8x8x8xbf16> to vector<128x8xbf16>
    %c1_131 = arith.constant 1 : index
    %c0_132 = arith.constant 0 : index
    %c0_133 = arith.constant 0 : index
    %100 = vector.load %arg4[%c1_131, %c0_132, %c0_133] : memref<9x8x8xbf16, #tpu.memory_space<vmem>>, vector<1x8x8xbf16>
    %101 = vector.shape_cast %100 : vector<1x8x8xbf16> to vector<8x8xbf16>
    %cst_134 = arith.constant dense<0.000000e+00> : vector<128x8xf32>
    %102 = tpu.matmul %99, %101, %cst_134 {dimension_numbers = #tpu.dot_dimension_numbers<[1], [0], [0], [1], [0, 0, 1, 1], [], []>} : vector<128x8xbf16>, vector<8x8xbf16>, vector<128x8xf32> -> vector<128x8xf32>
    %103 = arith.addf %97, %102 : vector<128x8xf32>
    %c0_135 = arith.constant 0 : index
    %c0_136 = arith.constant 0 : index
    %c2_137 = arith.constant 2 : index
    %c0_138 = arith.constant 0 : index
    %104 = vector.load %arg16[%c0_135, %c0_136, %c2_137, %c0_138] : memref<2x10x10x16xbf16, #tpu.memory_space<vmem>>, vector<2x8x8x8xbf16>
    %105 = vector.shape_cast %104 : vector<2x8x8x8xbf16> to vector<128x8xbf16>
    %c2_139 = arith.constant 2 : index
    %c0_140 = arith.constant 0 : index
    %c0_141 = arith.constant 0 : index
    %106 = vector.load %arg4[%c2_139, %c0_140, %c0_141] : memref<9x8x8xbf16, #tpu.memory_space<vmem>>, vector<1x8x8xbf16>
    %107 = vector.shape_cast %106 : vector<1x8x8xbf16> to vector<8x8xbf16>
    %cst_142 = arith.constant dense<0.000000e+00> : vector<128x8xf32>
    %108 = tpu.matmul %105, %107, %cst_142 {dimension_numbers = #tpu.dot_dimension_numbers<[1], [0], [0], [1], [0, 0, 1, 1], [], []>} : vector<128x8xbf16>, vector<8x8xbf16>, vector<128x8xf32> -> vector<128x8xf32>
    %109 = arith.addf %103, %108 : vector<128x8xf32>
    %c0_143 = arith.constant 0 : index
    %c1_144 = arith.constant 1 : index
    %c0_145 = arith.constant 0 : index
    %c0_146 = arith.constant 0 : index
    %110 = vector.load %arg16[%c0_143, %c1_144, %c0_145, %c0_146] : memref<2x10x10x16xbf16, #tpu.memory_space<vmem>>, vector<2x8x8x8xbf16>
    %111 = vector.shape_cast %110 : vector<2x8x8x8xbf16> to vector<128x8xbf16>
    %c3_147 = arith.constant 3 : index
    %c0_148 = arith.constant 0 : index
    %c0_149 = arith.constant 0 : index
    %112 = vector.load %arg4[%c3_147, %c0_148, %c0_149] : memref<9x8x8xbf16, #tpu.memory_space<vmem>>, vector<1x8x8xbf16>
    %113 = vector.shape_cast %112 : vector<1x8x8xbf16> to vector<8x8xbf16>
    %cst_150 = arith.constant dense<0.000000e+00> : vector<128x8xf32>
    %114 = tpu.matmul %111, %113, %cst_150 {dimension_numbers = #tpu.dot_dimension_numbers<[1], [0], [0], [1], [0, 0, 1, 1], [], []>} : vector<128x8xbf16>, vector<8x8xbf16>, vector<128x8xf32> -> vector<128x8xf32>
    %115 = arith.addf %109, %114 : vector<128x8xf32>
    %c0_151 = arith.constant 0 : index
    %c1_152 = arith.constant 1 : index
    %c1_153 = arith.constant 1 : index
    %c0_154 = arith.constant 0 : index
    %116 = vector.load %arg16[%c0_151, %c1_152, %c1_153, %c0_154] : memref<2x10x10x16xbf16, #tpu.memory_space<vmem>>, vector<2x8x8x8xbf16>
    %117 = vector.shape_cast %116 : vector<2x8x8x8xbf16> to vector<128x8xbf16>
    %c4_155 = arith.constant 4 : index
    %c0_156 = arith.constant 0 : index
    %c0_157 = arith.constant 0 : index
    %118 = vector.load %arg4[%c4_155, %c0_156, %c0_157] : memref<9x8x8xbf16, #tpu.memory_space<vmem>>, vector<1x8x8xbf16>
    %119 = vector.shape_cast %118 : vector<1x8x8xbf16> to vector<8x8xbf16>
    %cst_158 = arith.constant dense<0.000000e+00> : vector<128x8xf32>
    %120 = tpu.matmul %117, %119, %cst_158 {dimension_numbers = #tpu.dot_dimension_numbers<[1], [0], [0], [1], [0, 0, 1, 1], [], []>} : vector<128x8xbf16>, vector<8x8xbf16>, vector<128x8xf32> -> vector<128x8xf32>
    %121 = arith.addf %115, %120 : vector<128x8xf32>
    %c0_159 = arith.constant 0 : index
    %c1_160 = arith.constant 1 : index
    %c2_161 = arith.constant 2 : index
    %c0_162 = arith.constant 0 : index
    %122 = vector.load %arg16[%c0_159, %c1_160, %c2_161, %c0_162] : memref<2x10x10x16xbf16, #tpu.memory_space<vmem>>, vector<2x8x8x8xbf16>
    %123 = vector.shape_cast %122 : vector<2x8x8x8xbf16> to vector<128x8xbf16>
    %c5_163 = arith.constant 5 : index
    %c0_164 = arith.constant 0 : index
    %c0_165 = arith.constant 0 : index
    %124 = vector.load %arg4[%c5_163, %c0_164, %c0_165] : memref<9x8x8xbf16, #tpu.memory_space<vmem>>, vector<1x8x8xbf16>
    %125 = vector.shape_cast %124 : vector<1x8x8xbf16> to vector<8x8xbf16>
    %cst_166 = arith.constant dense<0.000000e+00> : vector<128x8xf32>
    %126 = tpu.matmul %123, %125, %cst_166 {dimension_numbers = #tpu.dot_dimension_numbers<[1], [0], [0], [1], [0, 0, 1, 1], [], []>} : vector<128x8xbf16>, vector<8x8xbf16>, vector<128x8xf32> -> vector<128x8xf32>
    %127 = arith.addf %121, %126 : vector<128x8xf32>
    %c0_167 = arith.constant 0 : index
    %c2_168 = arith.constant 2 : index
    %c0_169 = arith.constant 0 : index
    %c0_170 = arith.constant 0 : index
    %128 = vector.load %arg16[%c0_167, %c2_168, %c0_169, %c0_170] : memref<2x10x10x16xbf16, #tpu.memory_space<vmem>>, vector<2x8x8x8xbf16>
    %129 = vector.shape_cast %128 : vector<2x8x8x8xbf16> to vector<128x8xbf16>
    %c6_171 = arith.constant 6 : index
    %c0_172 = arith.constant 0 : index
    %c0_173 = arith.constant 0 : index
    %130 = vector.load %arg4[%c6_171, %c0_172, %c0_173] : memref<9x8x8xbf16, #tpu.memory_space<vmem>>, vector<1x8x8xbf16>
    %131 = vector.shape_cast %130 : vector<1x8x8xbf16> to vector<8x8xbf16>
    %cst_174 = arith.constant dense<0.000000e+00> : vector<128x8xf32>
    %132 = tpu.matmul %129, %131, %cst_174 {dimension_numbers = #tpu.dot_dimension_numbers<[1], [0], [0], [1], [0, 0, 1, 1], [], []>} : vector<128x8xbf16>, vector<8x8xbf16>, vector<128x8xf32> -> vector<128x8xf32>
    %133 = arith.addf %127, %132 : vector<128x8xf32>
    %c0_175 = arith.constant 0 : index
    %c2_176 = arith.constant 2 : index
    %c1_177 = arith.constant 1 : index
    %c0_178 = arith.constant 0 : index
    %134 = vector.load %arg16[%c0_175, %c2_176, %c1_177, %c0_178] : memref<2x10x10x16xbf16, #tpu.memory_space<vmem>>, vector<2x8x8x8xbf16>
    %135 = vector.shape_cast %134 : vector<2x8x8x8xbf16> to vector<128x8xbf16>
    %c7_179 = arith.constant 7 : index
    %c0_180 = arith.constant 0 : index
    %c0_181 = arith.constant 0 : index
    %136 = vector.load %arg4[%c7_179, %c0_180, %c0_181] : memref<9x8x8xbf16, #tpu.memory_space<vmem>>, vector<1x8x8xbf16>
    %137 = vector.shape_cast %136 : vector<1x8x8xbf16> to vector<8x8xbf16>
    %cst_182 = arith.constant dense<0.000000e+00> : vector<128x8xf32>
    %138 = tpu.matmul %135, %137, %cst_182 {dimension_numbers = #tpu.dot_dimension_numbers<[1], [0], [0], [1], [0, 0, 1, 1], [], []>} : vector<128x8xbf16>, vector<8x8xbf16>, vector<128x8xf32> -> vector<128x8xf32>
    %139 = arith.addf %133, %138 : vector<128x8xf32>
    %c0_183 = arith.constant 0 : index
    %c2_184 = arith.constant 2 : index
    %c2_185 = arith.constant 2 : index
    %c0_186 = arith.constant 0 : index
    %140 = vector.load %arg16[%c0_183, %c2_184, %c2_185, %c0_186] : memref<2x10x10x16xbf16, #tpu.memory_space<vmem>>, vector<2x8x8x8xbf16>
    %141 = vector.shape_cast %140 : vector<2x8x8x8xbf16> to vector<128x8xbf16>
    %c8_187 = arith.constant 8 : index
    %c0_188 = arith.constant 0 : index
    %c0_189 = arith.constant 0 : index
    %142 = vector.load %arg4[%c8_187, %c0_188, %c0_189] : memref<9x8x8xbf16, #tpu.memory_space<vmem>>, vector<1x8x8xbf16>
    %143 = vector.shape_cast %142 : vector<1x8x8xbf16> to vector<8x8xbf16>
    %cst_190 = arith.constant dense<0.000000e+00> : vector<128x8xf32>
    %144 = tpu.matmul %141, %143, %cst_190 {dimension_numbers = #tpu.dot_dimension_numbers<[1], [0], [0], [1], [0, 0, 1, 1], [], []>} : vector<128x8xbf16>, vector<8x8xbf16>, vector<128x8xf32> -> vector<128x8xf32>
    %145 = arith.addf %139, %144 : vector<128x8xf32>
    %cst_191 = arith.constant dense<0.000000e+00> : vector<8xf32>
    %146 = vector.multi_reduction <add>, %145, %cst_191 [0] : vector<128x8xf32> to vector<8xf32>
    %147 = vector.shape_cast %146 : vector<8xf32> to vector<1x8xf32>
    %cst_192 = arith.constant 7.812500e-03 : f32
    %148 = vector.broadcast %cst_192 : f32 to vector<1x8xf32>
    %149 = arith.mulf %147, %148 : vector<1x8xf32>
    %150 = vector.broadcast %149 : vector<1x8xf32> to vector<128x8xf32>
    %151 = arith.subf %145, %150 : vector<128x8xf32>
    %152 = arith.mulf %151, %151 : vector<128x8xf32>
    %cst_193 = arith.constant dense<0.000000e+00> : vector<8xf32>
    %153 = vector.multi_reduction <add>, %152, %cst_193 [0] : vector<128x8xf32> to vector<8xf32>
    %154 = vector.shape_cast %153 : vector<8xf32> to vector<1x8xf32>
    %cst_194 = arith.constant 7.812500e-03 : f32
    %155 = vector.broadcast %cst_194 : f32 to vector<1x8xf32>
    %156 = arith.mulf %154, %155 : vector<1x8xf32>
    %c0_195 = arith.constant 0 : index
    %c0_196 = arith.constant 0 : index
    %157 = vector.load %arg5[%c0_195, %c0_196] : memref<1x8xf32, #tpu.memory_space<vmem>>, vector<1x8xf32>
    %cst_197 = arith.constant 9.99999974E-6 : f32
    %158 = vector.broadcast %cst_197 : f32 to vector<1x8xf32>
    %159 = arith.addf %156, %158 : vector<1x8xf32>
    %160 = math.rsqrt %159 : vector<1x8xf32>
    %161 = arith.mulf %157, %160 : vector<1x8xf32>
    %162 = vector.broadcast %161 : vector<1x8xf32> to vector<128x8xf32>
    %163 = arith.mulf %151, %162 : vector<128x8xf32>
    %c0_198 = arith.constant 0 : index
    %c0_199 = arith.constant 0 : index
    %164 = vector.load %arg6[%c0_198, %c0_199] : memref<1x8xf32, #tpu.memory_space<vmem>>, vector<1x8xf32>
    %165 = vector.broadcast %164 : vector<1x8xf32> to vector<128x8xf32>
    %166 = arith.addf %163, %165 : vector<128x8xf32>
    %cst_200 = arith.constant 0.000000e+00 : f32
    %167 = vector.broadcast %cst_200 : f32 to vector<128x8xf32>
    %168 = arith.maximumf %166, %167 : vector<128x8xf32>
    %169 = vector.shape_cast %168 : vector<128x8xf32> to vector<2x8x8x8xf32>
    %170 = vector.shape_cast %169 : vector<2x8x8x8xf32> to vector<2x8x4x2x8xf32>
    %171 = vector.extract_strided_slice %170 {offsets = [0, 0, 0, 0, 0], sizes = [2, 8, 4, 1, 8], strides = [1, 1, 1, 1, 1]} : vector<2x8x4x2x8xf32> to vector<2x8x4x1x8xf32>
    %172 = vector.shape_cast %171 : vector<2x8x4x1x8xf32> to vector<2x8x4x8xf32>
    %173 = vector.extract_strided_slice %170 {offsets = [0, 0, 0, 1, 0], sizes = [2, 8, 4, 1, 8], strides = [1, 1, 1, 1, 1]} : vector<2x8x4x2x8xf32> to vector<2x8x4x1x8xf32>
    %174 = vector.shape_cast %173 : vector<2x8x4x1x8xf32> to vector<2x8x4x8xf32>
    %175 = arith.maximumf %172, %174 : vector<2x8x4x8xf32>
    %176 = vector.shape_cast %175 : vector<2x8x4x8xf32> to vector<2x4x2x4x8xf32>
    %177 = vector.extract_strided_slice %176 {offsets = [0, 0, 0, 0, 0], sizes = [2, 4, 1, 4, 8], strides = [1, 1, 1, 1, 1]} : vector<2x4x2x4x8xf32> to vector<2x4x1x4x8xf32>
    %178 = vector.shape_cast %177 : vector<2x4x1x4x8xf32> to vector<2x4x4x8xf32>
    %179 = vector.extract_strided_slice %176 {offsets = [0, 0, 1, 0, 0], sizes = [2, 4, 1, 4, 8], strides = [1, 1, 1, 1, 1]} : vector<2x4x2x4x8xf32> to vector<2x4x1x4x8xf32>
    %180 = vector.shape_cast %179 : vector<2x4x1x4x8xf32> to vector<2x4x4x8xf32>
    %181 = arith.maximumf %178, %180 : vector<2x4x4x8xf32>
    %182 = arith.truncf %181 : vector<2x4x4x8xf32> to vector<2x4x4x8xbf16>
    %cst_201 = arith.constant 0.000000e+00 : bf16
    %183 = vector.broadcast %cst_201 : bf16 to vector<2x1x6x8xbf16>
    %cst_202 = arith.constant 0.000000e+00 : bf16
    %184 = vector.broadcast %cst_202 : bf16 to vector<2x4x1x8xbf16>
    %c0_203 = arith.constant 0 : index
    %c0_204 = arith.constant 0 : index
    %c0_205 = arith.constant 0 : index
    %c0_206 = arith.constant 0 : index
    %185 = vector.load %arg16[%c0_203, %c0_204, %c0_205, %c0_206] : memref<2x10x10x16xbf16, #tpu.memory_space<vmem>>, vector<2x1x6x8xbf16>
    tpu.vector_store %arg16[%c0_203, %c0_204, %c0_205, %c0_206], %183 {strides = array<i32>} : memref<2x10x10x16xbf16, #tpu.memory_space<vmem>>, vector<2x1x6x8xbf16>,
    %c0_207 = arith.constant 0 : index
    %c5_208 = arith.constant 5 : index
    %c0_209 = arith.constant 0 : index
    %c0_210 = arith.constant 0 : index
    %186 = vector.load %arg16[%c0_207, %c5_208, %c0_209, %c0_210] : memref<2x10x10x16xbf16, #tpu.memory_space<vmem>>, vector<2x1x6x8xbf16>
    tpu.vector_store %arg16[%c0_207, %c5_208, %c0_209, %c0_210], %183 {strides = array<i32>} : memref<2x10x10x16xbf16, #tpu.memory_space<vmem>>, vector<2x1x6x8xbf16>,
    %c0_211 = arith.constant 0 : index
    %c1_212 = arith.constant 1 : index
    %c0_213 = arith.constant 0 : index
    %c0_214 = arith.constant 0 : index
    %187 = vector.load %arg16[%c0_211, %c1_212, %c0_213, %c0_214] : memref<2x10x10x16xbf16, #tpu.memory_space<vmem>>, vector<2x4x1x8xbf16>
    tpu.vector_store %arg16[%c0_211, %c1_212, %c0_213, %c0_214], %184 {strides = array<i32>} : memref<2x10x10x16xbf16, #tpu.memory_space<vmem>>, vector<2x4x1x8xbf16>,
    %c0_215 = arith.constant 0 : index
    %c1_216 = arith.constant 1 : index
    %c5_217 = arith.constant 5 : index
    %c0_218 = arith.constant 0 : index
    %188 = vector.load %arg16[%c0_215, %c1_216, %c5_217, %c0_218] : memref<2x10x10x16xbf16, #tpu.memory_space<vmem>>, vector<2x4x1x8xbf16>
    tpu.vector_store %arg16[%c0_215, %c1_216, %c5_217, %c0_218], %184 {strides = array<i32>} : memref<2x10x10x16xbf16, #tpu.memory_space<vmem>>, vector<2x4x1x8xbf16>,
    %c0_219 = arith.constant 0 : index
    %c1_220 = arith.constant 1 : index
    %c1_221 = arith.constant 1 : index
    %c0_222 = arith.constant 0 : index
    %189 = vector.load %arg16[%c0_219, %c1_220, %c1_221, %c0_222] : memref<2x10x10x16xbf16, #tpu.memory_space<vmem>>, vector<2x4x4x8xbf16>
    tpu.vector_store %arg16[%c0_219, %c1_220, %c1_221, %c0_222], %182 {strides = array<i32>} : memref<2x10x10x16xbf16, #tpu.memory_space<vmem>>, vector<2x4x4x8xbf16>,
    %c0_223 = arith.constant 0 : index
    %c0_224 = arith.constant 0 : index
    %c0_225 = arith.constant 0 : index
    %c0_226 = arith.constant 0 : index
    %190 = vector.load %arg16[%c0_223, %c0_224, %c0_225, %c0_226] : memref<2x10x10x16xbf16, #tpu.memory_space<vmem>>, vector<2x4x4x8xbf16>
    %191 = vector.shape_cast %190 : vector<2x4x4x8xbf16> to vector<32x8xbf16>
    %c0_227 = arith.constant 0 : index
    %c0_228 = arith.constant 0 : index
    %c0_229 = arith.constant 0 : index
    %192 = vector.load %arg7[%c0_227, %c0_228, %c0_229] : memref<9x8x16xbf16, #tpu.memory_space<vmem>>, vector<1x8x16xbf16>
    %193 = vector.shape_cast %192 : vector<1x8x16xbf16> to vector<8x16xbf16>
    %cst_230 = arith.constant dense<0.000000e+00> : vector<32x16xf32>
    %194 = tpu.matmul %191, %193, %cst_230 {dimension_numbers = #tpu.dot_dimension_numbers<[1], [0], [0], [1], [0, 0, 1, 1], [], []>} : vector<32x8xbf16>, vector<8x16xbf16>, vector<32x16xf32> -> vector<32x16xf32>
    %c0_231 = arith.constant 0 : index
    %c0_232 = arith.constant 0 : index
    %c1_233 = arith.constant 1 : index
    %c0_234 = arith.constant 0 : index
    %195 = vector.load %arg16[%c0_231, %c0_232, %c1_233, %c0_234] : memref<2x10x10x16xbf16, #tpu.memory_space<vmem>>, vector<2x4x4x8xbf16>
    %196 = vector.shape_cast %195 : vector<2x4x4x8xbf16> to vector<32x8xbf16>
    %c1_235 = arith.constant 1 : index
    %c0_236 = arith.constant 0 : index
    %c0_237 = arith.constant 0 : index
    %197 = vector.load %arg7[%c1_235, %c0_236, %c0_237] : memref<9x8x16xbf16, #tpu.memory_space<vmem>>, vector<1x8x16xbf16>
    %198 = vector.shape_cast %197 : vector<1x8x16xbf16> to vector<8x16xbf16>
    %cst_238 = arith.constant dense<0.000000e+00> : vector<32x16xf32>
    %199 = tpu.matmul %196, %198, %cst_238 {dimension_numbers = #tpu.dot_dimension_numbers<[1], [0], [0], [1], [0, 0, 1, 1], [], []>} : vector<32x8xbf16>, vector<8x16xbf16>, vector<32x16xf32> -> vector<32x16xf32>
    %200 = arith.addf %194, %199 : vector<32x16xf32>
    %c0_239 = arith.constant 0 : index
    %c0_240 = arith.constant 0 : index
    %c2_241 = arith.constant 2 : index
    %c0_242 = arith.constant 0 : index
    %201 = vector.load %arg16[%c0_239, %c0_240, %c2_241, %c0_242] : memref<2x10x10x16xbf16, #tpu.memory_space<vmem>>, vector<2x4x4x8xbf16>
    %202 = vector.shape_cast %201 : vector<2x4x4x8xbf16> to vector<32x8xbf16>
    %c2_243 = arith.constant 2 : index
    %c0_244 = arith.constant 0 : index
    %c0_245 = arith.constant 0 : index
    %203 = vector.load %arg7[%c2_243, %c0_244, %c0_245] : memref<9x8x16xbf16, #tpu.memory_space<vmem>>, vector<1x8x16xbf16>
    %204 = vector.shape_cast %203 : vector<1x8x16xbf16> to vector<8x16xbf16>
    %cst_246 = arith.constant dense<0.000000e+00> : vector<32x16xf32>
    %205 = tpu.matmul %202, %204, %cst_246 {dimension_numbers = #tpu.dot_dimension_numbers<[1], [0], [0], [1], [0, 0, 1, 1], [], []>} : vector<32x8xbf16>, vector<8x16xbf16>, vector<32x16xf32> -> vector<32x16xf32>
    %206 = arith.addf %200, %205 : vector<32x16xf32>
    %c0_247 = arith.constant 0 : index
    %c1_248 = arith.constant 1 : index
    %c0_249 = arith.constant 0 : index
    %c0_250 = arith.constant 0 : index
    %207 = vector.load %arg16[%c0_247, %c1_248, %c0_249, %c0_250] : memref<2x10x10x16xbf16, #tpu.memory_space<vmem>>, vector<2x4x4x8xbf16>
    %208 = vector.shape_cast %207 : vector<2x4x4x8xbf16> to vector<32x8xbf16>
    %c3_251 = arith.constant 3 : index
    %c0_252 = arith.constant 0 : index
    %c0_253 = arith.constant 0 : index
    %209 = vector.load %arg7[%c3_251, %c0_252, %c0_253] : memref<9x8x16xbf16, #tpu.memory_space<vmem>>, vector<1x8x16xbf16>
    %210 = vector.shape_cast %209 : vector<1x8x16xbf16> to vector<8x16xbf16>
    %cst_254 = arith.constant dense<0.000000e+00> : vector<32x16xf32>
    %211 = tpu.matmul %208, %210, %cst_254 {dimension_numbers = #tpu.dot_dimension_numbers<[1], [0], [0], [1], [0, 0, 1, 1], [], []>} : vector<32x8xbf16>, vector<8x16xbf16>, vector<32x16xf32> -> vector<32x16xf32>
    %212 = arith.addf %206, %211 : vector<32x16xf32>
    %c0_255 = arith.constant 0 : index
    %c1_256 = arith.constant 1 : index
    %c1_257 = arith.constant 1 : index
    %c0_258 = arith.constant 0 : index
    %213 = vector.load %arg16[%c0_255, %c1_256, %c1_257, %c0_258] : memref<2x10x10x16xbf16, #tpu.memory_space<vmem>>, vector<2x4x4x8xbf16>
    %214 = vector.shape_cast %213 : vector<2x4x4x8xbf16> to vector<32x8xbf16>
    %c4_259 = arith.constant 4 : index
    %c0_260 = arith.constant 0 : index
    %c0_261 = arith.constant 0 : index
    %215 = vector.load %arg7[%c4_259, %c0_260, %c0_261] : memref<9x8x16xbf16, #tpu.memory_space<vmem>>, vector<1x8x16xbf16>
    %216 = vector.shape_cast %215 : vector<1x8x16xbf16> to vector<8x16xbf16>
    %cst_262 = arith.constant dense<0.000000e+00> : vector<32x16xf32>
    %217 = tpu.matmul %214, %216, %cst_262 {dimension_numbers = #tpu.dot_dimension_numbers<[1], [0], [0], [1], [0, 0, 1, 1], [], []>} : vector<32x8xbf16>, vector<8x16xbf16>, vector<32x16xf32> -> vector<32x16xf32>
    %218 = arith.addf %212, %217 : vector<32x16xf32>
    %c0_263 = arith.constant 0 : index
    %c1_264 = arith.constant 1 : index
    %c2_265 = arith.constant 2 : index
    %c0_266 = arith.constant 0 : index
    %219 = vector.load %arg16[%c0_263, %c1_264, %c2_265, %c0_266] : memref<2x10x10x16xbf16, #tpu.memory_space<vmem>>, vector<2x4x4x8xbf16>
    %220 = vector.shape_cast %219 : vector<2x4x4x8xbf16> to vector<32x8xbf16>
    %c5_267 = arith.constant 5 : index
    %c0_268 = arith.constant 0 : index
    %c0_269 = arith.constant 0 : index
    %221 = vector.load %arg7[%c5_267, %c0_268, %c0_269] : memref<9x8x16xbf16, #tpu.memory_space<vmem>>, vector<1x8x16xbf16>
    %222 = vector.shape_cast %221 : vector<1x8x16xbf16> to vector<8x16xbf16>
    %cst_270 = arith.constant dense<0.000000e+00> : vector<32x16xf32>
    %223 = tpu.matmul %220, %222, %cst_270 {dimension_numbers = #tpu.dot_dimension_numbers<[1], [0], [0], [1], [0, 0, 1, 1], [], []>} : vector<32x8xbf16>, vector<8x16xbf16>, vector<32x16xf32> -> vector<32x16xf32>
    %224 = arith.addf %218, %223 : vector<32x16xf32>
    %c0_271 = arith.constant 0 : index
    %c2_272 = arith.constant 2 : index
    %c0_273 = arith.constant 0 : index
    %c0_274 = arith.constant 0 : index
    %225 = vector.load %arg16[%c0_271, %c2_272, %c0_273, %c0_274] : memref<2x10x10x16xbf16, #tpu.memory_space<vmem>>, vector<2x4x4x8xbf16>
    %226 = vector.shape_cast %225 : vector<2x4x4x8xbf16> to vector<32x8xbf16>
    %c6_275 = arith.constant 6 : index
    %c0_276 = arith.constant 0 : index
    %c0_277 = arith.constant 0 : index
    %227 = vector.load %arg7[%c6_275, %c0_276, %c0_277] : memref<9x8x16xbf16, #tpu.memory_space<vmem>>, vector<1x8x16xbf16>
    %228 = vector.shape_cast %227 : vector<1x8x16xbf16> to vector<8x16xbf16>
    %cst_278 = arith.constant dense<0.000000e+00> : vector<32x16xf32>
    %229 = tpu.matmul %226, %228, %cst_278 {dimension_numbers = #tpu.dot_dimension_numbers<[1], [0], [0], [1], [0, 0, 1, 1], [], []>} : vector<32x8xbf16>, vector<8x16xbf16>, vector<32x16xf32> -> vector<32x16xf32>
    %230 = arith.addf %224, %229 : vector<32x16xf32>
    %c0_279 = arith.constant 0 : index
    %c2_280 = arith.constant 2 : index
    %c1_281 = arith.constant 1 : index
    %c0_282 = arith.constant 0 : index
    %231 = vector.load %arg16[%c0_279, %c2_280, %c1_281, %c0_282] : memref<2x10x10x16xbf16, #tpu.memory_space<vmem>>, vector<2x4x4x8xbf16>
    %232 = vector.shape_cast %231 : vector<2x4x4x8xbf16> to vector<32x8xbf16>
    %c7_283 = arith.constant 7 : index
    %c0_284 = arith.constant 0 : index
    %c0_285 = arith.constant 0 : index
    %233 = vector.load %arg7[%c7_283, %c0_284, %c0_285] : memref<9x8x16xbf16, #tpu.memory_space<vmem>>, vector<1x8x16xbf16>
    %234 = vector.shape_cast %233 : vector<1x8x16xbf16> to vector<8x16xbf16>
    %cst_286 = arith.constant dense<0.000000e+00> : vector<32x16xf32>
    %235 = tpu.matmul %232, %234, %cst_286 {dimension_numbers = #tpu.dot_dimension_numbers<[1], [0], [0], [1], [0, 0, 1, 1], [], []>} : vector<32x8xbf16>, vector<8x16xbf16>, vector<32x16xf32> -> vector<32x16xf32>
    %236 = arith.addf %230, %235 : vector<32x16xf32>
    %c0_287 = arith.constant 0 : index
    %c2_288 = arith.constant 2 : index
    %c2_289 = arith.constant 2 : index
    %c0_290 = arith.constant 0 : index
    %237 = vector.load %arg16[%c0_287, %c2_288, %c2_289, %c0_290] : memref<2x10x10x16xbf16, #tpu.memory_space<vmem>>, vector<2x4x4x8xbf16>
    %238 = vector.shape_cast %237 : vector<2x4x4x8xbf16> to vector<32x8xbf16>
    %c8_291 = arith.constant 8 : index
    %c0_292 = arith.constant 0 : index
    %c0_293 = arith.constant 0 : index
    %239 = vector.load %arg7[%c8_291, %c0_292, %c0_293] : memref<9x8x16xbf16, #tpu.memory_space<vmem>>, vector<1x8x16xbf16>
    %240 = vector.shape_cast %239 : vector<1x8x16xbf16> to vector<8x16xbf16>
    %cst_294 = arith.constant dense<0.000000e+00> : vector<32x16xf32>
    %241 = tpu.matmul %238, %240, %cst_294 {dimension_numbers = #tpu.dot_dimension_numbers<[1], [0], [0], [1], [0, 0, 1, 1], [], []>} : vector<32x8xbf16>, vector<8x16xbf16>, vector<32x16xf32> -> vector<32x16xf32>
    %242 = arith.addf %236, %241 : vector<32x16xf32>
    %cst_295 = arith.constant dense<0.000000e+00> : vector<16xf32>
    %243 = vector.multi_reduction <add>, %242, %cst_295 [0] : vector<32x16xf32> to vector<16xf32>
    %244 = vector.shape_cast %243 : vector<16xf32> to vector<1x16xf32>
    %cst_296 = arith.constant 3.125000e-02 : f32
    %245 = vector.broadcast %cst_296 : f32 to vector<1x16xf32>
    %246 = arith.mulf %244, %245 : vector<1x16xf32>
    %247 = vector.broadcast %246 : vector<1x16xf32> to vector<32x16xf32>
    %248 = arith.subf %242, %247 : vector<32x16xf32>
    %249 = arith.mulf %248, %248 : vector<32x16xf32>
    %cst_297 = arith.constant dense<0.000000e+00> : vector<16xf32>
    %250 = vector.multi_reduction <add>, %249, %cst_297 [0] : vector<32x16xf32> to vector<16xf32>
    %251 = vector.shape_cast %250 : vector<16xf32> to vector<1x16xf32>
    %cst_298 = arith.constant 3.125000e-02 : f32
    %252 = vector.broadcast %cst_298 : f32 to vector<1x16xf32>
    %253 = arith.mulf %251, %252 : vector<1x16xf32>
    %c0_299 = arith.constant 0 : index
    %c0_300 = arith.constant 0 : index
    %254 = vector.load %arg8[%c0_299, %c0_300] : memref<1x16xf32, #tpu.memory_space<vmem>>, vector<1x16xf32>
    %cst_301 = arith.constant 9.99999974E-6 : f32
    %255 = vector.broadcast %cst_301 : f32 to vector<1x16xf32>
    %256 = arith.addf %253, %255 : vector<1x16xf32>
    %257 = math.rsqrt %256 : vector<1x16xf32>
    %258 = arith.mulf %254, %257 : vector<1x16xf32>
    %259 = vector.broadcast %258 : vector<1x16xf32> to vector<32x16xf32>
    %260 = arith.mulf %248, %259 : vector<32x16xf32>
    %c0_302 = arith.constant 0 : index
    %c0_303 = arith.constant 0 : index
    %261 = vector.load %arg9[%c0_302, %c0_303] : memref<1x16xf32, #tpu.memory_space<vmem>>, vector<1x16xf32>
    %262 = vector.broadcast %261 : vector<1x16xf32> to vector<32x16xf32>
    %263 = arith.addf %260, %262 : vector<32x16xf32>
    %cst_304 = arith.constant 0.000000e+00 : f32
    %264 = vector.broadcast %cst_304 : f32 to vector<32x16xf32>
    %265 = arith.maximumf %263, %264 : vector<32x16xf32>
    %266 = vector.shape_cast %265 : vector<32x16xf32> to vector<2x4x4x16xf32>
    %267 = vector.shape_cast %266 : vector<2x4x4x16xf32> to vector<2x4x2x2x16xf32>
    %268 = vector.extract_strided_slice %267 {offsets = [0, 0, 0, 0, 0], sizes = [2, 4, 2, 1, 16], strides = [1, 1, 1, 1, 1]} : vector<2x4x2x2x16xf32> to vector<2x4x2x1x16xf32>
    %269 = vector.shape_cast %268 : vector<2x4x2x1x16xf32> to vector<2x4x2x16xf32>
    %270 = vector.extract_strided_slice %267 {offsets = [0, 0, 0, 1, 0], sizes = [2, 4, 2, 1, 16], strides = [1, 1, 1, 1, 1]} : vector<2x4x2x2x16xf32> to vector<2x4x2x1x16xf32>
    %271 = vector.shape_cast %270 : vector<2x4x2x1x16xf32> to vector<2x4x2x16xf32>
    %272 = arith.maximumf %269, %271 : vector<2x4x2x16xf32>
    %273 = vector.shape_cast %272 : vector<2x4x2x16xf32> to vector<2x2x2x2x16xf32>
    %274 = vector.extract_strided_slice %273 {offsets = [0, 0, 0, 0, 0], sizes = [2, 2, 1, 2, 16], strides = [1, 1, 1, 1, 1]} : vector<2x2x2x2x16xf32> to vector<2x2x1x2x16xf32>
    %275 = vector.shape_cast %274 : vector<2x2x1x2x16xf32> to vector<2x2x2x16xf32>
    %276 = vector.extract_strided_slice %273 {offsets = [0, 0, 1, 0, 0], sizes = [2, 2, 1, 2, 16], strides = [1, 1, 1, 1, 1]} : vector<2x2x2x2x16xf32> to vector<2x2x1x2x16xf32>
    %277 = vector.shape_cast %276 : vector<2x2x1x2x16xf32> to vector<2x2x2x16xf32>
    %278 = arith.maximumf %275, %277 : vector<2x2x2x16xf32>
    %279 = arith.truncf %278 : vector<2x2x2x16xf32> to vector<2x2x2x16xbf16>
    %cst_305 = arith.constant 0.000000e+00 : bf16
    %280 = vector.broadcast %cst_305 : bf16 to vector<2x1x4x16xbf16>
    %cst_306 = arith.constant 0.000000e+00 : bf16
    %281 = vector.broadcast %cst_306 : bf16 to vector<2x2x1x16xbf16>
    %c0_307 = arith.constant 0 : index
    %c0_308 = arith.constant 0 : index
    %c0_309 = arith.constant 0 : index
    %c0_310 = arith.constant 0 : index
    %282 = vector.load %arg16[%c0_307, %c0_308, %c0_309, %c0_310] : memref<2x10x10x16xbf16, #tpu.memory_space<vmem>>, vector<2x1x4x16xbf16>
    tpu.vector_store %arg16[%c0_307, %c0_308, %c0_309, %c0_310], %280 {strides = array<i32>} : memref<2x10x10x16xbf16, #tpu.memory_space<vmem>>, vector<2x1x4x16xbf16>,
    %c0_311 = arith.constant 0 : index
    %c3_312 = arith.constant 3 : index
    %c0_313 = arith.constant 0 : index
    %c0_314 = arith.constant 0 : index
    %283 = vector.load %arg16[%c0_311, %c3_312, %c0_313, %c0_314] : memref<2x10x10x16xbf16, #tpu.memory_space<vmem>>, vector<2x1x4x16xbf16>
    tpu.vector_store %arg16[%c0_311, %c3_312, %c0_313, %c0_314], %280 {strides = array<i32>} : memref<2x10x10x16xbf16, #tpu.memory_space<vmem>>, vector<2x1x4x16xbf16>,
    %c0_315 = arith.constant 0 : index
    %c1_316 = arith.constant 1 : index
    %c0_317 = arith.constant 0 : index
    %c0_318 = arith.constant 0 : index
    %284 = vector.load %arg16[%c0_315, %c1_316, %c0_317, %c0_318] : memref<2x10x10x16xbf16, #tpu.memory_space<vmem>>, vector<2x2x1x16xbf16>
    tpu.vector_store %arg16[%c0_315, %c1_316, %c0_317, %c0_318], %281 {strides = array<i32>} : memref<2x10x10x16xbf16, #tpu.memory_space<vmem>>, vector<2x2x1x16xbf16>,
    %c0_319 = arith.constant 0 : index
    %c1_320 = arith.constant 1 : index
    %c3_321 = arith.constant 3 : index
    %c0_322 = arith.constant 0 : index
    %285 = vector.load %arg16[%c0_319, %c1_320, %c3_321, %c0_322] : memref<2x10x10x16xbf16, #tpu.memory_space<vmem>>, vector<2x2x1x16xbf16>
    tpu.vector_store %arg16[%c0_319, %c1_320, %c3_321, %c0_322], %281 {strides = array<i32>} : memref<2x10x10x16xbf16, #tpu.memory_space<vmem>>, vector<2x2x1x16xbf16>,
    %c0_323 = arith.constant 0 : index
    %c1_324 = arith.constant 1 : index
    %c1_325 = arith.constant 1 : index
    %c0_326 = arith.constant 0 : index
    %286 = vector.load %arg16[%c0_323, %c1_324, %c1_325, %c0_326] : memref<2x10x10x16xbf16, #tpu.memory_space<vmem>>, vector<2x2x2x16xbf16>
    tpu.vector_store %arg16[%c0_323, %c1_324, %c1_325, %c0_326], %279 {strides = array<i32>} : memref<2x10x10x16xbf16, #tpu.memory_space<vmem>>, vector<2x2x2x16xbf16>,
    %c0_327 = arith.constant 0 : index
    %c0_328 = arith.constant 0 : index
    %c0_329 = arith.constant 0 : index
    %c0_330 = arith.constant 0 : index
    %287 = vector.load %arg16[%c0_327, %c0_328, %c0_329, %c0_330] : memref<2x10x10x16xbf16, #tpu.memory_space<vmem>>, vector<2x2x2x16xbf16>
    %288 = vector.shape_cast %287 : vector<2x2x2x16xbf16> to vector<8x16xbf16>
    %c0_331 = arith.constant 0 : index
    %c0_332 = arith.constant 0 : index
    %c0_333 = arith.constant 0 : index
    %289 = vector.load %arg10[%c0_331, %c0_332, %c0_333] : memref<9x16x32xbf16, #tpu.memory_space<vmem>>, vector<1x16x32xbf16>
    %290 = vector.shape_cast %289 : vector<1x16x32xbf16> to vector<16x32xbf16>
    %cst_334 = arith.constant dense<0.000000e+00> : vector<8x32xf32>
    %291 = tpu.matmul %288, %290, %cst_334 {dimension_numbers = #tpu.dot_dimension_numbers<[1], [0], [0], [1], [0, 0, 1, 1], [], []>} : vector<8x16xbf16>, vector<16x32xbf16>, vector<8x32xf32> -> vector<8x32xf32>
    %c0_335 = arith.constant 0 : index
    %c0_336 = arith.constant 0 : index
    %c1_337 = arith.constant 1 : index
    %c0_338 = arith.constant 0 : index
    %292 = vector.load %arg16[%c0_335, %c0_336, %c1_337, %c0_338] : memref<2x10x10x16xbf16, #tpu.memory_space<vmem>>, vector<2x2x2x16xbf16>
    %293 = vector.shape_cast %292 : vector<2x2x2x16xbf16> to vector<8x16xbf16>
    %c1_339 = arith.constant 1 : index
    %c0_340 = arith.constant 0 : index
    %c0_341 = arith.constant 0 : index
    %294 = vector.load %arg10[%c1_339, %c0_340, %c0_341] : memref<9x16x32xbf16, #tpu.memory_space<vmem>>, vector<1x16x32xbf16>
    %295 = vector.shape_cast %294 : vector<1x16x32xbf16> to vector<16x32xbf16>
    %cst_342 = arith.constant dense<0.000000e+00> : vector<8x32xf32>
    %296 = tpu.matmul %293, %295, %cst_342 {dimension_numbers = #tpu.dot_dimension_numbers<[1], [0], [0], [1], [0, 0, 1, 1], [], []>} : vector<8x16xbf16>, vector<16x32xbf16>, vector<8x32xf32> -> vector<8x32xf32>
    %297 = arith.addf %291, %296 : vector<8x32xf32>
    %c0_343 = arith.constant 0 : index
    %c0_344 = arith.constant 0 : index
    %c2_345 = arith.constant 2 : index
    %c0_346 = arith.constant 0 : index
    %298 = vector.load %arg16[%c0_343, %c0_344, %c2_345, %c0_346] : memref<2x10x10x16xbf16, #tpu.memory_space<vmem>>, vector<2x2x2x16xbf16>
    %299 = vector.shape_cast %298 : vector<2x2x2x16xbf16> to vector<8x16xbf16>
    %c2_347 = arith.constant 2 : index
    %c0_348 = arith.constant 0 : index
    %c0_349 = arith.constant 0 : index
    %300 = vector.load %arg10[%c2_347, %c0_348, %c0_349] : memref<9x16x32xbf16, #tpu.memory_space<vmem>>, vector<1x16x32xbf16>
    %301 = vector.shape_cast %300 : vector<1x16x32xbf16> to vector<16x32xbf16>
    %cst_350 = arith.constant dense<0.000000e+00> : vector<8x32xf32>
    %302 = tpu.matmul %299, %301, %cst_350 {dimension_numbers = #tpu.dot_dimension_numbers<[1], [0], [0], [1], [0, 0, 1, 1], [], []>} : vector<8x16xbf16>, vector<16x32xbf16>, vector<8x32xf32> -> vector<8x32xf32>
    %303 = arith.addf %297, %302 : vector<8x32xf32>
    %c0_351 = arith.constant 0 : index
    %c1_352 = arith.constant 1 : index
    %c0_353 = arith.constant 0 : index
    %c0_354 = arith.constant 0 : index
    %304 = vector.load %arg16[%c0_351, %c1_352, %c0_353, %c0_354] : memref<2x10x10x16xbf16, #tpu.memory_space<vmem>>, vector<2x2x2x16xbf16>
    %305 = vector.shape_cast %304 : vector<2x2x2x16xbf16> to vector<8x16xbf16>
    %c3_355 = arith.constant 3 : index
    %c0_356 = arith.constant 0 : index
    %c0_357 = arith.constant 0 : index
    %306 = vector.load %arg10[%c3_355, %c0_356, %c0_357] : memref<9x16x32xbf16, #tpu.memory_space<vmem>>, vector<1x16x32xbf16>
    %307 = vector.shape_cast %306 : vector<1x16x32xbf16> to vector<16x32xbf16>
    %cst_358 = arith.constant dense<0.000000e+00> : vector<8x32xf32>
    %308 = tpu.matmul %305, %307, %cst_358 {dimension_numbers = #tpu.dot_dimension_numbers<[1], [0], [0], [1], [0, 0, 1, 1], [], []>} : vector<8x16xbf16>, vector<16x32xbf16>, vector<8x32xf32> -> vector<8x32xf32>
    %309 = arith.addf %303, %308 : vector<8x32xf32>
    %c0_359 = arith.constant 0 : index
    %c1_360 = arith.constant 1 : index
    %c1_361 = arith.constant 1 : index
    %c0_362 = arith.constant 0 : index
    %310 = vector.load %arg16[%c0_359, %c1_360, %c1_361, %c0_362] : memref<2x10x10x16xbf16, #tpu.memory_space<vmem>>, vector<2x2x2x16xbf16>
    %311 = vector.shape_cast %310 : vector<2x2x2x16xbf16> to vector<8x16xbf16>
    %c4_363 = arith.constant 4 : index
    %c0_364 = arith.constant 0 : index
    %c0_365 = arith.constant 0 : index
    %312 = vector.load %arg10[%c4_363, %c0_364, %c0_365] : memref<9x16x32xbf16, #tpu.memory_space<vmem>>, vector<1x16x32xbf16>
    %313 = vector.shape_cast %312 : vector<1x16x32xbf16> to vector<16x32xbf16>
    %cst_366 = arith.constant dense<0.000000e+00> : vector<8x32xf32>
    %314 = tpu.matmul %311, %313, %cst_366 {dimension_numbers = #tpu.dot_dimension_numbers<[1], [0], [0], [1], [0, 0, 1, 1], [], []>} : vector<8x16xbf16>, vector<16x32xbf16>, vector<8x32xf32> -> vector<8x32xf32>
    %315 = arith.addf %309, %314 : vector<8x32xf32>
    %c0_367 = arith.constant 0 : index
    %c1_368 = arith.constant 1 : index
    %c2_369 = arith.constant 2 : index
    %c0_370 = arith.constant 0 : index
    %316 = vector.load %arg16[%c0_367, %c1_368, %c2_369, %c0_370] : memref<2x10x10x16xbf16, #tpu.memory_space<vmem>>, vector<2x2x2x16xbf16>
    %317 = vector.shape_cast %316 : vector<2x2x2x16xbf16> to vector<8x16xbf16>
    %c5_371 = arith.constant 5 : index
    %c0_372 = arith.constant 0 : index
    %c0_373 = arith.constant 0 : index
    %318 = vector.load %arg10[%c5_371, %c0_372, %c0_373] : memref<9x16x32xbf16, #tpu.memory_space<vmem>>, vector<1x16x32xbf16>
    %319 = vector.shape_cast %318 : vector<1x16x32xbf16> to vector<16x32xbf16>
    %cst_374 = arith.constant dense<0.000000e+00> : vector<8x32xf32>
    %320 = tpu.matmul %317, %319, %cst_374 {dimension_numbers = #tpu.dot_dimension_numbers<[1], [0], [0], [1], [0, 0, 1, 1], [], []>} : vector<8x16xbf16>, vector<16x32xbf16>, vector<8x32xf32> -> vector<8x32xf32>
    %321 = arith.addf %315, %320 : vector<8x32xf32>
    %c0_375 = arith.constant 0 : index
    %c2_376 = arith.constant 2 : index
    %c0_377 = arith.constant 0 : index
    %c0_378 = arith.constant 0 : index
    %322 = vector.load %arg16[%c0_375, %c2_376, %c0_377, %c0_378] : memref<2x10x10x16xbf16, #tpu.memory_space<vmem>>, vector<2x2x2x16xbf16>
    %323 = vector.shape_cast %322 : vector<2x2x2x16xbf16> to vector<8x16xbf16>
    %c6_379 = arith.constant 6 : index
    %c0_380 = arith.constant 0 : index
    %c0_381 = arith.constant 0 : index
    %324 = vector.load %arg10[%c6_379, %c0_380, %c0_381] : memref<9x16x32xbf16, #tpu.memory_space<vmem>>, vector<1x16x32xbf16>
    %325 = vector.shape_cast %324 : vector<1x16x32xbf16> to vector<16x32xbf16>
    %cst_382 = arith.constant dense<0.000000e+00> : vector<8x32xf32>
    %326 = tpu.matmul %323, %325, %cst_382 {dimension_numbers = #tpu.dot_dimension_numbers<[1], [0], [0], [1], [0, 0, 1, 1], [], []>} : vector<8x16xbf16>, vector<16x32xbf16>, vector<8x32xf32> -> vector<8x32xf32>
    %327 = arith.addf %321, %326 : vector<8x32xf32>
    %c0_383 = arith.constant 0 : index
    %c2_384 = arith.constant 2 : index
    %c1_385 = arith.constant 1 : index
    %c0_386 = arith.constant 0 : index
    %328 = vector.load %arg16[%c0_383, %c2_384, %c1_385, %c0_386] : memref<2x10x10x16xbf16, #tpu.memory_space<vmem>>, vector<2x2x2x16xbf16>
    %329 = vector.shape_cast %328 : vector<2x2x2x16xbf16> to vector<8x16xbf16>
    %c7_387 = arith.constant 7 : index
    %c0_388 = arith.constant 0 : index
    %c0_389 = arith.constant 0 : index
    %330 = vector.load %arg10[%c7_387, %c0_388, %c0_389] : memref<9x16x32xbf16, #tpu.memory_space<vmem>>, vector<1x16x32xbf16>
    %331 = vector.shape_cast %330 : vector<1x16x32xbf16> to vector<16x32xbf16>
    %cst_390 = arith.constant dense<0.000000e+00> : vector<8x32xf32>
    %332 = tpu.matmul %329, %331, %cst_390 {dimension_numbers = #tpu.dot_dimension_numbers<[1], [0], [0], [1], [0, 0, 1, 1], [], []>} : vector<8x16xbf16>, vector<16x32xbf16>, vector<8x32xf32> -> vector<8x32xf32>
    %333 = arith.addf %327, %332 : vector<8x32xf32>
    %c0_391 = arith.constant 0 : index
    %c2_392 = arith.constant 2 : index
    %c2_393 = arith.constant 2 : index
    %c0_394 = arith.constant 0 : index
    %334 = vector.load %arg16[%c0_391, %c2_392, %c2_393, %c0_394] : memref<2x10x10x16xbf16, #tpu.memory_space<vmem>>, vector<2x2x2x16xbf16>
    %335 = vector.shape_cast %334 : vector<2x2x2x16xbf16> to vector<8x16xbf16>
    %c8_395 = arith.constant 8 : index
    %c0_396 = arith.constant 0 : index
    %c0_397 = arith.constant 0 : index
    %336 = vector.load %arg10[%c8_395, %c0_396, %c0_397] : memref<9x16x32xbf16, #tpu.memory_space<vmem>>, vector<1x16x32xbf16>
    %337 = vector.shape_cast %336 : vector<1x16x32xbf16> to vector<16x32xbf16>
    %cst_398 = arith.constant dense<0.000000e+00> : vector<8x32xf32>
    %338 = tpu.matmul %335, %337, %cst_398 {dimension_numbers = #tpu.dot_dimension_numbers<[1], [0], [0], [1], [0, 0, 1, 1], [], []>} : vector<8x16xbf16>, vector<16x32xbf16>, vector<8x32xf32> -> vector<8x32xf32>
    %339 = arith.addf %333, %338 : vector<8x32xf32>
    %cst_399 = arith.constant dense<0.000000e+00> : vector<32xf32>
    %340 = vector.multi_reduction <add>, %339, %cst_399 [0] : vector<8x32xf32> to vector<32xf32>
    %341 = vector.shape_cast %340 : vector<32xf32> to vector<1x32xf32>
    %cst_400 = arith.constant 1.250000e-01 : f32
    %342 = vector.broadcast %cst_400 : f32 to vector<1x32xf32>
    %343 = arith.mulf %341, %342 : vector<1x32xf32>
    %344 = vector.broadcast %343 : vector<1x32xf32> to vector<8x32xf32>
    %345 = arith.subf %339, %344 : vector<8x32xf32>
    %346 = arith.mulf %345, %345 : vector<8x32xf32>
    %cst_401 = arith.constant dense<0.000000e+00> : vector<32xf32>
    %347 = vector.multi_reduction <add>, %346, %cst_401 [0] : vector<8x32xf32> to vector<32xf32>
    %348 = vector.shape_cast %347 : vector<32xf32> to vector<1x32xf32>
    %cst_402 = arith.constant 1.250000e-01 : f32
    %349 = vector.broadcast %cst_402 : f32 to vector<1x32xf32>
    %350 = arith.mulf %348, %349 : vector<1x32xf32>
    %c0_403 = arith.constant 0 : index
    %c0_404 = arith.constant 0 : index
    %351 = vector.load %arg11[%c0_403, %c0_404] : memref<1x32xf32, #tpu.memory_space<vmem>>, vector<1x32xf32>
    %cst_405 = arith.constant 9.99999974E-6 : f32
    %352 = vector.broadcast %cst_405 : f32 to vector<1x32xf32>
    %353 = arith.addf %350, %352 : vector<1x32xf32>
    %354 = math.rsqrt %353 : vector<1x32xf32>
    %355 = arith.mulf %351, %354 : vector<1x32xf32>
    %356 = vector.broadcast %355 : vector<1x32xf32> to vector<8x32xf32>
    %357 = arith.mulf %345, %356 : vector<8x32xf32>
    %c0_406 = arith.constant 0 : index
    %c0_407 = arith.constant 0 : index
    %358 = vector.load %arg12[%c0_406, %c0_407] : memref<1x32xf32, #tpu.memory_space<vmem>>, vector<1x32xf32>
    %359 = vector.broadcast %358 : vector<1x32xf32> to vector<8x32xf32>
    %360 = arith.addf %357, %359 : vector<8x32xf32>
    %cst_408 = arith.constant 0.000000e+00 : f32
    %361 = vector.broadcast %cst_408 : f32 to vector<8x32xf32>
    %362 = arith.maximumf %360, %361 : vector<8x32xf32>
    %363 = vector.shape_cast %362 : vector<8x32xf32> to vector<2x2x2x32xf32>
    %364 = arith.truncf %363 : vector<2x2x2x32xf32> to vector<2x2x2x32xbf16>
    %365 = vector.shape_cast %364 : vector<2x2x2x32xbf16> to vector<2x4x32xbf16>
    %366 = arith.extf %365 : vector<2x4x32xbf16> to vector<2x4x32xf32>
    %cst_409 = arith.constant dense<0.000000e+00> : vector<2x32xf32>
    %367 = vector.multi_reduction <add>, %366, %cst_409 [1] : vector<2x4x32xf32> to vector<2x32xf32>
    %cst_410 = arith.constant 4.000000e+00 : f32
    %368 = vector.broadcast %cst_410 : f32 to vector<2x32xf32>
    %369 = arith.divf %367, %368 : vector<2x32xf32>
    %370 = arith.truncf %369 : vector<2x32xf32> to vector<2x32xbf16>
    %c0_411 = arith.constant 0 : index
    %c0_412 = arith.constant 0 : index
    %371 = vector.load %arg13[%c0_411, %c0_412] : memref<32x10xbf16, #tpu.memory_space<vmem>>, vector<32x10xbf16>
    %cst_413 = arith.constant dense<0.000000e+00> : vector<2x10xf32>
    %372 = tpu.matmul %370, %371, %cst_413 {dimension_numbers = #tpu.dot_dimension_numbers<[1], [0], [0], [1], [0, 0, 1, 1], [], []>} : vector<2x32xbf16>, vector<32x10xbf16>, vector<2x10xf32> -> vector<2x10xf32>
    %c0_414 = arith.constant 0 : index
    %c0_415 = arith.constant 0 : index
    %373 = vector.load %arg14[%c0_414, %c0_415] : memref<1x10xf32, #tpu.memory_space<vmem>>, vector<1x10xf32>
    %374 = vector.broadcast %373 : vector<1x10xf32> to vector<2x10xf32>
    %375 = arith.addf %372, %374 : vector<2x10xf32>
    %c0_416 = arith.constant 0 : index
    %c0_417 = arith.constant 0 : index
    %376 = vector.load %arg15[%c0_416, %c0_417] : memref<2x10xf32, #tpu.memory_space<vmem>>, vector<2x10xf32>
    tpu.vector_store %arg15[%c0_416, %c0_417], %375 {strides = array<i32>} : memref<2x10xf32, #tpu.memory_space<vmem>>, vector<2x10xf32>,
    return
  }
}

</mosaic_0001>

<llo_original>
// kernel: tpu_custom_call.1
$region0: #{tpu_custom_call.1}
  #allocation0 [shape = 'u32[]', space=smem, size = 0x4, offset = 0x4, fixed_abs, tag = 'smem constant byte address 0x4 - core index']
  #allocation1 [shape = 'u32[144,128]{1,0:T(1,128)}', space=vmem, size = 0x12000, scoped, tag = 'internal scratch']
  #allocation2 [shape = 'bf16[2,10,10,16]{3,2,1,0:T(8,128)(2,1)}', space=vmem, size = 0x14000, scoped, tag = 'scratch operand']
  %s0 = inlined_call_operand.vmem [shape: bf16[2,8,8,3], index: 0, kind: input, shape index: {}]
  %s1 = inlined_call_operand.vmem [shape: bf16[9,3,8], index: 1, kind: input, shape index: {}]
  %s2 = inlined_call_operand.vmem [shape: f32[1,8], index: 2, kind: input, shape index: {}]
  %s3 = inlined_call_operand.vmem [shape: f32[1,8], index: 3, kind: input, shape index: {}]
  %s4 = inlined_call_operand.vmem [shape: bf16[9,8,8], index: 4, kind: input, shape index: {}]
  %s5 = inlined_call_operand.vmem [shape: f32[1,8], index: 5, kind: input, shape index: {}]
  %s6 = inlined_call_operand.vmem [shape: f32[1,8], index: 6, kind: input, shape index: {}]
  %s7 = inlined_call_operand.vmem [shape: bf16[9,8,16], index: 7, kind: input, shape index: {}]
  %s8 = inlined_call_operand.vmem [shape: f32[1,16], index: 8, kind: input, shape index: {}]
  %s9 = inlined_call_operand.vmem [shape: f32[1,16], index: 9, kind: input, shape index: {}]
  %s10 = inlined_call_operand.vmem [shape: bf16[9,16,32], index: 10, kind: input, shape index: {}]
  %s11 = inlined_call_operand.vmem [shape: f32[1,32], index: 11, kind: input, shape index: {}]
  %s12 = inlined_call_operand.vmem [shape: f32[1,32], index: 12, kind: input, shape index: {}]
  %s13 = inlined_call_operand.vmem [shape: bf16[32,10], index: 13, kind: input, shape index: {}]
  %s14 = inlined_call_operand.vmem [shape: f32[1,10], index: 14, kind: input, shape index: {}]
  %s15 = inlined_call_operand.hbm [shape: f32[2,10], index: 15, kind: output, shape index: {}]
  %s16 = sld [smem:[#allocation0]]
  $region70: #{tpu_custom_call.1} parent=0
    _
  %s18 = ssub.s32 1, %s16
  %s19 = scalar_select 0, %s18, %s16
  $region1: #{tpu_custom_call.1} parent=0
    #allocation3 [shape = 'u8[1024]{0}', space=vmem, size = 0x400, scoped, tag = 'output window, operand 0, single buffered']
    #allocation4 [shape = 's32[1]{0}', space=sflag, size = 0x4, scoped, tag = 'scoped memory for tpu_custom_call.1']
    %20 = vsyncpa [#allocation4], 0
    // Predicated region
    $region2: #{tpu_custom_call.1} parent=1 // pred_check
      _
    $region3: #{tpu_custom_call.1} parent=1 // pred_check_branch
      %22 = sbr.rel (0) target = $region5
    $region4: #{tpu_custom_call.1} parent=1 // pred_region
      _
    $region5: #{tpu_custom_call.1} parent=1 // pred_fallthru
      _
    // Predicated region
    $region6: #{tpu_custom_call.1} parent=1 // pred_check
      _
    $region7: #{tpu_custom_call.1} parent=1 // pred_check_branch
      %24 = sbr.rel (0) target = $region9
    $region8: #{tpu_custom_call.1} parent=1 // pred_region
      _
    $region9: #{tpu_custom_call.1} parent=1 // pred_fallthru
      _
    // Predicated region
    $region10: #{tpu_custom_call.1} parent=1 // pred_check
      _
    $region11: #{tpu_custom_call.1} parent=1 // pred_check_branch
      %26 = sbr.rel (0) target = $region13
    $region12: #{tpu_custom_call.1} parent=1 // pred_region
      _
    $region13: #{tpu_custom_call.1} parent=1 // pred_fallthru
      _
    // Predicated region
    $region14: #{tpu_custom_call.1} parent=1 // pred_check
      _
    $region15: #{tpu_custom_call.1} parent=1 // pred_check_branch
      %28 = sbr.rel (0) target = $region17
    $region16: #{tpu_custom_call.1} parent=1 // pred_region
      _
    $region17: #{tpu_custom_call.1} parent=1 // pred_fallthru
      _
    // Predicated region
    $region18: #{tpu_custom_call.1} parent=1 // pred_check
      _
    $region19: #{tpu_custom_call.1} parent=1 // pred_check_branch
      %30 = sbr.rel (0) target = $region21
    $region20: #{tpu_custom_call.1} parent=1 // pred_region
      _
    $region21: #{tpu_custom_call.1} parent=1 // pred_fallthru
      _
    // Predicated region
    $region22: #{tpu_custom_call.1} parent=1 // pred_check
      _
    $region23: #{tpu_custom_call.1} parent=1 // pred_check_branch
      %32 = sbr.rel (0) target = $region25
    $region24: #{tpu_custom_call.1} parent=1 // pred_region
      _
    $region25: #{tpu_custom_call.1} parent=1 // pred_fallthru
      _
    // Predicated region
    $region26: #{tpu_custom_call.1} parent=1 // pred_check
      _
    $region27: #{tpu_custom_call.1} parent=1 // pred_check_branch
      %34 = sbr.rel (0) target = $region29
    $region28: #{tpu_custom_call.1} parent=1 // pred_region
      _
    $region29: #{tpu_custom_call.1} parent=1 // pred_fallthru
      _
    // Predicated region
    $region30: #{tpu_custom_call.1} parent=1 // pred_check
      _
    $region31: #{tpu_custom_call.1} parent=1 // pred_check_branch
      %36 = sbr.rel (0) target = $region33
    $region32: #{tpu_custom_call.1} parent=1 // pred_region
      _
    $region33: #{tpu_custom_call.1} parent=1 // pred_fallthru
      _
    // Predicated region
    $region34: #{tpu_custom_call.1} parent=1 // pred_check
      _
    $region35: #{tpu_custom_call.1} parent=1 // pred_check_branch
      %38 = sbr.rel (0) target = $region37
    $region36: #{tpu_custom_call.1} parent=1 // pred_region
      _
    $region37: #{tpu_custom_call.1} parent=1 // pred_fallthru
      _
    // Predicated region
    $region38: #{tpu_custom_call.1} parent=1 // pred_check
      _
    $region39: #{tpu_custom_call.1} parent=1 // pred_check_branch
      %40 = sbr.rel (0) target = $region41
    $region40: #{tpu_custom_call.1} parent=1 // pred_region
      _
    $region41: #{tpu_custom_call.1} parent=1 // pred_fallthru
      _
    // Predicated region
    $region42: #{tpu_custom_call.1} parent=1 // pred_check
      _
    $region43: #{tpu_custom_call.1} parent=1 // pred_check_branch
      %42 = sbr.rel (0) target = $region45
    $region44: #{tpu_custom_call.1} parent=1 // pred_region
      _
    $region45: #{tpu_custom_call.1} parent=1 // pred_fallthru
      _
    // Predicated region
    $region46: #{tpu_custom_call.1} parent=1 // pred_check
      _
    $region47: #{tpu_custom_call.1} parent=1 // pred_check_branch
      %44 = sbr.rel (0) target = $region49
    $region48: #{tpu_custom_call.1} parent=1 // pred_region
      _
    $region49: #{tpu_custom_call.1} parent=1 // pred_fallthru
      _
    // Predicated region
    $region50: #{tpu_custom_call.1} parent=1 // pred_check
      _
    $region51: #{tpu_custom_call.1} parent=1 // pred_check_branch
      %46 = sbr.rel (0) target = $region53
    $region52: #{tpu_custom_call.1} parent=1 // pred_region
      _
    $region53: #{tpu_custom_call.1} parent=1 // pred_fallthru
      _
    // Predicated region
    $region54: #{tpu_custom_call.1} parent=1 // pred_check
      _
    $region55: #{tpu_custom_call.1} parent=1 // pred_check_branch
      %48 = sbr.rel (0) target = $region57
    $region56: #{tpu_custom_call.1} parent=1 // pred_region
      _
    $region57: #{tpu_custom_call.1} parent=1 // pred_fallthru
      _
    // Predicated region
    $region58: #{tpu_custom_call.1} parent=1 // pred_check
      _
    $region59: #{tpu_custom_call.1} parent=1 // pred_check_branch
      %50 = sbr.rel (0) target = $region61
    $region60: #{tpu_custom_call.1} parent=1 // pred_region
      _
    $region61: #{tpu_custom_call.1} parent=1 // pred_fallthru
      _
    %v52 = vld [vmem:[%s0] sm:$0xf]
    %v53 = vld [vmem:[%s0 + $0x4] sm:$0xf]
    %v54 = vld [vmem:[%s0 + $0x8] sm:$0xf]
    %v55 = vld [vmem:[%s0 + $0xc] sm:$0xf]
    %v56 = vld [vmem:[%s0 + $0x10] sm:$0xf]
    %v57 = vld [vmem:[%s0 + $0x14] sm:$0xf]
    %v58 = vld [vmem:[%s0 + $0x18] sm:$0xf]
    %v59 = vld [vmem:[%s0 + $0x1c] sm:$0xf]
    %v60 = vld [vmem:[%s0 + $0x20] sm:$0xf]
    %v61 = vld [vmem:[%s0 + $0x24] sm:$0xf]
    %v62 = vld [vmem:[%s0 + $0x28] sm:$0xf]
    %v63 = vld [vmem:[%s0 + $0x2c] sm:$0xf]
    %v64 = vld [vmem:[%s0 + $0x30] sm:$0xf]
    %v65 = vld [vmem:[%s0 + $0x34] sm:$0xf]
    %v66 = vld [vmem:[%s0 + $0x38] sm:$0xf]
    %v67 = vld [vmem:[%s0 + $0x3c] sm:$0xf]
    %vm68 = vcmask 19456
    %69 = vst.msk [vmem:[#allocation2] sm:$0xf] %vm68, 0
    %vm70 = vcmask 16384
    %71 = vst.msk [vmem:[#allocation2 + $0x4] sm:$0x1] %vm70, 0
    %72 = vst.msk [vmem:[#allocation2 + $0x50] sm:$0xf] %vm68, 0
    %73 = vst.msk [vmem:[#allocation2 + $0x54] sm:$0x1] %vm70, 0
    %s74 = scalar_lea.vmem [#allocation2], 72
    %75 = vst.msk [vmem:[%s74] sm:$0xf] %vm68, 0
    %76 = vst.msk [vmem:[%s74 + $0x4] sm:$0x1] %vm70, 0
    %77 = vst.msk [vmem:[%s74 + $0x50] sm:$0xf] %vm68, 0
    %78 = vst.msk [vmem:[%s74 + $0x54] sm:$0x1] %vm70, 0
    %s79 = scalar_lea.vmem [#allocation2], 8
    %vm80 = vcmask 16384
    %vm81 = vsmask.f32 256
    %vm82 = vmand %vm80, %vm81
    %v83 = vld [vmem:[%s79] sm:$0x1]
    %v84 = vsel %vm82, 0, %v83
    %85 = vst [vmem:[%s79] sm:$0x1] %v84
    %v86 = vld [vmem:[%s79 + $0x8] sm:$0x1]
    %v87 = vsel %vm82, 0, %v86
    %88 = vst [vmem:[%s79 + $0x8] sm:$0x1] %v87
    %v89 = vld [vmem:[%s79 + $0x10] sm:$0x1]
    %v90 = vsel %vm82, 0, %v89
    %91 = vst [vmem:[%s79 + $0x10] sm:$0x1] %v90
    %v92 = vld [vmem:[%s79 + $0x18] sm:$0x1]
    %v93 = vsel %vm82, 0, %v92
    %94 = vst [vmem:[%s79 + $0x18] sm:$0x1] %v93
    %v95 = vld [vmem:[%s79 + $0x20] sm:$0x1]
    %v96 = vsel %vm82, 0, %v95
    %97 = vst [vmem:[%s79 + $0x20] sm:$0x1] %v96
    %v98 = vld [vmem:[%s79 + $0x28] sm:$0x1]
    %v99 = vsel %vm82, 0, %v98
    %100 = vst [vmem:[%s79 + $0x28] sm:$0x1] %v99
    %v101 = vld [vmem:[%s79 + $0x30] sm:$0x1]
    %v102 = vsel %vm82, 0, %v101
    %103 = vst [vmem:[%s79 + $0x30] sm:$0x1] %v102
    %v104 = vld [vmem:[%s79 + $0x38] sm:$0x1]
    %v105 = vsel %vm82, 0, %v104
    %106 = vst [vmem:[%s79 + $0x38] sm:$0x1] %v105
    %v107 = vld [vmem:[%s79 + $0x50] sm:$0x1]
    %v108 = vsel %vm82, 0, %v107
    %109 = vst [vmem:[%s79 + $0x50] sm:$0x1] %v108
    %v110 = vld [vmem:[%s79 + $0x58] sm:$0x1]
    %v111 = vsel %vm82, 0, %v110
    %112 = vst [vmem:[%s79 + $0x58] sm:$0x1] %v111
    %v113 = vld [vmem:[%s79 + $0x60] sm:$0x1]
    %v114 = vsel %vm82, 0, %v113
    %115 = vst [vmem:[%s79 + $0x60] sm:$0x1] %v114
    %v116 = vld [vmem:[%s79 + $0x68] sm:$0x1]
    %v117 = vsel %vm82, 0, %v116
    %118 = vst [vmem:[%s79 + $0x68] sm:$0x1] %v117
    %v119 = vld [vmem:[%s79 + $0x70] sm:$0x1]
    %v120 = vsel %vm82, 0, %v119
    %121 = vst [vmem:[%s79 + $0x70] sm:$0x1] %v120
    %v122 = vld [vmem:[%s79 + $0x78] sm:$0x1]
    %v123 = vsel %vm82, 0, %v122
    %124 = vst [vmem:[%s79 + $0x78] sm:$0x1] %v123
    %v125 = vld [vmem:[%s79 + $0x80] sm:$0x1]
    %v126 = vsel %vm82, 0, %v125
    %127 = vst [vmem:[%s79 + $0x80] sm:$0x1] %v126
    %v128 = vld [vmem:[%s79 + $0x88] sm:$0x1]
    %v129 = vsel %vm82, 0, %v128
    %130 = vst [vmem:[%s79 + $0x88] sm:$0x1] %v129
    %vm131 = vsmask.f32 7938
    %vm132 = vmand %vm80, %vm131
    %v133 = vld [vmem:[%s79 + $0x4] sm:$0x1]
    %v134 = vsel %vm132, 0, %v133
    %135 = vst [vmem:[%s79 + $0x4] sm:$0x1] %v134
    %v136 = vld [vmem:[%s79 + $0xc] sm:$0x1]
    %v137 = vsel %vm132, 0, %v136
    %138 = vst [vmem:[%s79 + $0xc] sm:$0x1] %v137
    %v139 = vld [vmem:[%s79 + $0x14] sm:$0x1]
    %v140 = vsel %vm132, 0, %v139
    %141 = vst [vmem:[%s79 + $0x14] sm:$0x1] %v140
    %v142 = vld [vmem:[%s79 + $0x1c] sm:$0x1]
    %v143 = vsel %vm132, 0, %v142
    %144 = vst [vmem:[%s79 + $0x1c] sm:$0x1] %v143
    %v145 = vld [vmem:[%s79 + $0x24] sm:$0x1]
    %v146 = vsel %vm132, 0, %v145
    %147 = vst [vmem:[%s79 + $0x24] sm:$0x1] %v146
    %v148 = vld [vmem:[%s79 + $0x2c] sm:$0x1]
    %v149 = vsel %vm132, 0, %v148
    %150 = vst [vmem:[%s79 + $0x2c] sm:$0x1] %v149
    %v151 = vld [vmem:[%s79 + $0x34] sm:$0x1]
    %v152 = vsel %vm132, 0, %v151
    %153 = vst [vmem:[%s79 + $0x34] sm:$0x1] %v152
    %v154 = vld [vmem:[%s79 + $0x3c] sm:$0x1]
    %v155 = vsel %vm132, 0, %v154
    %156 = vst [vmem:[%s79 + $0x3c] sm:$0x1] %v155
    %v157 = vld [vmem:[%s79 + $0x54] sm:$0x1]
    %v158 = vsel %vm132, 0, %v157
    %159 = vst [vmem:[%s79 + $0x54] sm:$0x1] %v158
    %v160 = vld [vmem:[%s79 + $0x5c] sm:$0x1]
    %v161 = vsel %vm132, 0, %v160
    %162 = vst [vmem:[%s79 + $0x5c] sm:$0x1] %v161
    %v163 = vld [vmem:[%s79 + $0x64] sm:$0x1]
    %v164 = vsel %vm132, 0, %v163
    %165 = vst [vmem:[%s79 + $0x64] sm:$0x1] %v164
    %v166 = vld [vmem:[%s79 + $0x6c] sm:$0x1]
    %v167 = vsel %vm132, 0, %v166
    %168 = vst [vmem:[%s79 + $0x6c] sm:$0x1] %v167
    %v169 = vld [vmem:[%s79 + $0x74] sm:$0x1]
    %v170 = vsel %vm132, 0, %v169
    %171 = vst [vmem:[%s79 + $0x74] sm:$0x1] %v170
    %v172 = vld [vmem:[%s79 + $0x7c] sm:$0x1]
    %v173 = vsel %vm132, 0, %v172
    %174 = vst [vmem:[%s79 + $0x7c] sm:$0x1] %v173
    %v175 = vld [vmem:[%s79 + $0x84] sm:$0x1]
    %v176 = vsel %vm132, 0, %v175
    %177 = vst [vmem:[%s79 + $0x84] sm:$0x1] %v176
    %v178 = vld [vmem:[%s79 + $0x8c] sm:$0x1]
    %v179 = vsel %vm132, 0, %v178
    %180 = vst [vmem:[%s79 + $0x8c] sm:$0x1] %v179
    %v182 = vshrl.u32 %v52, 16
    %v184 = vrot.slane %v182, 7
    %v185 = vshll.u32 %v52, 16
    %v187 = vor.u32 %v184, %v185
    %v188 = vrot.slane %v184, 4
    %v190 = vshrl.u32 %v53, 16
    %v192 = vrot.slane %v190, 7
    %v193 = vshll.u32 %v53, 16
    %v195 = vor.u32 %v192, %v193
    %v196 = vrot.slane %v192, 4
    %v198 = vshrl.u32 %v54, 16
    %v200 = vrot.slane %v198, 7
    %v201 = vshll.u32 %v54, 16
    %v203 = vor.u32 %v200, %v201
    %v204 = vrot.slane %v200, 4
    %v206 = vshrl.u32 %v55, 16
    %v208 = vrot.slane %v206, 7
    %v209 = vshll.u32 %v55, 16
    %v211 = vor.u32 %v208, %v209
    %v212 = vrot.slane %v208, 4
    %v214 = vshrl.u32 %v56, 16
    %v216 = vrot.slane %v214, 7
    %v217 = vshll.u32 %v56, 16
    %v219 = vor.u32 %v216, %v217
    %v220 = vrot.slane %v216, 4
    %v222 = vshrl.u32 %v57, 16
    %v224 = vrot.slane %v222, 7
    %v225 = vshll.u32 %v57, 16
    %v227 = vor.u32 %v224, %v225
    %v228 = vrot.slane %v224, 4
    %v230 = vshrl.u32 %v58, 16
    %v232 = vrot.slane %v230, 7
    %v233 = vshll.u32 %v58, 16
    %v235 = vor.u32 %v232, %v233
    %v236 = vrot.slane %v232, 4
    %v238 = vshrl.u32 %v59, 16
    %v240 = vrot.slane %v238, 7
    %v241 = vshll.u32 %v59, 16
    %v243 = vor.u32 %v240, %v241
    %v244 = vrot.slane %v240, 4
    %v246 = vshrl.u32 %v60, 16
    %v248 = vrot.slane %v246, 7
    %v249 = vshll.u32 %v60, 16
    %v251 = vor.u32 %v248, %v249
    %v252 = vrot.slane %v248, 4
    %v254 = vshrl.u32 %v61, 16
    %v256 = vrot.slane %v254, 7
    %v257 = vshll.u32 %v61, 16
    %v259 = vor.u32 %v256, %v257
    %v260 = vrot.slane %v256, 4
    %v262 = vshrl.u32 %v62, 16
    %v264 = vrot.slane %v262, 7
    %v265 = vshll.u32 %v62, 16
    %v267 = vor.u32 %v264, %v265
    %v268 = vrot.slane %v264, 4
    %v270 = vshrl.u32 %v63, 16
    %v272 = vrot.slane %v270, 7
    %v273 = vshll.u32 %v63, 16
    %v275 = vor.u32 %v272, %v273
    %v276 = vrot.slane %v272, 4
    %v278 = vshrl.u32 %v64, 16
    %v280 = vrot.slane %v278, 7
    %v281 = vshll.u32 %v64, 16
    %v283 = vor.u32 %v280, %v281
    %v284 = vrot.slane %v280, 4
    %v286 = vshrl.u32 %v65, 16
    %v288 = vrot.slane %v286, 7
    %v289 = vshll.u32 %v65, 16
    %v291 = vor.u32 %v288, %v289
    %v292 = vrot.slane %v288, 4
    %v294 = vshrl.u32 %v66, 16
    %v296 = vrot.slane %v294, 7
    %v297 = vshll.u32 %v66, 16
    %v299 = vor.u32 %v296, %v297
    %v300 = vrot.slane %v296, 4
    %v302 = vshrl.u32 %v67, 16
    %v304 = vrot.slane %v302, 7
    %v305 = vshll.u32 %v67, 16
    %v307 = vor.u32 %v304, %v305
    %v308 = vrot.slane %v304, 4
    %vm341 = vcmask 19456
    %vm342 = vmand %vm341, %vm131
    %v343 = vld [vmem:[%s79] sm:$0xf]
    %v344 = vsel %vm342, %v187, %v343
    %345 = vst [vmem:[%s79] sm:$0xf] %v344
    %v346 = vld [vmem:[%s79 + $0x4] sm:$0x1]
    %v347 = vsel %vm82, %v188, %v346
    %348 = vst [vmem:[%s79 + $0x4] sm:$0x1] %v347
    %v349 = vld [vmem:[%s79 + $0x8] sm:$0xf]
    %v350 = vsel %vm342, %v195, %v349
    %351 = vst [vmem:[%s79 + $0x8] sm:$0xf] %v350
    %v352 = vld [vmem:[%s79 + $0xc] sm:$0x1]
    %v353 = vsel %vm82, %v196, %v352
    %354 = vst [vmem:[%s79 + $0xc] sm:$0x1] %v353
    %v355 = vld [vmem:[%s79 + $0x10] sm:$0xf]
    %v356 = vsel %vm342, %v203, %v355
    %357 = vst [vmem:[%s79 + $0x10] sm:$0xf] %v356
    %v358 = vld [vmem:[%s79 + $0x14] sm:$0x1]
    %v359 = vsel %vm82, %v204, %v358
    %360 = vst [vmem:[%s79 + $0x14] sm:$0x1] %v359
    %v361 = vld [vmem:[%s79 + $0x18] sm:$0xf]
    %v362 = vsel %vm342, %v211, %v361
    %363 = vst [vmem:[%s79 + $0x18] sm:$0xf] %v362
    %v364 = vld [vmem:[%s79 + $0x1c] sm:$0x1]
    %v365 = vsel %vm82, %v212, %v364
    %366 = vst [vmem:[%s79 + $0x1c] sm:$0x1] %v365
    %v367 = vld [vmem:[%s79 + $0x20] sm:$0xf]
    %v368 = vsel %vm342, %v219, %v367
    %369 = vst [vmem:[%s79 + $0x20] sm:$0xf] %v368
    %v370 = vld [vmem:[%s79 + $0x24] sm:$0x1]
    %v371 = vsel %vm82, %v220, %v370
    %372 = vst [vmem:[%s79 + $0x24] sm:$0x1] %v371
    %v373 = vld [vmem:[%s79 + $0x28] sm:$0xf]
    %v374 = vsel %vm342, %v227, %v373
    %375 = vst [vmem:[%s79 + $0x28] sm:$0xf] %v374
    %v376 = vld [vmem:[%s79 + $0x2c] sm:$0x1]
    %v377 = vsel %vm82, %v228, %v376
    %378 = vst [vmem:[%s79 + $0x2c] sm:$0x1] %v377
    %v379 = vld [vmem:[%s79 + $0x30] sm:$0xf]
    %v380 = vsel %vm342, %v235, %v379
    %381 = vst [vmem:[%s79 + $0x30] sm:$0xf] %v380
    %v382 = vld [vmem:[%s79 + $0x34] sm:$0x1]
    %v383 = vsel %vm82, %v236, %v382
    %384 = vst [vmem:[%s79 + $0x34] sm:$0x1] %v383
    %v385 = vld [vmem:[%s79 + $0x38] sm:$0xf]
    %v386 = vsel %vm342, %v243, %v385
    %387 = vst [vmem:[%s79 + $0x38] sm:$0xf] %v386
    %v388 = vld [vmem:[%s79 + $0x3c] sm:$0x1]
    %v389 = vsel %vm82, %v244, %v388
    %390 = vst [vmem:[%s79 + $0x3c] sm:$0x1] %v389
    %v391 = vld [vmem:[%s79 + $0x50] sm:$0xf]
    %v392 = vsel %vm342, %v251, %v391
    %393 = vst [vmem:[%s79 + $0x50] sm:$0xf] %v392
    %v394 = vld [vmem:[%s79 + $0x54] sm:$0x1]
    %v395 = vsel %vm82, %v252, %v394
    %396 = vst [vmem:[%s79 + $0x54] sm:$0x1] %v395
    %v397 = vld [vmem:[%s79 + $0x58] sm:$0xf]
    %v398 = vsel %vm342, %v259, %v397
    %399 = vst [vmem:[%s79 + $0x58] sm:$0xf] %v398
    %v400 = vld [vmem:[%s79 + $0x5c] sm:$0x1]
    %v401 = vsel %vm82, %v260, %v400
    %402 = vst [vmem:[%s79 + $0x5c] sm:$0x1] %v401
    %v403 = vld [vmem:[%s79 + $0x60] sm:$0xf]
    %v404 = vsel %vm342, %v267, %v403
    %405 = vst [vmem:[%s79 + $0x60] sm:$0xf] %v404
    %v406 = vld [vmem:[%s79 + $0x64] sm:$0x1]
    %v407 = vsel %vm82, %v268, %v406
    %408 = vst [vmem:[%s79 + $0x64] sm:$0x1] %v407
    %v409 = vld [vmem:[%s79 + $0x68] sm:$0xf]
    %v410 = vsel %vm342, %v275, %v409
    %411 = vst [vmem:[%s79 + $0x68] sm:$0xf] %v410
    %v412 = vld [vmem:[%s79 + $0x6c] sm:$0x1]
    %v413 = vsel %vm82, %v276, %v412
    %414 = vst [vmem:[%s79 + $0x6c] sm:$0x1] %v413
    %v415 = vld [vmem:[%s79 + $0x70] sm:$0xf]
    %v416 = vsel %vm342, %v283, %v415
    %417 = vst [vmem:[%s79 + $0x70] sm:$0xf] %v416
    %v418 = vld [vmem:[%s79 + $0x74] sm:$0x1]
    %v419 = vsel %vm82, %v284, %v418
    %420 = vst [vmem:[%s79 + $0x74] sm:$0x1] %v419
    %v421 = vld [vmem:[%s79 + $0x78] sm:$0xf]
    %v422 = vsel %vm342, %v291, %v421
    %423 = vst [vmem:[%s79 + $0x78] sm:$0xf] %v422
    %v424 = vld [vmem:[%s79 + $0x7c] sm:$0x1]
    %v425 = vsel %vm82, %v292, %v424
    %426 = vst [vmem:[%s79 + $0x7c] sm:$0x1] %v425
    %v427 = vld [vmem:[%s79 + $0x80] sm:$0xf]
    %v428 = vsel %vm342, %v299, %v427
    %429 = vst [vmem:[%s79 + $0x80] sm:$0xf] %v428
    %v430 = vld [vmem:[%s79 + $0x84] sm:$0x1]
    %v431 = vsel %vm82, %v300, %v430
    %432 = vst [vmem:[%s79 + $0x84] sm:$0x1] %v431
    %v433 = vld [vmem:[%s79 + $0x88] sm:$0xf]
    %v434 = vsel %vm342, %v307, %v433
    %435 = vst [vmem:[%s79 + $0x88] sm:$0xf] %v434
    %v436 = vld [vmem:[%s79 + $0x8c] sm:$0x1]
    %v437 = vsel %vm82, %v308, %v436
    %438 = vst [vmem:[%s79 + $0x8c] sm:$0x1] %v437
    %v439 = vld [vmem:[#allocation2] sm:$0xf]
    %v440 = vld [vmem:[#allocation2 + $0x8] sm:$0xf]
    %v441 = vld [vmem:[#allocation2 + $0x10] sm:$0xf]
    %v442 = vld [vmem:[#allocation2 + $0x18] sm:$0xf]
    %v443 = vld [vmem:[#allocation2 + $0x20] sm:$0xf]
    %v444 = vld [vmem:[#allocation2 + $0x28] sm:$0xf]
    %v445 = vld [vmem:[#allocation2 + $0x30] sm:$0xf]
    %v446 = vld [vmem:[#allocation2 + $0x38] sm:$0xf]
    %v447 = vld [vmem:[#allocation2 + $0x50] sm:$0xf]
    %v448 = vld [vmem:[#allocation2 + $0x58] sm:$0xf]
    %v449 = vld [vmem:[#allocation2 + $0x60] sm:$0xf]
    %v450 = vld [vmem:[#allocation2 + $0x68] sm:$0xf]
    %v451 = vld [vmem:[#allocation2 + $0x70] sm:$0xf]
    %v452 = vld [vmem:[#allocation2 + $0x78] sm:$0xf]
    %v453 = vld [vmem:[#allocation2 + $0x80] sm:$0xf]
    %v454 = vld [vmem:[#allocation2 + $0x88] sm:$0xf]
    %v455 = vld [vmem:[%s1] sm:$0x3]
    %v456 = vld [vmem:[#allocation2 + $0x4] sm:$0x1]
    %v457 = vld [vmem:[#allocation2 + $0xc] sm:$0x1]
    %v458 = vld [vmem:[#allocation2 + $0x14] sm:$0x1]
    %v459 = vld [vmem:[#allocation2 + $0x1c] sm:$0x1]
    %v460 = vld [vmem:[#allocation2 + $0x24] sm:$0x1]
    %v461 = vld [vmem:[#allocation2 + $0x2c] sm:$0x1]
    %v462 = vld [vmem:[#allocation2 + $0x34] sm:$0x1]
    %v463 = vld [vmem:[#allocation2 + $0x3c] sm:$0x1]
    %v464 = vld [vmem:[#allocation2 + $0x54] sm:$0x1]
    %v465 = vld [vmem:[#allocation2 + $0x5c] sm:$0x1]
    %v466 = vld [vmem:[#allocation2 + $0x64] sm:$0x1]
    %v467 = vld [vmem:[#allocation2 + $0x6c] sm:$0x1]
    %v468 = vld [vmem:[#allocation2 + $0x74] sm:$0x1]
    %v469 = vld [vmem:[#allocation2 + $0x7c] sm:$0x1]
    %v470 = vld [vmem:[#allocation2 + $0x84] sm:$0x1]
    %v471 = vld [vmem:[#allocation2 + $0x8c] sm:$0x1]
    %vm472 = vsmask.f32 3328
    %vm473 = vsmask.f32 7440
    %vm474 = vmor %vm472, %vm473
    %v476 = vshrl.u32 %v439, 16
    %v478 = vrot.slane %v476, 4
    %v479 = vshll.u32 %v439, 16
    %v481 = vrot.slane %v479, 5
    %v482 = vor.u32 %v478, %v481
    %v483 = vrot.slane %v482, 4
    %v485 = vshll.u32 %v456, 16
    %v487 = vrot.slane %v485, 5
    %v488 = vsel %vm474, %v483, %v487
    %v490 = vshrl.u32 %v440, 16
    %v492 = vrot.slane %v490, 4
    %v493 = vshll.u32 %v440, 16
    %v495 = vrot.slane %v493, 5
    %v496 = vor.u32 %v492, %v495
    %v497 = vrot.slane %v496, 4
    %v499 = vshll.u32 %v457, 16
    %v501 = vrot.slane %v499, 5
    %v502 = vsel %vm474, %v497, %v501
    %v504 = vshrl.u32 %v441, 16
    %v506 = vrot.slane %v504, 4
    %v507 = vshll.u32 %v441, 16
    %v509 = vrot.slane %v507, 5
    %v510 = vor.u32 %v506, %v509
    %v511 = vrot.slane %v510, 4
    %v513 = vshll.u32 %v458, 16
    %v515 = vrot.slane %v513, 5
    %v516 = vsel %vm474, %v511, %v515
    %v518 = vshrl.u32 %v442, 16
    %v520 = vrot.slane %v518, 4
    %v521 = vshll.u32 %v442, 16
    %v523 = vrot.slane %v521, 5
    %v524 = vor.u32 %v520, %v523
    %v525 = vrot.slane %v524, 4
    %v527 = vshll.u32 %v459, 16
    %v529 = vrot.slane %v527, 5
    %v530 = vsel %vm474, %v525, %v529
    %v532 = vshrl.u32 %v443, 16
    %v534 = vrot.slane %v532, 4
    %v535 = vshll.u32 %v443, 16
    %v537 = vrot.slane %v535, 5
    %v538 = vor.u32 %v534, %v537
    %v539 = vrot.slane %v538, 4
    %v541 = vshll.u32 %v460, 16
    %v543 = vrot.slane %v541, 5
    %v544 = vsel %vm474, %v539, %v543
    %v546 = vshrl.u32 %v444, 16
    %v548 = vrot.slane %v546, 4
    %v549 = vshll.u32 %v444, 16
    %v551 = vrot.slane %v549, 5
    %v552 = vor.u32 %v548, %v551
    %v553 = vrot.slane %v552, 4
    %v555 = vshll.u32 %v461, 16
    %v557 = vrot.slane %v555, 5
    %v558 = vsel %vm474, %v553, %v557
    %v560 = vshrl.u32 %v445, 16
    %v562 = vrot.slane %v560, 4
    %v563 = vshll.u32 %v445, 16
    %v565 = vrot.slane %v563, 5
    %v566 = vor.u32 %v562, %v565
    %v567 = vrot.slane %v566, 4
    %v569 = vshll.u32 %v462, 16
    %v571 = vrot.slane %v569, 5
    %v572 = vsel %vm474, %v567, %v571
    %v574 = vshrl.u32 %v446, 16
    %v576 = vrot.slane %v574, 4
    %v577 = vshll.u32 %v446, 16
    %v579 = vrot.slane %v577, 5
    %v580 = vor.u32 %v576, %v579
    %v581 = vrot.slane %v580, 4
    %v583 = vshll.u32 %v463, 16
    %v585 = vrot.slane %v583, 5
    %v586 = vsel %vm474, %v581, %v585
    %v588 = vshrl.u32 %v447, 16
    %v590 = vrot.slane %v588, 4
    %v591 = vshll.u32 %v447, 16
    %v593 = vrot.slane %v591, 5
    %v594 = vor.u32 %v590, %v593
    %v595 = vrot.slane %v594, 4
    %v597 = vshll.u32 %v464, 16
    %v599 = vrot.slane %v597, 5
    %v600 = vsel %vm474, %v595, %v599
    %v602 = vshrl.u32 %v448, 16
    %v604 = vrot.slane %v602, 4
    %v605 = vshll.u32 %v448, 16
    %v607 = vrot.slane %v605, 5
    %v608 = vor.u32 %v604, %v607
    %v609 = vrot.slane %v608, 4
    %v611 = vshll.u32 %v465, 16
    %v613 = vrot.slane %v611, 5
    %v614 = vsel %vm474, %v609, %v613
    %v616 = vshrl.u32 %v449, 16
    %v618 = vrot.slane %v616, 4
    %v619 = vshll.u32 %v449, 16
    %v621 = vrot.slane %v619, 5
    %v622 = vor.u32 %v618, %v621
    %v623 = vrot.slane %v622, 4
    %v625 = vshll.u32 %v466, 16
    %v627 = vrot.slane %v625, 5
    %v628 = vsel %vm474, %v623, %v627
    %v630 = vshrl.u32 %v450, 16
    %v632 = vrot.slane %v630, 4
    %v633 = vshll.u32 %v450, 16
    %v635 = vrot.slane %v633, 5
    %v636 = vor.u32 %v632, %v635
    %v637 = vrot.slane %v636, 4
    %v639 = vshll.u32 %v467, 16
    %v641 = vrot.slane %v639, 5
    %v642 = vsel %vm474, %v637, %v641
    %v644 = vshrl.u32 %v451, 16
    %v646 = vrot.slane %v644, 4
    %v647 = vshll.u32 %v451, 16
    %v649 = vrot.slane %v647, 5
    %v650 = vor.u32 %v646, %v649
    %v651 = vrot.slane %v650, 4
    %v653 = vshll.u32 %v468, 16
    %v655 = vrot.slane %v653, 5
    %v656 = vsel %vm474, %v651, %v655
    %v658 = vshrl.u32 %v452, 16
    %v660 = vrot.slane %v658, 4
    %v661 = vshll.u32 %v452, 16
    %v663 = vrot.slane %v661, 5
    %v664 = vor.u32 %v660, %v663
    %v665 = vrot.slane %v664, 4
    %v667 = vshll.u32 %v469, 16
    %v669 = vrot.slane %v667, 5
    %v670 = vsel %vm474, %v665, %v669
    %v672 = vshrl.u32 %v453, 16
    %v674 = vrot.slane %v672, 4
    %v675 = vshll.u32 %v453, 16
    %v677 = vrot.slane %v675, 5
    %v678 = vor.u32 %v674, %v677
    %v679 = vrot.slane %v678, 4
    %v681 = vshll.u32 %v470, 16
    %v683 = vrot.slane %v681, 5
    %v684 = vsel %vm474, %v679, %v683
    %v686 = vshrl.u32 %v454, 16
    %v688 = vrot.slane %v686, 4
    %v689 = vshll.u32 %v454, 16
    %v691 = vrot.slane %v689, 5
    %v692 = vor.u32 %v688, %v691
    %v693 = vrot.slane %v692, 4
    %v695 = vshll.u32 %v471, 16
    %v697 = vrot.slane %v695, 5
    %v698 = vsel %vm474, %v693, %v697
    %s699 = scalar_lea.vmem %s1, 2
    %v700 = vld [vmem:[%s699] sm:$0x3]
    %v701 = vunpack.c.l.b16 %v488
    %v702 = vunpack.c.l.b16 %v502
    %v703 = vunpack.c.l.b16 %v516
    %v704 = vunpack.c.l.b16 %v530
    %v705 = vunpack.c.l.b16 %v544
    %v706 = vunpack.c.l.b16 %v558
    %v707 = vunpack.c.l.b16 %v572
    %v708 = vunpack.c.l.b16 %v586
    %v709 = vunpack.c.l.b16 %v600
    %v710 = vunpack.c.l.b16 %v614
    %v711 = vunpack.c.l.b16 %v628
    %v712 = vunpack.c.l.b16 %v642
    %v713 = vunpack.c.l.b16 %v656
    %v714 = vunpack.c.l.b16 %v670
    %v715 = vunpack.c.l.b16 %v684
    %v716 = vunpack.c.l.b16 %v698
    %v717 = vpack.c.b16 %v702, %v701
    %v718 = vpack.c.b16 %v704, %v703
    %v719 = vpack.c.b16 %v706, %v705
    %v720 = vpack.c.b16 %v708, %v707
    %v721 = vpack.c.b16 %v710, %v709
    %v722 = vpack.c.b16 %v712, %v711
    %v723 = vpack.c.b16 %v714, %v713
    %v724 = vpack.c.b16 %v716, %v715
    %vm725 = vcmask 23552
    %v727 = vsel %vm725, %v717, 0
    %v730 = vsel %vm725, %v718, 0
    %v733 = vsel %vm725, %v719, 0
    %v736 = vsel %vm725, %v720, 0
    %v739 = vsel %vm725, %v721, 0
    %v742 = vsel %vm725, %v722, 0
    %v745 = vsel %vm725, %v723, 0
    %v748 = vsel %vm725, %v724, 0
    %vm750 = vcmask 1040384
    %vm751 = vcmask 1041408
    %v752 = vsel %vm750, 4294967295, 65535
    %v753 = vsel %vm751, %v752, 0
    %v755 = vand.u32 %v700, %v753
    %757 = vmatprep.subr.bf16.mxu0 0
    %758 = vmatpush1.bf16.msra.mxu0 0
    %759 = vmatprep.subr.bf16.mxu0 0
    %760 = vmatpush1.bf16.msra.mxu0 0
    %761 = vmatprep.subr.bf16.mxu0 0
    %762 = vmatpush1.bf16.msra.mxu0 0
    %763 = vmatprep.subr.bf16.mxu0 0
    %764 = vmatpush1.bf16.msra.mxu0 0
    %765 = vmatprep.subr.bf16.mxu0 0
    %766 = vmatpush1.bf16.msra.mxu0 0
    %767 = vmatprep.subr.bf16.mxu0 0
    %768 = vmatpush1.bf16.msra.mxu0 0
    %769 = vmatprep.subr.bf16.mxu0 0
    %770 = vmatpush1.bf16.msra.mxu0 0
    %771 = vmatprep.subr.bf16.mxu0 0
    %772 = vmatpush1.bf16.msra.mxu0 %v755
    %773 = vmatprep.subr.bf16.mxu0 0
    %774 = vmatpush2.bf16.msra.mxu0 0
    %775 = vmatprep.subr.bf16.mxu0 0
    %776 = vmatpush2.bf16.msra.mxu0 0
    %777 = vmatprep.subr.bf16.mxu0 0
    %778 = vmatpush2.bf16.msra.mxu0 0
    %779 = vmatprep.subr.bf16.mxu0 0
    %780 = vmatpush2.bf16.msra.mxu0 0
    %781 = vmatprep.subr.bf16.mxu0 0
    %782 = vmatpush2.bf16.msra.mxu0 0
    %783 = vmatprep.subr.bf16.mxu0 0
    %784 = vmatpush2.bf16.msra.mxu0 0
    %785 = vmatprep.subr.bf16.mxu0 0
    %786 = vmatpush2.bf16.msra.mxu0 0
    %787 = vmatprep.subr.bf16.mxu0 0
    %788 = vmatpush2.bf16.msra.mxu0 0
    %789 = vmatprep.mubr.bf16.mxu0 0
    %790 = vmatmul.mubr.bf16.gmra.mxu0 %v727
    %v791 = vpop.f32.mrf.mxu0
    %v792 = vadd.f32 0.0, %v791
    %v793 = vpop.f32.mrf.mxu0
    %v794 = vpop.f32.mrf.mxu0
    %v795 = vadd.f32 0.0, %v794
    %v796 = vpop.f32.mrf.mxu0
    %797 = vmatprep.mubr.bf16.mxu0 0
    %798 = vmatmul.mubr.bf16.gmra.mxu0 %v730
    %v799 = vpop.f32.mrf.mxu0
    %v800 = vadd.f32 0.0, %v799
    %v801 = vpop.f32.mrf.mxu0
    %v802 = vpop.f32.mrf.mxu0
    %v803 = vadd.f32 0.0, %v802
    %v804 = vpop.f32.mrf.mxu0
    %805 = vmatprep.mubr.bf16.mxu0 0
    %806 = vmatmul.mubr.bf16.gmra.mxu0 %v733
    %v807 = vpop.f32.mrf.mxu0
    %v808 = vadd.f32 0.0, %v807
    %v809 = vpop.f32.mrf.mxu0
    %v810 = vpop.f32.mrf.mxu0
    %v811 = vadd.f32 0.0, %v810
    %v812 = vpop.f32.mrf.mxu0
    %813 = vmatprep.mubr.bf16.mxu0 0
    %814 = vmatmul.mubr.bf16.gmra.mxu0 %v736
    %v815 = vpop.f32.mrf.mxu0
    %v816 = vadd.f32 0.0, %v815
    %v817 = vpop.f32.mrf.mxu0
    %v818 = vpop.f32.mrf.mxu0
    %v819 = vadd.f32 0.0, %v818
    %v820 = vpop.f32.mrf.mxu0
    %821 = vmatprep.mubr.bf16.mxu0 0
    %822 = vmatmul.mubr.bf16.gmra.mxu0 %v739
    %v823 = vpop.f32.mrf.mxu0
    %v824 = vadd.f32 0.0, %v823
    %v825 = vpop.f32.mrf.mxu0
    %v826 = vpop.f32.mrf.mxu0
    %v827 = vadd.f32 0.0, %v826
    %v828 = vpop.f32.mrf.mxu0
    %829 = vmatprep.mubr.bf16.mxu0 0
    %830 = vmatmul.mubr.bf16.gmra.mxu0 %v742
    %v831 = vpop.f32.mrf.mxu0
    %v832 = vadd.f32 0.0, %v831
    %v833 = vpop.f32.mrf.mxu0
    %v834 = vpop.f32.mrf.mxu0
    %v835 = vadd.f32 0.0, %v834
    %v836 = vpop.f32.mrf.mxu0
    %837 = vmatprep.mubr.bf16.mxu0 0
    %838 = vmatmul.mubr.bf16.gmra.mxu0 %v745
    %v839 = vpop.f32.mrf.mxu0
    %v840 = vadd.f32 0.0, %v839
    %v841 = vpop.f32.mrf.mxu0
    %v842 = vpop.f32.mrf.mxu0
    %v843 = vadd.f32 0.0, %v842
    %v844 = vpop.f32.mrf.mxu0
    %845 = vmatprep.mubr.bf16.mxu0 0
    %846 = vmatmul.mubr.bf16.gmra.mxu0 %v748
    %v847 = vpop.f32.mrf.mxu0
    %v848 = vadd.f32 0.0, %v847
    %v849 = vpop.f32.mrf.mxu0
    %v850 = vpop.f32.mrf.mxu0
    %v851 = vadd.f32 0.0, %v850
    %v852 = vpop.f32.mrf.mxu0
    %853 = vdwg.mxu0
    %v870 = vunpack.c.l.b16 %v439
    %v871 = vunpack.c.l.b16 %v440
    %v872 = vunpack.c.l.b16 %v441
    %v873 = vunpack.c.l.b16 %v442
    %v874 = vunpack.c.l.b16 %v443
    %v875 = vunpack.c.l.b16 %v444
    %v876 = vunpack.c.l.b16 %v445
    %v877 = vunpack.c.l.b16 %v446
    %v878 = vunpack.c.l.b16 %v447
    %v879 = vunpack.c.l.b16 %v448
    %v880 = vunpack.c.l.b16 %v449
    %v881 = vunpack.c.l.b16 %v450
    %v882 = vunpack.c.l.b16 %v451
    %v883 = vunpack.c.l.b16 %v452
    %v884 = vunpack.c.l.b16 %v453
    %v885 = vunpack.c.l.b16 %v454
    %v886 = vpack.c.b16 %v871, %v870
    %v887 = vpack.c.b16 %v873, %v872
    %v888 = vpack.c.b16 %v875, %v874
    %v889 = vpack.c.b16 %v877, %v876
    %v890 = vpack.c.b16 %v879, %v878
    %v891 = vpack.c.b16 %v881, %v880
    %v892 = vpack.c.b16 %v883, %v882
    %v893 = vpack.c.b16 %v885, %v884
    %v895 = vsel %vm725, %v886, 0
    %v898 = vsel %vm725, %v887, 0
    %v901 = vsel %vm725, %v888, 0
    %v904 = vsel %vm725, %v889, 0
    %v907 = vsel %vm725, %v890, 0
    %v910 = vsel %vm725, %v891, 0
    %v913 = vsel %vm725, %v892, 0
    %v916 = vsel %vm725, %v893, 0
    %v919 = vand.u32 %v455, %v753
    %921 = vmatprep.subr.bf16.mxu0 0
    %922 = vmatpush1.bf16.msra.mxu0 0
    %923 = vmatprep.subr.bf16.mxu0 0
    %924 = vmatpush1.bf16.msra.mxu0 0
    %925 = vmatprep.subr.bf16.mxu0 0
    %926 = vmatpush1.bf16.msra.mxu0 0
    %927 = vmatprep.subr.bf16.mxu0 0
    %928 = vmatpush1.bf16.msra.mxu0 0
    %929 = vmatprep.subr.bf16.mxu0 0
    %930 = vmatpush1.bf16.msra.mxu0 0
    %931 = vmatprep.subr.bf16.mxu0 0
    %932 = vmatpush1.bf16.msra.mxu0 0
    %933 = vmatprep.subr.bf16.mxu0 0
    %934 = vmatpush1.bf16.msra.mxu0 0
    %935 = vmatprep.subr.bf16.mxu0 0
    %936 = vmatpush1.bf16.msra.mxu0 %v919
    %937 = vmatprep.subr.bf16.mxu0 0
    %938 = vmatpush2.bf16.msra.mxu0 0
    %939 = vmatprep.subr.bf16.mxu0 0
    %940 = vmatpush2.bf16.msra.mxu0 0
    %941 = vmatprep.subr.bf16.mxu0 0
    %942 = vmatpush2.bf16.msra.mxu0 0
    %943 = vmatprep.subr.bf16.mxu0 0
    %944 = vmatpush2.bf16.msra.mxu0 0
    %945 = vmatprep.subr.bf16.mxu0 0
    %946 = vmatpush2.bf16.msra.mxu0 0
    %947 = vmatprep.subr.bf16.mxu0 0
    %948 = vmatpush2.bf16.msra.mxu0 0
    %949 = vmatprep.subr.bf16.mxu0 0
    %950 = vmatpush2.bf16.msra.mxu0 0
    %951 = vmatprep.subr.bf16.mxu0 0
    %952 = vmatpush2.bf16.msra.mxu0 0
    %953 = vmatprep.mubr.bf16.mxu0 0
    %954 = vmatmul.mubr.bf16.gmra.mxu0 %v895
    %v955 = vpop.f32.mrf.mxu0
    %v956 = vadd.f32 %v792, %v955
    %v957 = vpop.f32.mrf.mxu0
    %v958 = vpop.f32.mrf.mxu0
    %v959 = vadd.f32 %v795, %v958
    %v960 = vpop.f32.mrf.mxu0
    %961 = vmatprep.mubr.bf16.mxu0 0
    %962 = vmatmul.mubr.bf16.gmra.mxu0 %v898
    %v963 = vpop.f32.mrf.mxu0
    %v964 = vadd.f32 %v800, %v963
    %v965 = vpop.f32.mrf.mxu0
    %v966 = vpop.f32.mrf.mxu0
    %v967 = vadd.f32 %v803, %v966
    %v968 = vpop.f32.mrf.mxu0
    %969 = vmatprep.mubr.bf16.mxu0 0
    %970 = vmatmul.mubr.bf16.gmra.mxu0 %v901
    %v971 = vpop.f32.mrf.mxu0
    %v972 = vadd.f32 %v808, %v971
    %v973 = vpop.f32.mrf.mxu0
    %v974 = vpop.f32.mrf.mxu0
    %v975 = vadd.f32 %v811, %v974
    %v976 = vpop.f32.mrf.mxu0
    %977 = vmatprep.mubr.bf16.mxu0 0
    %978 = vmatmul.mubr.bf16.gmra.mxu0 %v904
    %v979 = vpop.f32.mrf.mxu0
    %v980 = vadd.f32 %v816, %v979
    %v981 = vpop.f32.mrf.mxu0
    %v982 = vpop.f32.mrf.mxu0
    %v983 = vadd.f32 %v819, %v982
    %v984 = vpop.f32.mrf.mxu0
    %985 = vmatprep.mubr.bf16.mxu0 0
    %986 = vmatmul.mubr.bf16.gmra.mxu0 %v907
    %v987 = vpop.f32.mrf.mxu0
    %v988 = vadd.f32 %v824, %v987
    %v989 = vpop.f32.mrf.mxu0
    %v990 = vpop.f32.mrf.mxu0
    %v991 = vadd.f32 %v827, %v990
    %v992 = vpop.f32.mrf.mxu0
    %993 = vmatprep.mubr.bf16.mxu0 0
    %994 = vmatmul.mubr.bf16.gmra.mxu0 %v910
    %v995 = vpop.f32.mrf.mxu0
    %v996 = vadd.f32 %v832, %v995
    %v997 = vpop.f32.mrf.mxu0
    %v998 = vpop.f32.mrf.mxu0
    %v999 = vadd.f32 %v835, %v998
    %v1000 = vpop.f32.mrf.mxu0
    %1001 = vmatprep.mubr.bf16.mxu0 0
    %1002 = vmatmul.mubr.bf16.gmra.mxu0 %v913
    %v1003 = vpop.f32.mrf.mxu0
    %v1004 = vadd.f32 %v840, %v1003
    %v1005 = vpop.f32.mrf.mxu0
    %v1006 = vpop.f32.mrf.mxu0
    %v1007 = vadd.f32 %v843, %v1006
    %v1008 = vpop.f32.mrf.mxu0
    %1009 = vmatprep.mubr.bf16.mxu0 0
    %1010 = vmatmul.mubr.bf16.gmra.mxu0 %v916
    %v1011 = vpop.f32.mrf.mxu0
    %v1012 = vadd.f32 %v848, %v1011
    %v1013 = vpop.f32.mrf.mxu0
    %v1014 = vpop.f32.mrf.mxu0
    %v1015 = vadd.f32 %v851, %v1014
    %v1016 = vpop.f32.mrf.mxu0
    %1017 = vdwg.mxu0
    %v1018 = vld [vmem:[#allocation2] sm:$0xe]
    %v1019 = vld [vmem:[#allocation2 + $0x8] sm:$0xe]
    %v1020 = vld [vmem:[#allocation2 + $0x10] sm:$0xe]
    %v1021 = vld [vmem:[#allocation2 + $0x18] sm:$0xe]
    %v1022 = vld [vmem:[#allocation2 + $0x20] sm:$0xe]
    %v1023 = vld [vmem:[#allocation2 + $0x28] sm:$0xe]
    %v1024 = vld [vmem:[#allocation2 + $0x30] sm:$0xe]
    %v1025 = vld [vmem:[#allocation2 + $0x38] sm:$0xe]
    %v1026 = vld [vmem:[#allocation2 + $0x50] sm:$0xe]
    %v1027 = vld [vmem:[#allocation2 + $0x58] sm:$0xe]
    %v1028 = vld [vmem:[#allocation2 + $0x60] sm:$0xe]
    %v1029 = vld [vmem:[#allocation2 + $0x68] sm:$0xe]
    %v1030 = vld [vmem:[#allocation2 + $0x70] sm:$0xe]
    %v1031 = vld [vmem:[#allocation2 + $0x78] sm:$0xe]
    %v1032 = vld [vmem:[#allocation2 + $0x80] sm:$0xe]
    %v1033 = vld [vmem:[#allocation2 + $0x88] sm:$0xe]
    %vm1066 = vcmask 1042432
    %vm1067 = vcmask 1046532
    %vm1068 = vmor %vm1066, %vm1067
    %v1069 = vrot.slane %v1018, 5
    %v1070 = vrot.slane %v1069, 4
    %v1071 = vrot.slane %v456, 5
    %v1072 = vsel %vm1068, %v1070, %v1071
    %v1073 = vrot.slane %v1019, 5
    %v1074 = vrot.slane %v1073, 4
    %v1075 = vrot.slane %v457, 5
    %v1076 = vsel %vm1068, %v1074, %v1075
    %v1077 = vrot.slane %v1020, 5
    %v1078 = vrot.slane %v1077, 4
    %v1079 = vrot.slane %v458, 5
    %v1080 = vsel %vm1068, %v1078, %v1079
    %v1081 = vrot.slane %v1021, 5
    %v1082 = vrot.slane %v1081, 4
    %v1083 = vrot.slane %v459, 5
    %v1084 = vsel %vm1068, %v1082, %v1083
    %v1085 = vrot.slane %v1022, 5
    %v1086 = vrot.slane %v1085, 4
    %v1087 = vrot.slane %v460, 5
    %v1088 = vsel %vm1068, %v1086, %v1087
    %v1089 = vrot.slane %v1023, 5
    %v1090 = vrot.slane %v1089, 4
    %v1091 = vrot.slane %v461, 5
    %v1092 = vsel %vm1068, %v1090, %v1091
    %v1093 = vrot.slane %v1024, 5
    %v1094 = vrot.slane %v1093, 4
    %v1095 = vrot.slane %v462, 5
    %v1096 = vsel %vm1068, %v1094, %v1095
    %v1097 = vrot.slane %v1025, 5
    %v1098 = vrot.slane %v1097, 4
    %v1099 = vrot.slane %v463, 5
    %v1100 = vsel %vm1068, %v1098, %v1099
    %v1101 = vrot.slane %v1026, 5
    %v1102 = vrot.slane %v1101, 4
    %v1103 = vrot.slane %v464, 5
    %v1104 = vsel %vm1068, %v1102, %v1103
    %v1105 = vrot.slane %v1027, 5
    %v1106 = vrot.slane %v1105, 4
    %v1107 = vrot.slane %v465, 5
    %v1108 = vsel %vm1068, %v1106, %v1107
    %v1109 = vrot.slane %v1028, 5
    %v1110 = vrot.slane %v1109, 4
    %v1111 = vrot.slane %v466, 5
    %v1112 = vsel %vm1068, %v1110, %v1111
    %v1113 = vrot.slane %v1029, 5
    %v1114 = vrot.slane %v1113, 4
    %v1115 = vrot.slane %v467, 5
    %v1116 = vsel %vm1068, %v1114, %v1115
    %v1117 = vrot.slane %v1030, 5
    %v1118 = vrot.slane %v1117, 4
    %v1119 = vrot.slane %v468, 5
    %v1120 = vsel %vm1068, %v1118, %v1119
    %v1121 = vrot.slane %v1031, 5
    %v1122 = vrot.slane %v1121, 4
    %v1123 = vrot.slane %v469, 5
    %v1124 = vsel %vm1068, %v1122, %v1123
    %v1125 = vrot.slane %v1032, 5
    %v1126 = vrot.slane %v1125, 4
    %v1127 = vrot.slane %v470, 5
    %v1128 = vsel %vm1068, %v1126, %v1127
    %v1129 = vrot.slane %v1033, 5
    %v1130 = vrot.slane %v1129, 4
    %v1131 = vrot.slane %v471, 5
    %v1132 = vsel %vm1068, %v1130, %v1131
    %s1133 = scalar_lea.vmem %s1, 4
    %v1134 = vld [vmem:[%s1133] sm:$0x3]
    %v1135 = vunpack.c.l.b16 %v1072
    %v1136 = vunpack.c.l.b16 %v1076
    %v1137 = vunpack.c.l.b16 %v1080
    %v1138 = vunpack.c.l.b16 %v1084
    %v1139 = vunpack.c.l.b16 %v1088
    %v1140 = vunpack.c.l.b16 %v1092
    %v1141 = vunpack.c.l.b16 %v1096
    %v1142 = vunpack.c.l.b16 %v1100
    %v1143 = vunpack.c.l.b16 %v1104
    %v1144 = vunpack.c.l.b16 %v1108
    %v1145 = vunpack.c.l.b16 %v1112
    %v1146 = vunpack.c.l.b16 %v1116
    %v1147 = vunpack.c.l.b16 %v1120
    %v1148 = vunpack.c.l.b16 %v1124
    %v1149 = vunpack.c.l.b16 %v1128
    %v1150 = vunpack.c.l.b16 %v1132
    %v1151 = vpack.c.b16 %v1136, %v1135
    %v1152 = vpack.c.b16 %v1138, %v1137
    %v1153 = vpack.c.b16 %v1140, %v1139
    %v1154 = vpack.c.b16 %v1142, %v1141
    %v1155 = vpack.c.b16 %v1144, %v1143
    %v1156 = vpack.c.b16 %v1146, %v1145
    %v1157 = vpack.c.b16 %v1148, %v1147
    %v1158 = vpack.c.b16 %v1150, %v1149
    %v1160 = vsel %vm725, %v1151, 0
    %v1163 = vsel %vm725, %v1152, 0
    %v1166 = vsel %vm725, %v1153, 0
    %v1169 = vsel %vm725, %v1154, 0
    %v1172 = vsel %vm725, %v1155, 0
    %v1175 = vsel %vm725, %v1156, 0
    %v1178 = vsel %vm725, %v1157, 0
    %v1181 = vsel %vm725, %v1158, 0
    %v1184 = vand.u32 %v1134, %v753
    %1186 = vmatprep.subr.bf16.mxu0 0
    %1187 = vmatpush1.bf16.msra.mxu0 0
    %1188 = vmatprep.subr.bf16.mxu0 0
    %1189 = vmatpush1.bf16.msra.mxu0 0
    %1190 = vmatprep.subr.bf16.mxu0 0
    %1191 = vmatpush1.bf16.msra.mxu0 0
    %1192 = vmatprep.subr.bf16.mxu0 0
    %1193 = vmatpush1.bf16.msra.mxu0 0
    %1194 = vmatprep.subr.bf16.mxu0 0
    %1195 = vmatpush1.bf16.msra.mxu0 0
    %1196 = vmatprep.subr.bf16.mxu0 0
    %1197 = vmatpush1.bf16.msra.mxu0 0
    %1198 = vmatprep.subr.bf16.mxu0 0
    %1199 = vmatpush1.bf16.msra.mxu0 0
    %1200 = vmatprep.subr.bf16.mxu0 0
    %1201 = vmatpush1.bf16.msra.mxu0 %v1184
    %1202 = vmatprep.subr.bf16.mxu0 0
    %1203 = vmatpush2.bf16.msra.mxu0 0
    %1204 = vmatprep.subr.bf16.mxu0 0
    %1205 = vmatpush2.bf16.msra.mxu0 0
    %1206 = vmatprep.subr.bf16.mxu0 0
    %1207 = vmatpush2.bf16.msra.mxu0 0
    %1208 = vmatprep.subr.bf16.mxu0 0
    %1209 = vmatpush2.bf16.msra.mxu0 0
    %1210 = vmatprep.subr.bf16.mxu0 0
    %1211 = vmatpush2.bf16.msra.mxu0 0
    %1212 = vmatprep.subr.bf16.mxu0 0
    %1213 = vmatpush2.bf16.msra.mxu0 0
    %1214 = vmatprep.subr.bf16.mxu0 0
    %1215 = vmatpush2.bf16.msra.mxu0 0
    %1216 = vmatprep.subr.bf16.mxu0 0
    %1217 = vmatpush2.bf16.msra.mxu0 0
    %1218 = vmatprep.mubr.bf16.mxu0 0
    %1219 = vmatmul.mubr.bf16.gmra.mxu0 %v1160
    %v1220 = vpop.f32.mrf.mxu0
    %v1221 = vadd.f32 0.0, %v1220
    %v1222 = vpop.f32.mrf.mxu0
    %v1223 = vpop.f32.mrf.mxu0
    %v1224 = vadd.f32 0.0, %v1223
    %v1225 = vpop.f32.mrf.mxu0
    %1226 = vmatprep.mubr.bf16.mxu0 0
    %1227 = vmatmul.mubr.bf16.gmra.mxu0 %v1163
    %v1228 = vpop.f32.mrf.mxu0
    %v1229 = vadd.f32 0.0, %v1228
    %v1230 = vpop.f32.mrf.mxu0
    %v1231 = vpop.f32.mrf.mxu0
    %v1232 = vadd.f32 0.0, %v1231
    %v1233 = vpop.f32.mrf.mxu0
    %1234 = vmatprep.mubr.bf16.mxu0 0
    %1235 = vmatmul.mubr.bf16.gmra.mxu0 %v1166
    %v1236 = vpop.f32.mrf.mxu0
    %v1237 = vadd.f32 0.0, %v1236
    %v1238 = vpop.f32.mrf.mxu0
    %v1239 = vpop.f32.mrf.mxu0
    %v1240 = vadd.f32 0.0, %v1239
    %v1241 = vpop.f32.mrf.mxu0
    %1242 = vmatprep.mubr.bf16.mxu0 0
    %1243 = vmatmul.mubr.bf16.gmra.mxu0 %v1169
    %v1244 = vpop.f32.mrf.mxu0
    %v1245 = vadd.f32 0.0, %v1244
    %v1246 = vpop.f32.mrf.mxu0
    %v1247 = vpop.f32.mrf.mxu0
    %v1248 = vadd.f32 0.0, %v1247
    %v1249 = vpop.f32.mrf.mxu0
    %1250 = vmatprep.mubr.bf16.mxu0 0
    %1251 = vmatmul.mubr.bf16.gmra.mxu0 %v1172
    %v1252 = vpop.f32.mrf.mxu0
    %v1253 = vadd.f32 0.0, %v1252
    %v1254 = vpop.f32.mrf.mxu0
    %v1255 = vpop.f32.mrf.mxu0
    %v1256 = vadd.f32 0.0, %v1255
    %v1257 = vpop.f32.mrf.mxu0
    %1258 = vmatprep.mubr.bf16.mxu0 0
    %1259 = vmatmul.mubr.bf16.gmra.mxu0 %v1175
    %v1260 = vpop.f32.mrf.mxu0
    %v1261 = vadd.f32 0.0, %v1260
    %v1262 = vpop.f32.mrf.mxu0
    %v1263 = vpop.f32.mrf.mxu0
    %v1264 = vadd.f32 0.0, %v1263
    %v1265 = vpop.f32.mrf.mxu0
    %1266 = vmatprep.mubr.bf16.mxu0 0
    %1267 = vmatmul.mubr.bf16.gmra.mxu0 %v1178
    %v1268 = vpop.f32.mrf.mxu0
    %v1269 = vadd.f32 0.0, %v1268
    %v1270 = vpop.f32.mrf.mxu0
    %v1271 = vpop.f32.mrf.mxu0
    %v1272 = vadd.f32 0.0, %v1271
    %v1273 = vpop.f32.mrf.mxu0
    %1274 = vmatprep.mubr.bf16.mxu0 0
    %1275 = vmatmul.mubr.bf16.gmra.mxu0 %v1181
    %v1276 = vpop.f32.mrf.mxu0
    %v1277 = vadd.f32 0.0, %v1276
    %v1278 = vpop.f32.mrf.mxu0
    %v1279 = vpop.f32.mrf.mxu0
    %v1280 = vadd.f32 0.0, %v1279
    %v1281 = vpop.f32.mrf.mxu0
    %1282 = vdwg.mxu0
    %v1283 = vadd.f32 %v956, %v1221
    %v1284 = vadd.f32 %v959, %v1224
    %v1285 = vadd.f32 %v964, %v1229
    %v1286 = vadd.f32 %v967, %v1232
    %v1287 = vadd.f32 %v972, %v1237
    %v1288 = vadd.f32 %v975, %v1240
    %v1289 = vadd.f32 %v980, %v1245
    %v1290 = vadd.f32 %v983, %v1248
    %v1291 = vadd.f32 %v988, %v1253
    %v1292 = vadd.f32 %v991, %v1256
    %v1293 = vadd.f32 %v996, %v1261
    %v1294 = vadd.f32 %v999, %v1264
    %v1295 = vadd.f32 %v1004, %v1269
    %v1296 = vadd.f32 %v1007, %v1272
    %v1297 = vadd.f32 %v1012, %v1277
    %v1298 = vadd.f32 %v1015, %v1280
    %v1299 = vld [vmem:[%s79] sm:$0xf]
    %v1300 = vld [vmem:[%s79 + $0x8] sm:$0xf]
    %v1301 = vld [vmem:[%s79 + $0x10] sm:$0xf]
    %v1302 = vld [vmem:[%s79 + $0x18] sm:$0xf]
    %v1303 = vld [vmem:[%s79 + $0x20] sm:$0xf]
    %v1304 = vld [vmem:[%s79 + $0x28] sm:$0xf]
    %v1305 = vld [vmem:[%s79 + $0x30] sm:$0xf]
    %v1306 = vld [vmem:[%s79 + $0x38] sm:$0xf]
    %v1307 = vld [vmem:[%s79 + $0x50] sm:$0xf]
    %v1308 = vld [vmem:[%s79 + $0x58] sm:$0xf]
    %v1309 = vld [vmem:[%s79 + $0x60] sm:$0xf]
    %v1310 = vld [vmem:[%s79 + $0x68] sm:$0xf]
    %v1311 = vld [vmem:[%s79 + $0x70] sm:$0xf]
    %v1312 = vld [vmem:[%s79 + $0x78] sm:$0xf]
    %v1313 = vld [vmem:[%s79 + $0x80] sm:$0xf]
    %v1314 = vld [vmem:[%s79 + $0x88] sm:$0xf]
    %s1315 = scalar_lea.vmem %s1, 6
    %v1316 = vld [vmem:[%s1315] sm:$0x3]
    %v1333 = vunpack.c.l.b16 %v1299
    %v1334 = vunpack.c.l.b16 %v1300
    %v1335 = vunpack.c.l.b16 %v1301
    %v1336 = vunpack.c.l.b16 %v1302
    %v1337 = vunpack.c.l.b16 %v1303
    %v1338 = vunpack.c.l.b16 %v1304
    %v1339 = vunpack.c.l.b16 %v1305
    %v1340 = vunpack.c.l.b16 %v1306
    %v1341 = vunpack.c.l.b16 %v1307
    %v1342 = vunpack.c.l.b16 %v1308
    %v1343 = vunpack.c.l.b16 %v1309
    %v1344 = vunpack.c.l.b16 %v1310
    %v1345 = vunpack.c.l.b16 %v1311
    %v1346 = vunpack.c.l.b16 %v1312
    %v1347 = vunpack.c.l.b16 %v1313
    %v1348 = vunpack.c.l.b16 %v1314
    %v1349 = vpack.c.b16 %v1334, %v1333
    %v1350 = vpack.c.b16 %v1336, %v1335
    %v1351 = vpack.c.b16 %v1338, %v1337
    %v1352 = vpack.c.b16 %v1340, %v1339
    %v1353 = vpack.c.b16 %v1342, %v1341
    %v1354 = vpack.c.b16 %v1344, %v1343
    %v1355 = vpack.c.b16 %v1346, %v1345
    %v1356 = vpack.c.b16 %v1348, %v1347
    %v1358 = vsel %vm725, %v1349, 0
    %v1361 = vsel %vm725, %v1350, 0
    %v1364 = vsel %vm725, %v1351, 0
    %v1367 = vsel %vm725, %v1352, 0
    %v1370 = vsel %vm725, %v1353, 0
    %v1373 = vsel %vm725, %v1354, 0
    %v1376 = vsel %vm725, %v1355, 0
    %v1379 = vsel %vm725, %v1356, 0
    %v1382 = vand.u32 %v1316, %v753
    %1384 = vmatprep.subr.bf16.mxu0 0
    %1385 = vmatpush1.bf16.msra.mxu0 0
    %1386 = vmatprep.subr.bf16.mxu0 0
    %1387 = vmatpush1.bf16.msra.mxu0 0
    %1388 = vmatprep.subr.bf16.mxu0 0
    %1389 = vmatpush1.bf16.msra.mxu0 0
    %1390 = vmatprep.subr.bf16.mxu0 0
    %1391 = vmatpush1.bf16.msra.mxu0 0
    %1392 = vmatprep.subr.bf16.mxu0 0
    %1393 = vmatpush1.bf16.msra.mxu0 0
    %1394 = vmatprep.subr.bf16.mxu0 0
    %1395 = vmatpush1.bf16.msra.mxu0 0
    %1396 = vmatprep.subr.bf16.mxu0 0
    %1397 = vmatpush1.bf16.msra.mxu0 0
    %1398 = vmatprep.subr.bf16.mxu0 0
    %1399 = vmatpush1.bf16.msra.mxu0 %v1382
    %1400 = vmatprep.subr.bf16.mxu0 0
    %1401 = vmatpush2.bf16.msra.mxu0 0
    %1402 = vmatprep.subr.bf16.mxu0 0
    %1403 = vmatpush2.bf16.msra.mxu0 0
    %1404 = vmatprep.subr.bf16.mxu0 0
    %1405 = vmatpush2.bf16.msra.mxu0 0
    %1406 = vmatprep.subr.bf16.mxu0 0
    %1407 = vmatpush2.bf16.msra.mxu0 0
    %1408 = vmatprep.subr.bf16.mxu0 0
    %1409 = vmatpush2.bf16.msra.mxu0 0
    %1410 = vmatprep.subr.bf16.mxu0 0
    %1411 = vmatpush2.bf16.msra.mxu0 0
    %1412 = vmatprep.subr.bf16.mxu0 0
    %1413 = vmatpush2.bf16.msra.mxu0 0
    %1414 = vmatprep.subr.bf16.mxu0 0
    %1415 = vmatpush2.bf16.msra.mxu0 0
    %1416 = vmatprep.mubr.bf16.mxu0 0
    %1417 = vmatmul.mubr.bf16.gmra.mxu0 %v1358
    %v1418 = vpop.f32.mrf.mxu0
    %v1419 = vadd.f32 0.0, %v1418
    %v1420 = vpop.f32.mrf.mxu0
    %v1421 = vpop.f32.mrf.mxu0
    %v1422 = vadd.f32 0.0, %v1421
    %v1423 = vpop.f32.mrf.mxu0
    %1424 = vmatprep.mubr.bf16.mxu0 0
    %1425 = vmatmul.mubr.bf16.gmra.mxu0 %v1361
    %v1426 = vpop.f32.mrf.mxu0
    %v1427 = vadd.f32 0.0, %v1426
    %v1428 = vpop.f32.mrf.mxu0
    %v1429 = vpop.f32.mrf.mxu0
    %v1430 = vadd.f32 0.0, %v1429
    %v1431 = vpop.f32.mrf.mxu0
    %1432 = vmatprep.mubr.bf16.mxu0 0
    %1433 = vmatmul.mubr.bf16.gmra.mxu0 %v1364
    %v1434 = vpop.f32.mrf.mxu0
    %v1435 = vadd.f32 0.0, %v1434
    %v1436 = vpop.f32.mrf.mxu0
    %v1437 = vpop.f32.mrf.mxu0
    %v1438 = vadd.f32 0.0, %v1437
    %v1439 = vpop.f32.mrf.mxu0
    %1440 = vmatprep.mubr.bf16.mxu0 0
    %1441 = vmatmul.mubr.bf16.gmra.mxu0 %v1367
    %v1442 = vpop.f32.mrf.mxu0
    %v1443 = vadd.f32 0.0, %v1442
    %v1444 = vpop.f32.mrf.mxu0
    %v1445 = vpop.f32.mrf.mxu0
    %v1446 = vadd.f32 0.0, %v1445
    %v1447 = vpop.f32.mrf.mxu0
    %1448 = vmatprep.mubr.bf16.mxu0 0
    %1449 = vmatmul.mubr.bf16.gmra.mxu0 %v1370
    %v1450 = vpop.f32.mrf.mxu0
    %v1451 = vadd.f32 0.0, %v1450
    %v1452 = vpop.f32.mrf.mxu0
    %v1453 = vpop.f32.mrf.mxu0
    %v1454 = vadd.f32 0.0, %v1453
    %v1455 = vpop.f32.mrf.mxu0
    %1456 = vmatprep.mubr.bf16.mxu0 0
    %1457 = vmatmul.mubr.bf16.gmra.mxu0 %v1373
    %v1458 = vpop.f32.mrf.mxu0
    %v1459 = vadd.f32 0.0, %v1458
    %v1460 = vpop.f32.mrf.mxu0
    %v1461 = vpop.f32.mrf.mxu0
    %v1462 = vadd.f32 0.0, %v1461
    %v1463 = vpop.f32.mrf.mxu0
    %1464 = vmatprep.mubr.bf16.mxu0 0
    %1465 = vmatmul.mubr.bf16.gmra.mxu0 %v1376
    %v1466 = vpop.f32.mrf.mxu0
    %v1467 = vadd.f32 0.0, %v1466
    %v1468 = vpop.f32.mrf.mxu0
    %v1469 = vpop.f32.mrf.mxu0
    %v1470 = vadd.f32 0.0, %v1469
    %v1471 = vpop.f32.mrf.mxu0
    %1472 = vmatprep.mubr.bf16.mxu0 0
    %1473 = vmatmul.mubr.bf16.gmra.mxu0 %v1379
    %v1474 = vpop.f32.mrf.mxu0
    %v1475 = vadd.f32 0.0, %v1474
    %v1476 = vpop.f32.mrf.mxu0
    %v1477 = vpop.f32.mrf.mxu0
    %v1478 = vadd.f32 0.0, %v1477
    %v1479 = vpop.f32.mrf.mxu0
    %1480 = vdwg.mxu0
    %v1481 = vadd.f32 %v1283, %v1419
    %v1482 = vadd.f32 %v1284, %v1422
    %v1483 = vadd.f32 %v1285, %v1427
    %v1484 = vadd.f32 %v1286, %v1430
    %v1485 = vadd.f32 %v1287, %v1435
    %v1486 = vadd.f32 %v1288, %v1438
    %v1487 = vadd.f32 %v1289, %v1443
    %v1488 = vadd.f32 %v1290, %v1446
    %v1489 = vadd.f32 %v1291, %v1451
    %v1490 = vadd.f32 %v1292, %v1454
    %v1491 = vadd.f32 %v1293, %v1459
    %v1492 = vadd.f32 %v1294, %v1462
    %v1493 = vadd.f32 %v1295, %v1467
    %v1494 = vadd.f32 %v1296, %v1470
    %v1495 = vadd.f32 %v1297, %v1475
    %v1496 = vadd.f32 %v1298, %v1478
    %v1497 = vld [vmem:[%s79] sm:$0xf]
    %v1498 = vld [vmem:[%s79 + $0x4] sm:$0x1]
    %v1499 = vld [vmem:[%s79 + $0x8] sm:$0xf]
    %v1500 = vld [vmem:[%s79 + $0xc] sm:$0x1]
    %v1501 = vld [vmem:[%s79 + $0x10] sm:$0xf]
    %v1502 = vld [vmem:[%s79 + $0x14] sm:$0x1]
    %v1503 = vld [vmem:[%s79 + $0x18] sm:$0xf]
    %v1504 = vld [vmem:[%s79 + $0x1c] sm:$0x1]
    %v1505 = vld [vmem:[%s79 + $0x20] sm:$0xf]
    %v1506 = vld [vmem:[%s79 + $0x24] sm:$0x1]
    %v1507 = vld [vmem:[%s79 + $0x28] sm:$0xf]
    %v1508 = vld [vmem:[%s79 + $0x2c] sm:$0x1]
    %v1509 = vld [vmem:[%s79 + $0x30] sm:$0xf]
    %v1510 = vld [vmem:[%s79 + $0x34] sm:$0x1]
    %v1511 = vld [vmem:[%s79 + $0x38] sm:$0xf]
    %v1512 = vld [vmem:[%s79 + $0x3c] sm:$0x1]
    %v1513 = vld [vmem:[%s79 + $0x50] sm:$0xf]
    %v1514 = vld [vmem:[%s79 + $0x54] sm:$0x1]
    %v1515 = vld [vmem:[%s79 + $0x58] sm:$0xf]
    %v1516 = vld [vmem:[%s79 + $0x5c] sm:$0x1]
    %v1517 = vld [vmem:[%s79 + $0x60] sm:$0xf]
    %v1518 = vld [vmem:[%s79 + $0x64] sm:$0x1]
    %v1519 = vld [vmem:[%s79 + $0x68] sm:$0xf]
    %v1520 = vld [vmem:[%s79 + $0x6c] sm:$0x1]
    %v1521 = vld [vmem:[%s79 + $0x70] sm:$0xf]
    %v1522 = vld [vmem:[%s79 + $0x74] sm:$0x1]
    %v1523 = vld [vmem:[%s79 + $0x78] sm:$0xf]
    %v1524 = vld [vmem:[%s79 + $0x7c] sm:$0x1]
    %v1525 = vld [vmem:[%s79 + $0x80] sm:$0xf]
    %v1526 = vld [vmem:[%s79 + $0x84] sm:$0x1]
    %v1527 = vld [vmem:[%s79 + $0x88] sm:$0xf]
    %v1528 = vld [vmem:[%s79 + $0x8c] sm:$0x1]
    %v1530 = vshrl.u32 %v1497, 16
    %v1532 = vrot.slane %v1530, 4
    %v1533 = vshll.u32 %v1497, 16
    %v1535 = vrot.slane %v1533, 5
    %v1536 = vor.u32 %v1532, %v1535
    %v1537 = vrot.slane %v1536, 4
    %v1539 = vshll.u32 %v1498, 16
    %v1541 = vrot.slane %v1539, 5
    %v1542 = vsel %vm474, %v1537, %v1541
    %v1544 = vshrl.u32 %v1499, 16
    %v1546 = vrot.slane %v1544, 4
    %v1547 = vshll.u32 %v1499, 16
    %v1549 = vrot.slane %v1547, 5
    %v1550 = vor.u32 %v1546, %v1549
    %v1551 = vrot.slane %v1550, 4
    %v1553 = vshll.u32 %v1500, 16
    %v1555 = vrot.slane %v1553, 5
    %v1556 = vsel %vm474, %v1551, %v1555
    %v1558 = vshrl.u32 %v1501, 16
    %v1560 = vrot.slane %v1558, 4
    %v1561 = vshll.u32 %v1501, 16
    %v1563 = vrot.slane %v1561, 5
    %v1564 = vor.u32 %v1560, %v1563
    %v1565 = vrot.slane %v1564, 4
    %v1567 = vshll.u32 %v1502, 16
    %v1569 = vrot.slane %v1567, 5
    %v1570 = vsel %vm474, %v1565, %v1569
    %v1572 = vshrl.u32 %v1503, 16
    %v1574 = vrot.slane %v1572, 4
    %v1575 = vshll.u32 %v1503, 16
    %v1577 = vrot.slane %v1575, 5
    %v1578 = vor.u32 %v1574, %v1577
    %v1579 = vrot.slane %v1578, 4
    %v1581 = vshll.u32 %v1504, 16
    %v1583 = vrot.slane %v1581, 5
    %v1584 = vsel %vm474, %v1579, %v1583
    %v1586 = vshrl.u32 %v1505, 16
    %v1588 = vrot.slane %v1586, 4
    %v1589 = vshll.u32 %v1505, 16
    %v1591 = vrot.slane %v1589, 5
    %v1592 = vor.u32 %v1588, %v1591
    %v1593 = vrot.slane %v1592, 4
    %v1595 = vshll.u32 %v1506, 16
    %v1597 = vrot.slane %v1595, 5
    %v1598 = vsel %vm474, %v1593, %v1597
    %v1600 = vshrl.u32 %v1507, 16
    %v1602 = vrot.slane %v1600, 4
    %v1603 = vshll.u32 %v1507, 16
    %v1605 = vrot.slane %v1603, 5
    %v1606 = vor.u32 %v1602, %v1605
    %v1607 = vrot.slane %v1606, 4
    %v1609 = vshll.u32 %v1508, 16
    %v1611 = vrot.slane %v1609, 5
    %v1612 = vsel %vm474, %v1607, %v1611
    %v1614 = vshrl.u32 %v1509, 16
    %v1616 = vrot.slane %v1614, 4
    %v1617 = vshll.u32 %v1509, 16
    %v1619 = vrot.slane %v1617, 5
    %v1620 = vor.u32 %v1616, %v1619
    %v1621 = vrot.slane %v1620, 4
    %v1623 = vshll.u32 %v1510, 16
    %v1625 = vrot.slane %v1623, 5
    %v1626 = vsel %vm474, %v1621, %v1625
    %v1628 = vshrl.u32 %v1511, 16
    %v1630 = vrot.slane %v1628, 4
    %v1631 = vshll.u32 %v1511, 16
    %v1633 = vrot.slane %v1631, 5
    %v1634 = vor.u32 %v1630, %v1633
    %v1635 = vrot.slane %v1634, 4
    %v1637 = vshll.u32 %v1512, 16
    %v1639 = vrot.slane %v1637, 5
    %v1640 = vsel %vm474, %v1635, %v1639
    %v1642 = vshrl.u32 %v1513, 16
    %v1644 = vrot.slane %v1642, 4
    %v1645 = vshll.u32 %v1513, 16
    %v1647 = vrot.slane %v1645, 5
    %v1648 = vor.u32 %v1644, %v1647
    %v1649 = vrot.slane %v1648, 4
    %v1651 = vshll.u32 %v1514, 16
    %v1653 = vrot.slane %v1651, 5
    %v1654 = vsel %vm474, %v1649, %v1653
    %v1656 = vshrl.u32 %v1515, 16
    %v1658 = vrot.slane %v1656, 4
    %v1659 = vshll.u32 %v1515, 16
    %v1661 = vrot.slane %v1659, 5
    %v1662 = vor.u32 %v1658, %v1661
    %v1663 = vrot.slane %v1662, 4
    %v1665 = vshll.u32 %v1516, 16
    %v1667 = vrot.slane %v1665, 5
    %v1668 = vsel %vm474, %v1663, %v1667
    %v1670 = vshrl.u32 %v1517, 16
    %v1672 = vrot.slane %v1670, 4
    %v1673 = vshll.u32 %v1517, 16
    %v1675 = vrot.slane %v1673, 5
    %v1676 = vor.u32 %v1672, %v1675
    %v1677 = vrot.slane %v1676, 4
    %v1679 = vshll.u32 %v1518, 16
    %v1681 = vrot.slane %v1679, 5
    %v1682 = vsel %vm474, %v1677, %v1681
    %v1684 = vshrl.u32 %v1519, 16
    %v1686 = vrot.slane %v1684, 4
    %v1687 = vshll.u32 %v1519, 16
    %v1689 = vrot.slane %v1687, 5
    %v1690 = vor.u32 %v1686, %v1689
    %v1691 = vrot.slane %v1690, 4
    %v1693 = vshll.u32 %v1520, 16
    %v1695 = vrot.slane %v1693, 5
    %v1696 = vsel %vm474, %v1691, %v1695
    %v1698 = vshrl.u32 %v1521, 16
    %v1700 = vrot.slane %v1698, 4
    %v1701 = vshll.u32 %v1521, 16
    %v1703 = vrot.slane %v1701, 5
    %v1704 = vor.u32 %v1700, %v1703
    %v1705 = vrot.slane %v1704, 4
    %v1707 = vshll.u32 %v1522, 16
    %v1709 = vrot.slane %v1707, 5
    %v1710 = vsel %vm474, %v1705, %v1709
    %v1712 = vshrl.u32 %v1523, 16
    %v1714 = vrot.slane %v1712, 4
    %v1715 = vshll.u32 %v1523, 16
    %v1717 = vrot.slane %v1715, 5
    %v1718 = vor.u32 %v1714, %v1717
    %v1719 = vrot.slane %v1718, 4
    %v1721 = vshll.u32 %v1524, 16
    %v1723 = vrot.slane %v1721, 5
    %v1724 = vsel %vm474, %v1719, %v1723
    %v1726 = vshrl.u32 %v1525, 16
    %v1728 = vrot.slane %v1726, 4
    %v1729 = vshll.u32 %v1525, 16
    %v1731 = vrot.slane %v1729, 5
    %v1732 = vor.u32 %v1728, %v1731
    %v1733 = vrot.slane %v1732, 4
    %v1735 = vshll.u32 %v1526, 16
    %v1737 = vrot.slane %v1735, 5
    %v1738 = vsel %vm474, %v1733, %v1737
    %v1740 = vshrl.u32 %v1527, 16
    %v1742 = vrot.slane %v1740, 4
    %v1743 = vshll.u32 %v1527, 16
    %v1745 = vrot.slane %v1743, 5
    %v1746 = vor.u32 %v1742, %v1745
    %v1747 = vrot.slane %v1746, 4
    %v1749 = vshll.u32 %v1528, 16
    %v1751 = vrot.slane %v1749, 5
    %v1752 = vsel %vm474, %v1747, %v1751
    %s1753 = scalar_lea.vmem %s1, 8
    %v1754 = vld [vmem:[%s1753] sm:$0x3]
    %v1755 = vunpack.c.l.b16 %v1542
    %v1756 = vunpack.c.l.b16 %v1556
    %v1757 = vunpack.c.l.b16 %v1570
    %v1758 = vunpack.c.l.b16 %v1584
    %v1759 = vunpack.c.l.b16 %v1598
    %v1760 = vunpack.c.l.b16 %v1612
    %v1761 = vunpack.c.l.b16 %v1626
    %v1762 = vunpack.c.l.b16 %v1640
    %v1763 = vunpack.c.l.b16 %v1654
    %v1764 = vunpack.c.l.b16 %v1668
    %v1765 = vunpack.c.l.b16 %v1682
    %v1766 = vunpack.c.l.b16 %v1696
    %v1767 = vunpack.c.l.b16 %v1710
    %v1768 = vunpack.c.l.b16 %v1724
    %v1769 = vunpack.c.l.b16 %v1738
    %v1770 = vunpack.c.l.b16 %v1752
    %v1771 = vpack.c.b16 %v1756, %v1755
    %v1772 = vpack.c.b16 %v1758, %v1757
    %v1773 = vpack.c.b16 %v1760, %v1759
    %v1774 = vpack.c.b16 %v1762, %v1761
    %v1775 = vpack.c.b16 %v1764, %v1763
    %v1776 = vpack.c.b16 %v1766, %v1765
    %v1777 = vpack.c.b16 %v1768, %v1767
    %v1778 = vpack.c.b16 %v1770, %v1769
    %v1780 = vsel %vm725, %v1771, 0
    %v1783 = vsel %vm725, %v1772, 0
    %v1786 = vsel %vm725, %v1773, 0
    %v1789 = vsel %vm725, %v1774, 0
    %v1792 = vsel %vm725, %v1775, 0
    %v1795 = vsel %vm725, %v1776, 0
    %v1798 = vsel %vm725, %v1777, 0
    %v1801 = vsel %vm725, %v1778, 0
    %v1804 = vand.u32 %v1754, %v753
    %1806 = vmatprep.subr.bf16.mxu0 0
    %1807 = vmatpush1.bf16.msra.mxu0 0
    %1808 = vmatprep.subr.bf16.mxu0 0
    %1809 = vmatpush1.bf16.msra.mxu0 0
    %1810 = vmatprep.subr.bf16.mxu0 0
    %1811 = vmatpush1.bf16.msra.mxu0 0
    %1812 = vmatprep.subr.bf16.mxu0 0
    %1813 = vmatpush1.bf16.msra.mxu0 0
    %1814 = vmatprep.subr.bf16.mxu0 0
    %1815 = vmatpush1.bf16.msra.mxu0 0
    %1816 = vmatprep.subr.bf16.mxu0 0
    %1817 = vmatpush1.bf16.msra.mxu0 0
    %1818 = vmatprep.subr.bf16.mxu0 0
    %1819 = vmatpush1.bf16.msra.mxu0 0
    %1820 = vmatprep.subr.bf16.mxu0 0
    %1821 = vmatpush1.bf16.msra.mxu0 %v1804
    %1822 = vmatprep.subr.bf16.mxu0 0
    %1823 = vmatpush2.bf16.msra.mxu0 0
    %1824 = vmatprep.subr.bf16.mxu0 0
    %1825 = vmatpush2.bf16.msra.mxu0 0
    %1826 = vmatprep.subr.bf16.mxu0 0
    %1827 = vmatpush2.bf16.msra.mxu0 0
    %1828 = vmatprep.subr.bf16.mxu0 0
    %1829 = vmatpush2.bf16.msra.mxu0 0
    %1830 = vmatprep.subr.bf16.mxu0 0
    %1831 = vmatpush2.bf16.msra.mxu0 0
    %1832 = vmatprep.subr.bf16.mxu0 0
    %1833 = vmatpush2.bf16.msra.mxu0 0
    %1834 = vmatprep.subr.bf16.mxu0 0
    %1835 = vmatpush2.bf16.msra.mxu0 0
    %1836 = vmatprep.subr.bf16.mxu0 0
    %1837 = vmatpush2.bf16.msra.mxu0 0
    %1838 = vmatprep.mubr.bf16.mxu0 0
    %1839 = vmatmul.mubr.bf16.gmra.mxu0 %v1780
    %v1840 = vpop.f32.mrf.mxu0
    %v1841 = vadd.f32 0.0, %v1840
    %v1842 = vpop.f32.mrf.mxu0
    %v1843 = vpop.f32.mrf.mxu0
    %v1844 = vadd.f32 0.0, %v1843
    %v1845 = vpop.f32.mrf.mxu0
    %1846 = vmatprep.mubr.bf16.mxu0 0
    %1847 = vmatmul.mubr.bf16.gmra.mxu0 %v1783
    %v1848 = vpop.f32.mrf.mxu0
    %v1849 = vadd.f32 0.0, %v1848
    %v1850 = vpop.f32.mrf.mxu0
    %v1851 = vpop.f32.mrf.mxu0
    %v1852 = vadd.f32 0.0, %v1851
    %v1853 = vpop.f32.mrf.mxu0
    %1854 = vmatprep.mubr.bf16.mxu0 0
    %1855 = vmatmul.mubr.bf16.gmra.mxu0 %v1786
    %v1856 = vpop.f32.mrf.mxu0
    %v1857 = vadd.f32 0.0, %v1856
    %v1858 = vpop.f32.mrf.mxu0
    %v1859 = vpop.f32.mrf.mxu0
    %v1860 = vadd.f32 0.0, %v1859
    %v1861 = vpop.f32.mrf.mxu0
    %1862 = vmatprep.mubr.bf16.mxu0 0
    %1863 = vmatmul.mubr.bf16.gmra.mxu0 %v1789
    %v1864 = vpop.f32.mrf.mxu0
    %v1865 = vadd.f32 0.0, %v1864
    %v1866 = vpop.f32.mrf.mxu0
    %v1867 = vpop.f32.mrf.mxu0
    %v1868 = vadd.f32 0.0, %v1867
    %v1869 = vpop.f32.mrf.mxu0
    %1870 = vmatprep.mubr.bf16.mxu0 0
    %1871 = vmatmul.mubr.bf16.gmra.mxu0 %v1792
    %v1872 = vpop.f32.mrf.mxu0
    %v1873 = vadd.f32 0.0, %v1872
    %v1874 = vpop.f32.mrf.mxu0
    %v1875 = vpop.f32.mrf.mxu0
    %v1876 = vadd.f32 0.0, %v1875
    %v1877 = vpop.f32.mrf.mxu0
    %1878 = vmatprep.mubr.bf16.mxu0 0
    %1879 = vmatmul.mubr.bf16.gmra.mxu0 %v1795
    %v1880 = vpop.f32.mrf.mxu0
    %v1881 = vadd.f32 0.0, %v1880
    %v1882 = vpop.f32.mrf.mxu0
    %v1883 = vpop.f32.mrf.mxu0
    %v1884 = vadd.f32 0.0, %v1883
    %v1885 = vpop.f32.mrf.mxu0
    %1886 = vmatprep.mubr.bf16.mxu0 0
    %1887 = vmatmul.mubr.bf16.gmra.mxu0 %v1798
    %v1888 = vpop.f32.mrf.mxu0
    %v1889 = vadd.f32 0.0, %v1888
    %v1890 = vpop.f32.mrf.mxu0
    %v1891 = vpop.f32.mrf.mxu0
    %v1892 = vadd.f32 0.0, %v1891
    %v1893 = vpop.f32.mrf.mxu0
    %1894 = vmatprep.mubr.bf16.mxu0 0
    %1895 = vmatmul.mubr.bf16.gmra.mxu0 %v1801
    %v1896 = vpop.f32.mrf.mxu0
    %v1897 = vadd.f32 0.0, %v1896
    %v1898 = vpop.f32.mrf.mxu0
    %v1899 = vpop.f32.mrf.mxu0
    %v1900 = vadd.f32 0.0, %v1899
    %v1901 = vpop.f32.mrf.mxu0
    %1902 = vdwg.mxu0
    %v1903 = vadd.f32 %v1481, %v1841
    %v1904 = vadd.f32 %v1482, %v1844
    %v1905 = vadd.f32 %v1483, %v1849
    %v1906 = vadd.f32 %v1484, %v1852
    %v1907 = vadd.f32 %v1485, %v1857
    %v1908 = vadd.f32 %v1486, %v1860
    %v1909 = vadd.f32 %v1487, %v1865
    %v1910 = vadd.f32 %v1488, %v1868
    %v1911 = vadd.f32 %v1489, %v1873
    %v1912 = vadd.f32 %v1490, %v1876
    %v1913 = vadd.f32 %v1491, %v1881
    %v1914 = vadd.f32 %v1492, %v1884
    %v1915 = vadd.f32 %v1493, %v1889
    %v1916 = vadd.f32 %v1494, %v1892
    %v1917 = vadd.f32 %v1495, %v1897
    %v1918 = vadd.f32 %v1496, %v1900
    %v1919 = vld [vmem:[%s79] sm:$0xe]
    %v1920 = vld [vmem:[%s79 + $0x8] sm:$0xe]
    %v1921 = vld [vmem:[%s79 + $0x10] sm:$0xe]
    %v1922 = vld [vmem:[%s79 + $0x18] sm:$0xe]
    %v1923 = vld [vmem:[%s79 + $0x20] sm:$0xe]
    %v1924 = vld [vmem:[%s79 + $0x28] sm:$0xe]
    %v1925 = vld [vmem:[%s79 + $0x30] sm:$0xe]
    %v1926 = vld [vmem:[%s79 + $0x38] sm:$0xe]
    %v1927 = vld [vmem:[%s79 + $0x50] sm:$0xe]
    %v1928 = vld [vmem:[%s79 + $0x58] sm:$0xe]
    %v1929 = vld [vmem:[%s79 + $0x60] sm:$0xe]
    %v1930 = vld [vmem:[%s79 + $0x68] sm:$0xe]
    %v1931 = vld [vmem:[%s79 + $0x70] sm:$0xe]
    %v1932 = vld [vmem:[%s79 + $0x78] sm:$0xe]
    %v1933 = vld [vmem:[%s79 + $0x80] sm:$0xe]
    %v1934 = vld [vmem:[%s79 + $0x88] sm:$0xe]
    %v1967 = vrot.slane %v1919, 5
    %v1968 = vrot.slane %v1967, 4
    %v1969 = vrot.slane %v1498, 5
    %v1970 = vsel %vm1068, %v1968, %v1969
    %v1971 = vrot.slane %v1920, 5
    %v1972 = vrot.slane %v1971, 4
    %v1973 = vrot.slane %v1500, 5
    %v1974 = vsel %vm1068, %v1972, %v1973
    %v1975 = vrot.slane %v1921, 5
    %v1976 = vrot.slane %v1975, 4
    %v1977 = vrot.slane %v1502, 5
    %v1978 = vsel %vm1068, %v1976, %v1977
    %v1979 = vrot.slane %v1922, 5
    %v1980 = vrot.slane %v1979, 4
    %v1981 = vrot.slane %v1504, 5
    %v1982 = vsel %vm1068, %v1980, %v1981
    %v1983 = vrot.slane %v1923, 5
    %v1984 = vrot.slane %v1983, 4
    %v1985 = vrot.slane %v1506, 5
    %v1986 = vsel %vm1068, %v1984, %v1985
    %v1987 = vrot.slane %v1924, 5
    %v1988 = vrot.slane %v1987, 4
    %v1989 = vrot.slane %v1508, 5
    %v1990 = vsel %vm1068, %v1988, %v1989
    %v1991 = vrot.slane %v1925, 5
    %v1992 = vrot.slane %v1991, 4
    %v1993 = vrot.slane %v1510, 5
    %v1994 = vsel %vm1068, %v1992, %v1993
    %v1995 = vrot.slane %v1926, 5
    %v1996 = vrot.slane %v1995, 4
    %v1997 = vrot.slane %v1512, 5
    %v1998 = vsel %vm1068, %v1996, %v1997
    %v1999 = vrot.slane %v1927, 5
    %v2000 = vrot.slane %v1999, 4
    %v2001 = vrot.slane %v1514, 5
    %v2002 = vsel %vm1068, %v2000, %v2001
    %v2003 = vrot.slane %v1928, 5
    %v2004 = vrot.slane %v2003, 4
    %v2005 = vrot.slane %v1516, 5
    %v2006 = vsel %vm1068, %v2004, %v2005
    %v2007 = vrot.slane %v1929, 5
    %v2008 = vrot.slane %v2007, 4
    %v2009 = vrot.slane %v1518, 5
    %v2010 = vsel %vm1068, %v2008, %v2009
    %v2011 = vrot.slane %v1930, 5
    %v2012 = vrot.slane %v2011, 4
    %v2013 = vrot.slane %v1520, 5
    %v2014 = vsel %vm1068, %v2012, %v2013
    %v2015 = vrot.slane %v1931, 5
    %v2016 = vrot.slane %v2015, 4
    %v2017 = vrot.slane %v1522, 5
    %v2018 = vsel %vm1068, %v2016, %v2017
    %v2019 = vrot.slane %v1932, 5
    %v2020 = vrot.slane %v2019, 4
    %v2021 = vrot.slane %v1524, 5
    %v2022 = vsel %vm1068, %v2020, %v2021
    %v2023 = vrot.slane %v1933, 5
    %v2024 = vrot.slane %v2023, 4
    %v2025 = vrot.slane %v1526, 5
    %v2026 = vsel %vm1068, %v2024, %v2025
    %v2027 = vrot.slane %v1934, 5
    %v2028 = vrot.slane %v2027, 4
    %v2029 = vrot.slane %v1528, 5
    %v2030 = vsel %vm1068, %v2028, %v2029
    %s2031 = scalar_lea.vmem %s1, 10
    %v2032 = vld [vmem:[%s2031] sm:$0x3]
    %v2033 = vunpack.c.l.b16 %v1970
    %v2034 = vunpack.c.l.b16 %v1974
    %v2035 = vunpack.c.l.b16 %v1978
    %v2036 = vunpack.c.l.b16 %v1982
    %v2037 = vunpack.c.l.b16 %v1986
    %v2038 = vunpack.c.l.b16 %v1990
    %v2039 = vunpack.c.l.b16 %v1994
    %v2040 = vunpack.c.l.b16 %v1998
    %v2041 = vunpack.c.l.b16 %v2002
    %v2042 = vunpack.c.l.b16 %v2006
    %v2043 = vunpack.c.l.b16 %v2010
    %v2044 = vunpack.c.l.b16 %v2014
    %v2045 = vunpack.c.l.b16 %v2018
    %v2046 = vunpack.c.l.b16 %v2022
    %v2047 = vunpack.c.l.b16 %v2026
    %v2048 = vunpack.c.l.b16 %v2030
    %v2049 = vpack.c.b16 %v2034, %v2033
    %v2050 = vpack.c.b16 %v2036, %v2035
    %v2051 = vpack.c.b16 %v2038, %v2037
    %v2052 = vpack.c.b16 %v2040, %v2039
    %v2053 = vpack.c.b16 %v2042, %v2041
    %v2054 = vpack.c.b16 %v2044, %v2043
    %v2055 = vpack.c.b16 %v2046, %v2045
    %v2056 = vpack.c.b16 %v2048, %v2047
    %v2058 = vsel %vm725, %v2049, 0
    %v2061 = vsel %vm725, %v2050, 0
    %v2064 = vsel %vm725, %v2051, 0
    %v2067 = vsel %vm725, %v2052, 0
    %v2070 = vsel %vm725, %v2053, 0
    %v2073 = vsel %vm725, %v2054, 0
    %v2076 = vsel %vm725, %v2055, 0
    %v2079 = vsel %vm725, %v2056, 0
    %v2082 = vand.u32 %v2032, %v753
    %2084 = vmatprep.subr.bf16.mxu0 0
    %2085 = vmatpush1.bf16.msra.mxu0 0
    %2086 = vmatprep.subr.bf16.mxu0 0
    %2087 = vmatpush1.bf16.msra.mxu0 0
    %2088 = vmatprep.subr.bf16.mxu0 0
    %2089 = vmatpush1.bf16.msra.mxu0 0
    %2090 = vmatprep.subr.bf16.mxu0 0
    %2091 = vmatpush1.bf16.msra.mxu0 0
    %2092 = vmatprep.subr.bf16.mxu0 0
    %2093 = vmatpush1.bf16.msra.mxu0 0
    %2094 = vmatprep.subr.bf16.mxu0 0
    %2095 = vmatpush1.bf16.msra.mxu0 0
    %2096 = vmatprep.subr.bf16.mxu0 0
    %2097 = vmatpush1.bf16.msra.mxu0 0
    %2098 = vmatprep.subr.bf16.mxu0 0
    %2099 = vmatpush1.bf16.msra.mxu0 %v2082
    %2100 = vmatprep.subr.bf16.mxu0 0
    %2101 = vmatpush2.bf16.msra.mxu0 0
    %2102 = vmatprep.subr.bf16.mxu0 0
    %2103 = vmatpush2.bf16.msra.mxu0 0
    %2104 = vmatprep.subr.bf16.mxu0 0
    %2105 = vmatpush2.bf16.msra.mxu0 0
    %2106 = vmatprep.subr.bf16.mxu0 0
    %2107 = vmatpush2.bf16.msra.mxu0 0
    %2108 = vmatprep.subr.bf16.mxu0 0
    %2109 = vmatpush2.bf16.msra.mxu0 0
    %2110 = vmatprep.subr.bf16.mxu0 0
    %2111 = vmatpush2.bf16.msra.mxu0 0
    %2112 = vmatprep.subr.bf16.mxu0 0
    %2113 = vmatpush2.bf16.msra.mxu0 0
    %2114 = vmatprep.subr.bf16.mxu0 0
    %2115 = vmatpush2.bf16.msra.mxu0 0
    %2116 = vmatprep.mubr.bf16.mxu0 0
    %2117 = vmatmul.mubr.bf16.gmra.mxu0 %v2058
    %v2118 = vpop.f32.mrf.mxu0
    %v2119 = vadd.f32 0.0, %v2118
    %v2120 = vpop.f32.mrf.mxu0
    %v2121 = vpop.f32.mrf.mxu0
    %v2122 = vadd.f32 0.0, %v2121
    %v2123 = vpop.f32.mrf.mxu0
    %2124 = vmatprep.mubr.bf16.mxu0 0
    %2125 = vmatmul.mubr.bf16.gmra.mxu0 %v2061
    %v2126 = vpop.f32.mrf.mxu0
    %v2127 = vadd.f32 0.0, %v2126
    %v2128 = vpop.f32.mrf.mxu0
    %v2129 = vpop.f32.mrf.mxu0
    %v2130 = vadd.f32 0.0, %v2129
    %v2131 = vpop.f32.mrf.mxu0
    %2132 = vmatprep.mubr.bf16.mxu0 0
    %2133 = vmatmul.mubr.bf16.gmra.mxu0 %v2064
    %v2134 = vpop.f32.mrf.mxu0
    %v2135 = vadd.f32 0.0, %v2134
    %v2136 = vpop.f32.mrf.mxu0
    %v2137 = vpop.f32.mrf.mxu0
    %v2138 = vadd.f32 0.0, %v2137
    %v2139 = vpop.f32.mrf.mxu0
    %2140 = vmatprep.mubr.bf16.mxu0 0
    %2141 = vmatmul.mubr.bf16.gmra.mxu0 %v2067
    %v2142 = vpop.f32.mrf.mxu0
    %v2143 = vadd.f32 0.0, %v2142
    %v2144 = vpop.f32.mrf.mxu0
    %v2145 = vpop.f32.mrf.mxu0
    %v2146 = vadd.f32 0.0, %v2145
    %v2147 = vpop.f32.mrf.mxu0
    %2148 = vmatprep.mubr.bf16.mxu0 0
    %2149 = vmatmul.mubr.bf16.gmra.mxu0 %v2070
    %v2150 = vpop.f32.mrf.mxu0
    %v2151 = vadd.f32 0.0, %v2150
    %v2152 = vpop.f32.mrf.mxu0
    %v2153 = vpop.f32.mrf.mxu0
    %v2154 = vadd.f32 0.0, %v2153
    %v2155 = vpop.f32.mrf.mxu0
    %2156 = vmatprep.mubr.bf16.mxu0 0
    %2157 = vmatmul.mubr.bf16.gmra.mxu0 %v2073
    %v2158 = vpop.f32.mrf.mxu0
    %v2159 = vadd.f32 0.0, %v2158
    %v2160 = vpop.f32.mrf.mxu0
    %v2161 = vpop.f32.mrf.mxu0
    %v2162 = vadd.f32 0.0, %v2161
    %v2163 = vpop.f32.mrf.mxu0
    %2164 = vmatprep.mubr.bf16.mxu0 0
    %2165 = vmatmul.mubr.bf16.gmra.mxu0 %v2076
    %v2166 = vpop.f32.mrf.mxu0
    %v2167 = vadd.f32 0.0, %v2166
    %v2168 = vpop.f32.mrf.mxu0
    %v2169 = vpop.f32.mrf.mxu0
    %v2170 = vadd.f32 0.0, %v2169
    %v2171 = vpop.f32.mrf.mxu0
    %2172 = vmatprep.mubr.bf16.mxu0 0
    %2173 = vmatmul.mubr.bf16.gmra.mxu0 %v2079
    %v2174 = vpop.f32.mrf.mxu0
    %v2175 = vadd.f32 0.0, %v2174
    %v2176 = vpop.f32.mrf.mxu0
    %v2177 = vpop.f32.mrf.mxu0
    %v2178 = vadd.f32 0.0, %v2177
    %v2179 = vpop.f32.mrf.mxu0
    %2180 = vdwg.mxu0
    %v2181 = vadd.f32 %v1903, %v2119
    %v2182 = vadd.f32 %v1904, %v2122
    %v2183 = vadd.f32 %v1905, %v2127
    %v2184 = vadd.f32 %v1906, %v2130
    %v2185 = vadd.f32 %v1907, %v2135
    %v2186 = vadd.f32 %v1908, %v2138
    %v2187 = vadd.f32 %v1909, %v2143
    %v2188 = vadd.f32 %v1910, %v2146
    %v2189 = vadd.f32 %v1911, %v2151
    %v2190 = vadd.f32 %v1912, %v2154
    %v2191 = vadd.f32 %v1913, %v2159
    %v2192 = vadd.f32 %v1914, %v2162
    %v2193 = vadd.f32 %v1915, %v2167
    %v2194 = vadd.f32 %v1916, %v2170
    %v2195 = vadd.f32 %v1917, %v2175
    %v2196 = vadd.f32 %v1918, %v2178
    %s2197 = scalar_lea.vmem [#allocation2], 16
    %v2198 = vld [vmem:[%s2197] sm:$0xf]
    %v2199 = vld [vmem:[%s2197 + $0x8] sm:$0xf]
    %v2200 = vld [vmem:[%s2197 + $0x10] sm:$0xf]
    %v2201 = vld [vmem:[%s2197 + $0x18] sm:$0xf]
    %v2202 = vld [vmem:[%s2197 + $0x20] sm:$0xf]
    %v2203 = vld [vmem:[%s2197 + $0x28] sm:$0xf]
    %v2204 = vld [vmem:[%s2197 + $0x30] sm:$0xf]
    %v2205 = vld [vmem:[%s2197 + $0x38] sm:$0xf]
    %v2206 = vld [vmem:[%s2197 + $0x50] sm:$0xf]
    %v2207 = vld [vmem:[%s2197 + $0x58] sm:$0xf]
    %v2208 = vld [vmem:[%s2197 + $0x60] sm:$0xf]
    %v2209 = vld [vmem:[%s2197 + $0x68] sm:$0xf]
    %v2210 = vld [vmem:[%s2197 + $0x70] sm:$0xf]
    %v2211 = vld [vmem:[%s2197 + $0x78] sm:$0xf]
    %v2212 = vld [vmem:[%s2197 + $0x80] sm:$0xf]
    %v2213 = vld [vmem:[%s2197 + $0x88] sm:$0xf]
    %s2214 = scalar_lea.vmem %s1, 12
    %v2215 = vld [vmem:[%s2214] sm:$0x3]
    %v2232 = vunpack.c.l.b16 %v2198
    %v2233 = vunpack.c.l.b16 %v2199
    %v2234 = vunpack.c.l.b16 %v2200
    %v2235 = vunpack.c.l.b16 %v2201
    %v2236 = vunpack.c.l.b16 %v2202
    %v2237 = vunpack.c.l.b16 %v2203
    %v2238 = vunpack.c.l.b16 %v2204
    %v2239 = vunpack.c.l.b16 %v2205
    %v2240 = vunpack.c.l.b16 %v2206
    %v2241 = vunpack.c.l.b16 %v2207
    %v2242 = vunpack.c.l.b16 %v2208
    %v2243 = vunpack.c.l.b16 %v2209
    %v2244 = vunpack.c.l.b16 %v2210
    %v2245 = vunpack.c.l.b16 %v2211
    %v2246 = vunpack.c.l.b16 %v2212
    %v2247 = vunpack.c.l.b16 %v2213
    %v2248 = vpack.c.b16 %v2233, %v2232
    %v2249 = vpack.c.b16 %v2235, %v2234
    %v2250 = vpack.c.b16 %v2237, %v2236
    %v2251 = vpack.c.b16 %v2239, %v2238
    %v2252 = vpack.c.b16 %v2241, %v2240
    %v2253 = vpack.c.b16 %v2243, %v2242
    %v2254 = vpack.c.b16 %v2245, %v2244
    %v2255 = vpack.c.b16 %v2247, %v2246
    %v2257 = vsel %vm725, %v2248, 0
    %v2260 = vsel %vm725, %v2249, 0
    %v2263 = vsel %vm725, %v2250, 0
    %v2266 = vsel %vm725, %v2251, 0
    %v2269 = vsel %vm725, %v2252, 0
    %v2272 = vsel %vm725, %v2253, 0
    %v2275 = vsel %vm725, %v2254, 0
    %v2278 = vsel %vm725, %v2255, 0
    %v2281 = vand.u32 %v2215, %v753
    %2283 = vmatprep.subr.bf16.mxu0 0
    %2284 = vmatpush1.bf16.msra.mxu0 0
    %2285 = vmatprep.subr.bf16.mxu0 0
    %2286 = vmatpush1.bf16.msra.mxu0 0
    %2287 = vmatprep.subr.bf16.mxu0 0
    %2288 = vmatpush1.bf16.msra.mxu0 0
    %2289 = vmatprep.subr.bf16.mxu0 0
    %2290 = vmatpush1.bf16.msra.mxu0 0
    %2291 = vmatprep.subr.bf16.mxu0 0
    %2292 = vmatpush1.bf16.msra.mxu0 0
    %2293 = vmatprep.subr.bf16.mxu0 0
    %2294 = vmatpush1.bf16.msra.mxu0 0
    %2295 = vmatprep.subr.bf16.mxu0 0
    %2296 = vmatpush1.bf16.msra.mxu0 0
    %2297 = vmatprep.subr.bf16.mxu0 0
    %2298 = vmatpush1.bf16.msra.mxu0 %v2281
    %2299 = vmatprep.subr.bf16.mxu0 0
    %2300 = vmatpush2.bf16.msra.mxu0 0
    %2301 = vmatprep.subr.bf16.mxu0 0
    %2302 = vmatpush2.bf16.msra.mxu0 0
    %2303 = vmatprep.subr.bf16.mxu0 0
    %2304 = vmatpush2.bf16.msra.mxu0 0
    %2305 = vmatprep.subr.bf16.mxu0 0
    %2306 = vmatpush2.bf16.msra.mxu0 0
    %2307 = vmatprep.subr.bf16.mxu0 0
    %2308 = vmatpush2.bf16.msra.mxu0 0
    %2309 = vmatprep.subr.bf16.mxu0 0
    %2310 = vmatpush2.bf16.msra.mxu0 0
    %2311 = vmatprep.subr.bf16.mxu0 0
    %2312 = vmatpush2.bf16.msra.mxu0 0
    %2313 = vmatprep.subr.bf16.mxu0 0
    %2314 = vmatpush2.bf16.msra.mxu0 0
    %2315 = vmatprep.mubr.bf16.mxu0 0
    %2316 = vmatmul.mubr.bf16.gmra.mxu0 %v2257
    %v2317 = vpop.f32.mrf.mxu0
    %v2318 = vadd.f32 0.0, %v2317
    %v2319 = vpop.f32.mrf.mxu0
    %v2320 = vpop.f32.mrf.mxu0
    %v2321 = vadd.f32 0.0, %v2320
    %v2322 = vpop.f32.mrf.mxu0
    %2323 = vmatprep.mubr.bf16.mxu0 0
    %2324 = vmatmul.mubr.bf16.gmra.mxu0 %v2260
    %v2325 = vpop.f32.mrf.mxu0
    %v2326 = vadd.f32 0.0, %v2325
    %v2327 = vpop.f32.mrf.mxu0
    %v2328 = vpop.f32.mrf.mxu0
    %v2329 = vadd.f32 0.0, %v2328
    %v2330 = vpop.f32.mrf.mxu0
    %2331 = vmatprep.mubr.bf16.mxu0 0
    %2332 = vmatmul.mubr.bf16.gmra.mxu0 %v2263
    %v2333 = vpop.f32.mrf.mxu0
    %v2334 = vadd.f32 0.0, %v2333
    %v2335 = vpop.f32.mrf.mxu0
    %v2336 = vpop.f32.mrf.mxu0
    %v2337 = vadd.f32 0.0, %v2336
    %v2338 = vpop.f32.mrf.mxu0
    %2339 = vmatprep.mubr.bf16.mxu0 0
    %2340 = vmatmul.mubr.bf16.gmra.mxu0 %v2266
    %v2341 = vpop.f32.mrf.mxu0
    %v2342 = vadd.f32 0.0, %v2341
    %v2343 = vpop.f32.mrf.mxu0
    %v2344 = vpop.f32.mrf.mxu0
    %v2345 = vadd.f32 0.0, %v2344
    %v2346 = vpop.f32.mrf.mxu0
    %2347 = vmatprep.mubr.bf16.mxu0 0
    %2348 = vmatmul.mubr.bf16.gmra.mxu0 %v2269
    %v2349 = vpop.f32.mrf.mxu0
    %v2350 = vadd.f32 0.0, %v2349
    %v2351 = vpop.f32.mrf.mxu0
    %v2352 = vpop.f32.mrf.mxu0
    %v2353 = vadd.f32 0.0, %v2352
    %v2354 = vpop.f32.mrf.mxu0
    %2355 = vmatprep.mubr.bf16.mxu0 0
    %2356 = vmatmul.mubr.bf16.gmra.mxu0 %v2272
    %v2357 = vpop.f32.mrf.mxu0
    %v2358 = vadd.f32 0.0, %v2357
    %v2359 = vpop.f32.mrf.mxu0
    %v2360 = vpop.f32.mrf.mxu0
    %v2361 = vadd.f32 0.0, %v2360
    %v2362 = vpop.f32.mrf.mxu0
    %2363 = vmatprep.mubr.bf16.mxu0 0
    %2364 = vmatmul.mubr.bf16.gmra.mxu0 %v2275
    %v2365 = vpop.f32.mrf.mxu0
    %v2366 = vadd.f32 0.0, %v2365
    %v2367 = vpop.f32.mrf.mxu0
    %v2368 = vpop.f32.mrf.mxu0
    %v2369 = vadd.f32 0.0, %v2368
    %v2370 = vpop.f32.mrf.mxu0
    %2371 = vmatprep.mubr.bf16.mxu0 0
    %2372 = vmatmul.mubr.bf16.gmra.mxu0 %v2278
    %v2373 = vpop.f32.mrf.mxu0
    %v2374 = vadd.f32 0.0, %v2373
    %v2375 = vpop.f32.mrf.mxu0
    %v2376 = vpop.f32.mrf.mxu0
    %v2377 = vadd.f32 0.0, %v2376
    %v2378 = vpop.f32.mrf.mxu0
    %2379 = vdwg.mxu0
    %v2380 = vadd.f32 %v2181, %v2318
    %v2381 = vadd.f32 %v2182, %v2321
    %v2382 = vadd.f32 %v2183, %v2326
    %v2383 = vadd.f32 %v2184, %v2329
    %v2384 = vadd.f32 %v2185, %v2334
    %v2385 = vadd.f32 %v2186, %v2337
    %v2386 = vadd.f32 %v2187, %v2342
    %v2387 = vadd.f32 %v2188, %v2345
    %v2388 = vadd.f32 %v2189, %v2350
    %v2389 = vadd.f32 %v2190, %v2353
    %v2390 = vadd.f32 %v2191, %v2358
    %v2391 = vadd.f32 %v2192, %v2361
    %v2392 = vadd.f32 %v2193, %v2366
    %v2393 = vadd.f32 %v2194, %v2369
    %v2394 = vadd.f32 %v2195, %v2374
    %v2395 = vadd.f32 %v2196, %v2377
    %v2396 = vld [vmem:[%s2197] sm:$0xf]
    %v2397 = vld [vmem:[%s2197 + $0x4] sm:$0x1]
    %v2398 = vld [vmem:[%s2197 + $0x8] sm:$0xf]
    %v2399 = vld [vmem:[%s2197 + $0xc] sm:$0x1]
    %v2400 = vld [vmem:[%s2197 + $0x10] sm:$0xf]
    %v2401 = vld [vmem:[%s2197 + $0x14] sm:$0x1]
    %v2402 = vld [vmem:[%s2197 + $0x18] sm:$0xf]
    %v2403 = vld [vmem:[%s2197 + $0x1c] sm:$0x1]
    %v2404 = vld [vmem:[%s2197 + $0x20] sm:$0xf]
    %v2405 = vld [vmem:[%s2197 + $0x24] sm:$0x1]
    %v2406 = vld [vmem:[%s2197 + $0x28] sm:$0xf]
    %v2407 = vld [vmem:[%s2197 + $0x2c] sm:$0x1]
    %v2408 = vld [vmem:[%s2197 + $0x30] sm:$0xf]
    %v2409 = vld [vmem:[%s2197 + $0x34] sm:$0x1]
    %v2410 = vld [vmem:[%s2197 + $0x38] sm:$0xf]
    %v2411 = vld [vmem:[%s2197 + $0x3c] sm:$0x1]
    %v2412 = vld [vmem:[%s2197 + $0x50] sm:$0xf]
    %v2413 = vld [vmem:[%s2197 + $0x54] sm:$0x1]
    %v2414 = vld [vmem:[%s2197 + $0x58] sm:$0xf]
    %v2415 = vld [vmem:[%s2197 + $0x5c] sm:$0x1]
    %v2416 = vld [vmem:[%s2197 + $0x60] sm:$0xf]
    %v2417 = vld [vmem:[%s2197 + $0x64] sm:$0x1]
    %v2418 = vld [vmem:[%s2197 + $0x68] sm:$0xf]
    %v2419 = vld [vmem:[%s2197 + $0x6c] sm:$0x1]
    %v2420 = vld [vmem:[%s2197 + $0x70] sm:$0xf]
    %v2421 = vld [vmem:[%s2197 + $0x74] sm:$0x1]
    %v2422 = vld [vmem:[%s2197 + $0x78] sm:$0xf]
    %v2423 = vld [vmem:[%s2197 + $0x7c] sm:$0x1]
    %v2424 = vld [vmem:[%s2197 + $0x80] sm:$0xf]
    %v2425 = vld [vmem:[%s2197 + $0x84] sm:$0x1]
    %v2426 = vld [vmem:[%s2197 + $0x88] sm:$0xf]
    %v2427 = vld [vmem:[%s2197 + $0x8c] sm:$0x1]
    %v2429 = vshrl.u32 %v2396, 16
    %v2431 = vrot.slane %v2429, 4
    %v2432 = vshll.u32 %v2396, 16
    %v2434 = vrot.slane %v2432, 5
    %v2435 = vor.u32 %v2431, %v2434
    %v2436 = vrot.slane %v2435, 4
    %v2438 = vshll.u32 %v2397, 16
    %v2440 = vrot.slane %v2438, 5
    %v2441 = vsel %vm474, %v2436, %v2440
    %v2443 = vshrl.u32 %v2398, 16
    %v2445 = vrot.slane %v2443, 4
    %v2446 = vshll.u32 %v2398, 16
    %v2448 = vrot.slane %v2446, 5
    %v2449 = vor.u32 %v2445, %v2448
    %v2450 = vrot.slane %v2449, 4
    %v2452 = vshll.u32 %v2399, 16
    %v2454 = vrot.slane %v2452, 5
    %v2455 = vsel %vm474, %v2450, %v2454
    %v2457 = vshrl.u32 %v2400, 16
    %v2459 = vrot.slane %v2457, 4
    %v2460 = vshll.u32 %v2400, 16
    %v2462 = vrot.slane %v2460, 5
    %v2463 = vor.u32 %v2459, %v2462
    %v2464 = vrot.slane %v2463, 4
    %v2466 = vshll.u32 %v2401, 16
    %v2468 = vrot.slane %v2466, 5
    %v2469 = vsel %vm474, %v2464, %v2468
    %v2471 = vshrl.u32 %v2402, 16
    %v2473 = vrot.slane %v2471, 4
    %v2474 = vshll.u32 %v2402, 16
    %v2476 = vrot.slane %v2474, 5
    %v2477 = vor.u32 %v2473, %v2476
    %v2478 = vrot.slane %v2477, 4
    %v2480 = vshll.u32 %v2403, 16
    %v2482 = vrot.slane %v2480, 5
    %v2483 = vsel %vm474, %v2478, %v2482
    %v2485 = vshrl.u32 %v2404, 16
    %v2487 = vrot.slane %v2485, 4
    %v2488 = vshll.u32 %v2404, 16
    %v2490 = vrot.slane %v2488, 5
    %v2491 = vor.u32 %v2487, %v2490
    %v2492 = vrot.slane %v2491, 4
    %v2494 = vshll.u32 %v2405, 16
    %v2496 = vrot.slane %v2494, 5
    %v2497 = vsel %vm474, %v2492, %v2496
    %v2499 = vshrl.u32 %v2406, 16
    %v2501 = vrot.slane %v2499, 4
    %v2502 = vshll.u32 %v2406, 16
    %v2504 = vrot.slane %v2502, 5
    %v2505 = vor.u32 %v2501, %v2504
    %v2506 = vrot.slane %v2505, 4
    %v2508 = vshll.u32 %v2407, 16
    %v2510 = vrot.slane %v2508, 5
    %v2511 = vsel %vm474, %v2506, %v2510
    %v2513 = vshrl.u32 %v2408, 16
    %v2515 = vrot.slane %v2513, 4
    %v2516 = vshll.u32 %v2408, 16
    %v2518 = vrot.slane %v2516, 5
    %v2519 = vor.u32 %v2515, %v2518
    %v2520 = vrot.slane %v2519, 4
    %v2522 = vshll.u32 %v2409, 16
    %v2524 = vrot.slane %v2522, 5
    %v2525 = vsel %vm474, %v2520, %v2524
    %v2527 = vshrl.u32 %v2410, 16
    %v2529 = vrot.slane %v2527, 4
    %v2530 = vshll.u32 %v2410, 16
    %v2532 = vrot.slane %v2530, 5
    %v2533 = vor.u32 %v2529, %v2532
    %v2534 = vrot.slane %v2533, 4
    %v2536 = vshll.u32 %v2411, 16
    %v2538 = vrot.slane %v2536, 5
    %v2539 = vsel %vm474, %v2534, %v2538
    %v2541 = vshrl.u32 %v2412, 16
    %v2543 = vrot.slane %v2541, 4
    %v2544 = vshll.u32 %v2412, 16
    %v2546 = vrot.slane %v2544, 5
    %v2547 = vor.u32 %v2543, %v2546
    %v2548 = vrot.slane %v2547, 4
    %v2550 = vshll.u32 %v2413, 16
    %v2552 = vrot.slane %v2550, 5
    %v2553 = vsel %vm474, %v2548, %v2552
    %v2555 = vshrl.u32 %v2414, 16
    %v2557 = vrot.slane %v2555, 4
    %v2558 = vshll.u32 %v2414, 16
    %v2560 = vrot.slane %v2558, 5
    %v2561 = vor.u32 %v2557, %v2560
    %v2562 = vrot.slane %v2561, 4
    %v2564 = vshll.u32 %v2415, 16
    %v2566 = vrot.slane %v2564, 5
    %v2567 = vsel %vm474, %v2562, %v2566
    %v2569 = vshrl.u32 %v2416, 16
    %v2571 = vrot.slane %v2569, 4
    %v2572 = vshll.u32 %v2416, 16
    %v2574 = vrot.slane %v2572, 5
    %v2575 = vor.u32 %v2571, %v2574
    %v2576 = vrot.slane %v2575, 4
    %v2578 = vshll.u32 %v2417, 16
    %v2580 = vrot.slane %v2578, 5
    %v2581 = vsel %vm474, %v2576, %v2580
    %v2583 = vshrl.u32 %v2418, 16
    %v2585 = vrot.slane %v2583, 4
    %v2586 = vshll.u32 %v2418, 16
    %v2588 = vrot.slane %v2586, 5
    %v2589 = vor.u32 %v2585, %v2588
    %v2590 = vrot.slane %v2589, 4
    %v2592 = vshll.u32 %v2419, 16
    %v2594 = vrot.slane %v2592, 5
    %v2595 = vsel %vm474, %v2590, %v2594
    %v2597 = vshrl.u32 %v2420, 16
    %v2599 = vrot.slane %v2597, 4
    %v2600 = vshll.u32 %v2420, 16
    %v2602 = vrot.slane %v2600, 5
    %v2603 = vor.u32 %v2599, %v2602
    %v2604 = vrot.slane %v2603, 4
    %v2606 = vshll.u32 %v2421, 16
    %v2608 = vrot.slane %v2606, 5
    %v2609 = vsel %vm474, %v2604, %v2608
    %v2611 = vshrl.u32 %v2422, 16
    %v2613 = vrot.slane %v2611, 4
    %v2614 = vshll.u32 %v2422, 16
    %v2616 = vrot.slane %v2614, 5
    %v2617 = vor.u32 %v2613, %v2616
    %v2618 = vrot.slane %v2617, 4
    %v2620 = vshll.u32 %v2423, 16
    %v2622 = vrot.slane %v2620, 5
    %v2623 = vsel %vm474, %v2618, %v2622
    %v2625 = vshrl.u32 %v2424, 16
    %v2627 = vrot.slane %v2625, 4
    %v2628 = vshll.u32 %v2424, 16
    %v2630 = vrot.slane %v2628, 5
    %v2631 = vor.u32 %v2627, %v2630
    %v2632 = vrot.slane %v2631, 4
    %v2634 = vshll.u32 %v2425, 16
    %v2636 = vrot.slane %v2634, 5
    %v2637 = vsel %vm474, %v2632, %v2636
    %v2639 = vshrl.u32 %v2426, 16
    %v2641 = vrot.slane %v2639, 4
    %v2642 = vshll.u32 %v2426, 16
    %v2644 = vrot.slane %v2642, 5
    %v2645 = vor.u32 %v2641, %v2644
    %v2646 = vrot.slane %v2645, 4
    %v2648 = vshll.u32 %v2427, 16
    %v2650 = vrot.slane %v2648, 5
    %v2651 = vsel %vm474, %v2646, %v2650
    %s2652 = scalar_lea.vmem %s1, 14
    %v2653 = vld [vmem:[%s2652] sm:$0x3]
    %v2654 = vunpack.c.l.b16 %v2441
    %v2655 = vunpack.c.l.b16 %v2455
    %v2656 = vunpack.c.l.b16 %v2469
    %v2657 = vunpack.c.l.b16 %v2483
    %v2658 = vunpack.c.l.b16 %v2497
    %v2659 = vunpack.c.l.b16 %v2511
    %v2660 = vunpack.c.l.b16 %v2525
    %v2661 = vunpack.c.l.b16 %v2539
    %v2662 = vunpack.c.l.b16 %v2553
    %v2663 = vunpack.c.l.b16 %v2567
    %v2664 = vunpack.c.l.b16 %v2581
    %v2665 = vunpack.c.l.b16 %v2595
    %v2666 = vunpack.c.l.b16 %v2609
    %v2667 = vunpack.c.l.b16 %v2623
    %v2668 = vunpack.c.l.b16 %v2637
    %v2669 = vunpack.c.l.b16 %v2651
    %v2670 = vpack.c.b16 %v2655, %v2654
    %v2671 = vpack.c.b16 %v2657, %v2656
    %v2672 = vpack.c.b16 %v2659, %v2658
    %v2673 = vpack.c.b16 %v2661, %v2660
    %v2674 = vpack.c.b16 %v2663, %v2662
    %v2675 = vpack.c.b16 %v2665, %v2664
    %v2676 = vpack.c.b16 %v2667, %v2666
    %v2677 = vpack.c.b16 %v2669, %v2668
    %v2679 = vsel %vm725, %v2670, 0
    %v2682 = vsel %vm725, %v2671, 0
    %v2685 = vsel %vm725, %v2672, 0
    %v2688 = vsel %vm725, %v2673, 0
    %v2691 = vsel %vm725, %v2674, 0
    %v2694 = vsel %vm725, %v2675, 0
    %v2697 = vsel %vm725, %v2676, 0
    %v2700 = vsel %vm725, %v2677, 0
    %v2703 = vand.u32 %v2653, %v753
    %2705 = vmatprep.subr.bf16.mxu0 0
    %2706 = vmatpush1.bf16.msra.mxu0 0
    %2707 = vmatprep.subr.bf16.mxu0 0
    %2708 = vmatpush1.bf16.msra.mxu0 0
    %2709 = vmatprep.subr.bf16.mxu0 0
    %2710 = vmatpush1.bf16.msra.mxu0 0
    %2711 = vmatprep.subr.bf16.mxu0 0
    %2712 = vmatpush1.bf16.msra.mxu0 0
    %2713 = vmatprep.subr.bf16.mxu0 0
    %2714 = vmatpush1.bf16.msra.mxu0 0
    %2715 = vmatprep.subr.bf16.mxu0 0
    %2716 = vmatpush1.bf16.msra.mxu0 0
    %2717 = vmatprep.subr.bf16.mxu0 0
    %2718 = vmatpush1.bf16.msra.mxu0 0
    %2719 = vmatprep.subr.bf16.mxu0 0
    %2720 = vmatpush1.bf16.msra.mxu0 %v2703
    %2721 = vmatprep.subr.bf16.mxu0 0
    %2722 = vmatpush2.bf16.msra.mxu0 0
    %2723 = vmatprep.subr.bf16.mxu0 0
    %2724 = vmatpush2.bf16.msra.mxu0 0
    %2725 = vmatprep.subr.bf16.mxu0 0
    %2726 = vmatpush2.bf16.msra.mxu0 0
    %2727 = vmatprep.subr.bf16.mxu0 0
    %2728 = vmatpush2.bf16.msra.mxu0 0
    %2729 = vmatprep.subr.bf16.mxu0 0
    %2730 = vmatpush2.bf16.msra.mxu0 0
    %2731 = vmatprep.subr.bf16.mxu0 0
    %2732 = vmatpush2.bf16.msra.mxu0 0
    %2733 = vmatprep.subr.bf16.mxu0 0
    %2734 = vmatpush2.bf16.msra.mxu0 0
    %2735 = vmatprep.subr.bf16.mxu0 0
    %2736 = vmatpush2.bf16.msra.mxu0 0
    %2737 = vmatprep.mubr.bf16.mxu0 0
    %2738 = vmatmul.mubr.bf16.gmra.mxu0 %v2679
    %v2739 = vpop.f32.mrf.mxu0
    %v2740 = vadd.f32 0.0, %v2739
    %v2741 = vpop.f32.mrf.mxu0
    %v2742 = vpop.f32.mrf.mxu0
    %v2743 = vadd.f32 0.0, %v2742
    %v2744 = vpop.f32.mrf.mxu0
    %2745 = vmatprep.mubr.bf16.mxu0 0
    %2746 = vmatmul.mubr.bf16.gmra.mxu0 %v2682
    %v2747 = vpop.f32.mrf.mxu0
    %v2748 = vadd.f32 0.0, %v2747
    %v2749 = vpop.f32.mrf.mxu0
    %v2750 = vpop.f32.mrf.mxu0
    %v2751 = vadd.f32 0.0, %v2750
    %v2752 = vpop.f32.mrf.mxu0
    %2753 = vmatprep.mubr.bf16.mxu0 0
    %2754 = vmatmul.mubr.bf16.gmra.mxu0 %v2685
    %v2755 = vpop.f32.mrf.mxu0
    %v2756 = vadd.f32 0.0, %v2755
    %v2757 = vpop.f32.mrf.mxu0
    %v2758 = vpop.f32.mrf.mxu0
    %v2759 = vadd.f32 0.0, %v2758
    %v2760 = vpop.f32.mrf.mxu0
    %2761 = vmatprep.mubr.bf16.mxu0 0
    %2762 = vmatmul.mubr.bf16.gmra.mxu0 %v2688
    %v2763 = vpop.f32.mrf.mxu0
    %v2764 = vadd.f32 0.0, %v2763
    %v2765 = vpop.f32.mrf.mxu0
    %v2766 = vpop.f32.mrf.mxu0
    %v2767 = vadd.f32 0.0, %v2766
    %v2768 = vpop.f32.mrf.mxu0
    %2769 = vmatprep.mubr.bf16.mxu0 0
    %2770 = vmatmul.mubr.bf16.gmra.mxu0 %v2691
    %v2771 = vpop.f32.mrf.mxu0
    %v2772 = vadd.f32 0.0, %v2771
    %v2773 = vpop.f32.mrf.mxu0
    %v2774 = vpop.f32.mrf.mxu0
    %v2775 = vadd.f32 0.0, %v2774
    %v2776 = vpop.f32.mrf.mxu0
    %2777 = vmatprep.mubr.bf16.mxu0 0
    %2778 = vmatmul.mubr.bf16.gmra.mxu0 %v2694
    %v2779 = vpop.f32.mrf.mxu0
    %v2780 = vadd.f32 0.0, %v2779
    %v2781 = vpop.f32.mrf.mxu0
    %v2782 = vpop.f32.mrf.mxu0
    %v2783 = vadd.f32 0.0, %v2782
    %v2784 = vpop.f32.mrf.mxu0
    %2785 = vmatprep.mubr.bf16.mxu0 0
    %2786 = vmatmul.mubr.bf16.gmra.mxu0 %v2697
    %v2787 = vpop.f32.mrf.mxu0
    %v2788 = vadd.f32 0.0, %v2787
    %v2789 = vpop.f32.mrf.mxu0
    %v2790 = vpop.f32.mrf.mxu0
    %v2791 = vadd.f32 0.0, %v2790
    %v2792 = vpop.f32.mrf.mxu0
    %2793 = vmatprep.mubr.bf16.mxu0 0
    %2794 = vmatmul.mubr.bf16.gmra.mxu0 %v2700
    %v2795 = vpop.f32.mrf.mxu0
    %v2796 = vadd.f32 0.0, %v2795
    %v2797 = vpop.f32.mrf.mxu0
    %v2798 = vpop.f32.mrf.mxu0
    %v2799 = vadd.f32 0.0, %v2798
    %v2800 = vpop.f32.mrf.mxu0
    %2801 = vdwg.mxu0
    %v2802 = vadd.f32 %v2380, %v2740
    %v2803 = vadd.f32 %v2381, %v2743
    %v2804 = vadd.f32 %v2382, %v2748
    %v2805 = vadd.f32 %v2383, %v2751
    %v2806 = vadd.f32 %v2384, %v2756
    %v2807 = vadd.f32 %v2385, %v2759
    %v2808 = vadd.f32 %v2386, %v2764
    %v2809 = vadd.f32 %v2387, %v2767
    %v2810 = vadd.f32 %v2388, %v2772
    %v2811 = vadd.f32 %v2389, %v2775
    %v2812 = vadd.f32 %v2390, %v2780
    %v2813 = vadd.f32 %v2391, %v2783
    %v2814 = vadd.f32 %v2392, %v2788
    %v2815 = vadd.f32 %v2393, %v2791
    %v2816 = vadd.f32 %v2394, %v2796
    %v2817 = vadd.f32 %v2395, %v2799
    %v2818 = vld [vmem:[%s2197] sm:$0xe]
    %v2819 = vld [vmem:[%s2197 + $0x8] sm:$0xe]
    %v2820 = vld [vmem:[%s2197 + $0x10] sm:$0xe]
    %v2821 = vld [vmem:[%s2197 + $0x18] sm:$0xe]
    %v2822 = vld [vmem:[%s2197 + $0x20] sm:$0xe]
    %v2823 = vld [vmem:[%s2197 + $0x28] sm:$0xe]
    %v2824 = vld [vmem:[%s2197 + $0x30] sm:$0xe]
    %v2825 = vld [vmem:[%s2197 + $0x38] sm:$0xe]
    %v2826 = vld [vmem:[%s2197 + $0x50] sm:$0xe]
    %v2827 = vld [vmem:[%s2197 + $0x58] sm:$0xe]
    %v2828 = vld [vmem:[%s2197 + $0x60] sm:$0xe]
    %v2829 = vld [vmem:[%s2197 + $0x68] sm:$0xe]
    %v2830 = vld [vmem:[%s2197 + $0x70] sm:$0xe]
    %v2831 = vld [vmem:[%s2197 + $0x78] sm:$0xe]
    %v2832 = vld [vmem:[%s2197 + $0x80] sm:$0xe]
    %v2833 = vld [vmem:[%s2197 + $0x88] sm:$0xe]
    %v2866 = vrot.slane %v2818, 5
    %v2867 = vrot.slane %v2866, 4
    %v2868 = vrot.slane %v2397, 5
    %v2869 = vsel %vm1068, %v2867, %v2868
    %v2870 = vrot.slane %v2819, 5
    %v2871 = vrot.slane %v2870, 4
    %v2872 = vrot.slane %v2399, 5
    %v2873 = vsel %vm1068, %v2871, %v2872
    %v2874 = vrot.slane %v2820, 5
    %v2875 = vrot.slane %v2874, 4
    %v2876 = vrot.slane %v2401, 5
    %v2877 = vsel %vm1068, %v2875, %v2876
    %v2878 = vrot.slane %v2821, 5
    %v2879 = vrot.slane %v2878, 4
    %v2880 = vrot.slane %v2403, 5
    %v2881 = vsel %vm1068, %v2879, %v2880
    %v2882 = vrot.slane %v2822, 5
    %v2883 = vrot.slane %v2882, 4
    %v2884 = vrot.slane %v2405, 5
    %v2885 = vsel %vm1068, %v2883, %v2884
    %v2886 = vrot.slane %v2823, 5
    %v2887 = vrot.slane %v2886, 4
    %v2888 = vrot.slane %v2407, 5
    %v2889 = vsel %vm1068, %v2887, %v2888
    %v2890 = vrot.slane %v2824, 5
    %v2891 = vrot.slane %v2890, 4
    %v2892 = vrot.slane %v2409, 5
    %v2893 = vsel %vm1068, %v2891, %v2892
    %v2894 = vrot.slane %v2825, 5
    %v2895 = vrot.slane %v2894, 4
    %v2896 = vrot.slane %v2411, 5
    %v2897 = vsel %vm1068, %v2895, %v2896
    %v2898 = vrot.slane %v2826, 5
    %v2899 = vrot.slane %v2898, 4
    %v2900 = vrot.slane %v2413, 5
    %v2901 = vsel %vm1068, %v2899, %v2900
    %v2902 = vrot.slane %v2827, 5
    %v2903 = vrot.slane %v2902, 4
    %v2904 = vrot.slane %v2415, 5
    %v2905 = vsel %vm1068, %v2903, %v2904
    %v2906 = vrot.slane %v2828, 5
    %v2907 = vrot.slane %v2906, 4
    %v2908 = vrot.slane %v2417, 5
    %v2909 = vsel %vm1068, %v2907, %v2908
    %v2910 = vrot.slane %v2829, 5
    %v2911 = vrot.slane %v2910, 4
    %v2912 = vrot.slane %v2419, 5
    %v2913 = vsel %vm1068, %v2911, %v2912
    %v2914 = vrot.slane %v2830, 5
    %v2915 = vrot.slane %v2914, 4
    %v2916 = vrot.slane %v2421, 5
    %v2917 = vsel %vm1068, %v2915, %v2916
    %v2918 = vrot.slane %v2831, 5
    %v2919 = vrot.slane %v2918, 4
    %v2920 = vrot.slane %v2423, 5
    %v2921 = vsel %vm1068, %v2919, %v2920
    %v2922 = vrot.slane %v2832, 5
    %v2923 = vrot.slane %v2922, 4
    %v2924 = vrot.slane %v2425, 5
    %v2925 = vsel %vm1068, %v2923, %v2924
    %v2926 = vrot.slane %v2833, 5
    %v2927 = vrot.slane %v2926, 4
    %v2928 = vrot.slane %v2427, 5
    %v2929 = vsel %vm1068, %v2927, %v2928
    %s2930 = scalar_lea.vmem %s1, 16
    %v2931 = vld [vmem:[%s2930] sm:$0x3]
    %v2932 = vunpack.c.l.b16 %v2869
    %v2933 = vunpack.c.l.b16 %v2873
    %v2934 = vunpack.c.l.b16 %v2877
    %v2935 = vunpack.c.l.b16 %v2881
    %v2936 = vunpack.c.l.b16 %v2885
    %v2937 = vunpack.c.l.b16 %v2889
    %v2938 = vunpack.c.l.b16 %v2893
    %v2939 = vunpack.c.l.b16 %v2897
    %v2940 = vunpack.c.l.b16 %v2901
    %v2941 = vunpack.c.l.b16 %v2905
    %v2942 = vunpack.c.l.b16 %v2909
    %v2943 = vunpack.c.l.b16 %v2913
    %v2944 = vunpack.c.l.b16 %v2917
    %v2945 = vunpack.c.l.b16 %v2921
    %v2946 = vunpack.c.l.b16 %v2925
    %v2947 = vunpack.c.l.b16 %v2929
    %v2948 = vpack.c.b16 %v2933, %v2932
    %v2949 = vpack.c.b16 %v2935, %v2934
    %v2950 = vpack.c.b16 %v2937, %v2936
    %v2951 = vpack.c.b16 %v2939, %v2938
    %v2952 = vpack.c.b16 %v2941, %v2940
    %v2953 = vpack.c.b16 %v2943, %v2942
    %v2954 = vpack.c.b16 %v2945, %v2944
    %v2955 = vpack.c.b16 %v2947, %v2946
    %v2957 = vsel %vm725, %v2948, 0
    %v2960 = vsel %vm725, %v2949, 0
    %v2963 = vsel %vm725, %v2950, 0
    %v2966 = vsel %vm725, %v2951, 0
    %v2969 = vsel %vm725, %v2952, 0
    %v2972 = vsel %vm725, %v2953, 0
    %v2975 = vsel %vm725, %v2954, 0
    %v2978 = vsel %vm725, %v2955, 0
    %v2981 = vand.u32 %v2931, %v753
    %2983 = vmatprep.subr.bf16.mxu0 0
    %2984 = vmatpush1.bf16.msra.mxu0 0
    %2985 = vmatprep.subr.bf16.mxu0 0
    %2986 = vmatpush1.bf16.msra.mxu0 0
    %2987 = vmatprep.subr.bf16.mxu0 0
    %2988 = vmatpush1.bf16.msra.mxu0 0
    %2989 = vmatprep.subr.bf16.mxu0 0
    %2990 = vmatpush1.bf16.msra.mxu0 0
    %2991 = vmatprep.subr.bf16.mxu0 0
    %2992 = vmatpush1.bf16.msra.mxu0 0
    %2993 = vmatprep.subr.bf16.mxu0 0
    %2994 = vmatpush1.bf16.msra.mxu0 0
    %2995 = vmatprep.subr.bf16.mxu0 0
    %2996 = vmatpush1.bf16.msra.mxu0 0
    %2997 = vmatprep.subr.bf16.mxu0 0
    %2998 = vmatpush1.bf16.msra.mxu0 %v2981
    %2999 = vmatprep.subr.bf16.mxu0 0
    %3000 = vmatpush2.bf16.msra.mxu0 0
    %3001 = vmatprep.subr.bf16.mxu0 0
    %3002 = vmatpush2.bf16.msra.mxu0 0
    %3003 = vmatprep.subr.bf16.mxu0 0
    %3004 = vmatpush2.bf16.msra.mxu0 0
    %3005 = vmatprep.subr.bf16.mxu0 0
    %3006 = vmatpush2.bf16.msra.mxu0 0
    %3007 = vmatprep.subr.bf16.mxu0 0
    %3008 = vmatpush2.bf16.msra.mxu0 0
    %3009 = vmatprep.subr.bf16.mxu0 0
    %3010 = vmatpush2.bf16.msra.mxu0 0
    %3011 = vmatprep.subr.bf16.mxu0 0
    %3012 = vmatpush2.bf16.msra.mxu0 0
    %3013 = vmatprep.subr.bf16.mxu0 0
    %3014 = vmatpush2.bf16.msra.mxu0 0
    %3015 = vmatprep.mubr.bf16.mxu0 0
    %3016 = vmatmul.mubr.bf16.gmra.mxu0 %v2957
    %v3017 = vpop.f32.mrf.mxu0
    %v3018 = vadd.f32 0.0, %v3017
    %v3019 = vpop.f32.mrf.mxu0
    %v3020 = vpop.f32.mrf.mxu0
    %v3021 = vadd.f32 0.0, %v3020
    %v3022 = vpop.f32.mrf.mxu0
    %3023 = vmatprep.mubr.bf16.mxu0 0
    %3024 = vmatmul.mubr.bf16.gmra.mxu0 %v2960
    %v3025 = vpop.f32.mrf.mxu0
    %v3026 = vadd.f32 0.0, %v3025
    %v3027 = vpop.f32.mrf.mxu0
    %v3028 = vpop.f32.mrf.mxu0
    %v3029 = vadd.f32 0.0, %v3028
    %v3030 = vpop.f32.mrf.mxu0
    %3031 = vmatprep.mubr.bf16.mxu0 0
    %3032 = vmatmul.mubr.bf16.gmra.mxu0 %v2963
    %v3033 = vpop.f32.mrf.mxu0
    %v3034 = vadd.f32 0.0, %v3033
    %v3035 = vpop.f32.mrf.mxu0
    %v3036 = vpop.f32.mrf.mxu0
    %v3037 = vadd.f32 0.0, %v3036
    %v3038 = vpop.f32.mrf.mxu0
    %3039 = vmatprep.mubr.bf16.mxu0 0
    %3040 = vmatmul.mubr.bf16.gmra.mxu0 %v2966
    %v3041 = vpop.f32.mrf.mxu0
    %v3042 = vadd.f32 0.0, %v3041
    %v3043 = vpop.f32.mrf.mxu0
    %v3044 = vpop.f32.mrf.mxu0
    %v3045 = vadd.f32 0.0, %v3044
    %v3046 = vpop.f32.mrf.mxu0
    %3047 = vmatprep.mubr.bf16.mxu0 0
    %3048 = vmatmul.mubr.bf16.gmra.mxu0 %v2969
    %v3049 = vpop.f32.mrf.mxu0
    %v3050 = vadd.f32 0.0, %v3049
    %v3051 = vpop.f32.mrf.mxu0
    %v3052 = vpop.f32.mrf.mxu0
    %v3053 = vadd.f32 0.0, %v3052
    %v3054 = vpop.f32.mrf.mxu0
    %3055 = vmatprep.mubr.bf16.mxu0 0
    %3056 = vmatmul.mubr.bf16.gmra.mxu0 %v2972
    %v3057 = vpop.f32.mrf.mxu0
    %v3058 = vadd.f32 0.0, %v3057
    %v3059 = vpop.f32.mrf.mxu0
    %v3060 = vpop.f32.mrf.mxu0
    %v3061 = vadd.f32 0.0, %v3060
    %v3062 = vpop.f32.mrf.mxu0
    %3063 = vmatprep.mubr.bf16.mxu0 0
    %3064 = vmatmul.mubr.bf16.gmra.mxu0 %v2975
    %v3065 = vpop.f32.mrf.mxu0
    %v3066 = vadd.f32 0.0, %v3065
    %v3067 = vpop.f32.mrf.mxu0
    %v3068 = vpop.f32.mrf.mxu0
    %v3069 = vadd.f32 0.0, %v3068
    %v3070 = vpop.f32.mrf.mxu0
    %3071 = vmatprep.mubr.bf16.mxu0 0
    %3072 = vmatmul.mubr.bf16.gmra.mxu0 %v2978
    %v3073 = vpop.f32.mrf.mxu0
    %v3074 = vadd.f32 0.0, %v3073
    %v3075 = vpop.f32.mrf.mxu0
    %v3076 = vpop.f32.mrf.mxu0
    %v3077 = vadd.f32 0.0, %v3076
    %v3078 = vpop.f32.mrf.mxu0
    %3079 = vdwg.mxu0
    %v3080 = vadd.f32 %v2802, %v3018
    %v3081 = vadd.f32 %v2803, %v3021
    %v3082 = vadd.f32 %v2804, %v3026
    %v3083 = vadd.f32 %v2805, %v3029
    %v3084 = vadd.f32 %v2806, %v3034
    %v3085 = vadd.f32 %v2807, %v3037
    %v3086 = vadd.f32 %v2808, %v3042
    %v3087 = vadd.f32 %v2809, %v3045
    %v3088 = vadd.f32 %v2810, %v3050
    %v3089 = vadd.f32 %v2811, %v3053
    %v3090 = vadd.f32 %v2812, %v3058
    %v3091 = vadd.f32 %v2813, %v3061
    %v3092 = vadd.f32 %v2814, %v3066
    %v3093 = vadd.f32 %v2815, %v3069
    %v3094 = vadd.f32 %v2816, %v3074
    %v3095 = vadd.f32 %v2817, %v3077
    %vm3096 = vcmask 64512
    %v3097 = vsel %vm3096, %v3080, 0.0
    %v3098 = vsel %vm3096, %v3081, 0.0
    %v3099 = vadd.f32 %v3097, %v3098
    %v3100 = vsel %vm3096, %v3082, 0.0
    %v3101 = vadd.f32 %v3099, %v3100
    %v3102 = vsel %vm3096, %v3083, 0.0
    %v3103 = vadd.f32 %v3101, %v3102
    %v3104 = vsel %vm3096, %v3084, 0.0
    %v3105 = vadd.f32 %v3103, %v3104
    %v3106 = vsel %vm3096, %v3085, 0.0
    %v3107 = vadd.f32 %v3105, %v3106
    %v3108 = vsel %vm3096, %v3086, 0.0
    %v3109 = vadd.f32 %v3107, %v3108
    %v3110 = vsel %vm3096, %v3087, 0.0
    %v3111 = vadd.f32 %v3109, %v3110
    %v3112 = vsel %vm3096, %v3088, 0.0
    %v3113 = vadd.f32 %v3111, %v3112
    %v3114 = vsel %vm3096, %v3089, 0.0
    %v3115 = vadd.f32 %v3113, %v3114
    %v3116 = vsel %vm3096, %v3090, 0.0
    %v3117 = vadd.f32 %v3115, %v3116
    %v3118 = vsel %vm3096, %v3091, 0.0
    %v3119 = vadd.f32 %v3117, %v3118
    %v3120 = vsel %vm3096, %v3092, 0.0
    %v3121 = vadd.f32 %v3119, %v3120
    %v3122 = vsel %vm3096, %v3093, 0.0
    %v3123 = vadd.f32 %v3121, %v3122
    %v3124 = vsel %vm3096, %v3094, 0.0
    %v3125 = vadd.f32 %v3123, %v3124
    %v3126 = vsel %vm3096, %v3095, 0.0
    %v3127 = vadd.f32 %v3125, %v3126
    %v3128 = vrot.slane %v3127, 4
    %v3129 = vadd.f32 %v3127, %v3128
    %v3130 = vrot.slane %v3129, 2
    %v3131 = vadd.f32 %v3129, %v3130
    %v3132 = vrot.slane %v3131, 1
    %v3133 = vadd.f32 %v3131, %v3132
    %v3134 = vmul.f32 %v3133, 0.0078125
    %v3135 = vsub.f32 %v3080, %v3134
    %v3136 = vsub.f32 %v3081, %v3134
    %v3137 = vsub.f32 %v3082, %v3134
    %v3138 = vsub.f32 %v3083, %v3134
    %v3139 = vsub.f32 %v3084, %v3134
    %v3140 = vsub.f32 %v3085, %v3134
    %v3141 = vsub.f32 %v3086, %v3134
    %v3142 = vsub.f32 %v3087, %v3134
    %v3143 = vsub.f32 %v3088, %v3134
    %v3144 = vsub.f32 %v3089, %v3134
    %v3145 = vsub.f32 %v3090, %v3134
    %v3146 = vsub.f32 %v3091, %v3134
    %v3147 = vsub.f32 %v3092, %v3134
    %v3148 = vsub.f32 %v3093, %v3134
    %v3149 = vsub.f32 %v3094, %v3134
    %v3150 = vsub.f32 %v3095, %v3134
    %v3151 = vmul.f32 %v3135, %v3135
    %v3152 = vmul.f32 %v3136, %v3136
    %v3153 = vmul.f32 %v3137, %v3137
    %v3154 = vmul.f32 %v3138, %v3138
    %v3155 = vmul.f32 %v3139, %v3139
    %v3156 = vmul.f32 %v3140, %v3140
    %v3157 = vmul.f32 %v3141, %v3141
    %v3158 = vmul.f32 %v3142, %v3142
    %v3159 = vmul.f32 %v3143, %v3143
    %v3160 = vmul.f32 %v3144, %v3144
    %v3161 = vmul.f32 %v3145, %v3145
    %v3162 = vmul.f32 %v3146, %v3146
    %v3163 = vmul.f32 %v3147, %v3147
    %v3164 = vmul.f32 %v3148, %v3148
    %v3165 = vmul.f32 %v3149, %v3149
    %v3166 = vmul.f32 %v3150, %v3150
    %v3167 = vsel %vm3096, %v3151, 0.0
    %v3168 = vsel %vm3096, %v3152, 0.0
    %v3169 = vadd.f32 %v3167, %v3168
    %v3170 = vsel %vm3096, %v3153, 0.0
    %v3171 = vadd.f32 %v3169, %v3170
    %v3172 = vsel %vm3096, %v3154, 0.0
    %v3173 = vadd.f32 %v3171, %v3172
    %v3174 = vsel %vm3096, %v3155, 0.0
    %v3175 = vadd.f32 %v3173, %v3174
    %v3176 = vsel %vm3096, %v3156, 0.0
    %v3177 = vadd.f32 %v3175, %v3176
    %v3178 = vsel %vm3096, %v3157, 0.0
    %v3179 = vadd.f32 %v3177, %v3178
    %v3180 = vsel %vm3096, %v3158, 0.0
    %v3181 = vadd.f32 %v3179, %v3180
    %v3182 = vsel %vm3096, %v3159, 0.0
    %v3183 = vadd.f32 %v3181, %v3182
    %v3184 = vsel %vm3096, %v3160, 0.0
    %v3185 = vadd.f32 %v3183, %v3184
    %v3186 = vsel %vm3096, %v3161, 0.0
    %v3187 = vadd.f32 %v3185, %v3186
    %v3188 = vsel %vm3096, %v3162, 0.0
    %v3189 = vadd.f32 %v3187, %v3188
    %v3190 = vsel %vm3096, %v3163, 0.0
    %v3191 = vadd.f32 %v3189, %v3190
    %v3192 = vsel %vm3096, %v3164, 0.0
    %v3193 = vadd.f32 %v3191, %v3192
    %v3194 = vsel %vm3096, %v3165, 0.0
    %v3195 = vadd.f32 %v3193, %v3194
    %v3196 = vsel %vm3096, %v3166, 0.0
    %v3197 = vadd.f32 %v3195, %v3196
    %v3198 = vrot.slane %v3197, 4
    %v3199 = vadd.f32 %v3197, %v3198
    %v3200 = vrot.slane %v3199, 2
    %v3201 = vadd.f32 %v3199, %v3200
    %v3202 = vrot.slane %v3201, 1
    %v3203 = vadd.f32 %v3201, %v3202
    %v3204 = vmul.f32 %v3203, 0.0078125
    %v3205 = vld [vmem:[%s2] sm:$0x1]
    %v3206 = vadd.f32 %v3204, 1e-05
    %v3207 = vrsqrt.pop %v3206
    %v3208 = vmul.f32 %v3205, %v3207
    %v3210 = vlaneseq
    %v3211 = vshrl.u32 %v3210, 7
    %v3212 = vsub.s32 0, %v3211
    %v3213 = vrot.slane %v3208, %v3212
    %v3215 = vmul.f32 %v3135, %v3213
    %v3216 = vmul.f32 %v3136, %v3213
    %v3217 = vmul.f32 %v3137, %v3213
    %v3218 = vmul.f32 %v3138, %v3213
    %v3219 = vmul.f32 %v3139, %v3213
    %v3220 = vmul.f32 %v3140, %v3213
    %v3221 = vmul.f32 %v3141, %v3213
    %v3222 = vmul.f32 %v3142, %v3213
    %v3223 = vmul.f32 %v3143, %v3213
    %v3224 = vmul.f32 %v3144, %v3213
    %v3225 = vmul.f32 %v3145, %v3213
    %v3226 = vmul.f32 %v3146, %v3213
    %v3227 = vmul.f32 %v3147, %v3213
    %v3228 = vmul.f32 %v3148, %v3213
    %v3229 = vmul.f32 %v3149, %v3213
    %v3230 = vmul.f32 %v3150, %v3213
    %v3231 = vld [vmem:[%s3] sm:$0x1]
    %v3233 = vlaneseq
    %v3234 = vshrl.u32 %v3233, 7
    %v3235 = vsub.s32 0, %v3234
    %v3236 = vrot.slane %v3231, %v3235
    %v3238 = vadd.f32 %v3215, %v3236
    %v3239 = vadd.f32 %v3216, %v3236
    %v3240 = vadd.f32 %v3217, %v3236
    %v3241 = vadd.f32 %v3218, %v3236
    %v3242 = vadd.f32 %v3219, %v3236
    %v3243 = vadd.f32 %v3220, %v3236
    %v3244 = vadd.f32 %v3221, %v3236
    %v3245 = vadd.f32 %v3222, %v3236
    %v3246 = vadd.f32 %v3223, %v3236
    %v3247 = vadd.f32 %v3224, %v3236
    %v3248 = vadd.f32 %v3225, %v3236
    %v3249 = vadd.f32 %v3226, %v3236
    %v3250 = vadd.f32 %v3227, %v3236
    %v3251 = vadd.f32 %v3228, %v3236
    %v3252 = vadd.f32 %v3229, %v3236
    %v3253 = vadd.f32 %v3230, %v3236
    %v3254 = vmax.f32 %v3238, 0.0
    %v3255 = vmax.f32 %v3239, 0.0
    %v3256 = vmax.f32 %v3240, 0.0
    %v3257 = vmax.f32 %v3241, 0.0
    %v3258 = vmax.f32 %v3242, 0.0
    %v3259 = vmax.f32 %v3243, 0.0
    %v3260 = vmax.f32 %v3244, 0.0
    %v3261 = vmax.f32 %v3245, 0.0
    %v3262 = vmax.f32 %v3246, 0.0
    %v3263 = vmax.f32 %v3247, 0.0
    %v3264 = vmax.f32 %v3248, 0.0
    %v3265 = vmax.f32 %v3249, 0.0
    %v3266 = vmax.f32 %v3250, 0.0
    %v3267 = vmax.f32 %v3251, 0.0
    %v3268 = vmax.f32 %v3252, 0.0
    %v3269 = vmax.f32 %v3253, 0.0
    %v3270 = vpack.c.bf16 %v3254, %v3254
    %v3271 = vpack.c.bf16 %v3255, %v3255
    %v3272 = vpack.c.bf16 %v3256, %v3256
    %v3273 = vpack.c.bf16 %v3257, %v3257
    %v3274 = vpack.c.bf16 %v3258, %v3258
    %v3275 = vpack.c.bf16 %v3259, %v3259
    %v3276 = vpack.c.bf16 %v3260, %v3260
    %v3277 = vpack.c.bf16 %v3261, %v3261
    %v3278 = vpack.c.bf16 %v3262, %v3262
    %v3279 = vpack.c.bf16 %v3263, %v3263
    %v3280 = vpack.c.bf16 %v3264, %v3264
    %v3281 = vpack.c.bf16 %v3265, %v3265
    %v3282 = vpack.c.bf16 %v3266, %v3266
    %v3283 = vpack.c.bf16 %v3267, %v3267
    %v3284 = vpack.c.bf16 %v3268, %v3268
    %v3285 = vpack.c.bf16 %v3269, %v3269
    %vm3286 = vcmask 60416
    %3287 = vst.msk [vmem:[#allocation2] sm:$0xf] %vm3286, 0
    %vm3288 = vcmask 57344
    %3289 = vst.msk [vmem:[#allocation2 + $0x4] sm:$0x1] %vm3288, 0
    %3290 = vst.msk [vmem:[#allocation2 + $0x50] sm:$0xf] %vm3286, 0
    %3291 = vst.msk [vmem:[#allocation2 + $0x54] sm:$0x1] %vm3288, 0
    %3292 = vst.msk [vmem:[%s74] sm:$0xf] %vm3286, 0
    %3293 = vst.msk [vmem:[%s74 + $0x4] sm:$0x1] %vm3288, 0
    %3294 = vst.msk [vmem:[%s74 + $0x50] sm:$0xf] %vm3286, 0
    %3295 = vst.msk [vmem:[%s74 + $0x54] sm:$0x1] %vm3288, 0
    %vm3296 = vcmask 57344
    %vm3297 = vmand %vm3296, %vm81
    %v3298 = vld [vmem:[%s79] sm:$0x1]
    %v3299 = vsel %vm3297, 0, %v3298
    %3300 = vst [vmem:[%s79] sm:$0x1] %v3299
    %v3301 = vld [vmem:[%s79 + $0x8] sm:$0x1]
    %v3302 = vsel %vm3297, 0, %v3301
    %3303 = vst [vmem:[%s79 + $0x8] sm:$0x1] %v3302
    %v3304 = vld [vmem:[%s79 + $0x10] sm:$0x1]
    %v3305 = vsel %vm3297, 0, %v3304
    %3306 = vst [vmem:[%s79 + $0x10] sm:$0x1] %v3305
    %v3307 = vld [vmem:[%s79 + $0x18] sm:$0x1]
    %v3308 = vsel %vm3297, 0, %v3307
    %3309 = vst [vmem:[%s79 + $0x18] sm:$0x1] %v3308
    %v3310 = vld [vmem:[%s79 + $0x20] sm:$0x1]
    %v3311 = vsel %vm3297, 0, %v3310
    %3312 = vst [vmem:[%s79 + $0x20] sm:$0x1] %v3311
    %v3313 = vld [vmem:[%s79 + $0x28] sm:$0x1]
    %v3314 = vsel %vm3297, 0, %v3313
    %3315 = vst [vmem:[%s79 + $0x28] sm:$0x1] %v3314
    %v3316 = vld [vmem:[%s79 + $0x30] sm:$0x1]
    %v3317 = vsel %vm3297, 0, %v3316
    %3318 = vst [vmem:[%s79 + $0x30] sm:$0x1] %v3317
    %v3319 = vld [vmem:[%s79 + $0x38] sm:$0x1]
    %v3320 = vsel %vm3297, 0, %v3319
    %3321 = vst [vmem:[%s79 + $0x38] sm:$0x1] %v3320
    %v3322 = vld [vmem:[%s79 + $0x50] sm:$0x1]
    %v3323 = vsel %vm3297, 0, %v3322
    %3324 = vst [vmem:[%s79 + $0x50] sm:$0x1] %v3323
    %v3325 = vld [vmem:[%s79 + $0x58] sm:$0x1]
    %v3326 = vsel %vm3297, 0, %v3325
    %3327 = vst [vmem:[%s79 + $0x58] sm:$0x1] %v3326
    %v3328 = vld [vmem:[%s79 + $0x60] sm:$0x1]
    %v3329 = vsel %vm3297, 0, %v3328
    %3330 = vst [vmem:[%s79 + $0x60] sm:$0x1] %v3329
    %v3331 = vld [vmem:[%s79 + $0x68] sm:$0x1]
    %v3332 = vsel %vm3297, 0, %v3331
    %3333 = vst [vmem:[%s79 + $0x68] sm:$0x1] %v3332
    %v3334 = vld [vmem:[%s79 + $0x70] sm:$0x1]
    %v3335 = vsel %vm3297, 0, %v3334
    %3336 = vst [vmem:[%s79 + $0x70] sm:$0x1] %v3335
    %v3337 = vld [vmem:[%s79 + $0x78] sm:$0x1]
    %v3338 = vsel %vm3297, 0, %v3337
    %3339 = vst [vmem:[%s79 + $0x78] sm:$0x1] %v3338
    %v3340 = vld [vmem:[%s79 + $0x80] sm:$0x1]
    %v3341 = vsel %vm3297, 0, %v3340
    %3342 = vst [vmem:[%s79 + $0x80] sm:$0x1] %v3341
    %v3343 = vld [vmem:[%s79 + $0x88] sm:$0x1]
    %v3344 = vsel %vm3297, 0, %v3343
    %3345 = vst [vmem:[%s79 + $0x88] sm:$0x1] %v3344
    %vm3346 = vmand %vm3296, %vm131
    %v3347 = vld [vmem:[%s79 + $0x4] sm:$0x1]
    %v3348 = vsel %vm3346, 0, %v3347
    %3349 = vst [vmem:[%s79 + $0x4] sm:$0x1] %v3348
    %v3350 = vld [vmem:[%s79 + $0xc] sm:$0x1]
    %v3351 = vsel %vm3346, 0, %v3350
    %3352 = vst [vmem:[%s79 + $0xc] sm:$0x1] %v3351
    %v3353 = vld [vmem:[%s79 + $0x14] sm:$0x1]
    %v3354 = vsel %vm3346, 0, %v3353
    %3355 = vst [vmem:[%s79 + $0x14] sm:$0x1] %v3354
    %v3356 = vld [vmem:[%s79 + $0x1c] sm:$0x1]
    %v3357 = vsel %vm3346, 0, %v3356
    %3358 = vst [vmem:[%s79 + $0x1c] sm:$0x1] %v3357
    %v3359 = vld [vmem:[%s79 + $0x24] sm:$0x1]
    %v3360 = vsel %vm3346, 0, %v3359
    %3361 = vst [vmem:[%s79 + $0x24] sm:$0x1] %v3360
    %v3362 = vld [vmem:[%s79 + $0x2c] sm:$0x1]
    %v3363 = vsel %vm3346, 0, %v3362
    %3364 = vst [vmem:[%s79 + $0x2c] sm:$0x1] %v3363
    %v3365 = vld [vmem:[%s79 + $0x34] sm:$0x1]
    %v3366 = vsel %vm3346, 0, %v3365
    %3367 = vst [vmem:[%s79 + $0x34] sm:$0x1] %v3366
    %v3368 = vld [vmem:[%s79 + $0x3c] sm:$0x1]
    %v3369 = vsel %vm3346, 0, %v3368
    %3370 = vst [vmem:[%s79 + $0x3c] sm:$0x1] %v3369
    %v3371 = vld [vmem:[%s79 + $0x54] sm:$0x1]
    %v3372 = vsel %vm3346, 0, %v3371
    %3373 = vst [vmem:[%s79 + $0x54] sm:$0x1] %v3372
    %v3374 = vld [vmem:[%s79 + $0x5c] sm:$0x1]
    %v3375 = vsel %vm3346, 0, %v3374
    %3376 = vst [vmem:[%s79 + $0x5c] sm:$0x1] %v3375
    %v3377 = vld [vmem:[%s79 + $0x64] sm:$0x1]
    %v3378 = vsel %vm3346, 0, %v3377
    %3379 = vst [vmem:[%s79 + $0x64] sm:$0x1] %v3378
    %v3380 = vld [vmem:[%s79 + $0x6c] sm:$0x1]
    %v3381 = vsel %vm3346, 0, %v3380
    %3382 = vst [vmem:[%s79 + $0x6c] sm:$0x1] %v3381
    %v3383 = vld [vmem:[%s79 + $0x74] sm:$0x1]
    %v3384 = vsel %vm3346, 0, %v3383
    %3385 = vst [vmem:[%s79 + $0x74] sm:$0x1] %v3384
    %v3386 = vld [vmem:[%s79 + $0x7c] sm:$0x1]
    %v3387 = vsel %vm3346, 0, %v3386
    %3388 = vst [vmem:[%s79 + $0x7c] sm:$0x1] %v3387
    %v3389 = vld [vmem:[%s79 + $0x84] sm:$0x1]
    %v3390 = vsel %vm3346, 0, %v3389
    %3391 = vst [vmem:[%s79 + $0x84] sm:$0x1] %v3390
    %v3392 = vld [vmem:[%s79 + $0x8c] sm:$0x1]
    %v3393 = vsel %vm3346, 0, %v3392
    %3394 = vst [vmem:[%s79 + $0x8c] sm:$0x1] %v3393
    %v3411 = vunpack.c.l.b16 %v3270
    %v3412 = vunpack.c.l.b16 %v3271
    %v3413 = vunpack.c.l.b16 %v3272
    %v3414 = vunpack.c.l.b16 %v3273
    %v3415 = vunpack.c.l.b16 %v3274
    %v3416 = vunpack.c.l.b16 %v3275
    %v3417 = vunpack.c.l.b16 %v3276
    %v3418 = vunpack.c.l.b16 %v3277
    %v3419 = vunpack.c.l.b16 %v3278
    %v3420 = vunpack.c.l.b16 %v3279
    %v3421 = vunpack.c.l.b16 %v3280
    %v3422 = vunpack.c.l.b16 %v3281
    %v3423 = vunpack.c.l.b16 %v3282
    %v3424 = vunpack.c.l.b16 %v3283
    %v3425 = vunpack.c.l.b16 %v3284
    %v3426 = vunpack.c.l.b16 %v3285
    %v3427 = vpack.c.b16 %v3411, %v3411
    %v3428 = vpack.c.b16 %v3412, %v3412
    %v3429 = vpack.c.b16 %v3413, %v3413
    %v3430 = vpack.c.b16 %v3414, %v3414
    %v3431 = vpack.c.b16 %v3415, %v3415
    %v3432 = vpack.c.b16 %v3416, %v3416
    %v3433 = vpack.c.b16 %v3417, %v3417
    %v3434 = vpack.c.b16 %v3418, %v3418
    %v3435 = vpack.c.b16 %v3419, %v3419
    %v3436 = vpack.c.b16 %v3420, %v3420
    %v3437 = vpack.c.b16 %v3421, %v3421
    %v3438 = vpack.c.b16 %v3422, %v3422
    %v3439 = vpack.c.b16 %v3423, %v3423
    %v3440 = vpack.c.b16 %v3424, %v3424
    %v3441 = vpack.c.b16 %v3425, %v3425
    %v3442 = vpack.c.b16 %v3426, %v3426
    %v3444 = vshrl.u32 %v3427, 16
    %v3446 = vrot.slane %v3444, 7
    %v3447 = vshll.u32 %v3427, 16
    %v3449 = vor.u32 %v3446, %v3447
    %v3450 = vrot.slane %v3446, 4
    %v3452 = vshrl.u32 %v3428, 16
    %v3454 = vrot.slane %v3452, 7
    %v3455 = vshll.u32 %v3428, 16
    %v3457 = vor.u32 %v3454, %v3455
    %v3458 = vrot.slane %v3454, 4
    %v3460 = vshrl.u32 %v3429, 16
    %v3462 = vrot.slane %v3460, 7
    %v3463 = vshll.u32 %v3429, 16
    %v3465 = vor.u32 %v3462, %v3463
    %v3466 = vrot.slane %v3462, 4
    %v3468 = vshrl.u32 %v3430, 16
    %v3470 = vrot.slane %v3468, 7
    %v3471 = vshll.u32 %v3430, 16
    %v3473 = vor.u32 %v3470, %v3471
    %v3474 = vrot.slane %v3470, 4
    %v3476 = vshrl.u32 %v3431, 16
    %v3478 = vrot.slane %v3476, 7
    %v3479 = vshll.u32 %v3431, 16
    %v3481 = vor.u32 %v3478, %v3479
    %v3482 = vrot.slane %v3478, 4
    %v3484 = vshrl.u32 %v3432, 16
    %v3486 = vrot.slane %v3484, 7
    %v3487 = vshll.u32 %v3432, 16
    %v3489 = vor.u32 %v3486, %v3487
    %v3490 = vrot.slane %v3486, 4
    %v3492 = vshrl.u32 %v3433, 16
    %v3494 = vrot.slane %v3492, 7
    %v3495 = vshll.u32 %v3433, 16
    %v3497 = vor.u32 %v3494, %v3495
    %v3498 = vrot.slane %v3494, 4
    %v3500 = vshrl.u32 %v3434, 16
    %v3502 = vrot.slane %v3500, 7
    %v3503 = vshll.u32 %v3434, 16
    %v3505 = vor.u32 %v3502, %v3503
    %v3506 = vrot.slane %v3502, 4
    %v3508 = vshrl.u32 %v3435, 16
    %v3510 = vrot.slane %v3508, 7
    %v3511 = vshll.u32 %v3435, 16
    %v3513 = vor.u32 %v3510, %v3511
    %v3514 = vrot.slane %v3510, 4
    %v3516 = vshrl.u32 %v3436, 16
    %v3518 = vrot.slane %v3516, 7
    %v3519 = vshll.u32 %v3436, 16
    %v3521 = vor.u32 %v3518, %v3519
    %v3522 = vrot.slane %v3518, 4
    %v3524 = vshrl.u32 %v3437, 16
    %v3526 = vrot.slane %v3524, 7
    %v3527 = vshll.u32 %v3437, 16
    %v3529 = vor.u32 %v3526, %v3527
    %v3530 = vrot.slane %v3526, 4
    %v3532 = vshrl.u32 %v3438, 16
    %v3534 = vrot.slane %v3532, 7
    %v3535 = vshll.u32 %v3438, 16
    %v3537 = vor.u32 %v3534, %v3535
    %v3538 = vrot.slane %v3534, 4
    %v3540 = vshrl.u32 %v3439, 16
    %v3542 = vrot.slane %v3540, 7
    %v3543 = vshll.u32 %v3439, 16
    %v3545 = vor.u32 %v3542, %v3543
    %v3546 = vrot.slane %v3542, 4
    %v3548 = vshrl.u32 %v3440, 16
    %v3550 = vrot.slane %v3548, 7
    %v3551 = vshll.u32 %v3440, 16
    %v3553 = vor.u32 %v3550, %v3551
    %v3554 = vrot.slane %v3550, 4
    %v3556 = vshrl.u32 %v3441, 16
    %v3558 = vrot.slane %v3556, 7
    %v3559 = vshll.u32 %v3441, 16
    %v3561 = vor.u32 %v3558, %v3559
    %v3562 = vrot.slane %v3558, 4
    %v3564 = vshrl.u32 %v3442, 16
    %v3566 = vrot.slane %v3564, 7
    %v3567 = vshll.u32 %v3442, 16
    %v3569 = vor.u32 %v3566, %v3567
    %v3570 = vrot.slane %v3566, 4
    %vm3603 = vcmask 60416
    %vm3604 = vmand %vm3603, %vm131
    %v3605 = vld [vmem:[%s79] sm:$0xf]
    %v3606 = vsel %vm3604, %v3449, %v3605
    %3607 = vst [vmem:[%s79] sm:$0xf] %v3606
    %v3608 = vld [vmem:[%s79 + $0x4] sm:$0x1]
    %v3609 = vsel %vm3297, %v3450, %v3608
    %3610 = vst [vmem:[%s79 + $0x4] sm:$0x1] %v3609
    %v3611 = vld [vmem:[%s79 + $0x8] sm:$0xf]
    %v3612 = vsel %vm3604, %v3457, %v3611
    %3613 = vst [vmem:[%s79 + $0x8] sm:$0xf] %v3612
    %v3614 = vld [vmem:[%s79 + $0xc] sm:$0x1]
    %v3615 = vsel %vm3297, %v3458, %v3614
    %3616 = vst [vmem:[%s79 + $0xc] sm:$0x1] %v3615
    %v3617 = vld [vmem:[%s79 + $0x10] sm:$0xf]
    %v3618 = vsel %vm3604, %v3465, %v3617
    %3619 = vst [vmem:[%s79 + $0x10] sm:$0xf] %v3618
    %v3620 = vld [vmem:[%s79 + $0x14] sm:$0x1]
    %v3621 = vsel %vm3297, %v3466, %v3620
    %3622 = vst [vmem:[%s79 + $0x14] sm:$0x1] %v3621
    %v3623 = vld [vmem:[%s79 + $0x18] sm:$0xf]
    %v3624 = vsel %vm3604, %v3473, %v3623
    %3625 = vst [vmem:[%s79 + $0x18] sm:$0xf] %v3624
    %v3626 = vld [vmem:[%s79 + $0x1c] sm:$0x1]
    %v3627 = vsel %vm3297, %v3474, %v3626
    %3628 = vst [vmem:[%s79 + $0x1c] sm:$0x1] %v3627
    %v3629 = vld [vmem:[%s79 + $0x20] sm:$0xf]
    %v3630 = vsel %vm3604, %v3481, %v3629
    %3631 = vst [vmem:[%s79 + $0x20] sm:$0xf] %v3630
    %v3632 = vld [vmem:[%s79 + $0x24] sm:$0x1]
    %v3633 = vsel %vm3297, %v3482, %v3632
    %3634 = vst [vmem:[%s79 + $0x24] sm:$0x1] %v3633
    %v3635 = vld [vmem:[%s79 + $0x28] sm:$0xf]
    %v3636 = vsel %vm3604, %v3489, %v3635
    %3637 = vst [vmem:[%s79 + $0x28] sm:$0xf] %v3636
    %v3638 = vld [vmem:[%s79 + $0x2c] sm:$0x1]
    %v3639 = vsel %vm3297, %v3490, %v3638
    %3640 = vst [vmem:[%s79 + $0x2c] sm:$0x1] %v3639
    %v3641 = vld [vmem:[%s79 + $0x30] sm:$0xf]
    %v3642 = vsel %vm3604, %v3497, %v3641
    %3643 = vst [vmem:[%s79 + $0x30] sm:$0xf] %v3642
    %v3644 = vld [vmem:[%s79 + $0x34] sm:$0x1]
    %v3645 = vsel %vm3297, %v3498, %v3644
    %3646 = vst [vmem:[%s79 + $0x34] sm:$0x1] %v3645
    %v3647 = vld [vmem:[%s79 + $0x38] sm:$0xf]
    %v3648 = vsel %vm3604, %v3505, %v3647
    %3649 = vst [vmem:[%s79 + $0x38] sm:$0xf] %v3648
    %v3650 = vld [vmem:[%s79 + $0x3c] sm:$0x1]
    %v3651 = vsel %vm3297, %v3506, %v3650
    %3652 = vst [vmem:[%s79 + $0x3c] sm:$0x1] %v3651
    %v3653 = vld [vmem:[%s79 + $0x50] sm:$0xf]
    %v3654 = vsel %vm3604, %v3513, %v3653
    %3655 = vst [vmem:[%s79 + $0x50] sm:$0xf] %v3654
    %v3656 = vld [vmem:[%s79 + $0x54] sm:$0x1]
    %v3657 = vsel %vm3297, %v3514, %v3656
    %3658 = vst [vmem:[%s79 + $0x54] sm:$0x1] %v3657
    %v3659 = vld [vmem:[%s79 + $0x58] sm:$0xf]
    %v3660 = vsel %vm3604, %v3521, %v3659
    %3661 = vst [vmem:[%s79 + $0x58] sm:$0xf] %v3660
    %v3662 = vld [vmem:[%s79 + $0x5c] sm:$0x1]
    %v3663 = vsel %vm3297, %v3522, %v3662
    %3664 = vst [vmem:[%s79 + $0x5c] sm:$0x1] %v3663
    %v3665 = vld [vmem:[%s79 + $0x60] sm:$0xf]
    %v3666 = vsel %vm3604, %v3529, %v3665
    %3667 = vst [vmem:[%s79 + $0x60] sm:$0xf] %v3666
    %v3668 = vld [vmem:[%s79 + $0x64] sm:$0x1]
    %v3669 = vsel %vm3297, %v3530, %v3668
    %3670 = vst [vmem:[%s79 + $0x64] sm:$0x1] %v3669
    %v3671 = vld [vmem:[%s79 + $0x68] sm:$0xf]
    %v3672 = vsel %vm3604, %v3537, %v3671
    %3673 = vst [vmem:[%s79 + $0x68] sm:$0xf] %v3672
    %v3674 = vld [vmem:[%s79 + $0x6c] sm:$0x1]
    %v3675 = vsel %vm3297, %v3538, %v3674
    %3676 = vst [vmem:[%s79 + $0x6c] sm:$0x1] %v3675
    %v3677 = vld [vmem:[%s79 + $0x70] sm:$0xf]
    %v3678 = vsel %vm3604, %v3545, %v3677
    %3679 = vst [vmem:[%s79 + $0x70] sm:$0xf] %v3678
    %v3680 = vld [vmem:[%s79 + $0x74] sm:$0x1]
    %v3681 = vsel %vm3297, %v3546, %v3680
    %3682 = vst [vmem:[%s79 + $0x74] sm:$0x1] %v3681
    %v3683 = vld [vmem:[%s79 + $0x78] sm:$0xf]
    %v3684 = vsel %vm3604, %v3553, %v3683
    %3685 = vst [vmem:[%s79 + $0x78] sm:$0xf] %v3684
    %v3686 = vld [vmem:[%s79 + $0x7c] sm:$0x1]
    %v3687 = vsel %vm3297, %v3554, %v3686
    %3688 = vst [vmem:[%s79 + $0x7c] sm:$0x1] %v3687
    %v3689 = vld [vmem:[%s79 + $0x80] sm:$0xf]
    %v3690 = vsel %vm3604, %v3561, %v3689
    %3691 = vst [vmem:[%s79 + $0x80] sm:$0xf] %v3690
    %v3692 = vld [vmem:[%s79 + $0x84] sm:$0x1]
    %v3693 = vsel %vm3297, %v3562, %v3692
    %3694 = vst [vmem:[%s79 + $0x84] sm:$0x1] %v3693
    %v3695 = vld [vmem:[%s79 + $0x88] sm:$0xf]
    %v3696 = vsel %vm3604, %v3569, %v3695
    %3697 = vst [vmem:[%s79 + $0x88] sm:$0xf] %v3696
    %v3698 = vld [vmem:[%s79 + $0x8c] sm:$0x1]
    %v3699 = vsel %vm3297, %v3570, %v3698
    %3700 = vst [vmem:[%s79 + $0x8c] sm:$0x1] %v3699
    %v3701 = vld [vmem:[#allocation2] sm:$0xf]
    %v3702 = vld [vmem:[#allocation2 + $0x8] sm:$0xf]
    %v3703 = vld [vmem:[#allocation2 + $0x10] sm:$0xf]
    %v3704 = vld [vmem:[#allocation2 + $0x18] sm:$0xf]
    %v3705 = vld [vmem:[#allocation2 + $0x20] sm:$0xf]
    %v3706 = vld [vmem:[#allocation2 + $0x28] sm:$0xf]
    %v3707 = vld [vmem:[#allocation2 + $0x30] sm:$0xf]
    %v3708 = vld [vmem:[#allocation2 + $0x38] sm:$0xf]
    %v3709 = vld [vmem:[#allocation2 + $0x50] sm:$0xf]
    %v3710 = vld [vmem:[#allocation2 + $0x58] sm:$0xf]
    %v3711 = vld [vmem:[#allocation2 + $0x60] sm:$0xf]
    %v3712 = vld [vmem:[#allocation2 + $0x68] sm:$0xf]
    %v3713 = vld [vmem:[#allocation2 + $0x70] sm:$0xf]
    %v3714 = vld [vmem:[#allocation2 + $0x78] sm:$0xf]
    %v3715 = vld [vmem:[#allocation2 + $0x80] sm:$0xf]
    %v3716 = vld [vmem:[#allocation2 + $0x88] sm:$0xf]
    %v3717 = vld [vmem:[%s4] sm:$0xf]
    %v3718 = vld [vmem:[#allocation2 + $0x4] sm:$0x1]
    %v3719 = vld [vmem:[#allocation2 + $0xc] sm:$0x1]
    %v3720 = vld [vmem:[#allocation2 + $0x14] sm:$0x1]
    %v3721 = vld [vmem:[#allocation2 + $0x1c] sm:$0x1]
    %v3722 = vld [vmem:[#allocation2 + $0x24] sm:$0x1]
    %v3723 = vld [vmem:[#allocation2 + $0x2c] sm:$0x1]
    %v3724 = vld [vmem:[#allocation2 + $0x34] sm:$0x1]
    %v3725 = vld [vmem:[#allocation2 + $0x3c] sm:$0x1]
    %v3726 = vld [vmem:[#allocation2 + $0x54] sm:$0x1]
    %v3727 = vld [vmem:[#allocation2 + $0x5c] sm:$0x1]
    %v3728 = vld [vmem:[#allocation2 + $0x64] sm:$0x1]
    %v3729 = vld [vmem:[#allocation2 + $0x6c] sm:$0x1]
    %v3730 = vld [vmem:[#allocation2 + $0x74] sm:$0x1]
    %v3731 = vld [vmem:[#allocation2 + $0x7c] sm:$0x1]
    %v3732 = vld [vmem:[#allocation2 + $0x84] sm:$0x1]
    %v3733 = vld [vmem:[#allocation2 + $0x8c] sm:$0x1]
    %v3735 = vshrl.u32 %v3701, 16
    %v3737 = vrot.slane %v3735, 4
    %v3738 = vshll.u32 %v3701, 16
    %v3740 = vrot.slane %v3738, 5
    %v3741 = vor.u32 %v3737, %v3740
    %v3742 = vrot.slane %v3741, 4
    %v3744 = vshll.u32 %v3718, 16
    %v3746 = vrot.slane %v3744, 5
    %v3747 = vsel %vm474, %v3742, %v3746
    %v3749 = vshrl.u32 %v3702, 16
    %v3751 = vrot.slane %v3749, 4
    %v3752 = vshll.u32 %v3702, 16
    %v3754 = vrot.slane %v3752, 5
    %v3755 = vor.u32 %v3751, %v3754
    %v3756 = vrot.slane %v3755, 4
    %v3758 = vshll.u32 %v3719, 16
    %v3760 = vrot.slane %v3758, 5
    %v3761 = vsel %vm474, %v3756, %v3760
    %v3763 = vshrl.u32 %v3703, 16
    %v3765 = vrot.slane %v3763, 4
    %v3766 = vshll.u32 %v3703, 16
    %v3768 = vrot.slane %v3766, 5
    %v3769 = vor.u32 %v3765, %v3768
    %v3770 = vrot.slane %v3769, 4
    %v3772 = vshll.u32 %v3720, 16
    %v3774 = vrot.slane %v3772, 5
    %v3775 = vsel %vm474, %v3770, %v3774
    %v3777 = vshrl.u32 %v3704, 16
    %v3779 = vrot.slane %v3777, 4
    %v3780 = vshll.u32 %v3704, 16
    %v3782 = vrot.slane %v3780, 5
    %v3783 = vor.u32 %v3779, %v3782
    %v3784 = vrot.slane %v3783, 4
    %v3786 = vshll.u32 %v3721, 16
    %v3788 = vrot.slane %v3786, 5
    %v3789 = vsel %vm474, %v3784, %v3788
    %v3791 = vshrl.u32 %v3705, 16
    %v3793 = vrot.slane %v3791, 4
    %v3794 = vshll.u32 %v3705, 16
    %v3796 = vrot.slane %v3794, 5
    %v3797 = vor.u32 %v3793, %v3796
    %v3798 = vrot.slane %v3797, 4
    %v3800 = vshll.u32 %v3722, 16
    %v3802 = vrot.slane %v3800, 5
    %v3803 = vsel %vm474, %v3798, %v3802
    %v3805 = vshrl.u32 %v3706, 16
    %v3807 = vrot.slane %v3805, 4
    %v3808 = vshll.u32 %v3706, 16
    %v3810 = vrot.slane %v3808, 5
    %v3811 = vor.u32 %v3807, %v3810
    %v3812 = vrot.slane %v3811, 4
    %v3814 = vshll.u32 %v3723, 16
    %v3816 = vrot.slane %v3814, 5
    %v3817 = vsel %vm474, %v3812, %v3816
    %v3819 = vshrl.u32 %v3707, 16
    %v3821 = vrot.slane %v3819, 4
    %v3822 = vshll.u32 %v3707, 16
    %v3824 = vrot.slane %v3822, 5
    %v3825 = vor.u32 %v3821, %v3824
    %v3826 = vrot.slane %v3825, 4
    %v3828 = vshll.u32 %v3724, 16
    %v3830 = vrot.slane %v3828, 5
    %v3831 = vsel %vm474, %v3826, %v3830
    %v3833 = vshrl.u32 %v3708, 16
    %v3835 = vrot.slane %v3833, 4
    %v3836 = vshll.u32 %v3708, 16
    %v3838 = vrot.slane %v3836, 5
    %v3839 = vor.u32 %v3835, %v3838
    %v3840 = vrot.slane %v3839, 4
    %v3842 = vshll.u32 %v3725, 16
    %v3844 = vrot.slane %v3842, 5
    %v3845 = vsel %vm474, %v3840, %v3844
    %v3847 = vshrl.u32 %v3709, 16
    %v3849 = vrot.slane %v3847, 4
    %v3850 = vshll.u32 %v3709, 16
    %v3852 = vrot.slane %v3850, 5
    %v3853 = vor.u32 %v3849, %v3852
    %v3854 = vrot.slane %v3853, 4
    %v3856 = vshll.u32 %v3726, 16
    %v3858 = vrot.slane %v3856, 5
    %v3859 = vsel %vm474, %v3854, %v3858
    %v3861 = vshrl.u32 %v3710, 16
    %v3863 = vrot.slane %v3861, 4
    %v3864 = vshll.u32 %v3710, 16
    %v3866 = vrot.slane %v3864, 5
    %v3867 = vor.u32 %v3863, %v3866
    %v3868 = vrot.slane %v3867, 4
    %v3870 = vshll.u32 %v3727, 16
    %v3872 = vrot.slane %v3870, 5
    %v3873 = vsel %vm474, %v3868, %v3872
    %v3875 = vshrl.u32 %v3711, 16
    %v3877 = vrot.slane %v3875, 4
    %v3878 = vshll.u32 %v3711, 16
    %v3880 = vrot.slane %v3878, 5
    %v3881 = vor.u32 %v3877, %v3880
    %v3882 = vrot.slane %v3881, 4
    %v3884 = vshll.u32 %v3728, 16
    %v3886 = vrot.slane %v3884, 5
    %v3887 = vsel %vm474, %v3882, %v3886
    %v3889 = vshrl.u32 %v3712, 16
    %v3891 = vrot.slane %v3889, 4
    %v3892 = vshll.u32 %v3712, 16
    %v3894 = vrot.slane %v3892, 5
    %v3895 = vor.u32 %v3891, %v3894
    %v3896 = vrot.slane %v3895, 4
    %v3898 = vshll.u32 %v3729, 16
    %v3900 = vrot.slane %v3898, 5
    %v3901 = vsel %vm474, %v3896, %v3900
    %v3903 = vshrl.u32 %v3713, 16
    %v3905 = vrot.slane %v3903, 4
    %v3906 = vshll.u32 %v3713, 16
    %v3908 = vrot.slane %v3906, 5
    %v3909 = vor.u32 %v3905, %v3908
    %v3910 = vrot.slane %v3909, 4
    %v3912 = vshll.u32 %v3730, 16
    %v3914 = vrot.slane %v3912, 5
    %v3915 = vsel %vm474, %v3910, %v3914
    %v3917 = vshrl.u32 %v3714, 16
    %v3919 = vrot.slane %v3917, 4
    %v3920 = vshll.u32 %v3714, 16
    %v3922 = vrot.slane %v3920, 5
    %v3923 = vor.u32 %v3919, %v3922
    %v3924 = vrot.slane %v3923, 4
    %v3926 = vshll.u32 %v3731, 16
    %v3928 = vrot.slane %v3926, 5
    %v3929 = vsel %vm474, %v3924, %v3928
    %v3931 = vshrl.u32 %v3715, 16
    %v3933 = vrot.slane %v3931, 4
    %v3934 = vshll.u32 %v3715, 16
    %v3936 = vrot.slane %v3934, 5
    %v3937 = vor.u32 %v3933, %v3936
    %v3938 = vrot.slane %v3937, 4
    %v3940 = vshll.u32 %v3732, 16
    %v3942 = vrot.slane %v3940, 5
    %v3943 = vsel %vm474, %v3938, %v3942
    %v3945 = vshrl.u32 %v3716, 16
    %v3947 = vrot.slane %v3945, 4
    %v3948 = vshll.u32 %v3716, 16
    %v3950 = vrot.slane %v3948, 5
    %v3951 = vor.u32 %v3947, %v3950
    %v3952 = vrot.slane %v3951, 4
    %v3954 = vshll.u32 %v3733, 16
    %v3956 = vrot.slane %v3954, 5
    %v3957 = vsel %vm474, %v3952, %v3956
    %s3958 = scalar_lea.vmem %s4, 4
    %v3959 = vld [vmem:[%s3958] sm:$0xf]
    %v3960 = vunpack.c.l.b16 %v3747
    %v3961 = vunpack.c.l.b16 %v3761
    %v3962 = vunpack.c.l.b16 %v3775
    %v3963 = vunpack.c.l.b16 %v3789
    %v3964 = vunpack.c.l.b16 %v3803
    %v3965 = vunpack.c.l.b16 %v3817
    %v3966 = vunpack.c.l.b16 %v3831
    %v3967 = vunpack.c.l.b16 %v3845
    %v3968 = vunpack.c.l.b16 %v3859
    %v3969 = vunpack.c.l.b16 %v3873
    %v3970 = vunpack.c.l.b16 %v3887
    %v3971 = vunpack.c.l.b16 %v3901
    %v3972 = vunpack.c.l.b16 %v3915
    %v3973 = vunpack.c.l.b16 %v3929
    %v3974 = vunpack.c.l.b16 %v3943
    %v3975 = vunpack.c.l.b16 %v3957
    %v3976 = vpack.c.b16 %v3961, %v3960
    %v3977 = vpack.c.b16 %v3963, %v3962
    %v3978 = vpack.c.b16 %v3965, %v3964
    %v3979 = vpack.c.b16 %v3967, %v3966
    %v3980 = vpack.c.b16 %v3969, %v3968
    %v3981 = vpack.c.b16 %v3971, %v3970
    %v3982 = vpack.c.b16 %v3973, %v3972
    %v3983 = vpack.c.b16 %v3975, %v3974
    %v3985 = vsel %vm3096, %v3976, 0
    %v3988 = vsel %vm3096, %v3977, 0
    %v3991 = vsel %vm3096, %v3978, 0
    %v3994 = vsel %vm3096, %v3979, 0
    %v3997 = vsel %vm3096, %v3980, 0
    %v4000 = vsel %vm3096, %v3981, 0
    %v4003 = vsel %vm3096, %v3982, 0
    %v4006 = vsel %vm3096, %v3983, 0
    %vm4008 = vcmask 1043456
    %v4010 = vsel %vm4008, %v3959, 0
    %4012 = vmatprep.subr.bf16.mxu0 0
    %4013 = vmatpush1.bf16.msra.mxu0 0
    %4014 = vmatprep.subr.bf16.mxu0 0
    %4015 = vmatpush1.bf16.msra.mxu0 0
    %4016 = vmatprep.subr.bf16.mxu0 0
    %4017 = vmatpush1.bf16.msra.mxu0 0
    %4018 = vmatprep.subr.bf16.mxu0 0
    %4019 = vmatpush1.bf16.msra.mxu0 0
    %4020 = vmatprep.subr.bf16.mxu0 0
    %4021 = vmatpush1.bf16.msra.mxu0 0
    %4022 = vmatprep.subr.bf16.mxu0 0
    %4023 = vmatpush1.bf16.msra.mxu0 0
    %4024 = vmatprep.subr.bf16.mxu0 0
    %4025 = vmatpush1.bf16.msra.mxu0 0
    %4026 = vmatprep.subr.bf16.mxu0 0
    %4027 = vmatpush1.bf16.msra.mxu0 %v4010
    %4028 = vmatprep.subr.bf16.mxu0 0
    %4029 = vmatpush2.bf16.msra.mxu0 0
    %4030 = vmatprep.subr.bf16.mxu0 0
    %4031 = vmatpush2.bf16.msra.mxu0 0
    %4032 = vmatprep.subr.bf16.mxu0 0
    %4033 = vmatpush2.bf16.msra.mxu0 0
    %4034 = vmatprep.subr.bf16.mxu0 0
    %4035 = vmatpush2.bf16.msra.mxu0 0
    %4036 = vmatprep.subr.bf16.mxu0 0
    %4037 = vmatpush2.bf16.msra.mxu0 0
    %4038 = vmatprep.subr.bf16.mxu0 0
    %4039 = vmatpush2.bf16.msra.mxu0 0
    %4040 = vmatprep.subr.bf16.mxu0 0
    %4041 = vmatpush2.bf16.msra.mxu0 0
    %4042 = vmatprep.subr.bf16.mxu0 0
    %4043 = vmatpush2.bf16.msra.mxu0 0
    %4044 = vmatprep.mubr.bf16.mxu0 0
    %4045 = vmatmul.mubr.bf16.gmra.mxu0 %v3985
    %v4046 = vpop.f32.mrf.mxu0
    %v4047 = vadd.f32 0.0, %v4046
    %v4048 = vpop.f32.mrf.mxu0
    %v4049 = vpop.f32.mrf.mxu0
    %v4050 = vadd.f32 0.0, %v4049
    %v4051 = vpop.f32.mrf.mxu0
    %4052 = vmatprep.mubr.bf16.mxu0 0
    %4053 = vmatmul.mubr.bf16.gmra.mxu0 %v3988
    %v4054 = vpop.f32.mrf.mxu0
    %v4055 = vadd.f32 0.0, %v4054
    %v4056 = vpop.f32.mrf.mxu0
    %v4057 = vpop.f32.mrf.mxu0
    %v4058 = vadd.f32 0.0, %v4057
    %v4059 = vpop.f32.mrf.mxu0
    %4060 = vmatprep.mubr.bf16.mxu0 0
    %4061 = vmatmul.mubr.bf16.gmra.mxu0 %v3991
    %v4062 = vpop.f32.mrf.mxu0
    %v4063 = vadd.f32 0.0, %v4062
    %v4064 = vpop.f32.mrf.mxu0
    %v4065 = vpop.f32.mrf.mxu0
    %v4066 = vadd.f32 0.0, %v4065
    %v4067 = vpop.f32.mrf.mxu0
    %4068 = vmatprep.mubr.bf16.mxu0 0
    %4069 = vmatmul.mubr.bf16.gmra.mxu0 %v3994
    %v4070 = vpop.f32.mrf.mxu0
    %v4071 = vadd.f32 0.0, %v4070
    %v4072 = vpop.f32.mrf.mxu0
    %v4073 = vpop.f32.mrf.mxu0
    %v4074 = vadd.f32 0.0, %v4073
    %v4075 = vpop.f32.mrf.mxu0
    %4076 = vmatprep.mubr.bf16.mxu0 0
    %4077 = vmatmul.mubr.bf16.gmra.mxu0 %v3997
    %v4078 = vpop.f32.mrf.mxu0
    %v4079 = vadd.f32 0.0, %v4078
    %v4080 = vpop.f32.mrf.mxu0
    %v4081 = vpop.f32.mrf.mxu0
    %v4082 = vadd.f32 0.0, %v4081
    %v4083 = vpop.f32.mrf.mxu0
    %4084 = vmatprep.mubr.bf16.mxu0 0
    %4085 = vmatmul.mubr.bf16.gmra.mxu0 %v4000
    %v4086 = vpop.f32.mrf.mxu0
    %v4087 = vadd.f32 0.0, %v4086
    %v4088 = vpop.f32.mrf.mxu0
    %v4089 = vpop.f32.mrf.mxu0
    %v4090 = vadd.f32 0.0, %v4089
    %v4091 = vpop.f32.mrf.mxu0
    %4092 = vmatprep.mubr.bf16.mxu0 0
    %4093 = vmatmul.mubr.bf16.gmra.mxu0 %v4003
    %v4094 = vpop.f32.mrf.mxu0
    %v4095 = vadd.f32 0.0, %v4094
    %v4096 = vpop.f32.mrf.mxu0
    %v4097 = vpop.f32.mrf.mxu0
    %v4098 = vadd.f32 0.0, %v4097
    %v4099 = vpop.f32.mrf.mxu0
    %4100 = vmatprep.mubr.bf16.mxu0 0
    %4101 = vmatmul.mubr.bf16.gmra.mxu0 %v4006
    %v4102 = vpop.f32.mrf.mxu0
    %v4103 = vadd.f32 0.0, %v4102
    %v4104 = vpop.f32.mrf.mxu0
    %v4105 = vpop.f32.mrf.mxu0
    %v4106 = vadd.f32 0.0, %v4105
    %v4107 = vpop.f32.mrf.mxu0
    %4108 = vdwg.mxu0
    %v4125 = vunpack.c.l.b16 %v3701
    %v4126 = vunpack.c.l.b16 %v3702
    %v4127 = vunpack.c.l.b16 %v3703
    %v4128 = vunpack.c.l.b16 %v3704
    %v4129 = vunpack.c.l.b16 %v3705
    %v4130 = vunpack.c.l.b16 %v3706
    %v4131 = vunpack.c.l.b16 %v3707
    %v4132 = vunpack.c.l.b16 %v3708
    %v4133 = vunpack.c.l.b16 %v3709
    %v4134 = vunpack.c.l.b16 %v3710
    %v4135 = vunpack.c.l.b16 %v3711
    %v4136 = vunpack.c.l.b16 %v3712
    %v4137 = vunpack.c.l.b16 %v3713
    %v4138 = vunpack.c.l.b16 %v3714
    %v4139 = vunpack.c.l.b16 %v3715
    %v4140 = vunpack.c.l.b16 %v3716
    %v4141 = vpack.c.b16 %v4126, %v4125
    %v4142 = vpack.c.b16 %v4128, %v4127
    %v4143 = vpack.c.b16 %v4130, %v4129
    %v4144 = vpack.c.b16 %v4132, %v4131
    %v4145 = vpack.c.b16 %v4134, %v4133
    %v4146 = vpack.c.b16 %v4136, %v4135
    %v4147 = vpack.c.b16 %v4138, %v4137
    %v4148 = vpack.c.b16 %v4140, %v4139
    %v4150 = vsel %vm3096, %v4141, 0
    %v4153 = vsel %vm3096, %v4142, 0
    %v4156 = vsel %vm3096, %v4143, 0
    %v4159 = vsel %vm3096, %v4144, 0
    %v4162 = vsel %vm3096, %v4145, 0
    %v4165 = vsel %vm3096, %v4146, 0
    %v4168 = vsel %vm3096, %v4147, 0
    %v4171 = vsel %vm3096, %v4148, 0
    %v4174 = vsel %vm4008, %v3717, 0
    %4176 = vmatprep.subr.bf16.mxu0 0
    %4177 = vmatpush1.bf16.msra.mxu0 0
    %4178 = vmatprep.subr.bf16.mxu0 0
    %4179 = vmatpush1.bf16.msra.mxu0 0
    %4180 = vmatprep.subr.bf16.mxu0 0
    %4181 = vmatpush1.bf16.msra.mxu0 0
    %4182 = vmatprep.subr.bf16.mxu0 0
    %4183 = vmatpush1.bf16.msra.mxu0 0
    %4184 = vmatprep.subr.bf16.mxu0 0
    %4185 = vmatpush1.bf16.msra.mxu0 0
    %4186 = vmatprep.subr.bf16.mxu0 0
    %4187 = vmatpush1.bf16.msra.mxu0 0
    %4188 = vmatprep.subr.bf16.mxu0 0
    %4189 = vmatpush1.bf16.msra.mxu0 0
    %4190 = vmatprep.subr.bf16.mxu0 0
    %4191 = vmatpush1.bf16.msra.mxu0 %v4174
    %4192 = vmatprep.subr.bf16.mxu0 0
    %4193 = vmatpush2.bf16.msra.mxu0 0
    %4194 = vmatprep.subr.bf16.mxu0 0
    %4195 = vmatpush2.bf16.msra.mxu0 0
    %4196 = vmatprep.subr.bf16.mxu0 0
    %4197 = vmatpush2.bf16.msra.mxu0 0
    %4198 = vmatprep.subr.bf16.mxu0 0
    %4199 = vmatpush2.bf16.msra.mxu0 0
    %4200 = vmatprep.subr.bf16.mxu0 0
    %4201 = vmatpush2.bf16.msra.mxu0 0
    %4202 = vmatprep.subr.bf16.mxu0 0
    %4203 = vmatpush2.bf16.msra.mxu0 0
    %4204 = vmatprep.subr.bf16.mxu0 0
    %4205 = vmatpush2.bf16.msra.mxu0 0
    %4206 = vmatprep.subr.bf16.mxu0 0
    %4207 = vmatpush2.bf16.msra.mxu0 0
    %4208 = vmatprep.mubr.bf16.mxu0 0
    %4209 = vmatmul.mubr.bf16.gmra.mxu0 %v4150
    %v4210 = vpop.f32.mrf.mxu0
    %v4211 = vadd.f32 %v4047, %v4210
    %v4212 = vpop.f32.mrf.mxu0
    %v4213 = vpop.f32.mrf.mxu0
    %v4214 = vadd.f32 %v4050, %v4213
    %v4215 = vpop.f32.mrf.mxu0
    %4216 = vmatprep.mubr.bf16.mxu0 0
    %4217 = vmatmul.mubr.bf16.gmra.mxu0 %v4153
    %v4218 = vpop.f32.mrf.mxu0
    %v4219 = vadd.f32 %v4055, %v4218
    %v4220 = vpop.f32.mrf.mxu0
    %v4221 = vpop.f32.mrf.mxu0
    %v4222 = vadd.f32 %v4058, %v4221
    %v4223 = vpop.f32.mrf.mxu0
    %4224 = vmatprep.mubr.bf16.mxu0 0
    %4225 = vmatmul.mubr.bf16.gmra.mxu0 %v4156
    %v4226 = vpop.f32.mrf.mxu0
    %v4227 = vadd.f32 %v4063, %v4226
    %v4228 = vpop.f32.mrf.mxu0
    %v4229 = vpop.f32.mrf.mxu0
    %v4230 = vadd.f32 %v4066, %v4229
    %v4231 = vpop.f32.mrf.mxu0
    %4232 = vmatprep.mubr.bf16.mxu0 0
    %4233 = vmatmul.mubr.bf16.gmra.mxu0 %v4159
    %v4234 = vpop.f32.mrf.mxu0
    %v4235 = vadd.f32 %v4071, %v4234
    %v4236 = vpop.f32.mrf.mxu0
    %v4237 = vpop.f32.mrf.mxu0
    %v4238 = vadd.f32 %v4074, %v4237
    %v4239 = vpop.f32.mrf.mxu0
    %4240 = vmatprep.mubr.bf16.mxu0 0
    %4241 = vmatmul.mubr.bf16.gmra.mxu0 %v4162
    %v4242 = vpop.f32.mrf.mxu0
    %v4243 = vadd.f32 %v4079, %v4242
    %v4244 = vpop.f32.mrf.mxu0
    %v4245 = vpop.f32.mrf.mxu0
    %v4246 = vadd.f32 %v4082, %v4245
    %v4247 = vpop.f32.mrf.mxu0
    %4248 = vmatprep.mubr.bf16.mxu0 0
    %4249 = vmatmul.mubr.bf16.gmra.mxu0 %v4165
    %v4250 = vpop.f32.mrf.mxu0
    %v4251 = vadd.f32 %v4087, %v4250
    %v4252 = vpop.f32.mrf.mxu0
    %v4253 = vpop.f32.mrf.mxu0
    %v4254 = vadd.f32 %v4090, %v4253
    %v4255 = vpop.f32.mrf.mxu0
    %4256 = vmatprep.mubr.bf16.mxu0 0
    %4257 = vmatmul.mubr.bf16.gmra.mxu0 %v4168
    %v4258 = vpop.f32.mrf.mxu0
    %v4259 = vadd.f32 %v4095, %v4258
    %v4260 = vpop.f32.mrf.mxu0
    %v4261 = vpop.f32.mrf.mxu0
    %v4262 = vadd.f32 %v4098, %v4261
    %v4263 = vpop.f32.mrf.mxu0
    %4264 = vmatprep.mubr.bf16.mxu0 0
    %4265 = vmatmul.mubr.bf16.gmra.mxu0 %v4171
    %v4266 = vpop.f32.mrf.mxu0
    %v4267 = vadd.f32 %v4103, %v4266
    %v4268 = vpop.f32.mrf.mxu0
    %v4269 = vpop.f32.mrf.mxu0
    %v4270 = vadd.f32 %v4106, %v4269
    %v4271 = vpop.f32.mrf.mxu0
    %4272 = vdwg.mxu0
    %v4273 = vld [vmem:[#allocation2] sm:$0xe]
    %v4274 = vld [vmem:[#allocation2 + $0x8] sm:$0xe]
    %v4275 = vld [vmem:[#allocation2 + $0x10] sm:$0xe]
    %v4276 = vld [vmem:[#allocation2 + $0x18] sm:$0xe]
    %v4277 = vld [vmem:[#allocation2 + $0x20] sm:$0xe]
    %v4278 = vld [vmem:[#allocation2 + $0x28] sm:$0xe]
    %v4279 = vld [vmem:[#allocation2 + $0x30] sm:$0xe]
    %v4280 = vld [vmem:[#allocation2 + $0x38] sm:$0xe]
    %v4281 = vld [vmem:[#allocation2 + $0x50] sm:$0xe]
    %v4282 = vld [vmem:[#allocation2 + $0x58] sm:$0xe]
    %v4283 = vld [vmem:[#allocation2 + $0x60] sm:$0xe]
    %v4284 = vld [vmem:[#allocation2 + $0x68] sm:$0xe]
    %v4285 = vld [vmem:[#allocation2 + $0x70] sm:$0xe]
    %v4286 = vld [vmem:[#allocation2 + $0x78] sm:$0xe]
    %v4287 = vld [vmem:[#allocation2 + $0x80] sm:$0xe]
    %v4288 = vld [vmem:[#allocation2 + $0x88] sm:$0xe]
    %v4321 = vrot.slane %v4273, 5
    %v4322 = vrot.slane %v4321, 4
    %v4323 = vrot.slane %v3718, 5
    %v4324 = vsel %vm1068, %v4322, %v4323
    %v4325 = vrot.slane %v4274, 5
    %v4326 = vrot.slane %v4325, 4
    %v4327 = vrot.slane %v3719, 5
    %v4328 = vsel %vm1068, %v4326, %v4327
    %v4329 = vrot.slane %v4275, 5
    %v4330 = vrot.slane %v4329, 4
    %v4331 = vrot.slane %v3720, 5
    %v4332 = vsel %vm1068, %v4330, %v4331
    %v4333 = vrot.slane %v4276, 5
    %v4334 = vrot.slane %v4333, 4
    %v4335 = vrot.slane %v3721, 5
    %v4336 = vsel %vm1068, %v4334, %v4335
    %v4337 = vrot.slane %v4277, 5
    %v4338 = vrot.slane %v4337, 4
    %v4339 = vrot.slane %v3722, 5
    %v4340 = vsel %vm1068, %v4338, %v4339
    %v4341 = vrot.slane %v4278, 5
    %v4342 = vrot.slane %v4341, 4
    %v4343 = vrot.slane %v3723, 5
    %v4344 = vsel %vm1068, %v4342, %v4343
    %v4345 = vrot.slane %v4279, 5
    %v4346 = vrot.slane %v4345, 4
    %v4347 = vrot.slane %v3724, 5
    %v4348 = vsel %vm1068, %v4346, %v4347
    %v4349 = vrot.slane %v4280, 5
    %v4350 = vrot.slane %v4349, 4
    %v4351 = vrot.slane %v3725, 5
    %v4352 = vsel %vm1068, %v4350, %v4351
    %v4353 = vrot.slane %v4281, 5
    %v4354 = vrot.slane %v4353, 4
    %v4355 = vrot.slane %v3726, 5
    %v4356 = vsel %vm1068, %v4354, %v4355
    %v4357 = vrot.slane %v4282, 5
    %v4358 = vrot.slane %v4357, 4
    %v4359 = vrot.slane %v3727, 5
    %v4360 = vsel %vm1068, %v4358, %v4359
    %v4361 = vrot.slane %v4283, 5
    %v4362 = vrot.slane %v4361, 4
    %v4363 = vrot.slane %v3728, 5
    %v4364 = vsel %vm1068, %v4362, %v4363
    %v4365 = vrot.slane %v4284, 5
    %v4366 = vrot.slane %v4365, 4
    %v4367 = vrot.slane %v3729, 5
    %v4368 = vsel %vm1068, %v4366, %v4367
    %v4369 = vrot.slane %v4285, 5
    %v4370 = vrot.slane %v4369, 4
    %v4371 = vrot.slane %v3730, 5
    %v4372 = vsel %vm1068, %v4370, %v4371
    %v4373 = vrot.slane %v4286, 5
    %v4374 = vrot.slane %v4373, 4
    %v4375 = vrot.slane %v3731, 5
    %v4376 = vsel %vm1068, %v4374, %v4375
    %v4377 = vrot.slane %v4287, 5
    %v4378 = vrot.slane %v4377, 4
    %v4379 = vrot.slane %v3732, 5
    %v4380 = vsel %vm1068, %v4378, %v4379
    %v4381 = vrot.slane %v4288, 5
    %v4382 = vrot.slane %v4381, 4
    %v4383 = vrot.slane %v3733, 5
    %v4384 = vsel %vm1068, %v4382, %v4383
    %s4385 = scalar_lea.vmem %s4, 8
    %v4386 = vld [vmem:[%s4385] sm:$0xf]
    %v4387 = vunpack.c.l.b16 %v4324
    %v4388 = vunpack.c.l.b16 %v4328
    %v4389 = vunpack.c.l.b16 %v4332
    %v4390 = vunpack.c.l.b16 %v4336
    %v4391 = vunpack.c.l.b16 %v4340
    %v4392 = vunpack.c.l.b16 %v4344
    %v4393 = vunpack.c.l.b16 %v4348
    %v4394 = vunpack.c.l.b16 %v4352
    %v4395 = vunpack.c.l.b16 %v4356
    %v4396 = vunpack.c.l.b16 %v4360
    %v4397 = vunpack.c.l.b16 %v4364
    %v4398 = vunpack.c.l.b16 %v4368
    %v4399 = vunpack.c.l.b16 %v4372
    %v4400 = vunpack.c.l.b16 %v4376
    %v4401 = vunpack.c.l.b16 %v4380
    %v4402 = vunpack.c.l.b16 %v4384
    %v4403 = vpack.c.b16 %v4388, %v4387
    %v4404 = vpack.c.b16 %v4390, %v4389
    %v4405 = vpack.c.b16 %v4392, %v4391
    %v4406 = vpack.c.b16 %v4394, %v4393
    %v4407 = vpack.c.b16 %v4396, %v4395
    %v4408 = vpack.c.b16 %v4398, %v4397
    %v4409 = vpack.c.b16 %v4400, %v4399
    %v4410 = vpack.c.b16 %v4402, %v4401
    %v4412 = vsel %vm3096, %v4403, 0
    %v4415 = vsel %vm3096, %v4404, 0
    %v4418 = vsel %vm3096, %v4405, 0
    %v4421 = vsel %vm3096, %v4406, 0
    %v4424 = vsel %vm3096, %v4407, 0
    %v4427 = vsel %vm3096, %v4408, 0
    %v4430 = vsel %vm3096, %v4409, 0
    %v4433 = vsel %vm3096, %v4410, 0
    %v4436 = vsel %vm4008, %v4386, 0
    %4438 = vmatprep.subr.bf16.mxu0 0
    %4439 = vmatpush1.bf16.msra.mxu0 0
    %4440 = vmatprep.subr.bf16.mxu0 0
    %4441 = vmatpush1.bf16.msra.mxu0 0
    %4442 = vmatprep.subr.bf16.mxu0 0
    %4443 = vmatpush1.bf16.msra.mxu0 0
    %4444 = vmatprep.subr.bf16.mxu0 0
    %4445 = vmatpush1.bf16.msra.mxu0 0
    %4446 = vmatprep.subr.bf16.mxu0 0
    %4447 = vmatpush1.bf16.msra.mxu0 0
    %4448 = vmatprep.subr.bf16.mxu0 0
    %4449 = vmatpush1.bf16.msra.mxu0 0
    %4450 = vmatprep.subr.bf16.mxu0 0
    %4451 = vmatpush1.bf16.msra.mxu0 0
    %4452 = vmatprep.subr.bf16.mxu0 0
    %4453 = vmatpush1.bf16.msra.mxu0 %v4436
    %4454 = vmatprep.subr.bf16.mxu0 0
    %4455 = vmatpush2.bf16.msra.mxu0 0
    %4456 = vmatprep.subr.bf16.mxu0 0
    %4457 = vmatpush2.bf16.msra.mxu0 0
    %4458 = vmatprep.subr.bf16.mxu0 0
    %4459 = vmatpush2.bf16.msra.mxu0 0
    %4460 = vmatprep.subr.bf16.mxu0 0
    %4461 = vmatpush2.bf16.msra.mxu0 0
    %4462 = vmatprep.subr.bf16.mxu0 0
    %4463 = vmatpush2.bf16.msra.mxu0 0
    %4464 = vmatprep.subr.bf16.mxu0 0
    %4465 = vmatpush2.bf16.msra.mxu0 0
    %4466 = vmatprep.subr.bf16.mxu0 0
    %4467 = vmatpush2.bf16.msra.mxu0 0
    %4468 = vmatprep.subr.bf16.mxu0 0
    %4469 = vmatpush2.bf16.msra.mxu0 0
    %4470 = vmatprep.mubr.bf16.mxu0 0
    %4471 = vmatmul.mubr.bf16.gmra.mxu0 %v4412
    %v4472 = vpop.f32.mrf.mxu0
    %v4473 = vadd.f32 0.0, %v4472
    %v4474 = vpop.f32.mrf.mxu0
    %v4475 = vpop.f32.mrf.mxu0
    %v4476 = vadd.f32 0.0, %v4475
    %v4477 = vpop.f32.mrf.mxu0
    %4478 = vmatprep.mubr.bf16.mxu0 0
    %4479 = vmatmul.mubr.bf16.gmra.mxu0 %v4415
    %v4480 = vpop.f32.mrf.mxu0
    %v4481 = vadd.f32 0.0, %v4480
    %v4482 = vpop.f32.mrf.mxu0
    %v4483 = vpop.f32.mrf.mxu0
    %v4484 = vadd.f32 0.0, %v4483
    %v4485 = vpop.f32.mrf.mxu0
    %4486 = vmatprep.mubr.bf16.mxu0 0
    %4487 = vmatmul.mubr.bf16.gmra.mxu0 %v4418
    %v4488 = vpop.f32.mrf.mxu0
    %v4489 = vadd.f32 0.0, %v4488
    %v4490 = vpop.f32.mrf.mxu0
    %v4491 = vpop.f32.mrf.mxu0
    %v4492 = vadd.f32 0.0, %v4491
    %v4493 = vpop.f32.mrf.mxu0
    %4494 = vmatprep.mubr.bf16.mxu0 0
    %4495 = vmatmul.mubr.bf16.gmra.mxu0 %v4421
    %v4496 = vpop.f32.mrf.mxu0
    %v4497 = vadd.f32 0.0, %v4496
    %v4498 = vpop.f32.mrf.mxu0
    %v4499 = vpop.f32.mrf.mxu0
    %v4500 = vadd.f32 0.0, %v4499
    %v4501 = vpop.f32.mrf.mxu0
    %4502 = vmatprep.mubr.bf16.mxu0 0
    %4503 = vmatmul.mubr.bf16.gmra.mxu0 %v4424
    %v4504 = vpop.f32.mrf.mxu0
    %v4505 = vadd.f32 0.0, %v4504
    %v4506 = vpop.f32.mrf.mxu0
    %v4507 = vpop.f32.mrf.mxu0
    %v4508 = vadd.f32 0.0, %v4507
    %v4509 = vpop.f32.mrf.mxu0
    %4510 = vmatprep.mubr.bf16.mxu0 0
    %4511 = vmatmul.mubr.bf16.gmra.mxu0 %v4427
    %v4512 = vpop.f32.mrf.mxu0
    %v4513 = vadd.f32 0.0, %v4512
    %v4514 = vpop.f32.mrf.mxu0
    %v4515 = vpop.f32.mrf.mxu0
    %v4516 = vadd.f32 0.0, %v4515
    %v4517 = vpop.f32.mrf.mxu0
    %4518 = vmatprep.mubr.bf16.mxu0 0
    %4519 = vmatmul.mubr.bf16.gmra.mxu0 %v4430
    %v4520 = vpop.f32.mrf.mxu0
    %v4521 = vadd.f32 0.0, %v4520
    %v4522 = vpop.f32.mrf.mxu0
    %v4523 = vpop.f32.mrf.mxu0
    %v4524 = vadd.f32 0.0, %v4523
    %v4525 = vpop.f32.mrf.mxu0
    %4526 = vmatprep.mubr.bf16.mxu0 0
    %4527 = vmatmul.mubr.bf16.gmra.mxu0 %v4433
    %v4528 = vpop.f32.mrf.mxu0
    %v4529 = vadd.f32 0.0, %v4528
    %v4530 = vpop.f32.mrf.mxu0
    %v4531 = vpop.f32.mrf.mxu0
    %v4532 = vadd.f32 0.0, %v4531
    %v4533 = vpop.f32.mrf.mxu0
    %4534 = vdwg.mxu0
    %v4535 = vadd.f32 %v4211, %v4473
    %v4536 = vadd.f32 %v4214, %v4476
    %v4537 = vadd.f32 %v4219, %v4481
    %v4538 = vadd.f32 %v4222, %v4484
    %v4539 = vadd.f32 %v4227, %v4489
    %v4540 = vadd.f32 %v4230, %v4492
    %v4541 = vadd.f32 %v4235, %v4497
    %v4542 = vadd.f32 %v4238, %v4500
    %v4543 = vadd.f32 %v4243, %v4505
    %v4544 = vadd.f32 %v4246, %v4508
    %v4545 = vadd.f32 %v4251, %v4513
    %v4546 = vadd.f32 %v4254, %v4516
    %v4547 = vadd.f32 %v4259, %v4521
    %v4548 = vadd.f32 %v4262, %v4524
    %v4549 = vadd.f32 %v4267, %v4529
    %v4550 = vadd.f32 %v4270, %v4532
    %v4551 = vld [vmem:[%s79] sm:$0xf]
    %v4552 = vld [vmem:[%s79 + $0x8] sm:$0xf]
    %v4553 = vld [vmem:[%s79 + $0x10] sm:$0xf]
    %v4554 = vld [vmem:[%s79 + $0x18] sm:$0xf]
    %v4555 = vld [vmem:[%s79 + $0x20] sm:$0xf]
    %v4556 = vld [vmem:[%s79 + $0x28] sm:$0xf]
    %v4557 = vld [vmem:[%s79 + $0x30] sm:$0xf]
    %v4558 = vld [vmem:[%s79 + $0x38] sm:$0xf]
    %v4559 = vld [vmem:[%s79 + $0x50] sm:$0xf]
    %v4560 = vld [vmem:[%s79 + $0x58] sm:$0xf]
    %v4561 = vld [vmem:[%s79 + $0x60] sm:$0xf]
    %v4562 = vld [vmem:[%s79 + $0x68] sm:$0xf]
    %v4563 = vld [vmem:[%s79 + $0x70] sm:$0xf]
    %v4564 = vld [vmem:[%s79 + $0x78] sm:$0xf]
    %v4565 = vld [vmem:[%s79 + $0x80] sm:$0xf]
    %v4566 = vld [vmem:[%s79 + $0x88] sm:$0xf]
    %s4567 = scalar_lea.vmem %s4, 12
    %v4568 = vld [vmem:[%s4567] sm:$0xf]
    %v4585 = vunpack.c.l.b16 %v4551
    %v4586 = vunpack.c.l.b16 %v4552
    %v4587 = vunpack.c.l.b16 %v4553
    %v4588 = vunpack.c.l.b16 %v4554
    %v4589 = vunpack.c.l.b16 %v4555
    %v4590 = vunpack.c.l.b16 %v4556
    %v4591 = vunpack.c.l.b16 %v4557
    %v4592 = vunpack.c.l.b16 %v4558
    %v4593 = vunpack.c.l.b16 %v4559
    %v4594 = vunpack.c.l.b16 %v4560
    %v4595 = vunpack.c.l.b16 %v4561
    %v4596 = vunpack.c.l.b16 %v4562
    %v4597 = vunpack.c.l.b16 %v4563
    %v4598 = vunpack.c.l.b16 %v4564
    %v4599 = vunpack.c.l.b16 %v4565
    %v4600 = vunpack.c.l.b16 %v4566
    %v4601 = vpack.c.b16 %v4586, %v4585
    %v4602 = vpack.c.b16 %v4588, %v4587
    %v4603 = vpack.c.b16 %v4590, %v4589
    %v4604 = vpack.c.b16 %v4592, %v4591
    %v4605 = vpack.c.b16 %v4594, %v4593
    %v4606 = vpack.c.b16 %v4596, %v4595
    %v4607 = vpack.c.b16 %v4598, %v4597
    %v4608 = vpack.c.b16 %v4600, %v4599
    %v4610 = vsel %vm3096, %v4601, 0
    %v4613 = vsel %vm3096, %v4602, 0
    %v4616 = vsel %vm3096, %v4603, 0
    %v4619 = vsel %vm3096, %v4604, 0
    %v4622 = vsel %vm3096, %v4605, 0
    %v4625 = vsel %vm3096, %v4606, 0
    %v4628 = vsel %vm3096, %v4607, 0
    %v4631 = vsel %vm3096, %v4608, 0
    %v4634 = vsel %vm4008, %v4568, 0
    %4636 = vmatprep.subr.bf16.mxu0 0
    %4637 = vmatpush1.bf16.msra.mxu0 0
    %4638 = vmatprep.subr.bf16.mxu0 0
    %4639 = vmatpush1.bf16.msra.mxu0 0
    %4640 = vmatprep.subr.bf16.mxu0 0
    %4641 = vmatpush1.bf16.msra.mxu0 0
    %4642 = vmatprep.subr.bf16.mxu0 0
    %4643 = vmatpush1.bf16.msra.mxu0 0
    %4644 = vmatprep.subr.bf16.mxu0 0
    %4645 = vmatpush1.bf16.msra.mxu0 0
    %4646 = vmatprep.subr.bf16.mxu0 0
    %4647 = vmatpush1.bf16.msra.mxu0 0
    %4648 = vmatprep.subr.bf16.mxu0 0
    %4649 = vmatpush1.bf16.msra.mxu0 0
    %4650 = vmatprep.subr.bf16.mxu0 0
    %4651 = vmatpush1.bf16.msra.mxu0 %v4634
    %4652 = vmatprep.subr.bf16.mxu0 0
    %4653 = vmatpush2.bf16.msra.mxu0 0
    %4654 = vmatprep.subr.bf16.mxu0 0
    %4655 = vmatpush2.bf16.msra.mxu0 0
    %4656 = vmatprep.subr.bf16.mxu0 0
    %4657 = vmatpush2.bf16.msra.mxu0 0
    %4658 = vmatprep.subr.bf16.mxu0 0
    %4659 = vmatpush2.bf16.msra.mxu0 0
    %4660 = vmatprep.subr.bf16.mxu0 0
    %4661 = vmatpush2.bf16.msra.mxu0 0
    %4662 = vmatprep.subr.bf16.mxu0 0
    %4663 = vmatpush2.bf16.msra.mxu0 0
    %4664 = vmatprep.subr.bf16.mxu0 0
    %4665 = vmatpush2.bf16.msra.mxu0 0
    %4666 = vmatprep.subr.bf16.mxu0 0
    %4667 = vmatpush2.bf16.msra.mxu0 0
    %4668 = vmatprep.mubr.bf16.mxu0 0
    %4669 = vmatmul.mubr.bf16.gmra.mxu0 %v4610
    %v4670 = vpop.f32.mrf.mxu0
    %v4671 = vadd.f32 0.0, %v4670
    %v4672 = vpop.f32.mrf.mxu0
    %v4673 = vpop.f32.mrf.mxu0
    %v4674 = vadd.f32 0.0, %v4673
    %v4675 = vpop.f32.mrf.mxu0
    %4676 = vmatprep.mubr.bf16.mxu0 0
    %4677 = vmatmul.mubr.bf16.gmra.mxu0 %v4613
    %v4678 = vpop.f32.mrf.mxu0
    %v4679 = vadd.f32 0.0, %v4678
    %v4680 = vpop.f32.mrf.mxu0
    %v4681 = vpop.f32.mrf.mxu0
    %v4682 = vadd.f32 0.0, %v4681
    %v4683 = vpop.f32.mrf.mxu0
    %4684 = vmatprep.mubr.bf16.mxu0 0
    %4685 = vmatmul.mubr.bf16.gmra.mxu0 %v4616
    %v4686 = vpop.f32.mrf.mxu0
    %v4687 = vadd.f32 0.0, %v4686
    %v4688 = vpop.f32.mrf.mxu0
    %v4689 = vpop.f32.mrf.mxu0
    %v4690 = vadd.f32 0.0, %v4689
    %v4691 = vpop.f32.mrf.mxu0
    %4692 = vmatprep.mubr.bf16.mxu0 0
    %4693 = vmatmul.mubr.bf16.gmra.mxu0 %v4619
    %v4694 = vpop.f32.mrf.mxu0
    %v4695 = vadd.f32 0.0, %v4694
    %v4696 = vpop.f32.mrf.mxu0
    %v4697 = vpop.f32.mrf.mxu0
    %v4698 = vadd.f32 0.0, %v4697
    %v4699 = vpop.f32.mrf.mxu0
    %4700 = vmatprep.mubr.bf16.mxu0 0
    %4701 = vmatmul.mubr.bf16.gmra.mxu0 %v4622
    %v4702 = vpop.f32.mrf.mxu0
    %v4703 = vadd.f32 0.0, %v4702
    %v4704 = vpop.f32.mrf.mxu0
    %v4705 = vpop.f32.mrf.mxu0
    %v4706 = vadd.f32 0.0, %v4705
    %v4707 = vpop.f32.mrf.mxu0
    %4708 = vmatprep.mubr.bf16.mxu0 0
    %4709 = vmatmul.mubr.bf16.gmra.mxu0 %v4625
    %v4710 = vpop.f32.mrf.mxu0
    %v4711 = vadd.f32 0.0, %v4710
    %v4712 = vpop.f32.mrf.mxu0
    %v4713 = vpop.f32.mrf.mxu0
    %v4714 = vadd.f32 0.0, %v4713
    %v4715 = vpop.f32.mrf.mxu0
    %4716 = vmatprep.mubr.bf16.mxu0 0
    %4717 = vmatmul.mubr.bf16.gmra.mxu0 %v4628
    %v4718 = vpop.f32.mrf.mxu0
    %v4719 = vadd.f32 0.0, %v4718
    %v4720 = vpop.f32.mrf.mxu0
    %v4721 = vpop.f32.mrf.mxu0
    %v4722 = vadd.f32 0.0, %v4721
    %v4723 = vpop.f32.mrf.mxu0
    %4724 = vmatprep.mubr.bf16.mxu0 0
    %4725 = vmatmul.mubr.bf16.gmra.mxu0 %v4631
    %v4726 = vpop.f32.mrf.mxu0
    %v4727 = vadd.f32 0.0, %v4726
    %v4728 = vpop.f32.mrf.mxu0
    %v4729 = vpop.f32.mrf.mxu0
    %v4730 = vadd.f32 0.0, %v4729
    %v4731 = vpop.f32.mrf.mxu0
    %4732 = vdwg.mxu0
    %v4733 = vadd.f32 %v4535, %v4671
    %v4734 = vadd.f32 %v4536, %v4674
    %v4735 = vadd.f32 %v4537, %v4679
    %v4736 = vadd.f32 %v4538, %v4682
    %v4737 = vadd.f32 %v4539, %v4687
    %v4738 = vadd.f32 %v4540, %v4690
    %v4739 = vadd.f32 %v4541, %v4695
    %v4740 = vadd.f32 %v4542, %v4698
    %v4741 = vadd.f32 %v4543, %v4703
    %v4742 = vadd.f32 %v4544, %v4706
    %v4743 = vadd.f32 %v4545, %v4711
    %v4744 = vadd.f32 %v4546, %v4714
    %v4745 = vadd.f32 %v4547, %v4719
    %v4746 = vadd.f32 %v4548, %v4722
    %v4747 = vadd.f32 %v4549, %v4727
    %v4748 = vadd.f32 %v4550, %v4730
    %v4749 = vld [vmem:[%s79] sm:$0xf]
    %v4750 = vld [vmem:[%s79 + $0x4] sm:$0x1]
    %v4751 = vld [vmem:[%s79 + $0x8] sm:$0xf]
    %v4752 = vld [vmem:[%s79 + $0xc] sm:$0x1]
    %v4753 = vld [vmem:[%s79 + $0x10] sm:$0xf]
    %v4754 = vld [vmem:[%s79 + $0x14] sm:$0x1]
    %v4755 = vld [vmem:[%s79 + $0x18] sm:$0xf]
    %v4756 = vld [vmem:[%s79 + $0x1c] sm:$0x1]
    %v4757 = vld [vmem:[%s79 + $0x20] sm:$0xf]
    %v4758 = vld [vmem:[%s79 + $0x24] sm:$0x1]
    %v4759 = vld [vmem:[%s79 + $0x28] sm:$0xf]
    %v4760 = vld [vmem:[%s79 + $0x2c] sm:$0x1]
    %v4761 = vld [vmem:[%s79 + $0x30] sm:$0xf]
    %v4762 = vld [vmem:[%s79 + $0x34] sm:$0x1]
    %v4763 = vld [vmem:[%s79 + $0x38] sm:$0xf]
    %v4764 = vld [vmem:[%s79 + $0x3c] sm:$0x1]
    %v4765 = vld [vmem:[%s79 + $0x50] sm:$0xf]
    %v4766 = vld [vmem:[%s79 + $0x54] sm:$0x1]
    %v4767 = vld [vmem:[%s79 + $0x58] sm:$0xf]
    %v4768 = vld [vmem:[%s79 + $0x5c] sm:$0x1]
    %v4769 = vld [vmem:[%s79 + $0x60] sm:$0xf]
    %v4770 = vld [vmem:[%s79 + $0x64] sm:$0x1]
    %v4771 = vld [vmem:[%s79 + $0x68] sm:$0xf]
    %v4772 = vld [vmem:[%s79 + $0x6c] sm:$0x1]
    %v4773 = vld [vmem:[%s79 + $0x70] sm:$0xf]
    %v4774 = vld [vmem:[%s79 + $0x74] sm:$0x1]
    %v4775 = vld [vmem:[%s79 + $0x78] sm:$0xf]
    %v4776 = vld [vmem:[%s79 + $0x7c] sm:$0x1]
    %v4777 = vld [vmem:[%s79 + $0x80] sm:$0xf]
    %v4778 = vld [vmem:[%s79 + $0x84] sm:$0x1]
    %v4779 = vld [vmem:[%s79 + $0x88] sm:$0xf]
    %v4780 = vld [vmem:[%s79 + $0x8c] sm:$0x1]
    %v4782 = vshrl.u32 %v4749, 16
    %v4784 = vrot.slane %v4782, 4
    %v4785 = vshll.u32 %v4749, 16
    %v4787 = vrot.slane %v4785, 5
    %v4788 = vor.u32 %v4784, %v4787
    %v4789 = vrot.slane %v4788, 4
    %v4791 = vshll.u32 %v4750, 16
    %v4793 = vrot.slane %v4791, 5
    %v4794 = vsel %vm474, %v4789, %v4793
    %v4796 = vshrl.u32 %v4751, 16
    %v4798 = vrot.slane %v4796, 4
    %v4799 = vshll.u32 %v4751, 16
    %v4801 = vrot.slane %v4799, 5
    %v4802 = vor.u32 %v4798, %v4801
    %v4803 = vrot.slane %v4802, 4
    %v4805 = vshll.u32 %v4752, 16
    %v4807 = vrot.slane %v4805, 5
    %v4808 = vsel %vm474, %v4803, %v4807
    %v4810 = vshrl.u32 %v4753, 16
    %v4812 = vrot.slane %v4810, 4
    %v4813 = vshll.u32 %v4753, 16
    %v4815 = vrot.slane %v4813, 5
    %v4816 = vor.u32 %v4812, %v4815
    %v4817 = vrot.slane %v4816, 4
    %v4819 = vshll.u32 %v4754, 16
    %v4821 = vrot.slane %v4819, 5
    %v4822 = vsel %vm474, %v4817, %v4821
    %v4824 = vshrl.u32 %v4755, 16
    %v4826 = vrot.slane %v4824, 4
    %v4827 = vshll.u32 %v4755, 16
    %v4829 = vrot.slane %v4827, 5
    %v4830 = vor.u32 %v4826, %v4829
    %v4831 = vrot.slane %v4830, 4
    %v4833 = vshll.u32 %v4756, 16
    %v4835 = vrot.slane %v4833, 5
    %v4836 = vsel %vm474, %v4831, %v4835
    %v4838 = vshrl.u32 %v4757, 16
    %v4840 = vrot.slane %v4838, 4
    %v4841 = vshll.u32 %v4757, 16
    %v4843 = vrot.slane %v4841, 5
    %v4844 = vor.u32 %v4840, %v4843
    %v4845 = vrot.slane %v4844, 4
    %v4847 = vshll.u32 %v4758, 16
    %v4849 = vrot.slane %v4847, 5
    %v4850 = vsel %vm474, %v4845, %v4849
    %v4852 = vshrl.u32 %v4759, 16
    %v4854 = vrot.slane %v4852, 4
    %v4855 = vshll.u32 %v4759, 16
    %v4857 = vrot.slane %v4855, 5
    %v4858 = vor.u32 %v4854, %v4857
    %v4859 = vrot.slane %v4858, 4
    %v4861 = vshll.u32 %v4760, 16
    %v4863 = vrot.slane %v4861, 5
    %v4864 = vsel %vm474, %v4859, %v4863
    %v4866 = vshrl.u32 %v4761, 16
    %v4868 = vrot.slane %v4866, 4
    %v4869 = vshll.u32 %v4761, 16
    %v4871 = vrot.slane %v4869, 5
    %v4872 = vor.u32 %v4868, %v4871
    %v4873 = vrot.slane %v4872, 4
    %v4875 = vshll.u32 %v4762, 16
    %v4877 = vrot.slane %v4875, 5
    %v4878 = vsel %vm474, %v4873, %v4877
    %v4880 = vshrl.u32 %v4763, 16
    %v4882 = vrot.slane %v4880, 4
    %v4883 = vshll.u32 %v4763, 16
    %v4885 = vrot.slane %v4883, 5
    %v4886 = vor.u32 %v4882, %v4885
    %v4887 = vrot.slane %v4886, 4
    %v4889 = vshll.u32 %v4764, 16
    %v4891 = vrot.slane %v4889, 5
    %v4892 = vsel %vm474, %v4887, %v4891
    %v4894 = vshrl.u32 %v4765, 16
    %v4896 = vrot.slane %v4894, 4
    %v4897 = vshll.u32 %v4765, 16
    %v4899 = vrot.slane %v4897, 5
    %v4900 = vor.u32 %v4896, %v4899
    %v4901 = vrot.slane %v4900, 4
    %v4903 = vshll.u32 %v4766, 16
    %v4905 = vrot.slane %v4903, 5
    %v4906 = vsel %vm474, %v4901, %v4905
    %v4908 = vshrl.u32 %v4767, 16
    %v4910 = vrot.slane %v4908, 4
    %v4911 = vshll.u32 %v4767, 16
    %v4913 = vrot.slane %v4911, 5
    %v4914 = vor.u32 %v4910, %v4913
    %v4915 = vrot.slane %v4914, 4
    %v4917 = vshll.u32 %v4768, 16
    %v4919 = vrot.slane %v4917, 5
    %v4920 = vsel %vm474, %v4915, %v4919
    %v4922 = vshrl.u32 %v4769, 16
    %v4924 = vrot.slane %v4922, 4
    %v4925 = vshll.u32 %v4769, 16
    %v4927 = vrot.slane %v4925, 5
    %v4928 = vor.u32 %v4924, %v4927
    %v4929 = vrot.slane %v4928, 4
    %v4931 = vshll.u32 %v4770, 16
    %v4933 = vrot.slane %v4931, 5
    %v4934 = vsel %vm474, %v4929, %v4933
    %v4936 = vshrl.u32 %v4771, 16
    %v4938 = vrot.slane %v4936, 4
    %v4939 = vshll.u32 %v4771, 16
    %v4941 = vrot.slane %v4939, 5
    %v4942 = vor.u32 %v4938, %v4941
    %v4943 = vrot.slane %v4942, 4
    %v4945 = vshll.u32 %v4772, 16
    %v4947 = vrot.slane %v4945, 5
    %v4948 = vsel %vm474, %v4943, %v4947
    %v4950 = vshrl.u32 %v4773, 16
    %v4952 = vrot.slane %v4950, 4
    %v4953 = vshll.u32 %v4773, 16
    %v4955 = vrot.slane %v4953, 5
    %v4956 = vor.u32 %v4952, %v4955
    %v4957 = vrot.slane %v4956, 4
    %v4959 = vshll.u32 %v4774, 16
    %v4961 = vrot.slane %v4959, 5
    %v4962 = vsel %vm474, %v4957, %v4961
    %v4964 = vshrl.u32 %v4775, 16
    %v4966 = vrot.slane %v4964, 4
    %v4967 = vshll.u32 %v4775, 16
    %v4969 = vrot.slane %v4967, 5
    %v4970 = vor.u32 %v4966, %v4969
    %v4971 = vrot.slane %v4970, 4
    %v4973 = vshll.u32 %v4776, 16
    %v4975 = vrot.slane %v4973, 5
    %v4976 = vsel %vm474, %v4971, %v4975
    %v4978 = vshrl.u32 %v4777, 16
    %v4980 = vrot.slane %v4978, 4
    %v4981 = vshll.u32 %v4777, 16
    %v4983 = vrot.slane %v4981, 5
    %v4984 = vor.u32 %v4980, %v4983
    %v4985 = vrot.slane %v4984, 4
    %v4987 = vshll.u32 %v4778, 16
    %v4989 = vrot.slane %v4987, 5
    %v4990 = vsel %vm474, %v4985, %v4989
    %v4992 = vshrl.u32 %v4779, 16
    %v4994 = vrot.slane %v4992, 4
    %v4995 = vshll.u32 %v4779, 16
    %v4997 = vrot.slane %v4995, 5
    %v4998 = vor.u32 %v4994, %v4997
    %v4999 = vrot.slane %v4998, 4
    %v5001 = vshll.u32 %v4780, 16
    %v5003 = vrot.slane %v5001, 5
    %v5004 = vsel %vm474, %v4999, %v5003
    %s5005 = scalar_lea.vmem %s4, 16
    %v5006 = vld [vmem:[%s5005] sm:$0xf]
    %v5007 = vunpack.c.l.b16 %v4794
    %v5008 = vunpack.c.l.b16 %v4808
    %v5009 = vunpack.c.l.b16 %v4822
    %v5010 = vunpack.c.l.b16 %v4836
    %v5011 = vunpack.c.l.b16 %v4850
    %v5012 = vunpack.c.l.b16 %v4864
    %v5013 = vunpack.c.l.b16 %v4878
    %v5014 = vunpack.c.l.b16 %v4892
    %v5015 = vunpack.c.l.b16 %v4906
    %v5016 = vunpack.c.l.b16 %v4920
    %v5017 = vunpack.c.l.b16 %v4934
    %v5018 = vunpack.c.l.b16 %v4948
    %v5019 = vunpack.c.l.b16 %v4962
    %v5020 = vunpack.c.l.b16 %v4976
    %v5021 = vunpack.c.l.b16 %v4990
    %v5022 = vunpack.c.l.b16 %v5004
    %v5023 = vpack.c.b16 %v5008, %v5007
    %v5024 = vpack.c.b16 %v5010, %v5009
    %v5025 = vpack.c.b16 %v5012, %v5011
    %v5026 = vpack.c.b16 %v5014, %v5013
    %v5027 = vpack.c.b16 %v5016, %v5015
    %v5028 = vpack.c.b16 %v5018, %v5017
    %v5029 = vpack.c.b16 %v5020, %v5019
    %v5030 = vpack.c.b16 %v5022, %v5021
    %v5032 = vsel %vm3096, %v5023, 0
    %v5035 = vsel %vm3096, %v5024, 0
    %v5038 = vsel %vm3096, %v5025, 0
    %v5041 = vsel %vm3096, %v5026, 0
    %v5044 = vsel %vm3096, %v5027, 0
    %v5047 = vsel %vm3096, %v5028, 0
    %v5050 = vsel %vm3096, %v5029, 0
    %v5053 = vsel %vm3096, %v5030, 0
    %v5056 = vsel %vm4008, %v5006, 0
    %5058 = vmatprep.subr.bf16.mxu0 0
    %5059 = vmatpush1.bf16.msra.mxu0 0
    %5060 = vmatprep.subr.bf16.mxu0 0
    %5061 = vmatpush1.bf16.msra.mxu0 0
    %5062 = vmatprep.subr.bf16.mxu0 0
    %5063 = vmatpush1.bf16.msra.mxu0 0
    %5064 = vmatprep.subr.bf16.mxu0 0
    %5065 = vmatpush1.bf16.msra.mxu0 0
    %5066 = vmatprep.subr.bf16.mxu0 0
    %5067 = vmatpush1.bf16.msra.mxu0 0
    %5068 = vmatprep.subr.bf16.mxu0 0
    %5069 = vmatpush1.bf16.msra.mxu0 0
    %5070 = vmatprep.subr.bf16.mxu0 0
    %5071 = vmatpush1.bf16.msra.mxu0 0
    %5072 = vmatprep.subr.bf16.mxu0 0
    %5073 = vmatpush1.bf16.msra.mxu0 %v5056
    %5074 = vmatprep.subr.bf16.mxu0 0
    %5075 = vmatpush2.bf16.msra.mxu0 0
    %5076 = vmatprep.subr.bf16.mxu0 0
    %5077 = vmatpush2.bf16.msra.mxu0 0
    %5078 = vmatprep.subr.bf16.mxu0 0
    %5079 = vmatpush2.bf16.msra.mxu0 0
    %5080 = vmatprep.subr.bf16.mxu0 0
    %5081 = vmatpush2.bf16.msra.mxu0 0
    %5082 = vmatprep.subr.bf16.mxu0 0
    %5083 = vmatpush2.bf16.msra.mxu0 0
    %5084 = vmatprep.subr.bf16.mxu0 0
    %5085 = vmatpush2.bf16.msra.mxu0 0
    %5086 = vmatprep.subr.bf16.mxu0 0
    %5087 = vmatpush2.bf16.msra.mxu0 0
    %5088 = vmatprep.subr.bf16.mxu0 0
    %5089 = vmatpush2.bf16.msra.mxu0 0
    %5090 = vmatprep.mubr.bf16.mxu0 0
    %5091 = vmatmul.mubr.bf16.gmra.mxu0 %v5032
    %v5092 = vpop.f32.mrf.mxu0
    %v5093 = vadd.f32 0.0, %v5092
    %v5094 = vpop.f32.mrf.mxu0
    %v5095 = vpop.f32.mrf.mxu0
    %v5096 = vadd.f32 0.0, %v5095
    %v5097 = vpop.f32.mrf.mxu0
    %5098 = vmatprep.mubr.bf16.mxu0 0
    %5099 = vmatmul.mubr.bf16.gmra.mxu0 %v5035
    %v5100 = vpop.f32.mrf.mxu0
    %v5101 = vadd.f32 0.0, %v5100
    %v5102 = vpop.f32.mrf.mxu0
    %v5103 = vpop.f32.mrf.mxu0
    %v5104 = vadd.f32 0.0, %v5103
    %v5105 = vpop.f32.mrf.mxu0
    %5106 = vmatprep.mubr.bf16.mxu0 0
    %5107 = vmatmul.mubr.bf16.gmra.mxu0 %v5038
    %v5108 = vpop.f32.mrf.mxu0
    %v5109 = vadd.f32 0.0, %v5108
    %v5110 = vpop.f32.mrf.mxu0
    %v5111 = vpop.f32.mrf.mxu0
    %v5112 = vadd.f32 0.0, %v5111
    %v5113 = vpop.f32.mrf.mxu0
    %5114 = vmatprep.mubr.bf16.mxu0 0
    %5115 = vmatmul.mubr.bf16.gmra.mxu0 %v5041
    %v5116 = vpop.f32.mrf.mxu0
    %v5117 = vadd.f32 0.0, %v5116
    %v5118 = vpop.f32.mrf.mxu0
    %v5119 = vpop.f32.mrf.mxu0
    %v5120 = vadd.f32 0.0, %v5119
    %v5121 = vpop.f32.mrf.mxu0
    %5122 = vmatprep.mubr.bf16.mxu0 0
    %5123 = vmatmul.mubr.bf16.gmra.mxu0 %v5044
    %v5124 = vpop.f32.mrf.mxu0
    %v5125 = vadd.f32 0.0, %v5124
    %v5126 = vpop.f32.mrf.mxu0
    %v5127 = vpop.f32.mrf.mxu0
    %v5128 = vadd.f32 0.0, %v5127
    %v5129 = vpop.f32.mrf.mxu0
    %5130 = vmatprep.mubr.bf16.mxu0 0
    %5131 = vmatmul.mubr.bf16.gmra.mxu0 %v5047
    %v5132 = vpop.f32.mrf.mxu0
    %v5133 = vadd.f32 0.0, %v5132
    %v5134 = vpop.f32.mrf.mxu0
    %v5135 = vpop.f32.mrf.mxu0
    %v5136 = vadd.f32 0.0, %v5135
    %v5137 = vpop.f32.mrf.mxu0
    %5138 = vmatprep.mubr.bf16.mxu0 0
    %5139 = vmatmul.mubr.bf16.gmra.mxu0 %v5050
    %v5140 = vpop.f32.mrf.mxu0
    %v5141 = vadd.f32 0.0, %v5140
    %v5142 = vpop.f32.mrf.mxu0
    %v5143 = vpop.f32.mrf.mxu0
    %v5144 = vadd.f32 0.0, %v5143
    %v5145 = vpop.f32.mrf.mxu0
    %5146 = vmatprep.mubr.bf16.mxu0 0
    %5147 = vmatmul.mubr.bf16.gmra.mxu0 %v5053
    %v5148 = vpop.f32.mrf.mxu0
    %v5149 = vadd.f32 0.0, %v5148
    %v5150 = vpop.f32.mrf.mxu0
    %v5151 = vpop.f32.mrf.mxu0
    %v5152 = vadd.f32 0.0, %v5151
    %v5153 = vpop.f32.mrf.mxu0
    %5154 = vdwg.mxu0
    %v5155 = vadd.f32 %v4733, %v5093
    %v5156 = vadd.f32 %v4734, %v5096
    %v5157 = vadd.f32 %v4735, %v5101
    %v5158 = vadd.f32 %v4736, %v5104
    %v5159 = vadd.f32 %v4737, %v5109
    %v5160 = vadd.f32 %v4738, %v5112
    %v5161 = vadd.f32 %v4739, %v5117
    %v5162 = vadd.f32 %v4740, %v5120
    %v5163 = vadd.f32 %v4741, %v5125
    %v5164 = vadd.f32 %v4742, %v5128
    %v5165 = vadd.f32 %v4743, %v5133
    %v5166 = vadd.f32 %v4744, %v5136
    %v5167 = vadd.f32 %v4745, %v5141
    %v5168 = vadd.f32 %v4746, %v5144
    %v5169 = vadd.f32 %v4747, %v5149
    %v5170 = vadd.f32 %v4748, %v5152
    %v5171 = vld [vmem:[%s79] sm:$0xe]
    %v5172 = vld [vmem:[%s79 + $0x8] sm:$0xe]
    %v5173 = vld [vmem:[%s79 + $0x10] sm:$0xe]
    %v5174 = vld [vmem:[%s79 + $0x18] sm:$0xe]
    %v5175 = vld [vmem:[%s79 + $0x20] sm:$0xe]
    %v5176 = vld [vmem:[%s79 + $0x28] sm:$0xe]
    %v5177 = vld [vmem:[%s79 + $0x30] sm:$0xe]
    %v5178 = vld [vmem:[%s79 + $0x38] sm:$0xe]
    %v5179 = vld [vmem:[%s79 + $0x50] sm:$0xe]
    %v5180 = vld [vmem:[%s79 + $0x58] sm:$0xe]
    %v5181 = vld [vmem:[%s79 + $0x60] sm:$0xe]
    %v5182 = vld [vmem:[%s79 + $0x68] sm:$0xe]
    %v5183 = vld [vmem:[%s79 + $0x70] sm:$0xe]
    %v5184 = vld [vmem:[%s79 + $0x78] sm:$0xe]
    %v5185 = vld [vmem:[%s79 + $0x80] sm:$0xe]
    %v5186 = vld [vmem:[%s79 + $0x88] sm:$0xe]
    %v5219 = vrot.slane %v5171, 5
    %v5220 = vrot.slane %v5219, 4
    %v5221 = vrot.slane %v4750, 5
    %v5222 = vsel %vm1068, %v5220, %v5221
    %v5223 = vrot.slane %v5172, 5
    %v5224 = vrot.slane %v5223, 4
    %v5225 = vrot.slane %v4752, 5
    %v5226 = vsel %vm1068, %v5224, %v5225
    %v5227 = vrot.slane %v5173, 5
    %v5228 = vrot.slane %v5227, 4
    %v5229 = vrot.slane %v4754, 5
    %v5230 = vsel %vm1068, %v5228, %v5229
    %v5231 = vrot.slane %v5174, 5
    %v5232 = vrot.slane %v5231, 4
    %v5233 = vrot.slane %v4756, 5
    %v5234 = vsel %vm1068, %v5232, %v5233
    %v5235 = vrot.slane %v5175, 5
    %v5236 = vrot.slane %v5235, 4
    %v5237 = vrot.slane %v4758, 5
    %v5238 = vsel %vm1068, %v5236, %v5237
    %v5239 = vrot.slane %v5176, 5
    %v5240 = vrot.slane %v5239, 4
    %v5241 = vrot.slane %v4760, 5
    %v5242 = vsel %vm1068, %v5240, %v5241
    %v5243 = vrot.slane %v5177, 5
    %v5244 = vrot.slane %v5243, 4
    %v5245 = vrot.slane %v4762, 5
    %v5246 = vsel %vm1068, %v5244, %v5245
    %v5247 = vrot.slane %v5178, 5
    %v5248 = vrot.slane %v5247, 4
    %v5249 = vrot.slane %v4764, 5
    %v5250 = vsel %vm1068, %v5248, %v5249
    %v5251 = vrot.slane %v5179, 5
    %v5252 = vrot.slane %v5251, 4
    %v5253 = vrot.slane %v4766, 5
    %v5254 = vsel %vm1068, %v5252, %v5253
    %v5255 = vrot.slane %v5180, 5
    %v5256 = vrot.slane %v5255, 4
    %v5257 = vrot.slane %v4768, 5
    %v5258 = vsel %vm1068, %v5256, %v5257
    %v5259 = vrot.slane %v5181, 5
    %v5260 = vrot.slane %v5259, 4
    %v5261 = vrot.slane %v4770, 5
    %v5262 = vsel %vm1068, %v5260, %v5261
    %v5263 = vrot.slane %v5182, 5
    %v5264 = vrot.slane %v5263, 4
    %v5265 = vrot.slane %v4772, 5
    %v5266 = vsel %vm1068, %v5264, %v5265
    %v5267 = vrot.slane %v5183, 5
    %v5268 = vrot.slane %v5267, 4
    %v5269 = vrot.slane %v4774, 5
    %v5270 = vsel %vm1068, %v5268, %v5269
    %v5271 = vrot.slane %v5184, 5
    %v5272 = vrot.slane %v5271, 4
    %v5273 = vrot.slane %v4776, 5
    %v5274 = vsel %vm1068, %v5272, %v5273
    %v5275 = vrot.slane %v5185, 5
    %v5276 = vrot.slane %v5275, 4
    %v5277 = vrot.slane %v4778, 5
    %v5278 = vsel %vm1068, %v5276, %v5277
    %v5279 = vrot.slane %v5186, 5
    %v5280 = vrot.slane %v5279, 4
    %v5281 = vrot.slane %v4780, 5
    %v5282 = vsel %vm1068, %v5280, %v5281
    %s5283 = scalar_lea.vmem %s4, 20
    %v5284 = vld [vmem:[%s5283] sm:$0xf]
    %v5285 = vunpack.c.l.b16 %v5222
    %v5286 = vunpack.c.l.b16 %v5226
    %v5287 = vunpack.c.l.b16 %v5230
    %v5288 = vunpack.c.l.b16 %v5234
    %v5289 = vunpack.c.l.b16 %v5238
    %v5290 = vunpack.c.l.b16 %v5242
    %v5291 = vunpack.c.l.b16 %v5246
    %v5292 = vunpack.c.l.b16 %v5250
    %v5293 = vunpack.c.l.b16 %v5254
    %v5294 = vunpack.c.l.b16 %v5258
    %v5295 = vunpack.c.l.b16 %v5262
    %v5296 = vunpack.c.l.b16 %v5266
    %v5297 = vunpack.c.l.b16 %v5270
    %v5298 = vunpack.c.l.b16 %v5274
    %v5299 = vunpack.c.l.b16 %v5278
    %v5300 = vunpack.c.l.b16 %v5282
    %v5301 = vpack.c.b16 %v5286, %v5285
    %v5302 = vpack.c.b16 %v5288, %v5287
    %v5303 = vpack.c.b16 %v5290, %v5289
    %v5304 = vpack.c.b16 %v5292, %v5291
    %v5305 = vpack.c.b16 %v5294, %v5293
    %v5306 = vpack.c.b16 %v5296, %v5295
    %v5307 = vpack.c.b16 %v5298, %v5297
    %v5308 = vpack.c.b16 %v5300, %v5299
    %v5310 = vsel %vm3096, %v5301, 0
    %v5313 = vsel %vm3096, %v5302, 0
    %v5316 = vsel %vm3096, %v5303, 0
    %v5319 = vsel %vm3096, %v5304, 0
    %v5322 = vsel %vm3096, %v5305, 0
    %v5325 = vsel %vm3096, %v5306, 0
    %v5328 = vsel %vm3096, %v5307, 0
    %v5331 = vsel %vm3096, %v5308, 0
    %v5334 = vsel %vm4008, %v5284, 0
    %5336 = vmatprep.subr.bf16.mxu0 0
    %5337 = vmatpush1.bf16.msra.mxu0 0
    %5338 = vmatprep.subr.bf16.mxu0 0
    %5339 = vmatpush1.bf16.msra.mxu0 0
    %5340 = vmatprep.subr.bf16.mxu0 0
    %5341 = vmatpush1.bf16.msra.mxu0 0
    %5342 = vmatprep.subr.bf16.mxu0 0
    %5343 = vmatpush1.bf16.msra.mxu0 0
    %5344 = vmatprep.subr.bf16.mxu0 0
    %5345 = vmatpush1.bf16.msra.mxu0 0
    %5346 = vmatprep.subr.bf16.mxu0 0
    %5347 = vmatpush1.bf16.msra.mxu0 0
    %5348 = vmatprep.subr.bf16.mxu0 0
    %5349 = vmatpush1.bf16.msra.mxu0 0
    %5350 = vmatprep.subr.bf16.mxu0 0
    %5351 = vmatpush1.bf16.msra.mxu0 %v5334
    %5352 = vmatprep.subr.bf16.mxu0 0
    %5353 = vmatpush2.bf16.msra.mxu0 0
    %5354 = vmatprep.subr.bf16.mxu0 0
    %5355 = vmatpush2.bf16.msra.mxu0 0
    %5356 = vmatprep.subr.bf16.mxu0 0
    %5357 = vmatpush2.bf16.msra.mxu0 0
    %5358 = vmatprep.subr.bf16.mxu0 0
    %5359 = vmatpush2.bf16.msra.mxu0 0
    %5360 = vmatprep.subr.bf16.mxu0 0
    %5361 = vmatpush2.bf16.msra.mxu0 0
    %5362 = vmatprep.subr.bf16.mxu0 0
    %5363 = vmatpush2.bf16.msra.mxu0 0
    %5364 = vmatprep.subr.bf16.mxu0 0
    %5365 = vmatpush2.bf16.msra.mxu0 0
    %5366 = vmatprep.subr.bf16.mxu0 0
    %5367 = vmatpush2.bf16.msra.mxu0 0
    %5368 = vmatprep.mubr.bf16.mxu0 0
    %5369 = vmatmul.mubr.bf16.gmra.mxu0 %v5310
    %v5370 = vpop.f32.mrf.mxu0
    %v5371 = vadd.f32 0.0, %v5370
    %v5372 = vpop.f32.mrf.mxu0
    %v5373 = vpop.f32.mrf.mxu0
    %v5374 = vadd.f32 0.0, %v5373
    %v5375 = vpop.f32.mrf.mxu0
    %5376 = vmatprep.mubr.bf16.mxu0 0
    %5377 = vmatmul.mubr.bf16.gmra.mxu0 %v5313
    %v5378 = vpop.f32.mrf.mxu0
    %v5379 = vadd.f32 0.0, %v5378
    %v5380 = vpop.f32.mrf.mxu0
    %v5381 = vpop.f32.mrf.mxu0
    %v5382 = vadd.f32 0.0, %v5381
    %v5383 = vpop.f32.mrf.mxu0
    %5384 = vmatprep.mubr.bf16.mxu0 0
    %5385 = vmatmul.mubr.bf16.gmra.mxu0 %v5316
    %v5386 = vpop.f32.mrf.mxu0
    %v5387 = vadd.f32 0.0, %v5386
    %v5388 = vpop.f32.mrf.mxu0
    %v5389 = vpop.f32.mrf.mxu0
    %v5390 = vadd.f32 0.0, %v5389
    %v5391 = vpop.f32.mrf.mxu0
    %5392 = vmatprep.mubr.bf16.mxu0 0
    %5393 = vmatmul.mubr.bf16.gmra.mxu0 %v5319
    %v5394 = vpop.f32.mrf.mxu0
    %v5395 = vadd.f32 0.0, %v5394
    %v5396 = vpop.f32.mrf.mxu0
    %v5397 = vpop.f32.mrf.mxu0
    %v5398 = vadd.f32 0.0, %v5397
    %v5399 = vpop.f32.mrf.mxu0
    %5400 = vmatprep.mubr.bf16.mxu0 0
    %5401 = vmatmul.mubr.bf16.gmra.mxu0 %v5322
    %v5402 = vpop.f32.mrf.mxu0
    %v5403 = vadd.f32 0.0, %v5402
    %v5404 = vpop.f32.mrf.mxu0
    %v5405 = vpop.f32.mrf.mxu0
    %v5406 = vadd.f32 0.0, %v5405
    %v5407 = vpop.f32.mrf.mxu0
    %5408 = vmatprep.mubr.bf16.mxu0 0
    %5409 = vmatmul.mubr.bf16.gmra.mxu0 %v5325
    %v5410 = vpop.f32.mrf.mxu0
    %v5411 = vadd.f32 0.0, %v5410
    %v5412 = vpop.f32.mrf.mxu0
    %v5413 = vpop.f32.mrf.mxu0
    %v5414 = vadd.f32 0.0, %v5413
    %v5415 = vpop.f32.mrf.mxu0
    %5416 = vmatprep.mubr.bf16.mxu0 0
    %5417 = vmatmul.mubr.bf16.gmra.mxu0 %v5328
    %v5418 = vpop.f32.mrf.mxu0
    %v5419 = vadd.f32 0.0, %v5418
    %v5420 = vpop.f32.mrf.mxu0
    %v5421 = vpop.f32.mrf.mxu0
    %v5422 = vadd.f32 0.0, %v5421
    %v5423 = vpop.f32.mrf.mxu0
    %5424 = vmatprep.mubr.bf16.mxu0 0
    %5425 = vmatmul.mubr.bf16.gmra.mxu0 %v5331
    %v5426 = vpop.f32.mrf.mxu0
    %v5427 = vadd.f32 0.0, %v5426
    %v5428 = vpop.f32.mrf.mxu0
    %v5429 = vpop.f32.mrf.mxu0
    %v5430 = vadd.f32 0.0, %v5429
    %v5431 = vpop.f32.mrf.mxu0
    %5432 = vdwg.mxu0
    %v5433 = vadd.f32 %v5155, %v5371
    %v5434 = vadd.f32 %v5156, %v5374
    %v5435 = vadd.f32 %v5157, %v5379
    %v5436 = vadd.f32 %v5158, %v5382
    %v5437 = vadd.f32 %v5159, %v5387
    %v5438 = vadd.f32 %v5160, %v5390
    %v5439 = vadd.f32 %v5161, %v5395
    %v5440 = vadd.f32 %v5162, %v5398
    %v5441 = vadd.f32 %v5163, %v5403
    %v5442 = vadd.f32 %v5164, %v5406
    %v5443 = vadd.f32 %v5165, %v5411
    %v5444 = vadd.f32 %v5166, %v5414
    %v5445 = vadd.f32 %v5167, %v5419
    %v5446 = vadd.f32 %v5168, %v5422
    %v5447 = vadd.f32 %v5169, %v5427
    %v5448 = vadd.f32 %v5170, %v5430
    %v5449 = vld [vmem:[%s2197] sm:$0xf]
    %v5450 = vld [vmem:[%s2197 + $0x8] sm:$0xf]
    %v5451 = vld [vmem:[%s2197 + $0x10] sm:$0xf]
    %v5452 = vld [vmem:[%s2197 + $0x18] sm:$0xf]
    %v5453 = vld [vmem:[%s2197 + $0x20] sm:$0xf]
    %v5454 = vld [vmem:[%s2197 + $0x28] sm:$0xf]
    %v5455 = vld [vmem:[%s2197 + $0x30] sm:$0xf]
    %v5456 = vld [vmem:[%s2197 + $0x38] sm:$0xf]
    %v5457 = vld [vmem:[%s2197 + $0x50] sm:$0xf]
    %v5458 = vld [vmem:[%s2197 + $0x58] sm:$0xf]
    %v5459 = vld [vmem:[%s2197 + $0x60] sm:$0xf]
    %v5460 = vld [vmem:[%s2197 + $0x68] sm:$0xf]
    %v5461 = vld [vmem:[%s2197 + $0x70] sm:$0xf]
    %v5462 = vld [vmem:[%s2197 + $0x78] sm:$0xf]
    %v5463 = vld [vmem:[%s2197 + $0x80] sm:$0xf]
    %v5464 = vld [vmem:[%s2197 + $0x88] sm:$0xf]
    %s5465 = scalar_lea.vmem %s4, 24
    %v5466 = vld [vmem:[%s5465] sm:$0xf]
    %v5483 = vunpack.c.l.b16 %v5449
    %v5484 = vunpack.c.l.b16 %v5450
    %v5485 = vunpack.c.l.b16 %v5451
    %v5486 = vunpack.c.l.b16 %v5452
    %v5487 = vunpack.c.l.b16 %v5453
    %v5488 = vunpack.c.l.b16 %v5454
    %v5489 = vunpack.c.l.b16 %v5455
    %v5490 = vunpack.c.l.b16 %v5456
    %v5491 = vunpack.c.l.b16 %v5457
    %v5492 = vunpack.c.l.b16 %v5458
    %v5493 = vunpack.c.l.b16 %v5459
    %v5494 = vunpack.c.l.b16 %v5460
    %v5495 = vunpack.c.l.b16 %v5461
    %v5496 = vunpack.c.l.b16 %v5462
    %v5497 = vunpack.c.l.b16 %v5463
    %v5498 = vunpack.c.l.b16 %v5464
    %v5499 = vpack.c.b16 %v5484, %v5483
    %v5500 = vpack.c.b16 %v5486, %v5485
    %v5501 = vpack.c.b16 %v5488, %v5487
    %v5502 = vpack.c.b16 %v5490, %v5489
    %v5503 = vpack.c.b16 %v5492, %v5491
    %v5504 = vpack.c.b16 %v5494, %v5493
    %v5505 = vpack.c.b16 %v5496, %v5495
    %v5506 = vpack.c.b16 %v5498, %v5497
    %v5508 = vsel %vm3096, %v5499, 0
    %v5511 = vsel %vm3096, %v5500, 0
    %v5514 = vsel %vm3096, %v5501, 0
    %v5517 = vsel %vm3096, %v5502, 0
    %v5520 = vsel %vm3096, %v5503, 0
    %v5523 = vsel %vm3096, %v5504, 0
    %v5526 = vsel %vm3096, %v5505, 0
    %v5529 = vsel %vm3096, %v5506, 0
    %v5532 = vsel %vm4008, %v5466, 0
    %5534 = vmatprep.subr.bf16.mxu0 0
    %5535 = vmatpush1.bf16.msra.mxu0 0
    %5536 = vmatprep.subr.bf16.mxu0 0
    %5537 = vmatpush1.bf16.msra.mxu0 0
    %5538 = vmatprep.subr.bf16.mxu0 0
    %5539 = vmatpush1.bf16.msra.mxu0 0
    %5540 = vmatprep.subr.bf16.mxu0 0
    %5541 = vmatpush1.bf16.msra.mxu0 0
    %5542 = vmatprep.subr.bf16.mxu0 0
    %5543 = vmatpush1.bf16.msra.mxu0 0
    %5544 = vmatprep.subr.bf16.mxu0 0
    %5545 = vmatpush1.bf16.msra.mxu0 0
    %5546 = vmatprep.subr.bf16.mxu0 0
    %5547 = vmatpush1.bf16.msra.mxu0 0
    %5548 = vmatprep.subr.bf16.mxu0 0
    %5549 = vmatpush1.bf16.msra.mxu0 %v5532
    %5550 = vmatprep.subr.bf16.mxu0 0
    %5551 = vmatpush2.bf16.msra.mxu0 0
    %5552 = vmatprep.subr.bf16.mxu0 0
    %5553 = vmatpush2.bf16.msra.mxu0 0
    %5554 = vmatprep.subr.bf16.mxu0 0
    %5555 = vmatpush2.bf16.msra.mxu0 0
    %5556 = vmatprep.subr.bf16.mxu0 0
    %5557 = vmatpush2.bf16.msra.mxu0 0
    %5558 = vmatprep.subr.bf16.mxu0 0
    %5559 = vmatpush2.bf16.msra.mxu0 0
    %5560 = vmatprep.subr.bf16.mxu0 0
    %5561 = vmatpush2.bf16.msra.mxu0 0
    %5562 = vmatprep.subr.bf16.mxu0 0
    %5563 = vmatpush2.bf16.msra.mxu0 0
    %5564 = vmatprep.subr.bf16.mxu0 0
    %5565 = vmatpush2.bf16.msra.mxu0 0
    %5566 = vmatprep.mubr.bf16.mxu0 0
    %5567 = vmatmul.mubr.bf16.gmra.mxu0 %v5508
    %v5568 = vpop.f32.mrf.mxu0
    %v5569 = vadd.f32 0.0, %v5568
    %v5570 = vpop.f32.mrf.mxu0
    %v5571 = vpop.f32.mrf.mxu0
    %v5572 = vadd.f32 0.0, %v5571
    %v5573 = vpop.f32.mrf.mxu0
    %5574 = vmatprep.mubr.bf16.mxu0 0
    %5575 = vmatmul.mubr.bf16.gmra.mxu0 %v5511
    %v5576 = vpop.f32.mrf.mxu0
    %v5577 = vadd.f32 0.0, %v5576
    %v5578 = vpop.f32.mrf.mxu0
    %v5579 = vpop.f32.mrf.mxu0
    %v5580 = vadd.f32 0.0, %v5579
    %v5581 = vpop.f32.mrf.mxu0
    %5582 = vmatprep.mubr.bf16.mxu0 0
    %5583 = vmatmul.mubr.bf16.gmra.mxu0 %v5514
    %v5584 = vpop.f32.mrf.mxu0
    %v5585 = vadd.f32 0.0, %v5584
    %v5586 = vpop.f32.mrf.mxu0
    %v5587 = vpop.f32.mrf.mxu0
    %v5588 = vadd.f32 0.0, %v5587
    %v5589 = vpop.f32.mrf.mxu0
    %5590 = vmatprep.mubr.bf16.mxu0 0
    %5591 = vmatmul.mubr.bf16.gmra.mxu0 %v5517
    %v5592 = vpop.f32.mrf.mxu0
    %v5593 = vadd.f32 0.0, %v5592
    %v5594 = vpop.f32.mrf.mxu0
    %v5595 = vpop.f32.mrf.mxu0
    %v5596 = vadd.f32 0.0, %v5595
    %v5597 = vpop.f32.mrf.mxu0
    %5598 = vmatprep.mubr.bf16.mxu0 0
    %5599 = vmatmul.mubr.bf16.gmra.mxu0 %v5520
    %v5600 = vpop.f32.mrf.mxu0
    %v5601 = vadd.f32 0.0, %v5600
    %v5602 = vpop.f32.mrf.mxu0
    %v5603 = vpop.f32.mrf.mxu0
    %v5604 = vadd.f32 0.0, %v5603
    %v5605 = vpop.f32.mrf.mxu0
    %5606 = vmatprep.mubr.bf16.mxu0 0
    %5607 = vmatmul.mubr.bf16.gmra.mxu0 %v5523
    %v5608 = vpop.f32.mrf.mxu0
    %v5609 = vadd.f32 0.0, %v5608
    %v5610 = vpop.f32.mrf.mxu0
    %v5611 = vpop.f32.mrf.mxu0
    %v5612 = vadd.f32 0.0, %v5611
    %v5613 = vpop.f32.mrf.mxu0
    %5614 = vmatprep.mubr.bf16.mxu0 0
    %5615 = vmatmul.mubr.bf16.gmra.mxu0 %v5526
    %v5616 = vpop.f32.mrf.mxu0
    %v5617 = vadd.f32 0.0, %v5616
    %v5618 = vpop.f32.mrf.mxu0
    %v5619 = vpop.f32.mrf.mxu0
    %v5620 = vadd.f32 0.0, %v5619
    %v5621 = vpop.f32.mrf.mxu0
    %5622 = vmatprep.mubr.bf16.mxu0 0
    %5623 = vmatmul.mubr.bf16.gmra.mxu0 %v5529
    %v5624 = vpop.f32.mrf.mxu0
    %v5625 = vadd.f32 0.0, %v5624
    %v5626 = vpop.f32.mrf.mxu0
    %v5627 = vpop.f32.mrf.mxu0
    %v5628 = vadd.f32 0.0, %v5627
    %v5629 = vpop.f32.mrf.mxu0
    %5630 = vdwg.mxu0
    %v5631 = vadd.f32 %v5433, %v5569
    %v5632 = vadd.f32 %v5434, %v5572
    %v5633 = vadd.f32 %v5435, %v5577
    %v5634 = vadd.f32 %v5436, %v5580
    %v5635 = vadd.f32 %v5437, %v5585
    %v5636 = vadd.f32 %v5438, %v5588
    %v5637 = vadd.f32 %v5439, %v5593
    %v5638 = vadd.f32 %v5440, %v5596
    %v5639 = vadd.f32 %v5441, %v5601
    %v5640 = vadd.f32 %v5442, %v5604
    %v5641 = vadd.f32 %v5443, %v5609
    %v5642 = vadd.f32 %v5444, %v5612
    %v5643 = vadd.f32 %v5445, %v5617
    %v5644 = vadd.f32 %v5446, %v5620
    %v5645 = vadd.f32 %v5447, %v5625
    %v5646 = vadd.f32 %v5448, %v5628
    %v5647 = vld [vmem:[%s2197] sm:$0xf]
    %v5648 = vld [vmem:[%s2197 + $0x4] sm:$0x1]
    %v5649 = vld [vmem:[%s2197 + $0x8] sm:$0xf]
    %v5650 = vld [vmem:[%s2197 + $0xc] sm:$0x1]
    %v5651 = vld [vmem:[%s2197 + $0x10] sm:$0xf]
    %v5652 = vld [vmem:[%s2197 + $0x14] sm:$0x1]
    %v5653 = vld [vmem:[%s2197 + $0x18] sm:$0xf]
    %v5654 = vld [vmem:[%s2197 + $0x1c] sm:$0x1]
    %v5655 = vld [vmem:[%s2197 + $0x20] sm:$0xf]
    %v5656 = vld [vmem:[%s2197 + $0x24] sm:$0x1]
    %v5657 = vld [vmem:[%s2197 + $0x28] sm:$0xf]
    %v5658 = vld [vmem:[%s2197 + $0x2c] sm:$0x1]
    %v5659 = vld [vmem:[%s2197 + $0x30] sm:$0xf]
    %v5660 = vld [vmem:[%s2197 + $0x34] sm:$0x1]
    %v5661 = vld [vmem:[%s2197 + $0x38] sm:$0xf]
    %v5662 = vld [vmem:[%s2197 + $0x3c] sm:$0x1]
    %v5663 = vld [vmem:[%s2197 + $0x50] sm:$0xf]
    %v5664 = vld [vmem:[%s2197 + $0x54] sm:$0x1]
    %v5665 = vld [vmem:[%s2197 + $0x58] sm:$0xf]
    %v5666 = vld [vmem:[%s2197 + $0x5c] sm:$0x1]
    %v5667 = vld [vmem:[%s2197 + $0x60] sm:$0xf]
    %v5668 = vld [vmem:[%s2197 + $0x64] sm:$0x1]
    %v5669 = vld [vmem:[%s2197 + $0x68] sm:$0xf]
    %v5670 = vld [vmem:[%s2197 + $0x6c] sm:$0x1]
    %v5671 = vld [vmem:[%s2197 + $0x70] sm:$0xf]
    %v5672 = vld [vmem:[%s2197 + $0x74] sm:$0x1]
    %v5673 = vld [vmem:[%s2197 + $0x78] sm:$0xf]
    %v5674 = vld [vmem:[%s2197 + $0x7c] sm:$0x1]
    %v5675 = vld [vmem:[%s2197 + $0x80] sm:$0xf]
    %v5676 = vld [vmem:[%s2197 + $0x84] sm:$0x1]
    %v5677 = vld [vmem:[%s2197 + $0x88] sm:$0xf]
    %v5678 = vld [vmem:[%s2197 + $0x8c] sm:$0x1]
    %v5680 = vshrl.u32 %v5647, 16
    %v5682 = vrot.slane %v5680, 4
    %v5683 = vshll.u32 %v5647, 16
    %v5685 = vrot.slane %v5683, 5
    %v5686 = vor.u32 %v5682, %v5685
    %v5687 = vrot.slane %v5686, 4
    %v5689 = vshll.u32 %v5648, 16
    %v5691 = vrot.slane %v5689, 5
    %v5692 = vsel %vm474, %v5687, %v5691
    %v5694 = vshrl.u32 %v5649, 16
    %v5696 = vrot.slane %v5694, 4
    %v5697 = vshll.u32 %v5649, 16
    %v5699 = vrot.slane %v5697, 5
    %v5700 = vor.u32 %v5696, %v5699
    %v5701 = vrot.slane %v5700, 4
    %v5703 = vshll.u32 %v5650, 16
    %v5705 = vrot.slane %v5703, 5
    %v5706 = vsel %vm474, %v5701, %v5705
    %v5708 = vshrl.u32 %v5651, 16
    %v5710 = vrot.slane %v5708, 4
    %v5711 = vshll.u32 %v5651, 16
    %v5713 = vrot.slane %v5711, 5
    %v5714 = vor.u32 %v5710, %v5713
    %v5715 = vrot.slane %v5714, 4
    %v5717 = vshll.u32 %v5652, 16
    %v5719 = vrot.slane %v5717, 5
    %v5720 = vsel %vm474, %v5715, %v5719
    %v5722 = vshrl.u32 %v5653, 16
    %v5724 = vrot.slane %v5722, 4
    %v5725 = vshll.u32 %v5653, 16
    %v5727 = vrot.slane %v5725, 5
    %v5728 = vor.u32 %v5724, %v5727
    %v5729 = vrot.slane %v5728, 4
    %v5731 = vshll.u32 %v5654, 16
    %v5733 = vrot.slane %v5731, 5
    %v5734 = vsel %vm474, %v5729, %v5733
    %v5736 = vshrl.u32 %v5655, 16
    %v5738 = vrot.slane %v5736, 4
    %v5739 = vshll.u32 %v5655, 16
    %v5741 = vrot.slane %v5739, 5
    %v5742 = vor.u32 %v5738, %v5741
    %v5743 = vrot.slane %v5742, 4
    %v5745 = vshll.u32 %v5656, 16
    %v5747 = vrot.slane %v5745, 5
    %v5748 = vsel %vm474, %v5743, %v5747
    %v5750 = vshrl.u32 %v5657, 16
    %v5752 = vrot.slane %v5750, 4
    %v5753 = vshll.u32 %v5657, 16
    %v5755 = vrot.slane %v5753, 5
    %v5756 = vor.u32 %v5752, %v5755
    %v5757 = vrot.slane %v5756, 4
    %v5759 = vshll.u32 %v5658, 16
    %v5761 = vrot.slane %v5759, 5
    %v5762 = vsel %vm474, %v5757, %v5761
    %v5764 = vshrl.u32 %v5659, 16
    %v5766 = vrot.slane %v5764, 4
    %v5767 = vshll.u32 %v5659, 16
    %v5769 = vrot.slane %v5767, 5
    %v5770 = vor.u32 %v5766, %v5769
    %v5771 = vrot.slane %v5770, 4
    %v5773 = vshll.u32 %v5660, 16
    %v5775 = vrot.slane %v5773, 5
    %v5776 = vsel %vm474, %v5771, %v5775
    %v5778 = vshrl.u32 %v5661, 16
    %v5780 = vrot.slane %v5778, 4
    %v5781 = vshll.u32 %v5661, 16
    %v5783 = vrot.slane %v5781, 5
    %v5784 = vor.u32 %v5780, %v5783
    %v5785 = vrot.slane %v5784, 4
    %v5787 = vshll.u32 %v5662, 16
    %v5789 = vrot.slane %v5787, 5
    %v5790 = vsel %vm474, %v5785, %v5789
    %v5792 = vshrl.u32 %v5663, 16
    %v5794 = vrot.slane %v5792, 4
    %v5795 = vshll.u32 %v5663, 16
    %v5797 = vrot.slane %v5795, 5
    %v5798 = vor.u32 %v5794, %v5797
    %v5799 = vrot.slane %v5798, 4
    %v5801 = vshll.u32 %v5664, 16
    %v5803 = vrot.slane %v5801, 5
    %v5804 = vsel %vm474, %v5799, %v5803
    %v5806 = vshrl.u32 %v5665, 16
    %v5808 = vrot.slane %v5806, 4
    %v5809 = vshll.u32 %v5665, 16
    %v5811 = vrot.slane %v5809, 5
    %v5812 = vor.u32 %v5808, %v5811
    %v5813 = vrot.slane %v5812, 4
    %v5815 = vshll.u32 %v5666, 16
    %v5817 = vrot.slane %v5815, 5
    %v5818 = vsel %vm474, %v5813, %v5817
    %v5820 = vshrl.u32 %v5667, 16
    %v5822 = vrot.slane %v5820, 4
    %v5823 = vshll.u32 %v5667, 16
    %v5825 = vrot.slane %v5823, 5
    %v5826 = vor.u32 %v5822, %v5825
    %v5827 = vrot.slane %v5826, 4
    %v5829 = vshll.u32 %v5668, 16
    %v5831 = vrot.slane %v5829, 5
    %v5832 = vsel %vm474, %v5827, %v5831
    %v5834 = vshrl.u32 %v5669, 16
    %v5836 = vrot.slane %v5834, 4
    %v5837 = vshll.u32 %v5669, 16
    %v5839 = vrot.slane %v5837, 5
    %v5840 = vor.u32 %v5836, %v5839
    %v5841 = vrot.slane %v5840, 4
    %v5843 = vshll.u32 %v5670, 16
    %v5845 = vrot.slane %v5843, 5
    %v5846 = vsel %vm474, %v5841, %v5845
    %v5848 = vshrl.u32 %v5671, 16
    %v5850 = vrot.slane %v5848, 4
    %v5851 = vshll.u32 %v5671, 16
    %v5853 = vrot.slane %v5851, 5
    %v5854 = vor.u32 %v5850, %v5853
    %v5855 = vrot.slane %v5854, 4
    %v5857 = vshll.u32 %v5672, 16
    %v5859 = vrot.slane %v5857, 5
    %v5860 = vsel %vm474, %v5855, %v5859
    %v5862 = vshrl.u32 %v5673, 16
    %v5864 = vrot.slane %v5862, 4
    %v5865 = vshll.u32 %v5673, 16
    %v5867 = vrot.slane %v5865, 5
    %v5868 = vor.u32 %v5864, %v5867
    %v5869 = vrot.slane %v5868, 4
    %v5871 = vshll.u32 %v5674, 16
    %v5873 = vrot.slane %v5871, 5
    %v5874 = vsel %vm474, %v5869, %v5873
    %v5876 = vshrl.u32 %v5675, 16
    %v5878 = vrot.slane %v5876, 4
    %v5879 = vshll.u32 %v5675, 16
    %v5881 = vrot.slane %v5879, 5
    %v5882 = vor.u32 %v5878, %v5881
    %v5883 = vrot.slane %v5882, 4
    %v5885 = vshll.u32 %v5676, 16
    %v5887 = vrot.slane %v5885, 5
    %v5888 = vsel %vm474, %v5883, %v5887
    %v5890 = vshrl.u32 %v5677, 16
    %v5892 = vrot.slane %v5890, 4
    %v5893 = vshll.u32 %v5677, 16
    %v5895 = vrot.slane %v5893, 5
    %v5896 = vor.u32 %v5892, %v5895
    %v5897 = vrot.slane %v5896, 4
    %v5899 = vshll.u32 %v5678, 16
    %v5901 = vrot.slane %v5899, 5
    %v5902 = vsel %vm474, %v5897, %v5901
    %s5903 = scalar_lea.vmem %s4, 28
    %v5904 = vld [vmem:[%s5903] sm:$0xf]
    %v5905 = vunpack.c.l.b16 %v5692
    %v5906 = vunpack.c.l.b16 %v5706
    %v5907 = vunpack.c.l.b16 %v5720
    %v5908 = vunpack.c.l.b16 %v5734
    %v5909 = vunpack.c.l.b16 %v5748
    %v5910 = vunpack.c.l.b16 %v5762
    %v5911 = vunpack.c.l.b16 %v5776
    %v5912 = vunpack.c.l.b16 %v5790
    %v5913 = vunpack.c.l.b16 %v5804
    %v5914 = vunpack.c.l.b16 %v5818
    %v5915 = vunpack.c.l.b16 %v5832
    %v5916 = vunpack.c.l.b16 %v5846
    %v5917 = vunpack.c.l.b16 %v5860
    %v5918 = vunpack.c.l.b16 %v5874
    %v5919 = vunpack.c.l.b16 %v5888
    %v5920 = vunpack.c.l.b16 %v5902
    %v5921 = vpack.c.b16 %v5906, %v5905
    %v5922 = vpack.c.b16 %v5908, %v5907
    %v5923 = vpack.c.b16 %v5910, %v5909
    %v5924 = vpack.c.b16 %v5912, %v5911
    %v5925 = vpack.c.b16 %v5914, %v5913
    %v5926 = vpack.c.b16 %v5916, %v5915
    %v5927 = vpack.c.b16 %v5918, %v5917
    %v5928 = vpack.c.b16 %v5920, %v5919
    %v5930 = vsel %vm3096, %v5921, 0
    %v5933 = vsel %vm3096, %v5922, 0
    %v5936 = vsel %vm3096, %v5923, 0
    %v5939 = vsel %vm3096, %v5924, 0
    %v5942 = vsel %vm3096, %v5925, 0
    %v5945 = vsel %vm3096, %v5926, 0
    %v5948 = vsel %vm3096, %v5927, 0
    %v5951 = vsel %vm3096, %v5928, 0
    %v5954 = vsel %vm4008, %v5904, 0
    %5956 = vmatprep.subr.bf16.mxu0 0
    %5957 = vmatpush1.bf16.msra.mxu0 0
    %5958 = vmatprep.subr.bf16.mxu0 0
    %5959 = vmatpush1.bf16.msra.mxu0 0
    %5960 = vmatprep.subr.bf16.mxu0 0
    %5961 = vmatpush1.bf16.msra.mxu0 0
    %5962 = vmatprep.subr.bf16.mxu0 0
    %5963 = vmatpush1.bf16.msra.mxu0 0
    %5964 = vmatprep.subr.bf16.mxu0 0
    %5965 = vmatpush1.bf16.msra.mxu0 0
    %5966 = vmatprep.subr.bf16.mxu0 0
    %5967 = vmatpush1.bf16.msra.mxu0 0
    %5968 = vmatprep.subr.bf16.mxu0 0
    %5969 = vmatpush1.bf16.msra.mxu0 0
    %5970 = vmatprep.subr.bf16.mxu0 0
    %5971 = vmatpush1.bf16.msra.mxu0 %v5954
    %5972 = vmatprep.subr.bf16.mxu0 0
    %5973 = vmatpush2.bf16.msra.mxu0 0
    %5974 = vmatprep.subr.bf16.mxu0 0
    %5975 = vmatpush2.bf16.msra.mxu0 0
    %5976 = vmatprep.subr.bf16.mxu0 0
    %5977 = vmatpush2.bf16.msra.mxu0 0
    %5978 = vmatprep.subr.bf16.mxu0 0
    %5979 = vmatpush2.bf16.msra.mxu0 0
    %5980 = vmatprep.subr.bf16.mxu0 0
    %5981 = vmatpush2.bf16.msra.mxu0 0
    %5982 = vmatprep.subr.bf16.mxu0 0
    %5983 = vmatpush2.bf16.msra.mxu0 0
    %5984 = vmatprep.subr.bf16.mxu0 0
    %5985 = vmatpush2.bf16.msra.mxu0 0
    %5986 = vmatprep.subr.bf16.mxu0 0
    %5987 = vmatpush2.bf16.msra.mxu0 0
    %5988 = vmatprep.mubr.bf16.mxu0 0
    %5989 = vmatmul.mubr.bf16.gmra.mxu0 %v5930
    %v5990 = vpop.f32.mrf.mxu0
    %v5991 = vadd.f32 0.0, %v5990
    %v5992 = vpop.f32.mrf.mxu0
    %v5993 = vpop.f32.mrf.mxu0
    %v5994 = vadd.f32 0.0, %v5993
    %v5995 = vpop.f32.mrf.mxu0
    %5996 = vmatprep.mubr.bf16.mxu0 0
    %5997 = vmatmul.mubr.bf16.gmra.mxu0 %v5933
    %v5998 = vpop.f32.mrf.mxu0
    %v5999 = vadd.f32 0.0, %v5998
    %v6000 = vpop.f32.mrf.mxu0
    %v6001 = vpop.f32.mrf.mxu0
    %v6002 = vadd.f32 0.0, %v6001
    %v6003 = vpop.f32.mrf.mxu0
    %6004 = vmatprep.mubr.bf16.mxu0 0
    %6005 = vmatmul.mubr.bf16.gmra.mxu0 %v5936
    %v6006 = vpop.f32.mrf.mxu0
    %v6007 = vadd.f32 0.0, %v6006
    %v6008 = vpop.f32.mrf.mxu0
    %v6009 = vpop.f32.mrf.mxu0
    %v6010 = vadd.f32 0.0, %v6009
    %v6011 = vpop.f32.mrf.mxu0
    %6012 = vmatprep.mubr.bf16.mxu0 0
    %6013 = vmatmul.mubr.bf16.gmra.mxu0 %v5939
    %v6014 = vpop.f32.mrf.mxu0
    %v6015 = vadd.f32 0.0, %v6014
    %v6016 = vpop.f32.mrf.mxu0
    %v6017 = vpop.f32.mrf.mxu0
    %v6018 = vadd.f32 0.0, %v6017
    %v6019 = vpop.f32.mrf.mxu0
    %6020 = vmatprep.mubr.bf16.mxu0 0
    %6021 = vmatmul.mubr.bf16.gmra.mxu0 %v5942
    %v6022 = vpop.f32.mrf.mxu0
    %v6023 = vadd.f32 0.0, %v6022
    %v6024 = vpop.f32.mrf.mxu0
    %v6025 = vpop.f32.mrf.mxu0
    %v6026 = vadd.f32 0.0, %v6025
    %v6027 = vpop.f32.mrf.mxu0
    %6028 = vmatprep.mubr.bf16.mxu0 0
    %6029 = vmatmul.mubr.bf16.gmra.mxu0 %v5945
    %v6030 = vpop.f32.mrf.mxu0
    %v6031 = vadd.f32 0.0, %v6030
    %v6032 = vpop.f32.mrf.mxu0
    %v6033 = vpop.f32.mrf.mxu0
    %v6034 = vadd.f32 0.0, %v6033
    %v6035 = vpop.f32.mrf.mxu0
    %6036 = vmatprep.mubr.bf16.mxu0 0
    %6037 = vmatmul.mubr.bf16.gmra.mxu0 %v5948
    %v6038 = vpop.f32.mrf.mxu0
    %v6039 = vadd.f32 0.0, %v6038
    %v6040 = vpop.f32.mrf.mxu0
    %v6041 = vpop.f32.mrf.mxu0
    %v6042 = vadd.f32 0.0, %v6041
    %v6043 = vpop.f32.mrf.mxu0
    %6044 = vmatprep.mubr.bf16.mxu0 0
    %6045 = vmatmul.mubr.bf16.gmra.mxu0 %v5951
    %v6046 = vpop.f32.mrf.mxu0
    %v6047 = vadd.f32 0.0, %v6046
    %v6048 = vpop.f32.mrf.mxu0
    %v6049 = vpop.f32.mrf.mxu0
    %v6050 = vadd.f32 0.0, %v6049
    %v6051 = vpop.f32.mrf.mxu0
    %6052 = vdwg.mxu0
    %v6053 = vadd.f32 %v5631, %v5991
    %v6054 = vadd.f32 %v5632, %v5994
    %v6055 = vadd.f32 %v5633, %v5999
    %v6056 = vadd.f32 %v5634, %v6002
    %v6057 = vadd.f32 %v5635, %v6007
    %v6058 = vadd.f32 %v5636, %v6010
    %v6059 = vadd.f32 %v5637, %v6015
    %v6060 = vadd.f32 %v5638, %v6018
    %v6061 = vadd.f32 %v5639, %v6023
    %v6062 = vadd.f32 %v5640, %v6026
    %v6063 = vadd.f32 %v5641, %v6031
    %v6064 = vadd.f32 %v5642, %v6034
    %v6065 = vadd.f32 %v5643, %v6039
    %v6066 = vadd.f32 %v5644, %v6042
    %v6067 = vadd.f32 %v5645, %v6047
    %v6068 = vadd.f32 %v5646, %v6050
    %v6069 = vld [vmem:[%s2197] sm:$0xe]
    %v6070 = vld [vmem:[%s2197 + $0x8] sm:$0xe]
    %v6071 = vld [vmem:[%s2197 + $0x10] sm:$0xe]
    %v6072 = vld [vmem:[%s2197 + $0x18] sm:$0xe]
    %v6073 = vld [vmem:[%s2197 + $0x20] sm:$0xe]
    %v6074 = vld [vmem:[%s2197 + $0x28] sm:$0xe]
    %v6075 = vld [vmem:[%s2197 + $0x30] sm:$0xe]
    %v6076 = vld [vmem:[%s2197 + $0x38] sm:$0xe]
    %v6077 = vld [vmem:[%s2197 + $0x50] sm:$0xe]
    %v6078 = vld [vmem:[%s2197 + $0x58] sm:$0xe]
    %v6079 = vld [vmem:[%s2197 + $0x60] sm:$0xe]
    %v6080 = vld [vmem:[%s2197 + $0x68] sm:$0xe]
    %v6081 = vld [vmem:[%s2197 + $0x70] sm:$0xe]
    %v6082 = vld [vmem:[%s2197 + $0x78] sm:$0xe]
    %v6083 = vld [vmem:[%s2197 + $0x80] sm:$0xe]
    %v6084 = vld [vmem:[%s2197 + $0x88] sm:$0xe]
    %v6117 = vrot.slane %v6069, 5
    %v6118 = vrot.slane %v6117, 4
    %v6119 = vrot.slane %v5648, 5
    %v6120 = vsel %vm1068, %v6118, %v6119
    %v6121 = vrot.slane %v6070, 5
    %v6122 = vrot.slane %v6121, 4
    %v6123 = vrot.slane %v5650, 5
    %v6124 = vsel %vm1068, %v6122, %v6123
    %v6125 = vrot.slane %v6071, 5
    %v6126 = vrot.slane %v6125, 4
    %v6127 = vrot.slane %v5652, 5
    %v6128 = vsel %vm1068, %v6126, %v6127
    %v6129 = vrot.slane %v6072, 5
    %v6130 = vrot.slane %v6129, 4
    %v6131 = vrot.slane %v5654, 5
    %v6132 = vsel %vm1068, %v6130, %v6131
    %v6133 = vrot.slane %v6073, 5
    %v6134 = vrot.slane %v6133, 4
    %v6135 = vrot.slane %v5656, 5
    %v6136 = vsel %vm1068, %v6134, %v6135
    %v6137 = vrot.slane %v6074, 5
    %v6138 = vrot.slane %v6137, 4
    %v6139 = vrot.slane %v5658, 5
    %v6140 = vsel %vm1068, %v6138, %v6139
    %v6141 = vrot.slane %v6075, 5
    %v6142 = vrot.slane %v6141, 4
    %v6143 = vrot.slane %v5660, 5
    %v6144 = vsel %vm1068, %v6142, %v6143
    %v6145 = vrot.slane %v6076, 5
    %v6146 = vrot.slane %v6145, 4
    %v6147 = vrot.slane %v5662, 5
    %v6148 = vsel %vm1068, %v6146, %v6147
    %v6149 = vrot.slane %v6077, 5
    %v6150 = vrot.slane %v6149, 4
    %v6151 = vrot.slane %v5664, 5
    %v6152 = vsel %vm1068, %v6150, %v6151
    %v6153 = vrot.slane %v6078, 5
    %v6154 = vrot.slane %v6153, 4
    %v6155 = vrot.slane %v5666, 5
    %v6156 = vsel %vm1068, %v6154, %v6155
    %v6157 = vrot.slane %v6079, 5
    %v6158 = vrot.slane %v6157, 4
    %v6159 = vrot.slane %v5668, 5
    %v6160 = vsel %vm1068, %v6158, %v6159
    %v6161 = vrot.slane %v6080, 5
    %v6162 = vrot.slane %v6161, 4
    %v6163 = vrot.slane %v5670, 5
    %v6164 = vsel %vm1068, %v6162, %v6163
    %v6165 = vrot.slane %v6081, 5
    %v6166 = vrot.slane %v6165, 4
    %v6167 = vrot.slane %v5672, 5
    %v6168 = vsel %vm1068, %v6166, %v6167
    %v6169 = vrot.slane %v6082, 5
    %v6170 = vrot.slane %v6169, 4
    %v6171 = vrot.slane %v5674, 5
    %v6172 = vsel %vm1068, %v6170, %v6171
    %v6173 = vrot.slane %v6083, 5
    %v6174 = vrot.slane %v6173, 4
    %v6175 = vrot.slane %v5676, 5
    %v6176 = vsel %vm1068, %v6174, %v6175
    %v6177 = vrot.slane %v6084, 5
    %v6178 = vrot.slane %v6177, 4
    %v6179 = vrot.slane %v5678, 5
    %v6180 = vsel %vm1068, %v6178, %v6179
    %s6181 = scalar_lea.vmem %s4, 32
    %v6182 = vld [vmem:[%s6181] sm:$0xf]
    %v6183 = vunpack.c.l.b16 %v6120
    %v6184 = vunpack.c.l.b16 %v6124
    %v6185 = vunpack.c.l.b16 %v6128
    %v6186 = vunpack.c.l.b16 %v6132
    %v6187 = vunpack.c.l.b16 %v6136
    %v6188 = vunpack.c.l.b16 %v6140
    %v6189 = vunpack.c.l.b16 %v6144
    %v6190 = vunpack.c.l.b16 %v6148
    %v6191 = vunpack.c.l.b16 %v6152
    %v6192 = vunpack.c.l.b16 %v6156
    %v6193 = vunpack.c.l.b16 %v6160
    %v6194 = vunpack.c.l.b16 %v6164
    %v6195 = vunpack.c.l.b16 %v6168
    %v6196 = vunpack.c.l.b16 %v6172
    %v6197 = vunpack.c.l.b16 %v6176
    %v6198 = vunpack.c.l.b16 %v6180
    %v6199 = vpack.c.b16 %v6184, %v6183
    %v6200 = vpack.c.b16 %v6186, %v6185
    %v6201 = vpack.c.b16 %v6188, %v6187
    %v6202 = vpack.c.b16 %v6190, %v6189
    %v6203 = vpack.c.b16 %v6192, %v6191
    %v6204 = vpack.c.b16 %v6194, %v6193
    %v6205 = vpack.c.b16 %v6196, %v6195
    %v6206 = vpack.c.b16 %v6198, %v6197
    %v6208 = vsel %vm3096, %v6199, 0
    %v6211 = vsel %vm3096, %v6200, 0
    %v6214 = vsel %vm3096, %v6201, 0
    %v6217 = vsel %vm3096, %v6202, 0
    %v6220 = vsel %vm3096, %v6203, 0
    %v6223 = vsel %vm3096, %v6204, 0
    %v6226 = vsel %vm3096, %v6205, 0
    %v6229 = vsel %vm3096, %v6206, 0
    %v6232 = vsel %vm4008, %v6182, 0
    %6234 = vmatprep.subr.bf16.mxu0 0
    %6235 = vmatpush1.bf16.msra.mxu0 0
    %6236 = vmatprep.subr.bf16.mxu0 0
    %6237 = vmatpush1.bf16.msra.mxu0 0
    %6238 = vmatprep.subr.bf16.mxu0 0
    %6239 = vmatpush1.bf16.msra.mxu0 0
    %6240 = vmatprep.subr.bf16.mxu0 0
    %6241 = vmatpush1.bf16.msra.mxu0 0
    %6242 = vmatprep.subr.bf16.mxu0 0
    %6243 = vmatpush1.bf16.msra.mxu0 0
    %6244 = vmatprep.subr.bf16.mxu0 0
    %6245 = vmatpush1.bf16.msra.mxu0 0
    %6246 = vmatprep.subr.bf16.mxu0 0
    %6247 = vmatpush1.bf16.msra.mxu0 0
    %6248 = vmatprep.subr.bf16.mxu0 0
    %6249 = vmatpush1.bf16.msra.mxu0 %v6232
    %6250 = vmatprep.subr.bf16.mxu0 0
    %6251 = vmatpush2.bf16.msra.mxu0 0
    %6252 = vmatprep.subr.bf16.mxu0 0
    %6253 = vmatpush2.bf16.msra.mxu0 0
    %6254 = vmatprep.subr.bf16.mxu0 0
    %6255 = vmatpush2.bf16.msra.mxu0 0
    %6256 = vmatprep.subr.bf16.mxu0 0
    %6257 = vmatpush2.bf16.msra.mxu0 0
    %6258 = vmatprep.subr.bf16.mxu0 0
    %6259 = vmatpush2.bf16.msra.mxu0 0
    %6260 = vmatprep.subr.bf16.mxu0 0
    %6261 = vmatpush2.bf16.msra.mxu0 0
    %6262 = vmatprep.subr.bf16.mxu0 0
    %6263 = vmatpush2.bf16.msra.mxu0 0
    %6264 = vmatprep.subr.bf16.mxu0 0
    %6265 = vmatpush2.bf16.msra.mxu0 0
    %6266 = vmatprep.mubr.bf16.mxu0 0
    %6267 = vmatmul.mubr.bf16.gmra.mxu0 %v6208
    %v6268 = vpop.f32.mrf.mxu0
    %v6269 = vadd.f32 0.0, %v6268
    %v6270 = vpop.f32.mrf.mxu0
    %v6271 = vpop.f32.mrf.mxu0
    %v6272 = vadd.f32 0.0, %v6271
    %v6273 = vpop.f32.mrf.mxu0
    %6274 = vmatprep.mubr.bf16.mxu0 0
    %6275 = vmatmul.mubr.bf16.gmra.mxu0 %v6211
    %v6276 = vpop.f32.mrf.mxu0
    %v6277 = vadd.f32 0.0, %v6276
    %v6278 = vpop.f32.mrf.mxu0
    %v6279 = vpop.f32.mrf.mxu0
    %v6280 = vadd.f32 0.0, %v6279
    %v6281 = vpop.f32.mrf.mxu0
    %6282 = vmatprep.mubr.bf16.mxu0 0
    %6283 = vmatmul.mubr.bf16.gmra.mxu0 %v6214
    %v6284 = vpop.f32.mrf.mxu0
    %v6285 = vadd.f32 0.0, %v6284
    %v6286 = vpop.f32.mrf.mxu0
    %v6287 = vpop.f32.mrf.mxu0
    %v6288 = vadd.f32 0.0, %v6287
    %v6289 = vpop.f32.mrf.mxu0
    %6290 = vmatprep.mubr.bf16.mxu0 0
    %6291 = vmatmul.mubr.bf16.gmra.mxu0 %v6217
    %v6292 = vpop.f32.mrf.mxu0
    %v6293 = vadd.f32 0.0, %v6292
    %v6294 = vpop.f32.mrf.mxu0
    %v6295 = vpop.f32.mrf.mxu0
    %v6296 = vadd.f32 0.0, %v6295
    %v6297 = vpop.f32.mrf.mxu0
    %6298 = vmatprep.mubr.bf16.mxu0 0
    %6299 = vmatmul.mubr.bf16.gmra.mxu0 %v6220
    %v6300 = vpop.f32.mrf.mxu0
    %v6301 = vadd.f32 0.0, %v6300
    %v6302 = vpop.f32.mrf.mxu0
    %v6303 = vpop.f32.mrf.mxu0
    %v6304 = vadd.f32 0.0, %v6303
    %v6305 = vpop.f32.mrf.mxu0
    %6306 = vmatprep.mubr.bf16.mxu0 0
    %6307 = vmatmul.mubr.bf16.gmra.mxu0 %v6223
    %v6308 = vpop.f32.mrf.mxu0
    %v6309 = vadd.f32 0.0, %v6308
    %v6310 = vpop.f32.mrf.mxu0
    %v6311 = vpop.f32.mrf.mxu0
    %v6312 = vadd.f32 0.0, %v6311
    %v6313 = vpop.f32.mrf.mxu0
    %6314 = vmatprep.mubr.bf16.mxu0 0
    %6315 = vmatmul.mubr.bf16.gmra.mxu0 %v6226
    %v6316 = vpop.f32.mrf.mxu0
    %v6317 = vadd.f32 0.0, %v6316
    %v6318 = vpop.f32.mrf.mxu0
    %v6319 = vpop.f32.mrf.mxu0
    %v6320 = vadd.f32 0.0, %v6319
    %v6321 = vpop.f32.mrf.mxu0
    %6322 = vmatprep.mubr.bf16.mxu0 0
    %6323 = vmatmul.mubr.bf16.gmra.mxu0 %v6229
    %v6324 = vpop.f32.mrf.mxu0
    %v6325 = vadd.f32 0.0, %v6324
    %v6326 = vpop.f32.mrf.mxu0
    %v6327 = vpop.f32.mrf.mxu0
    %v6328 = vadd.f32 0.0, %v6327
    %v6329 = vpop.f32.mrf.mxu0
    %6330 = vdwg.mxu0
    %v6331 = vadd.f32 %v6053, %v6269
    %v6332 = vadd.f32 %v6054, %v6272
    %v6333 = vadd.f32 %v6055, %v6277
    %v6334 = vadd.f32 %v6056, %v6280
    %v6335 = vadd.f32 %v6057, %v6285
    %v6336 = vadd.f32 %v6058, %v6288
    %v6337 = vadd.f32 %v6059, %v6293
    %v6338 = vadd.f32 %v6060, %v6296
    %v6339 = vadd.f32 %v6061, %v6301
    %v6340 = vadd.f32 %v6062, %v6304
    %v6341 = vadd.f32 %v6063, %v6309
    %v6342 = vadd.f32 %v6064, %v6312
    %v6343 = vadd.f32 %v6065, %v6317
    %v6344 = vadd.f32 %v6066, %v6320
    %v6345 = vadd.f32 %v6067, %v6325
    %v6346 = vadd.f32 %v6068, %v6328
    %v6347 = vsel %vm3096, %v6331, 0.0
    %v6348 = vsel %vm3096, %v6332, 0.0
    %v6349 = vadd.f32 %v6347, %v6348
    %v6350 = vsel %vm3096, %v6333, 0.0
    %v6351 = vadd.f32 %v6349, %v6350
    %v6352 = vsel %vm3096, %v6334, 0.0
    %v6353 = vadd.f32 %v6351, %v6352
    %v6354 = vsel %vm3096, %v6335, 0.0
    %v6355 = vadd.f32 %v6353, %v6354
    %v6356 = vsel %vm3096, %v6336, 0.0
    %v6357 = vadd.f32 %v6355, %v6356
    %v6358 = vsel %vm3096, %v6337, 0.0
    %v6359 = vadd.f32 %v6357, %v6358
    %v6360 = vsel %vm3096, %v6338, 0.0
    %v6361 = vadd.f32 %v6359, %v6360
    %v6362 = vsel %vm3096, %v6339, 0.0
    %v6363 = vadd.f32 %v6361, %v6362
    %v6364 = vsel %vm3096, %v6340, 0.0
    %v6365 = vadd.f32 %v6363, %v6364
    %v6366 = vsel %vm3096, %v6341, 0.0
    %v6367 = vadd.f32 %v6365, %v6366
    %v6368 = vsel %vm3096, %v6342, 0.0
    %v6369 = vadd.f32 %v6367, %v6368
    %v6370 = vsel %vm3096, %v6343, 0.0
    %v6371 = vadd.f32 %v6369, %v6370
    %v6372 = vsel %vm3096, %v6344, 0.0
    %v6373 = vadd.f32 %v6371, %v6372
    %v6374 = vsel %vm3096, %v6345, 0.0
    %v6375 = vadd.f32 %v6373, %v6374
    %v6376 = vsel %vm3096, %v6346, 0.0
    %v6377 = vadd.f32 %v6375, %v6376
    %v6378 = vrot.slane %v6377, 4
    %v6379 = vadd.f32 %v6377, %v6378
    %v6380 = vrot.slane %v6379, 2
    %v6381 = vadd.f32 %v6379, %v6380
    %v6382 = vrot.slane %v6381, 1
    %v6383 = vadd.f32 %v6381, %v6382
    %v6384 = vmul.f32 %v6383, 0.0078125
    %v6385 = vsub.f32 %v6331, %v6384
    %v6386 = vsub.f32 %v6332, %v6384
    %v6387 = vsub.f32 %v6333, %v6384
    %v6388 = vsub.f32 %v6334, %v6384
    %v6389 = vsub.f32 %v6335, %v6384
    %v6390 = vsub.f32 %v6336, %v6384
    %v6391 = vsub.f32 %v6337, %v6384
    %v6392 = vsub.f32 %v6338, %v6384
    %v6393 = vsub.f32 %v6339, %v6384
    %v6394 = vsub.f32 %v6340, %v6384
    %v6395 = vsub.f32 %v6341, %v6384
    %v6396 = vsub.f32 %v6342, %v6384
    %v6397 = vsub.f32 %v6343, %v6384
    %v6398 = vsub.f32 %v6344, %v6384
    %v6399 = vsub.f32 %v6345, %v6384
    %v6400 = vsub.f32 %v6346, %v6384
    %v6401 = vmul.f32 %v6385, %v6385
    %v6402 = vmul.f32 %v6386, %v6386
    %v6403 = vmul.f32 %v6387, %v6387
    %v6404 = vmul.f32 %v6388, %v6388
    %v6405 = vmul.f32 %v6389, %v6389
    %v6406 = vmul.f32 %v6390, %v6390
    %v6407 = vmul.f32 %v6391, %v6391
    %v6408 = vmul.f32 %v6392, %v6392
    %v6409 = vmul.f32 %v6393, %v6393
    %v6410 = vmul.f32 %v6394, %v6394
    %v6411 = vmul.f32 %v6395, %v6395
    %v6412 = vmul.f32 %v6396, %v6396
    %v6413 = vmul.f32 %v6397, %v6397
    %v6414 = vmul.f32 %v6398, %v6398
    %v6415 = vmul.f32 %v6399, %v6399
    %v6416 = vmul.f32 %v6400, %v6400
    %v6417 = vsel %vm3096, %v6401, 0.0
    %v6418 = vsel %vm3096, %v6402, 0.0
    %v6419 = vadd.f32 %v6417, %v6418
    %v6420 = vsel %vm3096, %v6403, 0.0
    %v6421 = vadd.f32 %v6419, %v6420
    %v6422 = vsel %vm3096, %v6404, 0.0
    %v6423 = vadd.f32 %v6421, %v6422
    %v6424 = vsel %vm3096, %v6405, 0.0
    %v6425 = vadd.f32 %v6423, %v6424
    %v6426 = vsel %vm3096, %v6406, 0.0
    %v6427 = vadd.f32 %v6425, %v6426
    %v6428 = vsel %vm3096, %v6407, 0.0
    %v6429 = vadd.f32 %v6427, %v6428
    %v6430 = vsel %vm3096, %v6408, 0.0
    %v6431 = vadd.f32 %v6429, %v6430
    %v6432 = vsel %vm3096, %v6409, 0.0
    %v6433 = vadd.f32 %v6431, %v6432
    %v6434 = vsel %vm3096, %v6410, 0.0
    %v6435 = vadd.f32 %v6433, %v6434
    %v6436 = vsel %vm3096, %v6411, 0.0
    %v6437 = vadd.f32 %v6435, %v6436
    %v6438 = vsel %vm3096, %v6412, 0.0
    %v6439 = vadd.f32 %v6437, %v6438
    %v6440 = vsel %vm3096, %v6413, 0.0
    %v6441 = vadd.f32 %v6439, %v6440
    %v6442 = vsel %vm3096, %v6414, 0.0
    %v6443 = vadd.f32 %v6441, %v6442
    %v6444 = vsel %vm3096, %v6415, 0.0
    %v6445 = vadd.f32 %v6443, %v6444
    %v6446 = vsel %vm3096, %v6416, 0.0
    %v6447 = vadd.f32 %v6445, %v6446
    %v6448 = vrot.slane %v6447, 4
    %v6449 = vadd.f32 %v6447, %v6448
    %v6450 = vrot.slane %v6449, 2
    %v6451 = vadd.f32 %v6449, %v6450
    %v6452 = vrot.slane %v6451, 1
    %v6453 = vadd.f32 %v6451, %v6452
    %v6454 = vmul.f32 %v6453, 0.0078125
    %v6455 = vld [vmem:[%s5] sm:$0x1]
    %v6456 = vadd.f32 %v6454, 1e-05
    %v6457 = vrsqrt.pop %v6456
    %v6458 = vmul.f32 %v6455, %v6457
    %v6460 = vlaneseq
    %v6461 = vshrl.u32 %v6460, 7
    %v6462 = vsub.s32 0, %v6461
    %v6463 = vrot.slane %v6458, %v6462
    %v6465 = vmul.f32 %v6385, %v6463
    %v6466 = vmul.f32 %v6386, %v6463
    %v6467 = vmul.f32 %v6387, %v6463
    %v6468 = vmul.f32 %v6388, %v6463
    %v6469 = vmul.f32 %v6389, %v6463
    %v6470 = vmul.f32 %v6390, %v6463
    %v6471 = vmul.f32 %v6391, %v6463
    %v6472 = vmul.f32 %v6392, %v6463
    %v6473 = vmul.f32 %v6393, %v6463
    %v6474 = vmul.f32 %v6394, %v6463
    %v6475 = vmul.f32 %v6395, %v6463
    %v6476 = vmul.f32 %v6396, %v6463
    %v6477 = vmul.f32 %v6397, %v6463
    %v6478 = vmul.f32 %v6398, %v6463
    %v6479 = vmul.f32 %v6399, %v6463
    %v6480 = vmul.f32 %v6400, %v6463
    %v6481 = vld [vmem:[%s6] sm:$0x1]
    %v6483 = vlaneseq
    %v6484 = vshrl.u32 %v6483, 7
    %v6485 = vsub.s32 0, %v6484
    %v6486 = vrot.slane %v6481, %v6485
    %v6488 = vadd.f32 %v6465, %v6486
    %v6489 = vadd.f32 %v6466, %v6486
    %v6490 = vadd.f32 %v6467, %v6486
    %v6491 = vadd.f32 %v6468, %v6486
    %v6492 = vadd.f32 %v6469, %v6486
    %v6493 = vadd.f32 %v6470, %v6486
    %v6494 = vadd.f32 %v6471, %v6486
    %v6495 = vadd.f32 %v6472, %v6486
    %v6496 = vadd.f32 %v6473, %v6486
    %v6497 = vadd.f32 %v6474, %v6486
    %v6498 = vadd.f32 %v6475, %v6486
    %v6499 = vadd.f32 %v6476, %v6486
    %v6500 = vadd.f32 %v6477, %v6486
    %v6501 = vadd.f32 %v6478, %v6486
    %v6502 = vadd.f32 %v6479, %v6486
    %v6503 = vadd.f32 %v6480, %v6486
    %v6504 = vmax.f32 %v6488, 0.0
    %v6505 = vmax.f32 %v6489, 0.0
    %v6506 = vmax.f32 %v6490, 0.0
    %v6507 = vmax.f32 %v6491, 0.0
    %v6508 = vmax.f32 %v6492, 0.0
    %v6509 = vmax.f32 %v6493, 0.0
    %v6510 = vmax.f32 %v6494, 0.0
    %v6511 = vmax.f32 %v6495, 0.0
    %v6512 = vmax.f32 %v6496, 0.0
    %v6513 = vmax.f32 %v6497, 0.0
    %v6514 = vmax.f32 %v6498, 0.0
    %v6515 = vmax.f32 %v6499, 0.0
    %v6516 = vmax.f32 %v6500, 0.0
    %v6517 = vmax.f32 %v6501, 0.0
    %v6518 = vmax.f32 %v6502, 0.0
    %v6519 = vmax.f32 %v6503, 0.0
    %v6536 = vcombine.high %v6504, %v6504
    %v6538 = vunpack.c.l.s4 1983009808
    %v6539 = vunpack.c.0.s8 %v6538
    %v6540 = vlaneseq
    %v6541 = vshrl.u32 %v6540, 7
    %v6542 = vsub.s32 %v6539, %v6541
    %v6543 = vrot.slane %v6504, %v6542
    %v6545 = vunpack.c.l.s4 1983009808
    %v6546 = vunpack.c.0.s8 %v6545
    %v6547 = vlaneseq
    %v6548 = vshrl.u32 %v6547, 7
    %v6549 = vsub.s32 %v6546, %v6548
    %v6550 = vrot.slane %v6536, %v6549
    %v6551 = vcombine.high %v6543, %v6543
    %v6552 = vcombine.high %v6550, %v6550
    %v6553 = vcombine.high %v6505, %v6505
    %v6555 = vunpack.c.l.s4 1983009808
    %v6556 = vunpack.c.0.s8 %v6555
    %v6557 = vlaneseq
    %v6558 = vshrl.u32 %v6557, 7
    %v6559 = vsub.s32 %v6556, %v6558
    %v6560 = vrot.slane %v6505, %v6559
    %v6562 = vunpack.c.l.s4 1983009808
    %v6563 = vunpack.c.0.s8 %v6562
    %v6564 = vlaneseq
    %v6565 = vshrl.u32 %v6564, 7
    %v6566 = vsub.s32 %v6563, %v6565
    %v6567 = vrot.slane %v6553, %v6566
    %v6568 = vcombine.high %v6560, %v6560
    %v6569 = vcombine.high %v6567, %v6567
    %v6570 = vcombine.high %v6506, %v6506
    %v6572 = vunpack.c.l.s4 1983009808
    %v6573 = vunpack.c.0.s8 %v6572
    %v6574 = vlaneseq
    %v6575 = vshrl.u32 %v6574, 7
    %v6576 = vsub.s32 %v6573, %v6575
    %v6577 = vrot.slane %v6506, %v6576
    %v6579 = vunpack.c.l.s4 1983009808
    %v6580 = vunpack.c.0.s8 %v6579
    %v6581 = vlaneseq
    %v6582 = vshrl.u32 %v6581, 7
    %v6583 = vsub.s32 %v6580, %v6582
    %v6584 = vrot.slane %v6570, %v6583
    %v6585 = vcombine.high %v6577, %v6577
    %v6586 = vcombine.high %v6584, %v6584
    %v6587 = vcombine.high %v6507, %v6507
    %v6589 = vunpack.c.l.s4 1983009808
    %v6590 = vunpack.c.0.s8 %v6589
    %v6591 = vlaneseq
    %v6592 = vshrl.u32 %v6591, 7
    %v6593 = vsub.s32 %v6590, %v6592
    %v6594 = vrot.slane %v6507, %v6593
    %v6596 = vunpack.c.l.s4 1983009808
    %v6597 = vunpack.c.0.s8 %v6596
    %v6598 = vlaneseq
    %v6599 = vshrl.u32 %v6598, 7
    %v6600 = vsub.s32 %v6597, %v6599
    %v6601 = vrot.slane %v6587, %v6600
    %v6602 = vcombine.high %v6594, %v6594
    %v6603 = vcombine.high %v6601, %v6601
    %v6604 = vcombine.high %v6508, %v6508
    %v6606 = vunpack.c.l.s4 1983009808
    %v6607 = vunpack.c.0.s8 %v6606
    %v6608 = vlaneseq
    %v6609 = vshrl.u32 %v6608, 7
    %v6610 = vsub.s32 %v6607, %v6609
    %v6611 = vrot.slane %v6508, %v6610
    %v6613 = vunpack.c.l.s4 1983009808
    %v6614 = vunpack.c.0.s8 %v6613
    %v6615 = vlaneseq
    %v6616 = vshrl.u32 %v6615, 7
    %v6617 = vsub.s32 %v6614, %v6616
    %v6618 = vrot.slane %v6604, %v6617
    %v6619 = vcombine.high %v6611, %v6611
    %v6620 = vcombine.high %v6618, %v6618
    %v6621 = vcombine.high %v6509, %v6509
    %v6623 = vunpack.c.l.s4 1983009808
    %v6624 = vunpack.c.0.s8 %v6623
    %v6625 = vlaneseq
    %v6626 = vshrl.u32 %v6625, 7
    %v6627 = vsub.s32 %v6624, %v6626
    %v6628 = vrot.slane %v6509, %v6627
    %v6630 = vunpack.c.l.s4 1983009808
    %v6631 = vunpack.c.0.s8 %v6630
    %v6632 = vlaneseq
    %v6633 = vshrl.u32 %v6632, 7
    %v6634 = vsub.s32 %v6631, %v6633
    %v6635 = vrot.slane %v6621, %v6634
    %v6636 = vcombine.high %v6628, %v6628
    %v6637 = vcombine.high %v6635, %v6635
    %v6638 = vcombine.high %v6510, %v6510
    %v6640 = vunpack.c.l.s4 1983009808
    %v6641 = vunpack.c.0.s8 %v6640
    %v6642 = vlaneseq
    %v6643 = vshrl.u32 %v6642, 7
    %v6644 = vsub.s32 %v6641, %v6643
    %v6645 = vrot.slane %v6510, %v6644
    %v6647 = vunpack.c.l.s4 1983009808
    %v6648 = vunpack.c.0.s8 %v6647
    %v6649 = vlaneseq
    %v6650 = vshrl.u32 %v6649, 7
    %v6651 = vsub.s32 %v6648, %v6650
    %v6652 = vrot.slane %v6638, %v6651
    %v6653 = vcombine.high %v6645, %v6645
    %v6654 = vcombine.high %v6652, %v6652
    %v6655 = vcombine.high %v6511, %v6511
    %v6657 = vunpack.c.l.s4 1983009808
    %v6658 = vunpack.c.0.s8 %v6657
    %v6659 = vlaneseq
    %v6660 = vshrl.u32 %v6659, 7
    %v6661 = vsub.s32 %v6658, %v6660
    %v6662 = vrot.slane %v6511, %v6661
    %v6664 = vunpack.c.l.s4 1983009808
    %v6665 = vunpack.c.0.s8 %v6664
    %v6666 = vlaneseq
    %v6667 = vshrl.u32 %v6666, 7
    %v6668 = vsub.s32 %v6665, %v6667
    %v6669 = vrot.slane %v6655, %v6668
    %v6670 = vcombine.high %v6662, %v6662
    %v6671 = vcombine.high %v6669, %v6669
    %v6672 = vcombine.high %v6512, %v6512
    %v6674 = vunpack.c.l.s4 1983009808
    %v6675 = vunpack.c.0.s8 %v6674
    %v6676 = vlaneseq
    %v6677 = vshrl.u32 %v6676, 7
    %v6678 = vsub.s32 %v6675, %v6677
    %v6679 = vrot.slane %v6512, %v6678
    %v6681 = vunpack.c.l.s4 1983009808
    %v6682 = vunpack.c.0.s8 %v6681
    %v6683 = vlaneseq
    %v6684 = vshrl.u32 %v6683, 7
    %v6685 = vsub.s32 %v6682, %v6684
    %v6686 = vrot.slane %v6672, %v6685
    %v6687 = vcombine.high %v6679, %v6679
    %v6688 = vcombine.high %v6686, %v6686
    %v6689 = vcombine.high %v6513, %v6513
    %v6691 = vunpack.c.l.s4 1983009808
    %v6692 = vunpack.c.0.s8 %v6691
    %v6693 = vlaneseq
    %v6694 = vshrl.u32 %v6693, 7
    %v6695 = vsub.s32 %v6692, %v6694
    %v6696 = vrot.slane %v6513, %v6695
    %v6698 = vunpack.c.l.s4 1983009808
    %v6699 = vunpack.c.0.s8 %v6698
    %v6700 = vlaneseq
    %v6701 = vshrl.u32 %v6700, 7
    %v6702 = vsub.s32 %v6699, %v6701
    %v6703 = vrot.slane %v6689, %v6702
    %v6704 = vcombine.high %v6696, %v6696
    %v6705 = vcombine.high %v6703, %v6703
    %v6706 = vcombine.high %v6514, %v6514
    %v6708 = vunpack.c.l.s4 1983009808
    %v6709 = vunpack.c.0.s8 %v6708
    %v6710 = vlaneseq
    %v6711 = vshrl.u32 %v6710, 7
    %v6712 = vsub.s32 %v6709, %v6711
    %v6713 = vrot.slane %v6514, %v6712
    %v6715 = vunpack.c.l.s4 1983009808
    %v6716 = vunpack.c.0.s8 %v6715
    %v6717 = vlaneseq
    %v6718 = vshrl.u32 %v6717, 7
    %v6719 = vsub.s32 %v6716, %v6718
    %v6720 = vrot.slane %v6706, %v6719
    %v6721 = vcombine.high %v6713, %v6713
    %v6722 = vcombine.high %v6720, %v6720
    %v6723 = vcombine.high %v6515, %v6515
    %v6725 = vunpack.c.l.s4 1983009808
    %v6726 = vunpack.c.0.s8 %v6725
    %v6727 = vlaneseq
    %v6728 = vshrl.u32 %v6727, 7
    %v6729 = vsub.s32 %v6726, %v6728
    %v6730 = vrot.slane %v6515, %v6729
    %v6732 = vunpack.c.l.s4 1983009808
    %v6733 = vunpack.c.0.s8 %v6732
    %v6734 = vlaneseq
    %v6735 = vshrl.u32 %v6734, 7
    %v6736 = vsub.s32 %v6733, %v6735
    %v6737 = vrot.slane %v6723, %v6736
    %v6738 = vcombine.high %v6730, %v6730
    %v6739 = vcombine.high %v6737, %v6737
    %v6740 = vcombine.high %v6516, %v6516
    %v6742 = vunpack.c.l.s4 1983009808
    %v6743 = vunpack.c.0.s8 %v6742
    %v6744 = vlaneseq
    %v6745 = vshrl.u32 %v6744, 7
    %v6746 = vsub.s32 %v6743, %v6745
    %v6747 = vrot.slane %v6516, %v6746
    %v6749 = vunpack.c.l.s4 1983009808
    %v6750 = vunpack.c.0.s8 %v6749
    %v6751 = vlaneseq
    %v6752 = vshrl.u32 %v6751, 7
    %v6753 = vsub.s32 %v6750, %v6752
    %v6754 = vrot.slane %v6740, %v6753
    %v6755 = vcombine.high %v6747, %v6747
    %v6756 = vcombine.high %v6754, %v6754
    %v6757 = vcombine.high %v6517, %v6517
    %v6759 = vunpack.c.l.s4 1983009808
    %v6760 = vunpack.c.0.s8 %v6759
    %v6761 = vlaneseq
    %v6762 = vshrl.u32 %v6761, 7
    %v6763 = vsub.s32 %v6760, %v6762
    %v6764 = vrot.slane %v6517, %v6763
    %v6766 = vunpack.c.l.s4 1983009808
    %v6767 = vunpack.c.0.s8 %v6766
    %v6768 = vlaneseq
    %v6769 = vshrl.u32 %v6768, 7
    %v6770 = vsub.s32 %v6767, %v6769
    %v6771 = vrot.slane %v6757, %v6770
    %v6772 = vcombine.high %v6764, %v6764
    %v6773 = vcombine.high %v6771, %v6771
    %v6774 = vcombine.high %v6518, %v6518
    %v6776 = vunpack.c.l.s4 1983009808
    %v6777 = vunpack.c.0.s8 %v6776
    %v6778 = vlaneseq
    %v6779 = vshrl.u32 %v6778, 7
    %v6780 = vsub.s32 %v6777, %v6779
    %v6781 = vrot.slane %v6518, %v6780
    %v6783 = vunpack.c.l.s4 1983009808
    %v6784 = vunpack.c.0.s8 %v6783
    %v6785 = vlaneseq
    %v6786 = vshrl.u32 %v6785, 7
    %v6787 = vsub.s32 %v6784, %v6786
    %v6788 = vrot.slane %v6774, %v6787
    %v6789 = vcombine.high %v6781, %v6781
    %v6790 = vcombine.high %v6788, %v6788
    %v6791 = vcombine.high %v6519, %v6519
    %v6793 = vunpack.c.l.s4 1983009808
    %v6794 = vunpack.c.0.s8 %v6793
    %v6795 = vlaneseq
    %v6796 = vshrl.u32 %v6795, 7
    %v6797 = vsub.s32 %v6794, %v6796
    %v6798 = vrot.slane %v6519, %v6797
    %v6800 = vunpack.c.l.s4 1983009808
    %v6801 = vunpack.c.0.s8 %v6800
    %v6802 = vlaneseq
    %v6803 = vshrl.u32 %v6802, 7
    %v6804 = vsub.s32 %v6801, %v6803
    %v6805 = vrot.slane %v6791, %v6804
    %v6806 = vcombine.high %v6798, %v6798
    %v6807 = vcombine.high %v6805, %v6805
    %v6872 = vrot.slane %v6543, 7
    %v6873 = vrot.slane %v6872, 2
    %v6874 = vrot.slane %v6551, 7
    %v6875 = vrot.slane %v6874, 2
    %v6876 = vrot.slane %v6550, 7
    %v6877 = vrot.slane %v6876, 2
    %v6878 = vrot.slane %v6552, 7
    %v6879 = vrot.slane %v6878, 2
    %v6880 = vrot.slane %v6560, 7
    %v6881 = vrot.slane %v6880, 2
    %v6882 = vrot.slane %v6568, 7
    %v6883 = vrot.slane %v6882, 2
    %v6884 = vrot.slane %v6567, 7
    %v6885 = vrot.slane %v6884, 2
    %v6886 = vrot.slane %v6569, 7
    %v6887 = vrot.slane %v6886, 2
    %v6888 = vrot.slane %v6577, 7
    %v6889 = vrot.slane %v6888, 2
    %v6890 = vrot.slane %v6585, 7
    %v6891 = vrot.slane %v6890, 2
    %v6892 = vrot.slane %v6584, 7
    %v6893 = vrot.slane %v6892, 2
    %v6894 = vrot.slane %v6586, 7
    %v6895 = vrot.slane %v6894, 2
    %v6896 = vrot.slane %v6594, 7
    %v6897 = vrot.slane %v6896, 2
    %v6898 = vrot.slane %v6602, 7
    %v6899 = vrot.slane %v6898, 2
    %v6900 = vrot.slane %v6601, 7
    %v6901 = vrot.slane %v6900, 2
    %v6902 = vrot.slane %v6603, 7
    %v6903 = vrot.slane %v6902, 2
    %v6904 = vrot.slane %v6611, 7
    %v6905 = vrot.slane %v6904, 2
    %v6906 = vrot.slane %v6619, 7
    %v6907 = vrot.slane %v6906, 2
    %v6908 = vrot.slane %v6618, 7
    %v6909 = vrot.slane %v6908, 2
    %v6910 = vrot.slane %v6620, 7
    %v6911 = vrot.slane %v6910, 2
    %v6912 = vrot.slane %v6628, 7
    %v6913 = vrot.slane %v6912, 2
    %v6914 = vrot.slane %v6636, 7
    %v6915 = vrot.slane %v6914, 2
    %v6916 = vrot.slane %v6635, 7
    %v6917 = vrot.slane %v6916, 2
    %v6918 = vrot.slane %v6637, 7
    %v6919 = vrot.slane %v6918, 2
    %v6920 = vrot.slane %v6645, 7
    %v6921 = vrot.slane %v6920, 2
    %v6922 = vrot.slane %v6653, 7
    %v6923 = vrot.slane %v6922, 2
    %v6924 = vrot.slane %v6652, 7
    %v6925 = vrot.slane %v6924, 2
    %v6926 = vrot.slane %v6654, 7
    %v6927 = vrot.slane %v6926, 2
    %v6928 = vrot.slane %v6662, 7
    %v6929 = vrot.slane %v6928, 2
    %v6930 = vrot.slane %v6670, 7
    %v6931 = vrot.slane %v6930, 2
    %v6932 = vrot.slane %v6669, 7
    %v6933 = vrot.slane %v6932, 2
    %v6934 = vrot.slane %v6671, 7
    %v6935 = vrot.slane %v6934, 2
    %v6936 = vrot.slane %v6679, 7
    %v6937 = vrot.slane %v6936, 2
    %v6938 = vrot.slane %v6687, 7
    %v6939 = vrot.slane %v6938, 2
    %v6940 = vrot.slane %v6686, 7
    %v6941 = vrot.slane %v6940, 2
    %v6942 = vrot.slane %v6688, 7
    %v6943 = vrot.slane %v6942, 2
    %v6944 = vrot.slane %v6696, 7
    %v6945 = vrot.slane %v6944, 2
    %v6946 = vrot.slane %v6704, 7
    %v6947 = vrot.slane %v6946, 2
    %v6948 = vrot.slane %v6703, 7
    %v6949 = vrot.slane %v6948, 2
    %v6950 = vrot.slane %v6705, 7
    %v6951 = vrot.slane %v6950, 2
    %v6952 = vrot.slane %v6713, 7
    %v6953 = vrot.slane %v6952, 2
    %v6954 = vrot.slane %v6721, 7
    %v6955 = vrot.slane %v6954, 2
    %v6956 = vrot.slane %v6720, 7
    %v6957 = vrot.slane %v6956, 2
    %v6958 = vrot.slane %v6722, 7
    %v6959 = vrot.slane %v6958, 2
    %v6960 = vrot.slane %v6730, 7
    %v6961 = vrot.slane %v6960, 2
    %v6962 = vrot.slane %v6738, 7
    %v6963 = vrot.slane %v6962, 2
    %v6964 = vrot.slane %v6737, 7
    %v6965 = vrot.slane %v6964, 2
    %v6966 = vrot.slane %v6739, 7
    %v6967 = vrot.slane %v6966, 2
    %v6968 = vrot.slane %v6747, 7
    %v6969 = vrot.slane %v6968, 2
    %v6970 = vrot.slane %v6755, 7
    %v6971 = vrot.slane %v6970, 2
    %v6972 = vrot.slane %v6754, 7
    %v6973 = vrot.slane %v6972, 2
    %v6974 = vrot.slane %v6756, 7
    %v6975 = vrot.slane %v6974, 2
    %v6976 = vrot.slane %v6764, 7
    %v6977 = vrot.slane %v6976, 2
    %v6978 = vrot.slane %v6772, 7
    %v6979 = vrot.slane %v6978, 2
    %v6980 = vrot.slane %v6771, 7
    %v6981 = vrot.slane %v6980, 2
    %v6982 = vrot.slane %v6773, 7
    %v6983 = vrot.slane %v6982, 2
    %v6984 = vrot.slane %v6781, 7
    %v6985 = vrot.slane %v6984, 2
    %v6986 = vrot.slane %v6789, 7
    %v6987 = vrot.slane %v6986, 2
    %v6988 = vrot.slane %v6788, 7
    %v6989 = vrot.slane %v6988, 2
    %v6990 = vrot.slane %v6790, 7
    %v6991 = vrot.slane %v6990, 2
    %v6992 = vrot.slane %v6798, 7
    %v6993 = vrot.slane %v6992, 2
    %v6994 = vrot.slane %v6806, 7
    %v6995 = vrot.slane %v6994, 2
    %v6996 = vrot.slane %v6805, 7
    %v6997 = vrot.slane %v6996, 2
    %v6998 = vrot.slane %v6807, 7
    %v6999 = vrot.slane %v6998, 2
    %v7064 = vmax.f32 %v6543, %v6873
    %v7065 = vmax.f32 %v6551, %v6875
    %v7066 = vmax.f32 %v6550, %v6877
    %v7067 = vmax.f32 %v6552, %v6879
    %v7068 = vmax.f32 %v6560, %v6881
    %v7069 = vmax.f32 %v6568, %v6883
    %v7070 = vmax.f32 %v6567, %v6885
    %v7071 = vmax.f32 %v6569, %v6887
    %v7072 = vmax.f32 %v6577, %v6889
    %v7073 = vmax.f32 %v6585, %v6891
    %v7074 = vmax.f32 %v6584, %v6893
    %v7075 = vmax.f32 %v6586, %v6895
    %v7076 = vmax.f32 %v6594, %v6897
    %v7077 = vmax.f32 %v6602, %v6899
    %v7078 = vmax.f32 %v6601, %v6901
    %v7079 = vmax.f32 %v6603, %v6903
    %v7080 = vmax.f32 %v6611, %v6905
    %v7081 = vmax.f32 %v6619, %v6907
    %v7082 = vmax.f32 %v6618, %v6909
    %v7083 = vmax.f32 %v6620, %v6911
    %v7084 = vmax.f32 %v6628, %v6913
    %v7085 = vmax.f32 %v6636, %v6915
    %v7086 = vmax.f32 %v6635, %v6917
    %v7087 = vmax.f32 %v6637, %v6919
    %v7088 = vmax.f32 %v6645, %v6921
    %v7089 = vmax.f32 %v6653, %v6923
    %v7090 = vmax.f32 %v6652, %v6925
    %v7091 = vmax.f32 %v6654, %v6927
    %v7092 = vmax.f32 %v6662, %v6929
    %v7093 = vmax.f32 %v6670, %v6931
    %v7094 = vmax.f32 %v6669, %v6933
    %v7095 = vmax.f32 %v6671, %v6935
    %v7096 = vmax.f32 %v6679, %v6937
    %v7097 = vmax.f32 %v6687, %v6939
    %v7098 = vmax.f32 %v6686, %v6941
    %v7099 = vmax.f32 %v6688, %v6943
    %v7100 = vmax.f32 %v6696, %v6945
    %v7101 = vmax.f32 %v6704, %v6947
    %v7102 = vmax.f32 %v6703, %v6949
    %v7103 = vmax.f32 %v6705, %v6951
    %v7104 = vmax.f32 %v6713, %v6953
    %v7105 = vmax.f32 %v6721, %v6955
    %v7106 = vmax.f32 %v6720, %v6957
    %v7107 = vmax.f32 %v6722, %v6959
    %v7108 = vmax.f32 %v6730, %v6961
    %v7109 = vmax.f32 %v6738, %v6963
    %v7110 = vmax.f32 %v6737, %v6965
    %v7111 = vmax.f32 %v6739, %v6967
    %v7112 = vmax.f32 %v6747, %v6969
    %v7113 = vmax.f32 %v6755, %v6971
    %v7114 = vmax.f32 %v6754, %v6973
    %v7115 = vmax.f32 %v6756, %v6975
    %v7116 = vmax.f32 %v6764, %v6977
    %v7117 = vmax.f32 %v6772, %v6979
    %v7118 = vmax.f32 %v6771, %v6981
    %v7119 = vmax.f32 %v6773, %v6983
    %v7120 = vmax.f32 %v6781, %v6985
    %v7121 = vmax.f32 %v6789, %v6987
    %v7122 = vmax.f32 %v6788, %v6989
    %v7123 = vmax.f32 %v6790, %v6991
    %v7124 = vmax.f32 %v6798, %v6993
    %v7125 = vmax.f32 %v6806, %v6995
    %v7126 = vmax.f32 %v6805, %v6997
    %v7127 = vmax.f32 %v6807, %v6999
    %v7128 = vmax.f32 %v7064, %v7068
    %v7129 = vmax.f32 %v7065, %v7069
    %v7130 = vmax.f32 %v7066, %v7070
    %v7131 = vmax.f32 %v7067, %v7071
    %v7132 = vmax.f32 %v7072, %v7076
    %v7133 = vmax.f32 %v7073, %v7077
    %v7134 = vmax.f32 %v7074, %v7078
    %v7135 = vmax.f32 %v7075, %v7079
    %v7136 = vmax.f32 %v7080, %v7084
    %v7137 = vmax.f32 %v7081, %v7085
    %v7138 = vmax.f32 %v7082, %v7086
    %v7139 = vmax.f32 %v7083, %v7087
    %v7140 = vmax.f32 %v7088, %v7092
    %v7141 = vmax.f32 %v7089, %v7093
    %v7142 = vmax.f32 %v7090, %v7094
    %v7143 = vmax.f32 %v7091, %v7095
    %v7144 = vmax.f32 %v7096, %v7100
    %v7145 = vmax.f32 %v7097, %v7101
    %v7146 = vmax.f32 %v7098, %v7102
    %v7147 = vmax.f32 %v7099, %v7103
    %v7148 = vmax.f32 %v7104, %v7108
    %v7149 = vmax.f32 %v7105, %v7109
    %v7150 = vmax.f32 %v7106, %v7110
    %v7151 = vmax.f32 %v7107, %v7111
    %v7152 = vmax.f32 %v7112, %v7116
    %v7153 = vmax.f32 %v7113, %v7117
    %v7154 = vmax.f32 %v7114, %v7118
    %v7155 = vmax.f32 %v7115, %v7119
    %v7156 = vmax.f32 %v7120, %v7124
    %v7157 = vmax.f32 %v7121, %v7125
    %v7158 = vmax.f32 %v7122, %v7126
    %v7159 = vmax.f32 %v7123, %v7127
    %v7160 = vpack.c.bf16 %v7128, %v7128
    %v7161 = vpack.c.bf16 %v7129, %v7129
    %v7162 = vpack.c.bf16 %v7130, %v7130
    %v7163 = vpack.c.bf16 %v7131, %v7131
    %v7164 = vpack.c.bf16 %v7132, %v7132
    %v7165 = vpack.c.bf16 %v7133, %v7133
    %v7166 = vpack.c.bf16 %v7134, %v7134
    %v7167 = vpack.c.bf16 %v7135, %v7135
    %v7168 = vpack.c.bf16 %v7136, %v7136
    %v7169 = vpack.c.bf16 %v7137, %v7137
    %v7170 = vpack.c.bf16 %v7138, %v7138
    %v7171 = vpack.c.bf16 %v7139, %v7139
    %v7172 = vpack.c.bf16 %v7140, %v7140
    %v7173 = vpack.c.bf16 %v7141, %v7141
    %v7174 = vpack.c.bf16 %v7142, %v7142
    %v7175 = vpack.c.bf16 %v7143, %v7143
    %v7176 = vpack.c.bf16 %v7144, %v7144
    %v7177 = vpack.c.bf16 %v7145, %v7145
    %v7178 = vpack.c.bf16 %v7146, %v7146
    %v7179 = vpack.c.bf16 %v7147, %v7147
    %v7180 = vpack.c.bf16 %v7148, %v7148
    %v7181 = vpack.c.bf16 %v7149, %v7149
    %v7182 = vpack.c.bf16 %v7150, %v7150
    %v7183 = vpack.c.bf16 %v7151, %v7151
    %v7184 = vpack.c.bf16 %v7152, %v7152
    %v7185 = vpack.c.bf16 %v7153, %v7153
    %v7186 = vpack.c.bf16 %v7154, %v7154
    %v7187 = vpack.c.bf16 %v7155, %v7155
    %v7188 = vpack.c.bf16 %v7156, %v7156
    %v7189 = vpack.c.bf16 %v7157, %v7157
    %v7190 = vpack.c.bf16 %v7158, %v7158
    %v7191 = vpack.c.bf16 %v7159, %v7159
    %vm7192 = vcmask 59392
    %7193 = vst.msk [vmem:[#allocation2] sm:$0x7] %vm7192, 0
    %7194 = vst.msk [vmem:[#allocation2 + $0x50] sm:$0x7] %vm7192, 0
    %s7195 = scalar_lea.vmem [#allocation2], 40
    %7196 = vst.msk [vmem:[%s7195] sm:$0x7] %vm7192, 0
    %7197 = vst.msk [vmem:[%s7195 + $0x50] sm:$0x7] %vm7192, 0
    %v7198 = vld [vmem:[%s79] sm:$0x1]
    %v7199 = vsel %vm3297, 0, %v7198
    %7200 = vst [vmem:[%s79] sm:$0x1] %v7199
    %v7201 = vld [vmem:[%s79 + $0x8] sm:$0x1]
    %v7202 = vsel %vm3297, 0, %v7201
    %7203 = vst [vmem:[%s79 + $0x8] sm:$0x1] %v7202
    %v7204 = vld [vmem:[%s79 + $0x10] sm:$0x1]
    %v7205 = vsel %vm3297, 0, %v7204
    %7206 = vst [vmem:[%s79 + $0x10] sm:$0x1] %v7205
    %v7207 = vld [vmem:[%s79 + $0x18] sm:$0x1]
    %v7208 = vsel %vm3297, 0, %v7207
    %7209 = vst [vmem:[%s79 + $0x18] sm:$0x1] %v7208
    %v7210 = vld [vmem:[%s79 + $0x50] sm:$0x1]
    %v7211 = vsel %vm3297, 0, %v7210
    %7212 = vst [vmem:[%s79 + $0x50] sm:$0x1] %v7211
    %v7213 = vld [vmem:[%s79 + $0x58] sm:$0x1]
    %v7214 = vsel %vm3297, 0, %v7213
    %7215 = vst [vmem:[%s79 + $0x58] sm:$0x1] %v7214
    %v7216 = vld [vmem:[%s79 + $0x60] sm:$0x1]
    %v7217 = vsel %vm3297, 0, %v7216
    %7218 = vst [vmem:[%s79 + $0x60] sm:$0x1] %v7217
    %v7219 = vld [vmem:[%s79 + $0x68] sm:$0x1]
    %v7220 = vsel %vm3297, 0, %v7219
    %7221 = vst [vmem:[%s79 + $0x68] sm:$0x1] %v7220
    %vm7222 = vcmask 59394
    %vm7223 = vsmask.f32 7946
    %vm7224 = vmand %vm7222, %vm7223
    %v7225 = vld [vmem:[%s79] sm:$0x4]
    %v7226 = vsel %vm7224, 0, %v7225
    %7227 = vst [vmem:[%s79] sm:$0x4] %v7226
    %v7228 = vld [vmem:[%s79 + $0x8] sm:$0x4]
    %v7229 = vsel %vm7224, 0, %v7228
    %7230 = vst [vmem:[%s79 + $0x8] sm:$0x4] %v7229
    %v7231 = vld [vmem:[%s79 + $0x10] sm:$0x4]
    %v7232 = vsel %vm7224, 0, %v7231
    %7233 = vst [vmem:[%s79 + $0x10] sm:$0x4] %v7232
    %v7234 = vld [vmem:[%s79 + $0x18] sm:$0x4]
    %v7235 = vsel %vm7224, 0, %v7234
    %7236 = vst [vmem:[%s79 + $0x18] sm:$0x4] %v7235
    %v7237 = vld [vmem:[%s79 + $0x50] sm:$0x4]
    %v7238 = vsel %vm7224, 0, %v7237
    %7239 = vst [vmem:[%s79 + $0x50] sm:$0x4] %v7238
    %v7240 = vld [vmem:[%s79 + $0x58] sm:$0x4]
    %v7241 = vsel %vm7224, 0, %v7240
    %7242 = vst [vmem:[%s79 + $0x58] sm:$0x4] %v7241
    %v7243 = vld [vmem:[%s79 + $0x60] sm:$0x4]
    %v7244 = vsel %vm7224, 0, %v7243
    %7245 = vst [vmem:[%s79 + $0x60] sm:$0x4] %v7244
    %v7246 = vld [vmem:[%s79 + $0x68] sm:$0x4]
    %v7247 = vsel %vm7224, 0, %v7246
    %7248 = vst [vmem:[%s79 + $0x68] sm:$0x4] %v7247
    %v7281 = vunpack.c.l.b16 %v7160
    %v7282 = vunpack.c.l.b16 %v7161
    %v7283 = vunpack.c.l.b16 %v7162
    %v7284 = vunpack.c.l.b16 %v7163
    %v7285 = vunpack.c.l.b16 %v7164
    %v7286 = vunpack.c.l.b16 %v7165
    %v7287 = vunpack.c.l.b16 %v7166
    %v7288 = vunpack.c.l.b16 %v7167
    %v7289 = vunpack.c.l.b16 %v7168
    %v7290 = vunpack.c.l.b16 %v7169
    %v7291 = vunpack.c.l.b16 %v7170
    %v7292 = vunpack.c.l.b16 %v7171
    %v7293 = vunpack.c.l.b16 %v7172
    %v7294 = vunpack.c.l.b16 %v7173
    %v7295 = vunpack.c.l.b16 %v7174
    %v7296 = vunpack.c.l.b16 %v7175
    %v7297 = vunpack.c.l.b16 %v7176
    %v7298 = vunpack.c.l.b16 %v7177
    %v7299 = vunpack.c.l.b16 %v7178
    %v7300 = vunpack.c.l.b16 %v7179
    %v7301 = vunpack.c.l.b16 %v7180
    %v7302 = vunpack.c.l.b16 %v7181
    %v7303 = vunpack.c.l.b16 %v7182
    %v7304 = vunpack.c.l.b16 %v7183
    %v7305 = vunpack.c.l.b16 %v7184
    %v7306 = vunpack.c.l.b16 %v7185
    %v7307 = vunpack.c.l.b16 %v7186
    %v7308 = vunpack.c.l.b16 %v7187
    %v7309 = vunpack.c.l.b16 %v7188
    %v7310 = vunpack.c.l.b16 %v7189
    %v7311 = vunpack.c.l.b16 %v7190
    %v7312 = vunpack.c.l.b16 %v7191
    %v7313 = vpack.c.b16 %v7281, %v7281
    %v7314 = vpack.c.b16 %v7282, %v7282
    %v7315 = vpack.c.b16 %v7283, %v7283
    %v7316 = vpack.c.b16 %v7284, %v7284
    %v7317 = vpack.c.b16 %v7285, %v7285
    %v7318 = vpack.c.b16 %v7286, %v7286
    %v7319 = vpack.c.b16 %v7287, %v7287
    %v7320 = vpack.c.b16 %v7288, %v7288
    %v7321 = vpack.c.b16 %v7289, %v7289
    %v7322 = vpack.c.b16 %v7290, %v7290
    %v7323 = vpack.c.b16 %v7291, %v7291
    %v7324 = vpack.c.b16 %v7292, %v7292
    %v7325 = vpack.c.b16 %v7293, %v7293
    %v7326 = vpack.c.b16 %v7294, %v7294
    %v7327 = vpack.c.b16 %v7295, %v7295
    %v7328 = vpack.c.b16 %v7296, %v7296
    %v7329 = vpack.c.b16 %v7297, %v7297
    %v7330 = vpack.c.b16 %v7298, %v7298
    %v7331 = vpack.c.b16 %v7299, %v7299
    %v7332 = vpack.c.b16 %v7300, %v7300
    %v7333 = vpack.c.b16 %v7301, %v7301
    %v7334 = vpack.c.b16 %v7302, %v7302
    %v7335 = vpack.c.b16 %v7303, %v7303
    %v7336 = vpack.c.b16 %v7304, %v7304
    %v7337 = vpack.c.b16 %v7305, %v7305
    %v7338 = vpack.c.b16 %v7306, %v7306
    %v7339 = vpack.c.b16 %v7307, %v7307
    %v7340 = vpack.c.b16 %v7308, %v7308
    %v7341 = vpack.c.b16 %v7309, %v7309
    %v7342 = vpack.c.b16 %v7310, %v7310
    %v7343 = vpack.c.b16 %v7311, %v7311
    %v7344 = vpack.c.b16 %v7312, %v7312
    %v7345 = vunpack.c.l.b16 %v7313
    %v7346 = vunpack.c.l.b16 %v7314
    %v7347 = vunpack.c.l.b16 %v7315
    %v7348 = vunpack.c.l.b16 %v7316
    %v7349 = vunpack.c.l.b16 %v7317
    %v7350 = vunpack.c.l.b16 %v7318
    %v7351 = vunpack.c.l.b16 %v7319
    %v7352 = vunpack.c.l.b16 %v7320
    %v7353 = vunpack.c.l.b16 %v7321
    %v7354 = vunpack.c.l.b16 %v7322
    %v7355 = vunpack.c.l.b16 %v7323
    %v7356 = vunpack.c.l.b16 %v7324
    %v7357 = vunpack.c.l.b16 %v7325
    %v7358 = vunpack.c.l.b16 %v7326
    %v7359 = vunpack.c.l.b16 %v7327
    %v7360 = vunpack.c.l.b16 %v7328
    %v7361 = vunpack.c.l.b16 %v7329
    %v7362 = vunpack.c.l.b16 %v7330
    %v7363 = vunpack.c.l.b16 %v7331
    %v7364 = vunpack.c.l.b16 %v7332
    %v7365 = vunpack.c.l.b16 %v7333
    %v7366 = vunpack.c.l.b16 %v7334
    %v7367 = vunpack.c.l.b16 %v7335
    %v7368 = vunpack.c.l.b16 %v7336
    %v7369 = vunpack.c.l.b16 %v7337
    %v7370 = vunpack.c.l.b16 %v7338
    %v7371 = vunpack.c.l.b16 %v7339
    %v7372 = vunpack.c.l.b16 %v7340
    %v7373 = vunpack.c.l.b16 %v7341
    %v7374 = vunpack.c.l.b16 %v7342
    %v7375 = vunpack.c.l.b16 %v7343
    %v7376 = vunpack.c.l.b16 %v7344
    %v7377 = vrot.slane %v7345, 7
    %v7378 = vrot.slane %v7346, 6
    %vm7379 = vcmask 1042434
    %v7380 = vsel %vm7379, %v7378, %v7377
    %v7381 = vrot.slane %v7347, 5
    %vm7382 = vcmask 1043459
    %v7383 = vsel %vm7382, %v7381, %v7380
    %v7384 = vrot.slane %v7348, 4
    %vm7385 = vcmask 1044484
    %v7386 = vsel %vm7385, %v7384, %v7383
    %v7387 = vrot.slane %v7349, 7
    %v7388 = vrot.slane %v7350, 6
    %v7389 = vsel %vm7379, %v7388, %v7387
    %v7390 = vrot.slane %v7351, 5
    %v7391 = vsel %vm7382, %v7390, %v7389
    %v7392 = vrot.slane %v7352, 4
    %v7393 = vsel %vm7385, %v7392, %v7391
    %v7394 = vrot.slane %v7353, 7
    %v7395 = vrot.slane %v7354, 6
    %v7396 = vsel %vm7379, %v7395, %v7394
    %v7397 = vrot.slane %v7355, 5
    %v7398 = vsel %vm7382, %v7397, %v7396
    %v7399 = vrot.slane %v7356, 4
    %v7400 = vsel %vm7385, %v7399, %v7398
    %v7401 = vrot.slane %v7357, 7
    %v7402 = vrot.slane %v7358, 6
    %v7403 = vsel %vm7379, %v7402, %v7401
    %v7404 = vrot.slane %v7359, 5
    %v7405 = vsel %vm7382, %v7404, %v7403
    %v7406 = vrot.slane %v7360, 4
    %v7407 = vsel %vm7385, %v7406, %v7405
    %v7408 = vrot.slane %v7361, 7
    %v7409 = vrot.slane %v7362, 6
    %v7410 = vsel %vm7379, %v7409, %v7408
    %v7411 = vrot.slane %v7363, 5
    %v7412 = vsel %vm7382, %v7411, %v7410
    %v7413 = vrot.slane %v7364, 4
    %v7414 = vsel %vm7385, %v7413, %v7412
    %v7415 = vrot.slane %v7365, 7
    %v7416 = vrot.slane %v7366, 6
    %v7417 = vsel %vm7379, %v7416, %v7415
    %v7418 = vrot.slane %v7367, 5
    %v7419 = vsel %vm7382, %v7418, %v7417
    %v7420 = vrot.slane %v7368, 4
    %v7421 = vsel %vm7385, %v7420, %v7419
    %v7422 = vrot.slane %v7369, 7
    %v7423 = vrot.slane %v7370, 6
    %v7424 = vsel %vm7379, %v7423, %v7422
    %v7425 = vrot.slane %v7371, 5
    %v7426 = vsel %vm7382, %v7425, %v7424
    %v7427 = vrot.slane %v7372, 4
    %v7428 = vsel %vm7385, %v7427, %v7426
    %v7429 = vrot.slane %v7373, 7
    %v7430 = vrot.slane %v7374, 6
    %v7431 = vsel %vm7379, %v7430, %v7429
    %v7432 = vrot.slane %v7375, 5
    %v7433 = vsel %vm7382, %v7432, %v7431
    %v7434 = vrot.slane %v7376, 4
    %v7435 = vsel %vm7385, %v7434, %v7433
    %v7436 = vpack.c.b16 %v7386, %v7386
    %v7437 = vpack.c.b16 %v7393, %v7393
    %v7438 = vpack.c.b16 %v7400, %v7400
    %v7439 = vpack.c.b16 %v7407, %v7407
    %v7440 = vpack.c.b16 %v7414, %v7414
    %v7441 = vpack.c.b16 %v7421, %v7421
    %v7442 = vpack.c.b16 %v7428, %v7428
    %v7443 = vpack.c.b16 %v7435, %v7435
    %vm7452 = vcmask 59392
    %vm7453 = vsmask.f32 2306
    %vm7454 = vmand %vm7452, %vm7453
    %v7455 = vld [vmem:[%s79] sm:$0x7]
    %v7456 = vsel %vm7454, %v7436, %v7455
    %7457 = vst [vmem:[%s79] sm:$0x7] %v7456
    %v7458 = vld [vmem:[%s79 + $0x8] sm:$0x7]
    %v7459 = vsel %vm7454, %v7437, %v7458
    %7460 = vst [vmem:[%s79 + $0x8] sm:$0x7] %v7459
    %v7461 = vld [vmem:[%s79 + $0x10] sm:$0x7]
    %v7462 = vsel %vm7454, %v7438, %v7461
    %7463 = vst [vmem:[%s79 + $0x10] sm:$0x7] %v7462
    %v7464 = vld [vmem:[%s79 + $0x18] sm:$0x7]
    %v7465 = vsel %vm7454, %v7439, %v7464
    %7466 = vst [vmem:[%s79 + $0x18] sm:$0x7] %v7465
    %v7467 = vld [vmem:[%s79 + $0x50] sm:$0x7]
    %v7468 = vsel %vm7454, %v7440, %v7467
    %7469 = vst [vmem:[%s79 + $0x50] sm:$0x7] %v7468
    %v7470 = vld [vmem:[%s79 + $0x58] sm:$0x7]
    %v7471 = vsel %vm7454, %v7441, %v7470
    %7472 = vst [vmem:[%s79 + $0x58] sm:$0x7] %v7471
    %v7473 = vld [vmem:[%s79 + $0x60] sm:$0x7]
    %v7474 = vsel %vm7454, %v7442, %v7473
    %7475 = vst [vmem:[%s79 + $0x60] sm:$0x7] %v7474
    %v7476 = vld [vmem:[%s79 + $0x68] sm:$0x7]
    %v7477 = vsel %vm7454, %v7443, %v7476
    %7478 = vst [vmem:[%s79 + $0x68] sm:$0x7] %v7477
    %v7479 = vld [vmem:[#allocation2] sm:$0x3]
    %v7480 = vld [vmem:[#allocation2 + $0x8] sm:$0x3]
    %v7481 = vld [vmem:[#allocation2 + $0x10] sm:$0x3]
    %v7482 = vld [vmem:[#allocation2 + $0x18] sm:$0x3]
    %v7483 = vld [vmem:[#allocation2 + $0x50] sm:$0x3]
    %v7484 = vld [vmem:[#allocation2 + $0x58] sm:$0x3]
    %v7485 = vld [vmem:[#allocation2 + $0x60] sm:$0x3]
    %v7486 = vld [vmem:[#allocation2 + $0x68] sm:$0x3]
    %v7487 = vld [vmem:[%s7] sm:$0xf]
    %v7488 = vld [vmem:[#allocation2] sm:$0x7]
    %v7489 = vld [vmem:[#allocation2 + $0x8] sm:$0x7]
    %v7490 = vld [vmem:[#allocation2 + $0x10] sm:$0x7]
    %v7491 = vld [vmem:[#allocation2 + $0x18] sm:$0x7]
    %v7492 = vld [vmem:[#allocation2 + $0x50] sm:$0x7]
    %v7493 = vld [vmem:[#allocation2 + $0x58] sm:$0x7]
    %v7494 = vld [vmem:[#allocation2 + $0x60] sm:$0x7]
    %v7495 = vld [vmem:[#allocation2 + $0x68] sm:$0x7]
    %v7505 = vunpack.c.l.s4 1983009808
    %v7506 = vunpack.c.0.s8 %v7505
    %v7507 = vlaneseq
    %v7508 = vshrl.u32 %v7507, 7
    %v7509 = vsub.s32 %v7506, %v7508
    %v7510 = vrot.slane %v7488, %v7509
    %v7511 = vcombine.high %v7510, %v7510
    %v7513 = vunpack.c.l.s4 1983009808
    %v7514 = vunpack.c.0.s8 %v7513
    %v7515 = vlaneseq
    %v7516 = vshrl.u32 %v7515, 7
    %v7517 = vsub.s32 %v7514, %v7516
    %v7518 = vrot.slane %v7489, %v7517
    %v7519 = vcombine.high %v7518, %v7518
    %v7521 = vunpack.c.l.s4 1983009808
    %v7522 = vunpack.c.0.s8 %v7521
    %v7523 = vlaneseq
    %v7524 = vshrl.u32 %v7523, 7
    %v7525 = vsub.s32 %v7522, %v7524
    %v7526 = vrot.slane %v7490, %v7525
    %v7527 = vcombine.high %v7526, %v7526
    %v7529 = vunpack.c.l.s4 1983009808
    %v7530 = vunpack.c.0.s8 %v7529
    %v7531 = vlaneseq
    %v7532 = vshrl.u32 %v7531, 7
    %v7533 = vsub.s32 %v7530, %v7532
    %v7534 = vrot.slane %v7491, %v7533
    %v7535 = vcombine.high %v7534, %v7534
    %v7537 = vunpack.c.l.s4 1983009808
    %v7538 = vunpack.c.0.s8 %v7537
    %v7539 = vlaneseq
    %v7540 = vshrl.u32 %v7539, 7
    %v7541 = vsub.s32 %v7538, %v7540
    %v7542 = vrot.slane %v7492, %v7541
    %v7543 = vcombine.high %v7542, %v7542
    %v7545 = vunpack.c.l.s4 1983009808
    %v7546 = vunpack.c.0.s8 %v7545
    %v7547 = vlaneseq
    %v7548 = vshrl.u32 %v7547, 7
    %v7549 = vsub.s32 %v7546, %v7548
    %v7550 = vrot.slane %v7493, %v7549
    %v7551 = vcombine.high %v7550, %v7550
    %v7553 = vunpack.c.l.s4 1983009808
    %v7554 = vunpack.c.0.s8 %v7553
    %v7555 = vlaneseq
    %v7556 = vshrl.u32 %v7555, 7
    %v7557 = vsub.s32 %v7554, %v7556
    %v7558 = vrot.slane %v7494, %v7557
    %v7559 = vcombine.high %v7558, %v7558
    %v7561 = vunpack.c.l.s4 1983009808
    %v7562 = vunpack.c.0.s8 %v7561
    %v7563 = vlaneseq
    %v7564 = vshrl.u32 %v7563, 7
    %v7565 = vsub.s32 %v7562, %v7564
    %v7566 = vrot.slane %v7495, %v7565
    %v7567 = vcombine.high %v7566, %v7566
    %vm7568 = vsmask.f32 1280
    %vm7569 = vsmask.f32 3336
    %vm7570 = vmor %vm7568, %vm7569
    %vm7571 = vsmask.f32 5392
    %vm7572 = vmor %vm7570, %vm7571
    %vm7573 = vsmask.f32 7448
    %vm7574 = vmor %vm7572, %vm7573
    %v7576 = vshrl.u32 %v7510, 16
    %v7578 = vrot.slane %v7576, 6
    %v7579 = vshll.u32 %v7510, 16
    %v7581 = vrot.slane %v7579, 7
    %v7582 = vor.u32 %v7578, %v7581
    %v7583 = vrot.slane %v7582, 2
    %v7585 = vshll.u32 %v7511, 16
    %v7587 = vrot.slane %v7585, 7
    %v7588 = vsel %vm7574, %v7583, %v7587
    %v7590 = vshrl.u32 %v7518, 16
    %v7592 = vrot.slane %v7590, 6
    %v7593 = vshll.u32 %v7518, 16
    %v7595 = vrot.slane %v7593, 7
    %v7596 = vor.u32 %v7592, %v7595
    %v7597 = vrot.slane %v7596, 2
    %v7599 = vshll.u32 %v7519, 16
    %v7601 = vrot.slane %v7599, 7
    %v7602 = vsel %vm7574, %v7597, %v7601
    %v7604 = vshrl.u32 %v7526, 16
    %v7606 = vrot.slane %v7604, 6
    %v7607 = vshll.u32 %v7526, 16
    %v7609 = vrot.slane %v7607, 7
    %v7610 = vor.u32 %v7606, %v7609
    %v7611 = vrot.slane %v7610, 2
    %v7613 = vshll.u32 %v7527, 16
    %v7615 = vrot.slane %v7613, 7
    %v7616 = vsel %vm7574, %v7611, %v7615
    %v7618 = vshrl.u32 %v7534, 16
    %v7620 = vrot.slane %v7618, 6
    %v7621 = vshll.u32 %v7534, 16
    %v7623 = vrot.slane %v7621, 7
    %v7624 = vor.u32 %v7620, %v7623
    %v7625 = vrot.slane %v7624, 2
    %v7627 = vshll.u32 %v7535, 16
    %v7629 = vrot.slane %v7627, 7
    %v7630 = vsel %vm7574, %v7625, %v7629
    %v7632 = vshrl.u32 %v7542, 16
    %v7634 = vrot.slane %v7632, 6
    %v7635 = vshll.u32 %v7542, 16
    %v7637 = vrot.slane %v7635, 7
    %v7638 = vor.u32 %v7634, %v7637
    %v7639 = vrot.slane %v7638, 2
    %v7641 = vshll.u32 %v7543, 16
    %v7643 = vrot.slane %v7641, 7
    %v7644 = vsel %vm7574, %v7639, %v7643
    %v7646 = vshrl.u32 %v7550, 16
    %v7648 = vrot.slane %v7646, 6
    %v7649 = vshll.u32 %v7550, 16
    %v7651 = vrot.slane %v7649, 7
    %v7652 = vor.u32 %v7648, %v7651
    %v7653 = vrot.slane %v7652, 2
    %v7655 = vshll.u32 %v7551, 16
    %v7657 = vrot.slane %v7655, 7
    %v7658 = vsel %vm7574, %v7653, %v7657
    %v7660 = vshrl.u32 %v7558, 16
    %v7662 = vrot.slane %v7660, 6
    %v7663 = vshll.u32 %v7558, 16
    %v7665 = vrot.slane %v7663, 7
    %v7666 = vor.u32 %v7662, %v7665
    %v7667 = vrot.slane %v7666, 2
    %v7669 = vshll.u32 %v7559, 16
    %v7671 = vrot.slane %v7669, 7
    %v7672 = vsel %vm7574, %v7667, %v7671
    %v7674 = vshrl.u32 %v7566, 16
    %v7676 = vrot.slane %v7674, 6
    %v7677 = vshll.u32 %v7566, 16
    %v7679 = vrot.slane %v7677, 7
    %v7680 = vor.u32 %v7676, %v7679
    %v7681 = vrot.slane %v7680, 2
    %v7683 = vshll.u32 %v7567, 16
    %v7685 = vrot.slane %v7683, 7
    %v7686 = vsel %vm7574, %v7681, %v7685
    %s7687 = scalar_lea.vmem %s7, 4
    %v7688 = vld [vmem:[%s7687] sm:$0xf]
    %v7689 = vcombine.low %v7588, %v7602
    %v7690 = vcombine.low %v7616, %v7630
    %v7692 = vunpack.c.l.s4 1983009808
    %v7693 = vunpack.c.0.s8 %v7692
    %v7694 = vlaneseq
    %v7695 = vshrl.u32 %v7694, 7
    %v7696 = vsub.s32 %v7693, %v7695
    %v7697 = vrot.slane %v7689, %v7696
    %v7699 = vunpack.c.l.s4 1983009808
    %v7700 = vunpack.c.0.s8 %v7699
    %v7701 = vlaneseq
    %v7702 = vshrl.u32 %v7701, 7
    %v7703 = vsub.s32 %v7700, %v7702
    %v7704 = vrot.slane %v7690, %v7703
    %v7705 = vcombine.low %v7697, %v7704
    %v7706 = vcombine.low %v7644, %v7658
    %v7707 = vcombine.low %v7672, %v7686
    %v7709 = vunpack.c.l.s4 1983009808
    %v7710 = vunpack.c.0.s8 %v7709
    %v7711 = vlaneseq
    %v7712 = vshrl.u32 %v7711, 7
    %v7713 = vsub.s32 %v7710, %v7712
    %v7714 = vrot.slane %v7706, %v7713
    %v7716 = vunpack.c.l.s4 1983009808
    %v7717 = vunpack.c.0.s8 %v7716
    %v7718 = vlaneseq
    %v7719 = vshrl.u32 %v7718, 7
    %v7720 = vsub.s32 %v7717, %v7719
    %v7721 = vrot.slane %v7707, %v7720
    %v7722 = vcombine.low %v7714, %v7721
    %v7724 = vsel %vm3096, %v7705, 0
    %v7727 = vsel %vm3096, %v7722, 0
    %v7730 = vsel %vm4008, %v7688, 0
    %7732 = vmatprep.subr.bf16.mxu0 0
    %7733 = vmatpush1.bf16.msra.mxu0 0
    %7734 = vmatprep.subr.bf16.mxu0 0
    %7735 = vmatpush1.bf16.msra.mxu0 0
    %7736 = vmatprep.subr.bf16.mxu0 0
    %7737 = vmatpush1.bf16.msra.mxu0 0
    %7738 = vmatprep.subr.bf16.mxu0 0
    %7739 = vmatpush1.bf16.msra.mxu0 0
    %7740 = vmatprep.subr.bf16.mxu0 0
    %7741 = vmatpush1.bf16.msra.mxu0 0
    %7742 = vmatprep.subr.bf16.mxu0 0
    %7743 = vmatpush1.bf16.msra.mxu0 0
    %7744 = vmatprep.subr.bf16.mxu0 0
    %7745 = vmatpush1.bf16.msra.mxu0 0
    %7746 = vmatprep.subr.bf16.mxu0 0
    %7747 = vmatpush1.bf16.msra.mxu0 %v7730
    %7748 = vmatprep.subr.bf16.mxu0 0
    %7749 = vmatpush2.bf16.msra.mxu0 0
    %7750 = vmatprep.subr.bf16.mxu0 0
    %7751 = vmatpush2.bf16.msra.mxu0 0
    %7752 = vmatprep.subr.bf16.mxu0 0
    %7753 = vmatpush2.bf16.msra.mxu0 0
    %7754 = vmatprep.subr.bf16.mxu0 0
    %7755 = vmatpush2.bf16.msra.mxu0 0
    %7756 = vmatprep.subr.bf16.mxu0 0
    %7757 = vmatpush2.bf16.msra.mxu0 0
    %7758 = vmatprep.subr.bf16.mxu0 0
    %7759 = vmatpush2.bf16.msra.mxu0 0
    %7760 = vmatprep.subr.bf16.mxu0 0
    %7761 = vmatpush2.bf16.msra.mxu0 0
    %7762 = vmatprep.subr.bf16.mxu0 0
    %7763 = vmatpush2.bf16.msra.mxu0 0
    %7764 = vmatprep.mubr.bf16.mxu0 0
    %7765 = vmatmul.mubr.bf16.gmra.mxu0 %v7724
    %v7766 = vpop.f32.mrf.mxu0
    %v7767 = vadd.f32 0.0, %v7766
    %v7768 = vpop.f32.mrf.mxu0
    %v7769 = vpop.f32.mrf.mxu0
    %v7770 = vadd.f32 0.0, %v7769
    %v7771 = vpop.f32.mrf.mxu0
    %7772 = vmatprep.mubr.bf16.mxu0 0
    %7773 = vmatmul.mubr.bf16.gmra.mxu0 %v7727
    %v7774 = vpop.f32.mrf.mxu0
    %v7775 = vadd.f32 0.0, %v7774
    %v7776 = vpop.f32.mrf.mxu0
    %v7777 = vpop.f32.mrf.mxu0
    %v7778 = vadd.f32 0.0, %v7777
    %v7779 = vpop.f32.mrf.mxu0
    %7780 = vdwg.mxu0
    %v7789 = vcombine.low %v7479, %v7480
    %v7790 = vcombine.low %v7481, %v7482
    %v7792 = vunpack.c.l.s4 1983009808
    %v7793 = vunpack.c.0.s8 %v7792
    %v7794 = vlaneseq
    %v7795 = vshrl.u32 %v7794, 7
    %v7796 = vsub.s32 %v7793, %v7795
    %v7797 = vrot.slane %v7789, %v7796
    %v7799 = vunpack.c.l.s4 1983009808
    %v7800 = vunpack.c.0.s8 %v7799
    %v7801 = vlaneseq
    %v7802 = vshrl.u32 %v7801, 7
    %v7803 = vsub.s32 %v7800, %v7802
    %v7804 = vrot.slane %v7790, %v7803
    %v7805 = vcombine.low %v7797, %v7804
    %v7806 = vcombine.low %v7483, %v7484
    %v7807 = vcombine.low %v7485, %v7486
    %v7809 = vunpack.c.l.s4 1983009808
    %v7810 = vunpack.c.0.s8 %v7809
    %v7811 = vlaneseq
    %v7812 = vshrl.u32 %v7811, 7
    %v7813 = vsub.s32 %v7810, %v7812
    %v7814 = vrot.slane %v7806, %v7813
    %v7816 = vunpack.c.l.s4 1983009808
    %v7817 = vunpack.c.0.s8 %v7816
    %v7818 = vlaneseq
    %v7819 = vshrl.u32 %v7818, 7
    %v7820 = vsub.s32 %v7817, %v7819
    %v7821 = vrot.slane %v7807, %v7820
    %v7822 = vcombine.low %v7814, %v7821
    %v7824 = vsel %vm3096, %v7805, 0
    %v7827 = vsel %vm3096, %v7822, 0
    %v7830 = vsel %vm4008, %v7487, 0
    %7832 = vmatprep.subr.bf16.mxu0 0
    %7833 = vmatpush1.bf16.msra.mxu0 0
    %7834 = vmatprep.subr.bf16.mxu0 0
    %7835 = vmatpush1.bf16.msra.mxu0 0
    %7836 = vmatprep.subr.bf16.mxu0 0
    %7837 = vmatpush1.bf16.msra.mxu0 0
    %7838 = vmatprep.subr.bf16.mxu0 0
    %7839 = vmatpush1.bf16.msra.mxu0 0
    %7840 = vmatprep.subr.bf16.mxu0 0
    %7841 = vmatpush1.bf16.msra.mxu0 0
    %7842 = vmatprep.subr.bf16.mxu0 0
    %7843 = vmatpush1.bf16.msra.mxu0 0
    %7844 = vmatprep.subr.bf16.mxu0 0
    %7845 = vmatpush1.bf16.msra.mxu0 0
    %7846 = vmatprep.subr.bf16.mxu0 0
    %7847 = vmatpush1.bf16.msra.mxu0 %v7830
    %7848 = vmatprep.subr.bf16.mxu0 0
    %7849 = vmatpush2.bf16.msra.mxu0 0
    %7850 = vmatprep.subr.bf16.mxu0 0
    %7851 = vmatpush2.bf16.msra.mxu0 0
    %7852 = vmatprep.subr.bf16.mxu0 0
    %7853 = vmatpush2.bf16.msra.mxu0 0
    %7854 = vmatprep.subr.bf16.mxu0 0
    %7855 = vmatpush2.bf16.msra.mxu0 0
    %7856 = vmatprep.subr.bf16.mxu0 0
    %7857 = vmatpush2.bf16.msra.mxu0 0
    %7858 = vmatprep.subr.bf16.mxu0 0
    %7859 = vmatpush2.bf16.msra.mxu0 0
    %7860 = vmatprep.subr.bf16.mxu0 0
    %7861 = vmatpush2.bf16.msra.mxu0 0
    %7862 = vmatprep.subr.bf16.mxu0 0
    %7863 = vmatpush2.bf16.msra.mxu0 0
    %7864 = vmatprep.mubr.bf16.mxu0 0
    %7865 = vmatmul.mubr.bf16.gmra.mxu0 %v7824
    %v7866 = vpop.f32.mrf.mxu0
    %v7867 = vadd.f32 %v7767, %v7866
    %v7868 = vpop.f32.mrf.mxu0
    %v7869 = vpop.f32.mrf.mxu0
    %v7870 = vadd.f32 %v7770, %v7869
    %v7871 = vpop.f32.mrf.mxu0
    %7872 = vmatprep.mubr.bf16.mxu0 0
    %7873 = vmatmul.mubr.bf16.gmra.mxu0 %v7827
    %v7874 = vpop.f32.mrf.mxu0
    %v7875 = vadd.f32 %v7775, %v7874
    %v7876 = vpop.f32.mrf.mxu0
    %v7877 = vpop.f32.mrf.mxu0
    %v7878 = vadd.f32 %v7778, %v7877
    %v7879 = vpop.f32.mrf.mxu0
    %7880 = vdwg.mxu0
    %v7881 = vld [vmem:[#allocation2] sm:$0x6]
    %v7882 = vld [vmem:[#allocation2 + $0x8] sm:$0x6]
    %v7883 = vld [vmem:[#allocation2 + $0x10] sm:$0x6]
    %v7884 = vld [vmem:[#allocation2 + $0x18] sm:$0x6]
    %v7885 = vld [vmem:[#allocation2 + $0x50] sm:$0x6]
    %v7886 = vld [vmem:[#allocation2 + $0x58] sm:$0x6]
    %v7887 = vld [vmem:[#allocation2 + $0x60] sm:$0x6]
    %v7888 = vld [vmem:[#allocation2 + $0x68] sm:$0x6]
    %v7898 = vunpack.c.l.s4 1983009808
    %v7899 = vunpack.c.0.s8 %v7898
    %v7900 = vlaneseq
    %v7901 = vshrl.u32 %v7900, 7
    %v7902 = vsub.s32 %v7899, %v7901
    %v7903 = vrot.slane %v7881, %v7902
    %v7904 = vcombine.high %v7903, %v7903
    %v7906 = vunpack.c.l.s4 1983009808
    %v7907 = vunpack.c.0.s8 %v7906
    %v7908 = vlaneseq
    %v7909 = vshrl.u32 %v7908, 7
    %v7910 = vsub.s32 %v7907, %v7909
    %v7911 = vrot.slane %v7882, %v7910
    %v7912 = vcombine.high %v7911, %v7911
    %v7914 = vunpack.c.l.s4 1983009808
    %v7915 = vunpack.c.0.s8 %v7914
    %v7916 = vlaneseq
    %v7917 = vshrl.u32 %v7916, 7
    %v7918 = vsub.s32 %v7915, %v7917
    %v7919 = vrot.slane %v7883, %v7918
    %v7920 = vcombine.high %v7919, %v7919
    %v7922 = vunpack.c.l.s4 1983009808
    %v7923 = vunpack.c.0.s8 %v7922
    %v7924 = vlaneseq
    %v7925 = vshrl.u32 %v7924, 7
    %v7926 = vsub.s32 %v7923, %v7925
    %v7927 = vrot.slane %v7884, %v7926
    %v7928 = vcombine.high %v7927, %v7927
    %v7930 = vunpack.c.l.s4 1983009808
    %v7931 = vunpack.c.0.s8 %v7930
    %v7932 = vlaneseq
    %v7933 = vshrl.u32 %v7932, 7
    %v7934 = vsub.s32 %v7931, %v7933
    %v7935 = vrot.slane %v7885, %v7934
    %v7936 = vcombine.high %v7935, %v7935
    %v7938 = vunpack.c.l.s4 1983009808
    %v7939 = vunpack.c.0.s8 %v7938
    %v7940 = vlaneseq
    %v7941 = vshrl.u32 %v7940, 7
    %v7942 = vsub.s32 %v7939, %v7941
    %v7943 = vrot.slane %v7886, %v7942
    %v7944 = vcombine.high %v7943, %v7943
    %v7946 = vunpack.c.l.s4 1983009808
    %v7947 = vunpack.c.0.s8 %v7946
    %v7948 = vlaneseq
    %v7949 = vshrl.u32 %v7948, 7
    %v7950 = vsub.s32 %v7947, %v7949
    %v7951 = vrot.slane %v7887, %v7950
    %v7952 = vcombine.high %v7951, %v7951
    %v7954 = vunpack.c.l.s4 1983009808
    %v7955 = vunpack.c.0.s8 %v7954
    %v7956 = vlaneseq
    %v7957 = vshrl.u32 %v7956, 7
    %v7958 = vsub.s32 %v7955, %v7957
    %v7959 = vrot.slane %v7888, %v7958
    %v7960 = vcombine.high %v7959, %v7959
    %vm7961 = vcmask 1040384
    %vm7962 = vcmask 1042434
    %vm7963 = vmor %vm7961, %vm7962
    %vm7964 = vcmask 1044484
    %vm7965 = vmor %vm7963, %vm7964
    %vm7966 = vcmask 1046534
    %vm7967 = vmor %vm7965, %vm7966
    %v7968 = vrot.slane %v7903, 7
    %v7969 = vrot.slane %v7968, 2
    %v7970 = vrot.slane %v7904, 7
    %v7971 = vsel %vm7967, %v7969, %v7970
    %v7972 = vrot.slane %v7911, 7
    %v7973 = vrot.slane %v7972, 2
    %v7974 = vrot.slane %v7912, 7
    %v7975 = vsel %vm7967, %v7973, %v7974
    %v7976 = vrot.slane %v7919, 7
    %v7977 = vrot.slane %v7976, 2
    %v7978 = vrot.slane %v7920, 7
    %v7979 = vsel %vm7967, %v7977, %v7978
    %v7980 = vrot.slane %v7927, 7
    %v7981 = vrot.slane %v7980, 2
    %v7982 = vrot.slane %v7928, 7
    %v7983 = vsel %vm7967, %v7981, %v7982
    %v7984 = vrot.slane %v7935, 7
    %v7985 = vrot.slane %v7984, 2
    %v7986 = vrot.slane %v7936, 7
    %v7987 = vsel %vm7967, %v7985, %v7986
    %v7988 = vrot.slane %v7943, 7
    %v7989 = vrot.slane %v7988, 2
    %v7990 = vrot.slane %v7944, 7
    %v7991 = vsel %vm7967, %v7989, %v7990
    %v7992 = vrot.slane %v7951, 7
    %v7993 = vrot.slane %v7992, 2
    %v7994 = vrot.slane %v7952, 7
    %v7995 = vsel %vm7967, %v7993, %v7994
    %v7996 = vrot.slane %v7959, 7
    %v7997 = vrot.slane %v7996, 2
    %v7998 = vrot.slane %v7960, 7
    %v7999 = vsel %vm7967, %v7997, %v7998
    %s8000 = scalar_lea.vmem %s7, 8
    %v8001 = vld [vmem:[%s8000] sm:$0xf]
    %v8002 = vcombine.low %v7971, %v7975
    %v8003 = vcombine.low %v7979, %v7983
    %v8005 = vunpack.c.l.s4 1983009808
    %v8006 = vunpack.c.0.s8 %v8005
    %v8007 = vlaneseq
    %v8008 = vshrl.u32 %v8007, 7
    %v8009 = vsub.s32 %v8006, %v8008
    %v8010 = vrot.slane %v8002, %v8009
    %v8012 = vunpack.c.l.s4 1983009808
    %v8013 = vunpack.c.0.s8 %v8012
    %v8014 = vlaneseq
    %v8015 = vshrl.u32 %v8014, 7
    %v8016 = vsub.s32 %v8013, %v8015
    %v8017 = vrot.slane %v8003, %v8016
    %v8018 = vcombine.low %v8010, %v8017
    %v8019 = vcombine.low %v7987, %v7991
    %v8020 = vcombine.low %v7995, %v7999
    %v8022 = vunpack.c.l.s4 1983009808
    %v8023 = vunpack.c.0.s8 %v8022
    %v8024 = vlaneseq
    %v8025 = vshrl.u32 %v8024, 7
    %v8026 = vsub.s32 %v8023, %v8025
    %v8027 = vrot.slane %v8019, %v8026
    %v8029 = vunpack.c.l.s4 1983009808
    %v8030 = vunpack.c.0.s8 %v8029
    %v8031 = vlaneseq
    %v8032 = vshrl.u32 %v8031, 7
    %v8033 = vsub.s32 %v8030, %v8032
    %v8034 = vrot.slane %v8020, %v8033
    %v8035 = vcombine.low %v8027, %v8034
    %v8037 = vsel %vm3096, %v8018, 0
    %v8040 = vsel %vm3096, %v8035, 0
    %v8043 = vsel %vm4008, %v8001, 0
    %8045 = vmatprep.subr.bf16.mxu0 0
    %8046 = vmatpush1.bf16.msra.mxu0 0
    %8047 = vmatprep.subr.bf16.mxu0 0
    %8048 = vmatpush1.bf16.msra.mxu0 0
    %8049 = vmatprep.subr.bf16.mxu0 0
    %8050 = vmatpush1.bf16.msra.mxu0 0
    %8051 = vmatprep.subr.bf16.mxu0 0
    %8052 = vmatpush1.bf16.msra.mxu0 0
    %8053 = vmatprep.subr.bf16.mxu0 0
    %8054 = vmatpush1.bf16.msra.mxu0 0
    %8055 = vmatprep.subr.bf16.mxu0 0
    %8056 = vmatpush1.bf16.msra.mxu0 0
    %8057 = vmatprep.subr.bf16.mxu0 0
    %8058 = vmatpush1.bf16.msra.mxu0 0
    %8059 = vmatprep.subr.bf16.mxu0 0
    %8060 = vmatpush1.bf16.msra.mxu0 %v8043
    %8061 = vmatprep.subr.bf16.mxu0 0
    %8062 = vmatpush2.bf16.msra.mxu0 0
    %8063 = vmatprep.subr.bf16.mxu0 0
    %8064 = vmatpush2.bf16.msra.mxu0 0
    %8065 = vmatprep.subr.bf16.mxu0 0
    %8066 = vmatpush2.bf16.msra.mxu0 0
    %8067 = vmatprep.subr.bf16.mxu0 0
    %8068 = vmatpush2.bf16.msra.mxu0 0
    %8069 = vmatprep.subr.bf16.mxu0 0
    %8070 = vmatpush2.bf16.msra.mxu0 0
    %8071 = vmatprep.subr.bf16.mxu0 0
    %8072 = vmatpush2.bf16.msra.mxu0 0
    %8073 = vmatprep.subr.bf16.mxu0 0
    %8074 = vmatpush2.bf16.msra.mxu0 0
    %8075 = vmatprep.subr.bf16.mxu0 0
    %8076 = vmatpush2.bf16.msra.mxu0 0
    %8077 = vmatprep.mubr.bf16.mxu0 0
    %8078 = vmatmul.mubr.bf16.gmra.mxu0 %v8037
    %v8079 = vpop.f32.mrf.mxu0
    %v8080 = vadd.f32 0.0, %v8079
    %v8081 = vpop.f32.mrf.mxu0
    %v8082 = vpop.f32.mrf.mxu0
    %v8083 = vadd.f32 0.0, %v8082
    %v8084 = vpop.f32.mrf.mxu0
    %8085 = vmatprep.mubr.bf16.mxu0 0
    %8086 = vmatmul.mubr.bf16.gmra.mxu0 %v8040
    %v8087 = vpop.f32.mrf.mxu0
    %v8088 = vadd.f32 0.0, %v8087
    %v8089 = vpop.f32.mrf.mxu0
    %v8090 = vpop.f32.mrf.mxu0
    %v8091 = vadd.f32 0.0, %v8090
    %v8092 = vpop.f32.mrf.mxu0
    %8093 = vdwg.mxu0
    %v8094 = vadd.f32 %v7867, %v8080
    %v8095 = vadd.f32 %v7870, %v8083
    %v8096 = vadd.f32 %v7875, %v8088
    %v8097 = vadd.f32 %v7878, %v8091
    %v8098 = vld [vmem:[%s79] sm:$0x3]
    %v8099 = vld [vmem:[%s79 + $0x8] sm:$0x3]
    %v8100 = vld [vmem:[%s79 + $0x10] sm:$0x3]
    %v8101 = vld [vmem:[%s79 + $0x18] sm:$0x3]
    %v8102 = vld [vmem:[%s79 + $0x50] sm:$0x3]
    %v8103 = vld [vmem:[%s79 + $0x58] sm:$0x3]
    %v8104 = vld [vmem:[%s79 + $0x60] sm:$0x3]
    %v8105 = vld [vmem:[%s79 + $0x68] sm:$0x3]
    %s8106 = scalar_lea.vmem %s7, 12
    %v8107 = vld [vmem:[%s8106] sm:$0xf]
    %v8116 = vcombine.low %v8098, %v8099
    %v8117 = vcombine.low %v8100, %v8101
    %v8119 = vunpack.c.l.s4 1983009808
    %v8120 = vunpack.c.0.s8 %v8119
    %v8121 = vlaneseq
    %v8122 = vshrl.u32 %v8121, 7
    %v8123 = vsub.s32 %v8120, %v8122
    %v8124 = vrot.slane %v8116, %v8123
    %v8126 = vunpack.c.l.s4 1983009808
    %v8127 = vunpack.c.0.s8 %v8126
    %v8128 = vlaneseq
    %v8129 = vshrl.u32 %v8128, 7
    %v8130 = vsub.s32 %v8127, %v8129
    %v8131 = vrot.slane %v8117, %v8130
    %v8132 = vcombine.low %v8124, %v8131
    %v8133 = vcombine.low %v8102, %v8103
    %v8134 = vcombine.low %v8104, %v8105
    %v8136 = vunpack.c.l.s4 1983009808
    %v8137 = vunpack.c.0.s8 %v8136
    %v8138 = vlaneseq
    %v8139 = vshrl.u32 %v8138, 7
    %v8140 = vsub.s32 %v8137, %v8139
    %v8141 = vrot.slane %v8133, %v8140
    %v8143 = vunpack.c.l.s4 1983009808
    %v8144 = vunpack.c.0.s8 %v8143
    %v8145 = vlaneseq
    %v8146 = vshrl.u32 %v8145, 7
    %v8147 = vsub.s32 %v8144, %v8146
    %v8148 = vrot.slane %v8134, %v8147
    %v8149 = vcombine.low %v8141, %v8148
    %v8151 = vsel %vm3096, %v8132, 0
    %v8154 = vsel %vm3096, %v8149, 0
    %v8157 = vsel %vm4008, %v8107, 0
    %8159 = vmatprep.subr.bf16.mxu0 0
    %8160 = vmatpush1.bf16.msra.mxu0 0
    %8161 = vmatprep.subr.bf16.mxu0 0
    %8162 = vmatpush1.bf16.msra.mxu0 0
    %8163 = vmatprep.subr.bf16.mxu0 0
    %8164 = vmatpush1.bf16.msra.mxu0 0
    %8165 = vmatprep.subr.bf16.mxu0 0
    %8166 = vmatpush1.bf16.msra.mxu0 0
    %8167 = vmatprep.subr.bf16.mxu0 0
    %8168 = vmatpush1.bf16.msra.mxu0 0
    %8169 = vmatprep.subr.bf16.mxu0 0
    %8170 = vmatpush1.bf16.msra.mxu0 0
    %8171 = vmatprep.subr.bf16.mxu0 0
    %8172 = vmatpush1.bf16.msra.mxu0 0
    %8173 = vmatprep.subr.bf16.mxu0 0
    %8174 = vmatpush1.bf16.msra.mxu0 %v8157
    %8175 = vmatprep.subr.bf16.mxu0 0
    %8176 = vmatpush2.bf16.msra.mxu0 0
    %8177 = vmatprep.subr.bf16.mxu0 0
    %8178 = vmatpush2.bf16.msra.mxu0 0
    %8179 = vmatprep.subr.bf16.mxu0 0
    %8180 = vmatpush2.bf16.msra.mxu0 0
    %8181 = vmatprep.subr.bf16.mxu0 0
    %8182 = vmatpush2.bf16.msra.mxu0 0
    %8183 = vmatprep.subr.bf16.mxu0 0
    %8184 = vmatpush2.bf16.msra.mxu0 0
    %8185 = vmatprep.subr.bf16.mxu0 0
    %8186 = vmatpush2.bf16.msra.mxu0 0
    %8187 = vmatprep.subr.bf16.mxu0 0
    %8188 = vmatpush2.bf16.msra.mxu0 0
    %8189 = vmatprep.subr.bf16.mxu0 0
    %8190 = vmatpush2.bf16.msra.mxu0 0
    %8191 = vmatprep.mubr.bf16.mxu0 0
    %8192 = vmatmul.mubr.bf16.gmra.mxu0 %v8151
    %v8193 = vpop.f32.mrf.mxu0
    %v8194 = vadd.f32 0.0, %v8193
    %v8195 = vpop.f32.mrf.mxu0
    %v8196 = vpop.f32.mrf.mxu0
    %v8197 = vadd.f32 0.0, %v8196
    %v8198 = vpop.f32.mrf.mxu0
    %8199 = vmatprep.mubr.bf16.mxu0 0
    %8200 = vmatmul.mubr.bf16.gmra.mxu0 %v8154
    %v8201 = vpop.f32.mrf.mxu0
    %v8202 = vadd.f32 0.0, %v8201
    %v8203 = vpop.f32.mrf.mxu0
    %v8204 = vpop.f32.mrf.mxu0
    %v8205 = vadd.f32 0.0, %v8204
    %v8206 = vpop.f32.mrf.mxu0
    %8207 = vdwg.mxu0
    %v8208 = vadd.f32 %v8094, %v8194
    %v8209 = vadd.f32 %v8095, %v8197
    %v8210 = vadd.f32 %v8096, %v8202
    %v8211 = vadd.f32 %v8097, %v8205
    %v8212 = vld [vmem:[%s79] sm:$0x7]
    %v8213 = vld [vmem:[%s79 + $0x8] sm:$0x7]
    %v8214 = vld [vmem:[%s79 + $0x10] sm:$0x7]
    %v8215 = vld [vmem:[%s79 + $0x18] sm:$0x7]
    %v8216 = vld [vmem:[%s79 + $0x50] sm:$0x7]
    %v8217 = vld [vmem:[%s79 + $0x58] sm:$0x7]
    %v8218 = vld [vmem:[%s79 + $0x60] sm:$0x7]
    %v8219 = vld [vmem:[%s79 + $0x68] sm:$0x7]
    %v8229 = vunpack.c.l.s4 1983009808
    %v8230 = vunpack.c.0.s8 %v8229
    %v8231 = vlaneseq
    %v8232 = vshrl.u32 %v8231, 7
    %v8233 = vsub.s32 %v8230, %v8232
    %v8234 = vrot.slane %v8212, %v8233
    %v8235 = vcombine.high %v8234, %v8234
    %v8237 = vunpack.c.l.s4 1983009808
    %v8238 = vunpack.c.0.s8 %v8237
    %v8239 = vlaneseq
    %v8240 = vshrl.u32 %v8239, 7
    %v8241 = vsub.s32 %v8238, %v8240
    %v8242 = vrot.slane %v8213, %v8241
    %v8243 = vcombine.high %v8242, %v8242
    %v8245 = vunpack.c.l.s4 1983009808
    %v8246 = vunpack.c.0.s8 %v8245
    %v8247 = vlaneseq
    %v8248 = vshrl.u32 %v8247, 7
    %v8249 = vsub.s32 %v8246, %v8248
    %v8250 = vrot.slane %v8214, %v8249
    %v8251 = vcombine.high %v8250, %v8250
    %v8253 = vunpack.c.l.s4 1983009808
    %v8254 = vunpack.c.0.s8 %v8253
    %v8255 = vlaneseq
    %v8256 = vshrl.u32 %v8255, 7
    %v8257 = vsub.s32 %v8254, %v8256
    %v8258 = vrot.slane %v8215, %v8257
    %v8259 = vcombine.high %v8258, %v8258
    %v8261 = vunpack.c.l.s4 1983009808
    %v8262 = vunpack.c.0.s8 %v8261
    %v8263 = vlaneseq
    %v8264 = vshrl.u32 %v8263, 7
    %v8265 = vsub.s32 %v8262, %v8264
    %v8266 = vrot.slane %v8216, %v8265
    %v8267 = vcombine.high %v8266, %v8266
    %v8269 = vunpack.c.l.s4 1983009808
    %v8270 = vunpack.c.0.s8 %v8269
    %v8271 = vlaneseq
    %v8272 = vshrl.u32 %v8271, 7
    %v8273 = vsub.s32 %v8270, %v8272
    %v8274 = vrot.slane %v8217, %v8273
    %v8275 = vcombine.high %v8274, %v8274
    %v8277 = vunpack.c.l.s4 1983009808
    %v8278 = vunpack.c.0.s8 %v8277
    %v8279 = vlaneseq
    %v8280 = vshrl.u32 %v8279, 7
    %v8281 = vsub.s32 %v8278, %v8280
    %v8282 = vrot.slane %v8218, %v8281
    %v8283 = vcombine.high %v8282, %v8282
    %v8285 = vunpack.c.l.s4 1983009808
    %v8286 = vunpack.c.0.s8 %v8285
    %v8287 = vlaneseq
    %v8288 = vshrl.u32 %v8287, 7
    %v8289 = vsub.s32 %v8286, %v8288
    %v8290 = vrot.slane %v8219, %v8289
    %v8291 = vcombine.high %v8290, %v8290
    %v8293 = vshrl.u32 %v8234, 16
    %v8295 = vrot.slane %v8293, 6
    %v8296 = vshll.u32 %v8234, 16
    %v8298 = vrot.slane %v8296, 7
    %v8299 = vor.u32 %v8295, %v8298
    %v8300 = vrot.slane %v8299, 2
    %v8302 = vshll.u32 %v8235, 16
    %v8304 = vrot.slane %v8302, 7
    %v8305 = vsel %vm7574, %v8300, %v8304
    %v8307 = vshrl.u32 %v8242, 16
    %v8309 = vrot.slane %v8307, 6
    %v8310 = vshll.u32 %v8242, 16
    %v8312 = vrot.slane %v8310, 7
    %v8313 = vor.u32 %v8309, %v8312
    %v8314 = vrot.slane %v8313, 2
    %v8316 = vshll.u32 %v8243, 16
    %v8318 = vrot.slane %v8316, 7
    %v8319 = vsel %vm7574, %v8314, %v8318
    %v8321 = vshrl.u32 %v8250, 16
    %v8323 = vrot.slane %v8321, 6
    %v8324 = vshll.u32 %v8250, 16
    %v8326 = vrot.slane %v8324, 7
    %v8327 = vor.u32 %v8323, %v8326
    %v8328 = vrot.slane %v8327, 2
    %v8330 = vshll.u32 %v8251, 16
    %v8332 = vrot.slane %v8330, 7
    %v8333 = vsel %vm7574, %v8328, %v8332
    %v8335 = vshrl.u32 %v8258, 16
    %v8337 = vrot.slane %v8335, 6
    %v8338 = vshll.u32 %v8258, 16
    %v8340 = vrot.slane %v8338, 7
    %v8341 = vor.u32 %v8337, %v8340
    %v8342 = vrot.slane %v8341, 2
    %v8344 = vshll.u32 %v8259, 16
    %v8346 = vrot.slane %v8344, 7
    %v8347 = vsel %vm7574, %v8342, %v8346
    %v8349 = vshrl.u32 %v8266, 16
    %v8351 = vrot.slane %v8349, 6
    %v8352 = vshll.u32 %v8266, 16
    %v8354 = vrot.slane %v8352, 7
    %v8355 = vor.u32 %v8351, %v8354
    %v8356 = vrot.slane %v8355, 2
    %v8358 = vshll.u32 %v8267, 16
    %v8360 = vrot.slane %v8358, 7
    %v8361 = vsel %vm7574, %v8356, %v8360
    %v8363 = vshrl.u32 %v8274, 16
    %v8365 = vrot.slane %v8363, 6
    %v8366 = vshll.u32 %v8274, 16
    %v8368 = vrot.slane %v8366, 7
    %v8369 = vor.u32 %v8365, %v8368
    %v8370 = vrot.slane %v8369, 2
    %v8372 = vshll.u32 %v8275, 16
    %v8374 = vrot.slane %v8372, 7
    %v8375 = vsel %vm7574, %v8370, %v8374
    %v8377 = vshrl.u32 %v8282, 16
    %v8379 = vrot.slane %v8377, 6
    %v8380 = vshll.u32 %v8282, 16
    %v8382 = vrot.slane %v8380, 7
    %v8383 = vor.u32 %v8379, %v8382
    %v8384 = vrot.slane %v8383, 2
    %v8386 = vshll.u32 %v8283, 16
    %v8388 = vrot.slane %v8386, 7
    %v8389 = vsel %vm7574, %v8384, %v8388
    %v8391 = vshrl.u32 %v8290, 16
    %v8393 = vrot.slane %v8391, 6
    %v8394 = vshll.u32 %v8290, 16
    %v8396 = vrot.slane %v8394, 7
    %v8397 = vor.u32 %v8393, %v8396
    %v8398 = vrot.slane %v8397, 2
    %v8400 = vshll.u32 %v8291, 16
    %v8402 = vrot.slane %v8400, 7
    %v8403 = vsel %vm7574, %v8398, %v8402
    %s8404 = scalar_lea.vmem %s7, 16
    %v8405 = vld [vmem:[%s8404] sm:$0xf]
    %v8406 = vcombine.low %v8305, %v8319
    %v8407 = vcombine.low %v8333, %v8347
    %v8409 = vunpack.c.l.s4 1983009808
    %v8410 = vunpack.c.0.s8 %v8409
    %v8411 = vlaneseq
    %v8412 = vshrl.u32 %v8411, 7
    %v8413 = vsub.s32 %v8410, %v8412
    %v8414 = vrot.slane %v8406, %v8413
    %v8416 = vunpack.c.l.s4 1983009808
    %v8417 = vunpack.c.0.s8 %v8416
    %v8418 = vlaneseq
    %v8419 = vshrl.u32 %v8418, 7
    %v8420 = vsub.s32 %v8417, %v8419
    %v8421 = vrot.slane %v8407, %v8420
    %v8422 = vcombine.low %v8414, %v8421
    %v8423 = vcombine.low %v8361, %v8375
    %v8424 = vcombine.low %v8389, %v8403
    %v8426 = vunpack.c.l.s4 1983009808
    %v8427 = vunpack.c.0.s8 %v8426
    %v8428 = vlaneseq
    %v8429 = vshrl.u32 %v8428, 7
    %v8430 = vsub.s32 %v8427, %v8429
    %v8431 = vrot.slane %v8423, %v8430
    %v8433 = vunpack.c.l.s4 1983009808
    %v8434 = vunpack.c.0.s8 %v8433
    %v8435 = vlaneseq
    %v8436 = vshrl.u32 %v8435, 7
    %v8437 = vsub.s32 %v8434, %v8436
    %v8438 = vrot.slane %v8424, %v8437
    %v8439 = vcombine.low %v8431, %v8438
    %v8441 = vsel %vm3096, %v8422, 0
    %v8444 = vsel %vm3096, %v8439, 0
    %v8447 = vsel %vm4008, %v8405, 0
    %8449 = vmatprep.subr.bf16.mxu0 0
    %8450 = vmatpush1.bf16.msra.mxu0 0
    %8451 = vmatprep.subr.bf16.mxu0 0
    %8452 = vmatpush1.bf16.msra.mxu0 0
    %8453 = vmatprep.subr.bf16.mxu0 0
    %8454 = vmatpush1.bf16.msra.mxu0 0
    %8455 = vmatprep.subr.bf16.mxu0 0
    %8456 = vmatpush1.bf16.msra.mxu0 0
    %8457 = vmatprep.subr.bf16.mxu0 0
    %8458 = vmatpush1.bf16.msra.mxu0 0
    %8459 = vmatprep.subr.bf16.mxu0 0
    %8460 = vmatpush1.bf16.msra.mxu0 0
    %8461 = vmatprep.subr.bf16.mxu0 0
    %8462 = vmatpush1.bf16.msra.mxu0 0
    %8463 = vmatprep.subr.bf16.mxu0 0
    %8464 = vmatpush1.bf16.msra.mxu0 %v8447
    %8465 = vmatprep.subr.bf16.mxu0 0
    %8466 = vmatpush2.bf16.msra.mxu0 0
    %8467 = vmatprep.subr.bf16.mxu0 0
    %8468 = vmatpush2.bf16.msra.mxu0 0
    %8469 = vmatprep.subr.bf16.mxu0 0
    %8470 = vmatpush2.bf16.msra.mxu0 0
    %8471 = vmatprep.subr.bf16.mxu0 0
    %8472 = vmatpush2.bf16.msra.mxu0 0
    %8473 = vmatprep.subr.bf16.mxu0 0
    %8474 = vmatpush2.bf16.msra.mxu0 0
    %8475 = vmatprep.subr.bf16.mxu0 0
    %8476 = vmatpush2.bf16.msra.mxu0 0
    %8477 = vmatprep.subr.bf16.mxu0 0
    %8478 = vmatpush2.bf16.msra.mxu0 0
    %8479 = vmatprep.subr.bf16.mxu0 0
    %8480 = vmatpush2.bf16.msra.mxu0 0
    %8481 = vmatprep.mubr.bf16.mxu0 0
    %8482 = vmatmul.mubr.bf16.gmra.mxu0 %v8441
    %v8483 = vpop.f32.mrf.mxu0
    %v8484 = vadd.f32 0.0, %v8483
    %v8485 = vpop.f32.mrf.mxu0
    %v8486 = vpop.f32.mrf.mxu0
    %v8487 = vadd.f32 0.0, %v8486
    %v8488 = vpop.f32.mrf.mxu0
    %8489 = vmatprep.mubr.bf16.mxu0 0
    %8490 = vmatmul.mubr.bf16.gmra.mxu0 %v8444
    %v8491 = vpop.f32.mrf.mxu0
    %v8492 = vadd.f32 0.0, %v8491
    %v8493 = vpop.f32.mrf.mxu0
    %v8494 = vpop.f32.mrf.mxu0
    %v8495 = vadd.f32 0.0, %v8494
    %v8496 = vpop.f32.mrf.mxu0
    %8497 = vdwg.mxu0
    %v8498 = vadd.f32 %v8208, %v8484
    %v8499 = vadd.f32 %v8209, %v8487
    %v8500 = vadd.f32 %v8210, %v8492
    %v8501 = vadd.f32 %v8211, %v8495
    %v8502 = vld [vmem:[%s79] sm:$0x6]
    %v8503 = vld [vmem:[%s79 + $0x8] sm:$0x6]
    %v8504 = vld [vmem:[%s79 + $0x10] sm:$0x6]
    %v8505 = vld [vmem:[%s79 + $0x18] sm:$0x6]
    %v8506 = vld [vmem:[%s79 + $0x50] sm:$0x6]
    %v8507 = vld [vmem:[%s79 + $0x58] sm:$0x6]
    %v8508 = vld [vmem:[%s79 + $0x60] sm:$0x6]
    %v8509 = vld [vmem:[%s79 + $0x68] sm:$0x6]
    %v8519 = vunpack.c.l.s4 1983009808
    %v8520 = vunpack.c.0.s8 %v8519
    %v8521 = vlaneseq
    %v8522 = vshrl.u32 %v8521, 7
    %v8523 = vsub.s32 %v8520, %v8522
    %v8524 = vrot.slane %v8502, %v8523
    %v8525 = vcombine.high %v8524, %v8524
    %v8527 = vunpack.c.l.s4 1983009808
    %v8528 = vunpack.c.0.s8 %v8527
    %v8529 = vlaneseq
    %v8530 = vshrl.u32 %v8529, 7
    %v8531 = vsub.s32 %v8528, %v8530
    %v8532 = vrot.slane %v8503, %v8531
    %v8533 = vcombine.high %v8532, %v8532
    %v8535 = vunpack.c.l.s4 1983009808
    %v8536 = vunpack.c.0.s8 %v8535
    %v8537 = vlaneseq
    %v8538 = vshrl.u32 %v8537, 7
    %v8539 = vsub.s32 %v8536, %v8538
    %v8540 = vrot.slane %v8504, %v8539
    %v8541 = vcombine.high %v8540, %v8540
    %v8543 = vunpack.c.l.s4 1983009808
    %v8544 = vunpack.c.0.s8 %v8543
    %v8545 = vlaneseq
    %v8546 = vshrl.u32 %v8545, 7
    %v8547 = vsub.s32 %v8544, %v8546
    %v8548 = vrot.slane %v8505, %v8547
    %v8549 = vcombine.high %v8548, %v8548
    %v8551 = vunpack.c.l.s4 1983009808
    %v8552 = vunpack.c.0.s8 %v8551
    %v8553 = vlaneseq
    %v8554 = vshrl.u32 %v8553, 7
    %v8555 = vsub.s32 %v8552, %v8554
    %v8556 = vrot.slane %v8506, %v8555
    %v8557 = vcombine.high %v8556, %v8556
    %v8559 = vunpack.c.l.s4 1983009808
    %v8560 = vunpack.c.0.s8 %v8559
    %v8561 = vlaneseq
    %v8562 = vshrl.u32 %v8561, 7
    %v8563 = vsub.s32 %v8560, %v8562
    %v8564 = vrot.slane %v8507, %v8563
    %v8565 = vcombine.high %v8564, %v8564
    %v8567 = vunpack.c.l.s4 1983009808
    %v8568 = vunpack.c.0.s8 %v8567
    %v8569 = vlaneseq
    %v8570 = vshrl.u32 %v8569, 7
    %v8571 = vsub.s32 %v8568, %v8570
    %v8572 = vrot.slane %v8508, %v8571
    %v8573 = vcombine.high %v8572, %v8572
    %v8575 = vunpack.c.l.s4 1983009808
    %v8576 = vunpack.c.0.s8 %v8575
    %v8577 = vlaneseq
    %v8578 = vshrl.u32 %v8577, 7
    %v8579 = vsub.s32 %v8576, %v8578
    %v8580 = vrot.slane %v8509, %v8579
    %v8581 = vcombine.high %v8580, %v8580
    %v8582 = vrot.slane %v8524, 7
    %v8583 = vrot.slane %v8582, 2
    %v8584 = vrot.slane %v8525, 7
    %v8585 = vsel %vm7967, %v8583, %v8584
    %v8586 = vrot.slane %v8532, 7
    %v8587 = vrot.slane %v8586, 2
    %v8588 = vrot.slane %v8533, 7
    %v8589 = vsel %vm7967, %v8587, %v8588
    %v8590 = vrot.slane %v8540, 7
    %v8591 = vrot.slane %v8590, 2
    %v8592 = vrot.slane %v8541, 7
    %v8593 = vsel %vm7967, %v8591, %v8592
    %v8594 = vrot.slane %v8548, 7
    %v8595 = vrot.slane %v8594, 2
    %v8596 = vrot.slane %v8549, 7
    %v8597 = vsel %vm7967, %v8595, %v8596
    %v8598 = vrot.slane %v8556, 7
    %v8599 = vrot.slane %v8598, 2
    %v8600 = vrot.slane %v8557, 7
    %v8601 = vsel %vm7967, %v8599, %v8600
    %v8602 = vrot.slane %v8564, 7
    %v8603 = vrot.slane %v8602, 2
    %v8604 = vrot.slane %v8565, 7
    %v8605 = vsel %vm7967, %v8603, %v8604
    %v8606 = vrot.slane %v8572, 7
    %v8607 = vrot.slane %v8606, 2
    %v8608 = vrot.slane %v8573, 7
    %v8609 = vsel %vm7967, %v8607, %v8608
    %v8610 = vrot.slane %v8580, 7
    %v8611 = vrot.slane %v8610, 2
    %v8612 = vrot.slane %v8581, 7
    %v8613 = vsel %vm7967, %v8611, %v8612
    %s8614 = scalar_lea.vmem %s7, 20
    %v8615 = vld [vmem:[%s8614] sm:$0xf]
    %v8616 = vcombine.low %v8585, %v8589
    %v8617 = vcombine.low %v8593, %v8597
    %v8619 = vunpack.c.l.s4 1983009808
    %v8620 = vunpack.c.0.s8 %v8619
    %v8621 = vlaneseq
    %v8622 = vshrl.u32 %v8621, 7
    %v8623 = vsub.s32 %v8620, %v8622
    %v8624 = vrot.slane %v8616, %v8623
    %v8626 = vunpack.c.l.s4 1983009808
    %v8627 = vunpack.c.0.s8 %v8626
    %v8628 = vlaneseq
    %v8629 = vshrl.u32 %v8628, 7
    %v8630 = vsub.s32 %v8627, %v8629
    %v8631 = vrot.slane %v8617, %v8630
    %v8632 = vcombine.low %v8624, %v8631
    %v8633 = vcombine.low %v8601, %v8605
    %v8634 = vcombine.low %v8609, %v8613
    %v8636 = vunpack.c.l.s4 1983009808
    %v8637 = vunpack.c.0.s8 %v8636
    %v8638 = vlaneseq
    %v8639 = vshrl.u32 %v8638, 7
    %v8640 = vsub.s32 %v8637, %v8639
    %v8641 = vrot.slane %v8633, %v8640
    %v8643 = vunpack.c.l.s4 1983009808
    %v8644 = vunpack.c.0.s8 %v8643
    %v8645 = vlaneseq
    %v8646 = vshrl.u32 %v8645, 7
    %v8647 = vsub.s32 %v8644, %v8646
    %v8648 = vrot.slane %v8634, %v8647
    %v8649 = vcombine.low %v8641, %v8648
    %v8651 = vsel %vm3096, %v8632, 0
    %v8654 = vsel %vm3096, %v8649, 0
    %v8657 = vsel %vm4008, %v8615, 0
    %8659 = vmatprep.subr.bf16.mxu0 0
    %8660 = vmatpush1.bf16.msra.mxu0 0
    %8661 = vmatprep.subr.bf16.mxu0 0
    %8662 = vmatpush1.bf16.msra.mxu0 0
    %8663 = vmatprep.subr.bf16.mxu0 0
    %8664 = vmatpush1.bf16.msra.mxu0 0
    %8665 = vmatprep.subr.bf16.mxu0 0
    %8666 = vmatpush1.bf16.msra.mxu0 0
    %8667 = vmatprep.subr.bf16.mxu0 0
    %8668 = vmatpush1.bf16.msra.mxu0 0
    %8669 = vmatprep.subr.bf16.mxu0 0
    %8670 = vmatpush1.bf16.msra.mxu0 0
    %8671 = vmatprep.subr.bf16.mxu0 0
    %8672 = vmatpush1.bf16.msra.mxu0 0
    %8673 = vmatprep.subr.bf16.mxu0 0
    %8674 = vmatpush1.bf16.msra.mxu0 %v8657
    %8675 = vmatprep.subr.bf16.mxu0 0
    %8676 = vmatpush2.bf16.msra.mxu0 0
    %8677 = vmatprep.subr.bf16.mxu0 0
    %8678 = vmatpush2.bf16.msra.mxu0 0
    %8679 = vmatprep.subr.bf16.mxu0 0
    %8680 = vmatpush2.bf16.msra.mxu0 0
    %8681 = vmatprep.subr.bf16.mxu0 0
    %8682 = vmatpush2.bf16.msra.mxu0 0
    %8683 = vmatprep.subr.bf16.mxu0 0
    %8684 = vmatpush2.bf16.msra.mxu0 0
    %8685 = vmatprep.subr.bf16.mxu0 0
    %8686 = vmatpush2.bf16.msra.mxu0 0
    %8687 = vmatprep.subr.bf16.mxu0 0
    %8688 = vmatpush2.bf16.msra.mxu0 0
    %8689 = vmatprep.subr.bf16.mxu0 0
    %8690 = vmatpush2.bf16.msra.mxu0 0
    %8691 = vmatprep.mubr.bf16.mxu0 0
    %8692 = vmatmul.mubr.bf16.gmra.mxu0 %v8651
    %v8693 = vpop.f32.mrf.mxu0
    %v8694 = vadd.f32 0.0, %v8693
    %v8695 = vpop.f32.mrf.mxu0
    %v8696 = vpop.f32.mrf.mxu0
    %v8697 = vadd.f32 0.0, %v8696
    %v8698 = vpop.f32.mrf.mxu0
    %8699 = vmatprep.mubr.bf16.mxu0 0
    %8700 = vmatmul.mubr.bf16.gmra.mxu0 %v8654
    %v8701 = vpop.f32.mrf.mxu0
    %v8702 = vadd.f32 0.0, %v8701
    %v8703 = vpop.f32.mrf.mxu0
    %v8704 = vpop.f32.mrf.mxu0
    %v8705 = vadd.f32 0.0, %v8704
    %v8706 = vpop.f32.mrf.mxu0
    %8707 = vdwg.mxu0
    %v8708 = vadd.f32 %v8498, %v8694
    %v8709 = vadd.f32 %v8499, %v8697
    %v8710 = vadd.f32 %v8500, %v8702
    %v8711 = vadd.f32 %v8501, %v8705
    %v8712 = vld [vmem:[%s2197] sm:$0x3]
    %v8713 = vld [vmem:[%s2197 + $0x8] sm:$0x3]
    %v8714 = vld [vmem:[%s2197 + $0x10] sm:$0x3]
    %v8715 = vld [vmem:[%s2197 + $0x18] sm:$0x3]
    %v8716 = vld [vmem:[%s2197 + $0x50] sm:$0x3]
    %v8717 = vld [vmem:[%s2197 + $0x58] sm:$0x3]
    %v8718 = vld [vmem:[%s2197 + $0x60] sm:$0x3]
    %v8719 = vld [vmem:[%s2197 + $0x68] sm:$0x3]
    %s8720 = scalar_lea.vmem %s7, 24
    %v8721 = vld [vmem:[%s8720] sm:$0xf]
    %v8730 = vcombine.low %v8712, %v8713
    %v8731 = vcombine.low %v8714, %v8715
    %v8733 = vunpack.c.l.s4 1983009808
    %v8734 = vunpack.c.0.s8 %v8733
    %v8735 = vlaneseq
    %v8736 = vshrl.u32 %v8735, 7
    %v8737 = vsub.s32 %v8734, %v8736
    %v8738 = vrot.slane %v8730, %v8737
    %v8740 = vunpack.c.l.s4 1983009808
    %v8741 = vunpack.c.0.s8 %v8740
    %v8742 = vlaneseq
    %v8743 = vshrl.u32 %v8742, 7
    %v8744 = vsub.s32 %v8741, %v8743
    %v8745 = vrot.slane %v8731, %v8744
    %v8746 = vcombine.low %v8738, %v8745
    %v8747 = vcombine.low %v8716, %v8717
    %v8748 = vcombine.low %v8718, %v8719
    %v8750 = vunpack.c.l.s4 1983009808
    %v8751 = vunpack.c.0.s8 %v8750
    %v8752 = vlaneseq
    %v8753 = vshrl.u32 %v8752, 7
    %v8754 = vsub.s32 %v8751, %v8753
    %v8755 = vrot.slane %v8747, %v8754
    %v8757 = vunpack.c.l.s4 1983009808
    %v8758 = vunpack.c.0.s8 %v8757
    %v8759 = vlaneseq
    %v8760 = vshrl.u32 %v8759, 7
    %v8761 = vsub.s32 %v8758, %v8760
    %v8762 = vrot.slane %v8748, %v8761
    %v8763 = vcombine.low %v8755, %v8762
    %v8765 = vsel %vm3096, %v8746, 0
    %v8768 = vsel %vm3096, %v8763, 0
    %v8771 = vsel %vm4008, %v8721, 0
    %8773 = vmatprep.subr.bf16.mxu0 0
    %8774 = vmatpush1.bf16.msra.mxu0 0
    %8775 = vmatprep.subr.bf16.mxu0 0
    %8776 = vmatpush1.bf16.msra.mxu0 0
    %8777 = vmatprep.subr.bf16.mxu0 0
    %8778 = vmatpush1.bf16.msra.mxu0 0
    %8779 = vmatprep.subr.bf16.mxu0 0
    %8780 = vmatpush1.bf16.msra.mxu0 0
    %8781 = vmatprep.subr.bf16.mxu0 0
    %8782 = vmatpush1.bf16.msra.mxu0 0
    %8783 = vmatprep.subr.bf16.mxu0 0
    %8784 = vmatpush1.bf16.msra.mxu0 0
    %8785 = vmatprep.subr.bf16.mxu0 0
    %8786 = vmatpush1.bf16.msra.mxu0 0
    %8787 = vmatprep.subr.bf16.mxu0 0
    %8788 = vmatpush1.bf16.msra.mxu0 %v8771
    %8789 = vmatprep.subr.bf16.mxu0 0
    %8790 = vmatpush2.bf16.msra.mxu0 0
    %8791 = vmatprep.subr.bf16.mxu0 0
    %8792 = vmatpush2.bf16.msra.mxu0 0
    %8793 = vmatprep.subr.bf16.mxu0 0
    %8794 = vmatpush2.bf16.msra.mxu0 0
    %8795 = vmatprep.subr.bf16.mxu0 0
    %8796 = vmatpush2.bf16.msra.mxu0 0
    %8797 = vmatprep.subr.bf16.mxu0 0
    %8798 = vmatpush2.bf16.msra.mxu0 0
    %8799 = vmatprep.subr.bf16.mxu0 0
    %8800 = vmatpush2.bf16.msra.mxu0 0
    %8801 = vmatprep.subr.bf16.mxu0 0
    %8802 = vmatpush2.bf16.msra.mxu0 0
    %8803 = vmatprep.subr.bf16.mxu0 0
    %8804 = vmatpush2.bf16.msra.mxu0 0
    %8805 = vmatprep.mubr.bf16.mxu0 0
    %8806 = vmatmul.mubr.bf16.gmra.mxu0 %v8765
    %v8807 = vpop.f32.mrf.mxu0
    %v8808 = vadd.f32 0.0, %v8807
    %v8809 = vpop.f32.mrf.mxu0
    %v8810 = vpop.f32.mrf.mxu0
    %v8811 = vadd.f32 0.0, %v8810
    %v8812 = vpop.f32.mrf.mxu0
    %8813 = vmatprep.mubr.bf16.mxu0 0
    %8814 = vmatmul.mubr.bf16.gmra.mxu0 %v8768
    %v8815 = vpop.f32.mrf.mxu0
    %v8816 = vadd.f32 0.0, %v8815
    %v8817 = vpop.f32.mrf.mxu0
    %v8818 = vpop.f32.mrf.mxu0
    %v8819 = vadd.f32 0.0, %v8818
    %v8820 = vpop.f32.mrf.mxu0
    %8821 = vdwg.mxu0
    %v8822 = vadd.f32 %v8708, %v8808
    %v8823 = vadd.f32 %v8709, %v8811
    %v8824 = vadd.f32 %v8710, %v8816
    %v8825 = vadd.f32 %v8711, %v8819
    %v8826 = vld [vmem:[%s2197] sm:$0x7]
    %v8827 = vld [vmem:[%s2197 + $0x8] sm:$0x7]
    %v8828 = vld [vmem:[%s2197 + $0x10] sm:$0x7]
    %v8829 = vld [vmem:[%s2197 + $0x18] sm:$0x7]
    %v8830 = vld [vmem:[%s2197 + $0x50] sm:$0x7]
    %v8831 = vld [vmem:[%s2197 + $0x58] sm:$0x7]
    %v8832 = vld [vmem:[%s2197 + $0x60] sm:$0x7]
    %v8833 = vld [vmem:[%s2197 + $0x68] sm:$0x7]
    %v8843 = vunpack.c.l.s4 1983009808
    %v8844 = vunpack.c.0.s8 %v8843
    %v8845 = vlaneseq
    %v8846 = vshrl.u32 %v8845, 7
    %v8847 = vsub.s32 %v8844, %v8846
    %v8848 = vrot.slane %v8826, %v8847
    %v8849 = vcombine.high %v8848, %v8848
    %v8851 = vunpack.c.l.s4 1983009808
    %v8852 = vunpack.c.0.s8 %v8851
    %v8853 = vlaneseq
    %v8854 = vshrl.u32 %v8853, 7
    %v8855 = vsub.s32 %v8852, %v8854
    %v8856 = vrot.slane %v8827, %v8855
    %v8857 = vcombine.high %v8856, %v8856
    %v8859 = vunpack.c.l.s4 1983009808
    %v8860 = vunpack.c.0.s8 %v8859
    %v8861 = vlaneseq
    %v8862 = vshrl.u32 %v8861, 7
    %v8863 = vsub.s32 %v8860, %v8862
    %v8864 = vrot.slane %v8828, %v8863
    %v8865 = vcombine.high %v8864, %v8864
    %v8867 = vunpack.c.l.s4 1983009808
    %v8868 = vunpack.c.0.s8 %v8867
    %v8869 = vlaneseq
    %v8870 = vshrl.u32 %v8869, 7
    %v8871 = vsub.s32 %v8868, %v8870
    %v8872 = vrot.slane %v8829, %v8871
    %v8873 = vcombine.high %v8872, %v8872
    %v8875 = vunpack.c.l.s4 1983009808
    %v8876 = vunpack.c.0.s8 %v8875
    %v8877 = vlaneseq
    %v8878 = vshrl.u32 %v8877, 7
    %v8879 = vsub.s32 %v8876, %v8878
    %v8880 = vrot.slane %v8830, %v8879
    %v8881 = vcombine.high %v8880, %v8880
    %v8883 = vunpack.c.l.s4 1983009808
    %v8884 = vunpack.c.0.s8 %v8883
    %v8885 = vlaneseq
    %v8886 = vshrl.u32 %v8885, 7
    %v8887 = vsub.s32 %v8884, %v8886
    %v8888 = vrot.slane %v8831, %v8887
    %v8889 = vcombine.high %v8888, %v8888
    %v8891 = vunpack.c.l.s4 1983009808
    %v8892 = vunpack.c.0.s8 %v8891
    %v8893 = vlaneseq
    %v8894 = vshrl.u32 %v8893, 7
    %v8895 = vsub.s32 %v8892, %v8894
    %v8896 = vrot.slane %v8832, %v8895
    %v8897 = vcombine.high %v8896, %v8896
    %v8899 = vunpack.c.l.s4 1983009808
    %v8900 = vunpack.c.0.s8 %v8899
    %v8901 = vlaneseq
    %v8902 = vshrl.u32 %v8901, 7
    %v8903 = vsub.s32 %v8900, %v8902
    %v8904 = vrot.slane %v8833, %v8903
    %v8905 = vcombine.high %v8904, %v8904
    %v8907 = vshrl.u32 %v8848, 16
    %v8909 = vrot.slane %v8907, 6
    %v8910 = vshll.u32 %v8848, 16
    %v8912 = vrot.slane %v8910, 7
    %v8913 = vor.u32 %v8909, %v8912
    %v8914 = vrot.slane %v8913, 2
    %v8916 = vshll.u32 %v8849, 16
    %v8918 = vrot.slane %v8916, 7
    %v8919 = vsel %vm7574, %v8914, %v8918
    %v8921 = vshrl.u32 %v8856, 16
    %v8923 = vrot.slane %v8921, 6
    %v8924 = vshll.u32 %v8856, 16
    %v8926 = vrot.slane %v8924, 7
    %v8927 = vor.u32 %v8923, %v8926
    %v8928 = vrot.slane %v8927, 2
    %v8930 = vshll.u32 %v8857, 16
    %v8932 = vrot.slane %v8930, 7
    %v8933 = vsel %vm7574, %v8928, %v8932
    %v8935 = vshrl.u32 %v8864, 16
    %v8937 = vrot.slane %v8935, 6
    %v8938 = vshll.u32 %v8864, 16
    %v8940 = vrot.slane %v8938, 7
    %v8941 = vor.u32 %v8937, %v8940
    %v8942 = vrot.slane %v8941, 2
    %v8944 = vshll.u32 %v8865, 16
    %v8946 = vrot.slane %v8944, 7
    %v8947 = vsel %vm7574, %v8942, %v8946
    %v8949 = vshrl.u32 %v8872, 16
    %v8951 = vrot.slane %v8949, 6
    %v8952 = vshll.u32 %v8872, 16
    %v8954 = vrot.slane %v8952, 7
    %v8955 = vor.u32 %v8951, %v8954
    %v8956 = vrot.slane %v8955, 2
    %v8958 = vshll.u32 %v8873, 16
    %v8960 = vrot.slane %v8958, 7
    %v8961 = vsel %vm7574, %v8956, %v8960
    %v8963 = vshrl.u32 %v8880, 16
    %v8965 = vrot.slane %v8963, 6
    %v8966 = vshll.u32 %v8880, 16
    %v8968 = vrot.slane %v8966, 7
    %v8969 = vor.u32 %v8965, %v8968
    %v8970 = vrot.slane %v8969, 2
    %v8972 = vshll.u32 %v8881, 16
    %v8974 = vrot.slane %v8972, 7
    %v8975 = vsel %vm7574, %v8970, %v8974
    %v8977 = vshrl.u32 %v8888, 16
    %v8979 = vrot.slane %v8977, 6
    %v8980 = vshll.u32 %v8888, 16
    %v8982 = vrot.slane %v8980, 7
    %v8983 = vor.u32 %v8979, %v8982
    %v8984 = vrot.slane %v8983, 2
    %v8986 = vshll.u32 %v8889, 16
    %v8988 = vrot.slane %v8986, 7
    %v8989 = vsel %vm7574, %v8984, %v8988
    %v8991 = vshrl.u32 %v8896, 16
    %v8993 = vrot.slane %v8991, 6
    %v8994 = vshll.u32 %v8896, 16
    %v8996 = vrot.slane %v8994, 7
    %v8997 = vor.u32 %v8993, %v8996
    %v8998 = vrot.slane %v8997, 2
    %v9000 = vshll.u32 %v8897, 16
    %v9002 = vrot.slane %v9000, 7
    %v9003 = vsel %vm7574, %v8998, %v9002
    %v9005 = vshrl.u32 %v8904, 16
    %v9007 = vrot.slane %v9005, 6
    %v9008 = vshll.u32 %v8904, 16
    %v9010 = vrot.slane %v9008, 7
    %v9011 = vor.u32 %v9007, %v9010
    %v9012 = vrot.slane %v9011, 2
    %v9014 = vshll.u32 %v8905, 16
    %v9016 = vrot.slane %v9014, 7
    %v9017 = vsel %vm7574, %v9012, %v9016
    %s9018 = scalar_lea.vmem %s7, 28
    %v9019 = vld [vmem:[%s9018] sm:$0xf]
    %v9020 = vcombine.low %v8919, %v8933
    %v9021 = vcombine.low %v8947, %v8961
    %v9023 = vunpack.c.l.s4 1983009808
    %v9024 = vunpack.c.0.s8 %v9023
    %v9025 = vlaneseq
    %v9026 = vshrl.u32 %v9025, 7
    %v9027 = vsub.s32 %v9024, %v9026
    %v9028 = vrot.slane %v9020, %v9027
    %v9030 = vunpack.c.l.s4 1983009808
    %v9031 = vunpack.c.0.s8 %v9030
    %v9032 = vlaneseq
    %v9033 = vshrl.u32 %v9032, 7
    %v9034 = vsub.s32 %v9031, %v9033
    %v9035 = vrot.slane %v9021, %v9034
    %v9036 = vcombine.low %v9028, %v9035
    %v9037 = vcombine.low %v8975, %v8989
    %v9038 = vcombine.low %v9003, %v9017
    %v9040 = vunpack.c.l.s4 1983009808
    %v9041 = vunpack.c.0.s8 %v9040
    %v9042 = vlaneseq
    %v9043 = vshrl.u32 %v9042, 7
    %v9044 = vsub.s32 %v9041, %v9043
    %v9045 = vrot.slane %v9037, %v9044
    %v9047 = vunpack.c.l.s4 1983009808
    %v9048 = vunpack.c.0.s8 %v9047
    %v9049 = vlaneseq
    %v9050 = vshrl.u32 %v9049, 7
    %v9051 = vsub.s32 %v9048, %v9050
    %v9052 = vrot.slane %v9038, %v9051
    %v9053 = vcombine.low %v9045, %v9052
    %v9055 = vsel %vm3096, %v9036, 0
    %v9058 = vsel %vm3096, %v9053, 0
    %v9061 = vsel %vm4008, %v9019, 0
    %9063 = vmatprep.subr.bf16.mxu0 0
    %9064 = vmatpush1.bf16.msra.mxu0 0
    %9065 = vmatprep.subr.bf16.mxu0 0
    %9066 = vmatpush1.bf16.msra.mxu0 0
    %9067 = vmatprep.subr.bf16.mxu0 0
    %9068 = vmatpush1.bf16.msra.mxu0 0
    %9069 = vmatprep.subr.bf16.mxu0 0
    %9070 = vmatpush1.bf16.msra.mxu0 0
    %9071 = vmatprep.subr.bf16.mxu0 0
    %9072 = vmatpush1.bf16.msra.mxu0 0
    %9073 = vmatprep.subr.bf16.mxu0 0
    %9074 = vmatpush1.bf16.msra.mxu0 0
    %9075 = vmatprep.subr.bf16.mxu0 0
    %9076 = vmatpush1.bf16.msra.mxu0 0
    %9077 = vmatprep.subr.bf16.mxu0 0
    %9078 = vmatpush1.bf16.msra.mxu0 %v9061
    %9079 = vmatprep.subr.bf16.mxu0 0
    %9080 = vmatpush2.bf16.msra.mxu0 0
    %9081 = vmatprep.subr.bf16.mxu0 0
    %9082 = vmatpush2.bf16.msra.mxu0 0
    %9083 = vmatprep.subr.bf16.mxu0 0
    %9084 = vmatpush2.bf16.msra.mxu0 0
    %9085 = vmatprep.subr.bf16.mxu0 0
    %9086 = vmatpush2.bf16.msra.mxu0 0
    %9087 = vmatprep.subr.bf16.mxu0 0
    %9088 = vmatpush2.bf16.msra.mxu0 0
    %9089 = vmatprep.subr.bf16.mxu0 0
    %9090 = vmatpush2.bf16.msra.mxu0 0
    %9091 = vmatprep.subr.bf16.mxu0 0
    %9092 = vmatpush2.bf16.msra.mxu0 0
    %9093 = vmatprep.subr.bf16.mxu0 0
    %9094 = vmatpush2.bf16.msra.mxu0 0
    %9095 = vmatprep.mubr.bf16.mxu0 0
    %9096 = vmatmul.mubr.bf16.gmra.mxu0 %v9055
    %v9097 = vpop.f32.mrf.mxu0
    %v9098 = vadd.f32 0.0, %v9097
    %v9099 = vpop.f32.mrf.mxu0
    %v9100 = vpop.f32.mrf.mxu0
    %v9101 = vadd.f32 0.0, %v9100
    %v9102 = vpop.f32.mrf.mxu0
    %9103 = vmatprep.mubr.bf16.mxu0 0
    %9104 = vmatmul.mubr.bf16.gmra.mxu0 %v9058
    %v9105 = vpop.f32.mrf.mxu0
    %v9106 = vadd.f32 0.0, %v9105
    %v9107 = vpop.f32.mrf.mxu0
    %v9108 = vpop.f32.mrf.mxu0
    %v9109 = vadd.f32 0.0, %v9108
    %v9110 = vpop.f32.mrf.mxu0
    %9111 = vdwg.mxu0
    %v9112 = vadd.f32 %v8822, %v9098
    %v9113 = vadd.f32 %v8823, %v9101
    %v9114 = vadd.f32 %v8824, %v9106
    %v9115 = vadd.f32 %v8825, %v9109
    %v9116 = vld [vmem:[%s2197] sm:$0x6]
    %v9117 = vld [vmem:[%s2197 + $0x8] sm:$0x6]
    %v9118 = vld [vmem:[%s2197 + $0x10] sm:$0x6]
    %v9119 = vld [vmem:[%s2197 + $0x18] sm:$0x6]
    %v9120 = vld [vmem:[%s2197 + $0x50] sm:$0x6]
    %v9121 = vld [vmem:[%s2197 + $0x58] sm:$0x6]
    %v9122 = vld [vmem:[%s2197 + $0x60] sm:$0x6]
    %v9123 = vld [vmem:[%s2197 + $0x68] sm:$0x6]
    %v9133 = vunpack.c.l.s4 1983009808
    %v9134 = vunpack.c.0.s8 %v9133
    %v9135 = vlaneseq
    %v9136 = vshrl.u32 %v9135, 7
    %v9137 = vsub.s32 %v9134, %v9136
    %v9138 = vrot.slane %v9116, %v9137
    %v9139 = vcombine.high %v9138, %v9138
    %v9141 = vunpack.c.l.s4 1983009808
    %v9142 = vunpack.c.0.s8 %v9141
    %v9143 = vlaneseq
    %v9144 = vshrl.u32 %v9143, 7
    %v9145 = vsub.s32 %v9142, %v9144
    %v9146 = vrot.slane %v9117, %v9145
    %v9147 = vcombine.high %v9146, %v9146
    %v9149 = vunpack.c.l.s4 1983009808
    %v9150 = vunpack.c.0.s8 %v9149
    %v9151 = vlaneseq
    %v9152 = vshrl.u32 %v9151, 7
    %v9153 = vsub.s32 %v9150, %v9152
    %v9154 = vrot.slane %v9118, %v9153
    %v9155 = vcombine.high %v9154, %v9154
    %v9157 = vunpack.c.l.s4 1983009808
    %v9158 = vunpack.c.0.s8 %v9157
    %v9159 = vlaneseq
    %v9160 = vshrl.u32 %v9159, 7
    %v9161 = vsub.s32 %v9158, %v9160
    %v9162 = vrot.slane %v9119, %v9161
    %v9163 = vcombine.high %v9162, %v9162
    %v9165 = vunpack.c.l.s4 1983009808
    %v9166 = vunpack.c.0.s8 %v9165
    %v9167 = vlaneseq
    %v9168 = vshrl.u32 %v9167, 7
    %v9169 = vsub.s32 %v9166, %v9168
    %v9170 = vrot.slane %v9120, %v9169
    %v9171 = vcombine.high %v9170, %v9170
    %v9173 = vunpack.c.l.s4 1983009808
    %v9174 = vunpack.c.0.s8 %v9173
    %v9175 = vlaneseq
    %v9176 = vshrl.u32 %v9175, 7
    %v9177 = vsub.s32 %v9174, %v9176
    %v9178 = vrot.slane %v9121, %v9177
    %v9179 = vcombine.high %v9178, %v9178
    %v9181 = vunpack.c.l.s4 1983009808
    %v9182 = vunpack.c.0.s8 %v9181
    %v9183 = vlaneseq
    %v9184 = vshrl.u32 %v9183, 7
    %v9185 = vsub.s32 %v9182, %v9184
    %v9186 = vrot.slane %v9122, %v9185
    %v9187 = vcombine.high %v9186, %v9186
    %v9189 = vunpack.c.l.s4 1983009808
    %v9190 = vunpack.c.0.s8 %v9189
    %v9191 = vlaneseq
    %v9192 = vshrl.u32 %v9191, 7
    %v9193 = vsub.s32 %v9190, %v9192
    %v9194 = vrot.slane %v9123, %v9193
    %v9195 = vcombine.high %v9194, %v9194
    %v9196 = vrot.slane %v9138, 7
    %v9197 = vrot.slane %v9196, 2
    %v9198 = vrot.slane %v9139, 7
    %v9199 = vsel %vm7967, %v9197, %v9198
    %v9200 = vrot.slane %v9146, 7
    %v9201 = vrot.slane %v9200, 2
    %v9202 = vrot.slane %v9147, 7
    %v9203 = vsel %vm7967, %v9201, %v9202
    %v9204 = vrot.slane %v9154, 7
    %v9205 = vrot.slane %v9204, 2
    %v9206 = vrot.slane %v9155, 7
    %v9207 = vsel %vm7967, %v9205, %v9206
    %v9208 = vrot.slane %v9162, 7
    %v9209 = vrot.slane %v9208, 2
    %v9210 = vrot.slane %v9163, 7
    %v9211 = vsel %vm7967, %v9209, %v9210
    %v9212 = vrot.slane %v9170, 7
    %v9213 = vrot.slane %v9212, 2
    %v9214 = vrot.slane %v9171, 7
    %v9215 = vsel %vm7967, %v9213, %v9214
    %v9216 = vrot.slane %v9178, 7
    %v9217 = vrot.slane %v9216, 2
    %v9218 = vrot.slane %v9179, 7
    %v9219 = vsel %vm7967, %v9217, %v9218
    %v9220 = vrot.slane %v9186, 7
    %v9221 = vrot.slane %v9220, 2
    %v9222 = vrot.slane %v9187, 7
    %v9223 = vsel %vm7967, %v9221, %v9222
    %v9224 = vrot.slane %v9194, 7
    %v9225 = vrot.slane %v9224, 2
    %v9226 = vrot.slane %v9195, 7
    %v9227 = vsel %vm7967, %v9225, %v9226
    %s9228 = scalar_lea.vmem %s7, 32
    %v9229 = vld [vmem:[%s9228] sm:$0xf]
    %v9230 = vcombine.low %v9199, %v9203
    %v9231 = vcombine.low %v9207, %v9211
    %v9233 = vunpack.c.l.s4 1983009808
    %v9234 = vunpack.c.0.s8 %v9233
    %v9235 = vlaneseq
    %v9236 = vshrl.u32 %v9235, 7
    %v9237 = vsub.s32 %v9234, %v9236
    %v9238 = vrot.slane %v9230, %v9237
    %v9240 = vunpack.c.l.s4 1983009808
    %v9241 = vunpack.c.0.s8 %v9240
    %v9242 = vlaneseq
    %v9243 = vshrl.u32 %v9242, 7
    %v9244 = vsub.s32 %v9241, %v9243
    %v9245 = vrot.slane %v9231, %v9244
    %v9246 = vcombine.low %v9238, %v9245
    %v9247 = vcombine.low %v9215, %v9219
    %v9248 = vcombine.low %v9223, %v9227
    %v9250 = vunpack.c.l.s4 1983009808
    %v9251 = vunpack.c.0.s8 %v9250
    %v9252 = vlaneseq
    %v9253 = vshrl.u32 %v9252, 7
    %v9254 = vsub.s32 %v9251, %v9253
    %v9255 = vrot.slane %v9247, %v9254
    %v9257 = vunpack.c.l.s4 1983009808
    %v9258 = vunpack.c.0.s8 %v9257
    %v9259 = vlaneseq
    %v9260 = vshrl.u32 %v9259, 7
    %v9261 = vsub.s32 %v9258, %v9260
    %v9262 = vrot.slane %v9248, %v9261
    %v9263 = vcombine.low %v9255, %v9262
    %v9265 = vsel %vm3096, %v9246, 0
    %v9268 = vsel %vm3096, %v9263, 0
    %v9271 = vsel %vm4008, %v9229, 0
    %9273 = vmatprep.subr.bf16.mxu0 0
    %9274 = vmatpush1.bf16.msra.mxu0 0
    %9275 = vmatprep.subr.bf16.mxu0 0
    %9276 = vmatpush1.bf16.msra.mxu0 0
    %9277 = vmatprep.subr.bf16.mxu0 0
    %9278 = vmatpush1.bf16.msra.mxu0 0
    %9279 = vmatprep.subr.bf16.mxu0 0
    %9280 = vmatpush1.bf16.msra.mxu0 0
    %9281 = vmatprep.subr.bf16.mxu0 0
    %9282 = vmatpush1.bf16.msra.mxu0 0
    %9283 = vmatprep.subr.bf16.mxu0 0
    %9284 = vmatpush1.bf16.msra.mxu0 0
    %9285 = vmatprep.subr.bf16.mxu0 0
    %9286 = vmatpush1.bf16.msra.mxu0 0
    %9287 = vmatprep.subr.bf16.mxu0 0
    %9288 = vmatpush1.bf16.msra.mxu0 %v9271
    %9289 = vmatprep.subr.bf16.mxu0 0
    %9290 = vmatpush2.bf16.msra.mxu0 0
    %9291 = vmatprep.subr.bf16.mxu0 0
    %9292 = vmatpush2.bf16.msra.mxu0 0
    %9293 = vmatprep.subr.bf16.mxu0 0
    %9294 = vmatpush2.bf16.msra.mxu0 0
    %9295 = vmatprep.subr.bf16.mxu0 0
    %9296 = vmatpush2.bf16.msra.mxu0 0
    %9297 = vmatprep.subr.bf16.mxu0 0
    %9298 = vmatpush2.bf16.msra.mxu0 0
    %9299 = vmatprep.subr.bf16.mxu0 0
    %9300 = vmatpush2.bf16.msra.mxu0 0
    %9301 = vmatprep.subr.bf16.mxu0 0
    %9302 = vmatpush2.bf16.msra.mxu0 0
    %9303 = vmatprep.subr.bf16.mxu0 0
    %9304 = vmatpush2.bf16.msra.mxu0 0
    %9305 = vmatprep.mubr.bf16.mxu0 0
    %9306 = vmatmul.mubr.bf16.gmra.mxu0 %v9265
    %v9307 = vpop.f32.mrf.mxu0
    %v9308 = vadd.f32 0.0, %v9307
    %v9309 = vpop.f32.mrf.mxu0
    %v9310 = vpop.f32.mrf.mxu0
    %v9311 = vadd.f32 0.0, %v9310
    %v9312 = vpop.f32.mrf.mxu0
    %9313 = vmatprep.mubr.bf16.mxu0 0
    %9314 = vmatmul.mubr.bf16.gmra.mxu0 %v9268
    %v9315 = vpop.f32.mrf.mxu0
    %v9316 = vadd.f32 0.0, %v9315
    %v9317 = vpop.f32.mrf.mxu0
    %v9318 = vpop.f32.mrf.mxu0
    %v9319 = vadd.f32 0.0, %v9318
    %v9320 = vpop.f32.mrf.mxu0
    %9321 = vdwg.mxu0
    %v9322 = vadd.f32 %v9112, %v9308
    %v9323 = vadd.f32 %v9113, %v9311
    %v9324 = vadd.f32 %v9114, %v9316
    %v9325 = vadd.f32 %v9115, %v9319
    %vm9326 = vcmask 130048
    %v9327 = vsel %vm9326, %v9322, 0.0
    %v9328 = vsel %vm9326, %v9323, 0.0
    %v9329 = vadd.f32 %v9327, %v9328
    %v9330 = vsel %vm9326, %v9324, 0.0
    %v9331 = vadd.f32 %v9329, %v9330
    %v9332 = vsel %vm9326, %v9325, 0.0
    %v9333 = vadd.f32 %v9331, %v9332
    %v9334 = vrot.slane %v9333, 4
    %v9335 = vadd.f32 %v9333, %v9334
    %v9336 = vrot.slane %v9335, 2
    %v9337 = vadd.f32 %v9335, %v9336
    %v9338 = vrot.slane %v9337, 1
    %v9339 = vadd.f32 %v9337, %v9338
    %v9340 = vmul.f32 %v9339, 0.03125
    %v9341 = vsub.f32 %v9322, %v9340
    %v9342 = vsub.f32 %v9323, %v9340
    %v9343 = vsub.f32 %v9324, %v9340
    %v9344 = vsub.f32 %v9325, %v9340
    %v9345 = vmul.f32 %v9341, %v9341
    %v9346 = vmul.f32 %v9342, %v9342
    %v9347 = vmul.f32 %v9343, %v9343
    %v9348 = vmul.f32 %v9344, %v9344
    %v9349 = vsel %vm9326, %v9345, 0.0
    %v9350 = vsel %vm9326, %v9346, 0.0
    %v9351 = vadd.f32 %v9349, %v9350
    %v9352 = vsel %vm9326, %v9347, 0.0
    %v9353 = vadd.f32 %v9351, %v9352
    %v9354 = vsel %vm9326, %v9348, 0.0
    %v9355 = vadd.f32 %v9353, %v9354
    %v9356 = vrot.slane %v9355, 4
    %v9357 = vadd.f32 %v9355, %v9356
    %v9358 = vrot.slane %v9357, 2
    %v9359 = vadd.f32 %v9357, %v9358
    %v9360 = vrot.slane %v9359, 1
    %v9361 = vadd.f32 %v9359, %v9360
    %v9362 = vmul.f32 %v9361, 0.03125
    %v9363 = vld [vmem:[%s8] sm:$0x1]
    %v9364 = vadd.f32 %v9362, 1e-05
    %v9365 = vrsqrt.pop %v9364
    %v9366 = vmul.f32 %v9363, %v9365
    %v9368 = vlaneseq
    %v9369 = vshrl.u32 %v9368, 7
    %v9370 = vsub.s32 0, %v9369
    %v9371 = vrot.slane %v9366, %v9370
    %v9373 = vmul.f32 %v9341, %v9371
    %v9374 = vmul.f32 %v9342, %v9371
    %v9375 = vmul.f32 %v9343, %v9371
    %v9376 = vmul.f32 %v9344, %v9371
    %v9377 = vld [vmem:[%s9] sm:$0x1]
    %v9379 = vlaneseq
    %v9380 = vshrl.u32 %v9379, 7
    %v9381 = vsub.s32 0, %v9380
    %v9382 = vrot.slane %v9377, %v9381
    %v9384 = vadd.f32 %v9373, %v9382
    %v9385 = vadd.f32 %v9374, %v9382
    %v9386 = vadd.f32 %v9375, %v9382
    %v9387 = vadd.f32 %v9376, %v9382
    %v9388 = vmax.f32 %v9384, 0.0
    %v9389 = vmax.f32 %v9385, 0.0
    %v9390 = vmax.f32 %v9386, 0.0
    %v9391 = vmax.f32 %v9387, 0.0
    %v9396 = vcombine.high %v9388, %v9388
    %v9398 = vunpack.c.l.s4 1983009808
    %v9399 = vunpack.c.0.s8 %v9398
    %v9400 = vlaneseq
    %v9401 = vshrl.u32 %v9400, 7
    %v9402 = vsub.s32 %v9399, %v9401
    %v9403 = vrot.slane %v9388, %v9402
    %v9405 = vunpack.c.l.s4 1983009808
    %v9406 = vunpack.c.0.s8 %v9405
    %v9407 = vlaneseq
    %v9408 = vshrl.u32 %v9407, 7
    %v9409 = vsub.s32 %v9406, %v9408
    %v9410 = vrot.slane %v9396, %v9409
    %v9411 = vcombine.high %v9403, %v9403
    %v9412 = vcombine.high %v9410, %v9410
    %v9413 = vcombine.high %v9389, %v9389
    %v9415 = vunpack.c.l.s4 1983009808
    %v9416 = vunpack.c.0.s8 %v9415
    %v9417 = vlaneseq
    %v9418 = vshrl.u32 %v9417, 7
    %v9419 = vsub.s32 %v9416, %v9418
    %v9420 = vrot.slane %v9389, %v9419
    %v9422 = vunpack.c.l.s4 1983009808
    %v9423 = vunpack.c.0.s8 %v9422
    %v9424 = vlaneseq
    %v9425 = vshrl.u32 %v9424, 7
    %v9426 = vsub.s32 %v9423, %v9425
    %v9427 = vrot.slane %v9413, %v9426
    %v9428 = vcombine.high %v9420, %v9420
    %v9429 = vcombine.high %v9427, %v9427
    %v9430 = vcombine.high %v9390, %v9390
    %v9432 = vunpack.c.l.s4 1983009808
    %v9433 = vunpack.c.0.s8 %v9432
    %v9434 = vlaneseq
    %v9435 = vshrl.u32 %v9434, 7
    %v9436 = vsub.s32 %v9433, %v9435
    %v9437 = vrot.slane %v9390, %v9436
    %v9439 = vunpack.c.l.s4 1983009808
    %v9440 = vunpack.c.0.s8 %v9439
    %v9441 = vlaneseq
    %v9442 = vshrl.u32 %v9441, 7
    %v9443 = vsub.s32 %v9440, %v9442
    %v9444 = vrot.slane %v9430, %v9443
    %v9445 = vcombine.high %v9437, %v9437
    %v9446 = vcombine.high %v9444, %v9444
    %v9447 = vcombine.high %v9391, %v9391
    %v9449 = vunpack.c.l.s4 1983009808
    %v9450 = vunpack.c.0.s8 %v9449
    %v9451 = vlaneseq
    %v9452 = vshrl.u32 %v9451, 7
    %v9453 = vsub.s32 %v9450, %v9452
    %v9454 = vrot.slane %v9391, %v9453
    %v9456 = vunpack.c.l.s4 1983009808
    %v9457 = vunpack.c.0.s8 %v9456
    %v9458 = vlaneseq
    %v9459 = vshrl.u32 %v9458, 7
    %v9460 = vsub.s32 %v9457, %v9459
    %v9461 = vrot.slane %v9447, %v9460
    %v9462 = vcombine.high %v9454, %v9454
    %v9463 = vcombine.high %v9461, %v9461
    %v9480 = vrot.slane %v9403, 7
    %v9481 = vrot.slane %v9480, 2
    %v9482 = vrot.slane %v9411, 7
    %v9483 = vrot.slane %v9482, 2
    %v9484 = vrot.slane %v9410, 7
    %v9485 = vrot.slane %v9484, 2
    %v9486 = vrot.slane %v9412, 7
    %v9487 = vrot.slane %v9486, 2
    %v9488 = vrot.slane %v9420, 7
    %v9489 = vrot.slane %v9488, 2
    %v9490 = vrot.slane %v9428, 7
    %v9491 = vrot.slane %v9490, 2
    %v9492 = vrot.slane %v9427, 7
    %v9493 = vrot.slane %v9492, 2
    %v9494 = vrot.slane %v9429, 7
    %v9495 = vrot.slane %v9494, 2
    %v9496 = vrot.slane %v9437, 7
    %v9497 = vrot.slane %v9496, 2
    %v9498 = vrot.slane %v9445, 7
    %v9499 = vrot.slane %v9498, 2
    %v9500 = vrot.slane %v9444, 7
    %v9501 = vrot.slane %v9500, 2
    %v9502 = vrot.slane %v9446, 7
    %v9503 = vrot.slane %v9502, 2
    %v9504 = vrot.slane %v9454, 7
    %v9505 = vrot.slane %v9504, 2
    %v9506 = vrot.slane %v9462, 7
    %v9507 = vrot.slane %v9506, 2
    %v9508 = vrot.slane %v9461, 7
    %v9509 = vrot.slane %v9508, 2
    %v9510 = vrot.slane %v9463, 7
    %v9511 = vrot.slane %v9510, 2
    %v9528 = vmax.f32 %v9403, %v9481
    %v9529 = vmax.f32 %v9411, %v9483
    %v9530 = vmax.f32 %v9410, %v9485
    %v9531 = vmax.f32 %v9412, %v9487
    %v9532 = vmax.f32 %v9420, %v9489
    %v9533 = vmax.f32 %v9428, %v9491
    %v9534 = vmax.f32 %v9427, %v9493
    %v9535 = vmax.f32 %v9429, %v9495
    %v9536 = vmax.f32 %v9437, %v9497
    %v9537 = vmax.f32 %v9445, %v9499
    %v9538 = vmax.f32 %v9444, %v9501
    %v9539 = vmax.f32 %v9446, %v9503
    %v9540 = vmax.f32 %v9454, %v9505
    %v9541 = vmax.f32 %v9462, %v9507
    %v9542 = vmax.f32 %v9461, %v9509
    %v9543 = vmax.f32 %v9463, %v9511
    %v9544 = vmax.f32 %v9528, %v9530
    %v9545 = vmax.f32 %v9529, %v9531
    %v9546 = vmax.f32 %v9532, %v9534
    %v9547 = vmax.f32 %v9533, %v9535
    %v9548 = vmax.f32 %v9536, %v9538
    %v9549 = vmax.f32 %v9537, %v9539
    %v9550 = vmax.f32 %v9540, %v9542
    %v9551 = vmax.f32 %v9541, %v9543
    %v9552 = vpack.c.bf16 %v9544, %v9544
    %v9553 = vpack.c.bf16 %v9545, %v9545
    %v9554 = vpack.c.bf16 %v9546, %v9546
    %v9555 = vpack.c.bf16 %v9547, %v9547
    %v9556 = vpack.c.bf16 %v9548, %v9548
    %v9557 = vpack.c.bf16 %v9549, %v9549
    %v9558 = vpack.c.bf16 %v9550, %v9550
    %v9559 = vpack.c.bf16 %v9551, %v9551
    %vm9560 = vcmask 123904
    %9561 = vst.msk [vmem:[#allocation2] sm:$0x3] %vm9560, 0
    %9562 = vst.msk [vmem:[#allocation2 + $0x50] sm:$0x3] %vm9560, 0
    %s9563 = scalar_lea.vmem [#allocation2], 24
    %9564 = vst.msk [vmem:[%s9563] sm:$0x3] %vm9560, 0
    %9565 = vst.msk [vmem:[%s9563 + $0x50] sm:$0x3] %vm9560, 0
    %vm9566 = vcmask 122880
    %vm9567 = vmand %vm9566, %vm81
    %v9568 = vld [vmem:[%s79] sm:$0x1]
    %v9569 = vsel %vm9567, 0, %v9568
    %9570 = vst [vmem:[%s79] sm:$0x1] %v9569
    %v9571 = vld [vmem:[%s79 + $0x8] sm:$0x1]
    %v9572 = vsel %vm9567, 0, %v9571
    %9573 = vst [vmem:[%s79 + $0x8] sm:$0x1] %v9572
    %v9574 = vld [vmem:[%s79 + $0x50] sm:$0x1]
    %v9575 = vsel %vm9567, 0, %v9574
    %9576 = vst [vmem:[%s79 + $0x50] sm:$0x1] %v9575
    %v9577 = vld [vmem:[%s79 + $0x58] sm:$0x1]
    %v9578 = vsel %vm9567, 0, %v9577
    %9579 = vst [vmem:[%s79 + $0x58] sm:$0x1] %v9578
    %vm9580 = vcmask 123905
    %vm9581 = vsmask.f32 7942
    %vm9582 = vmand %vm9580, %vm9581
    %v9583 = vld [vmem:[%s79] sm:$0x2]
    %v9584 = vsel %vm9582, 0, %v9583
    %9585 = vst [vmem:[%s79] sm:$0x2] %v9584
    %v9586 = vld [vmem:[%s79 + $0x8] sm:$0x2]
    %v9587 = vsel %vm9582, 0, %v9586
    %9588 = vst [vmem:[%s79 + $0x8] sm:$0x2] %v9587
    %v9589 = vld [vmem:[%s79 + $0x50] sm:$0x2]
    %v9590 = vsel %vm9582, 0, %v9589
    %9591 = vst [vmem:[%s79 + $0x50] sm:$0x2] %v9590
    %v9592 = vld [vmem:[%s79 + $0x58] sm:$0x2]
    %v9593 = vsel %vm9582, 0, %v9592
    %9594 = vst [vmem:[%s79 + $0x58] sm:$0x2] %v9593
    %v9603 = vunpack.c.l.b16 %v9552
    %v9604 = vunpack.c.l.b16 %v9553
    %v9605 = vunpack.c.l.b16 %v9554
    %v9606 = vunpack.c.l.b16 %v9555
    %v9607 = vunpack.c.l.b16 %v9556
    %v9608 = vunpack.c.l.b16 %v9557
    %v9609 = vunpack.c.l.b16 %v9558
    %v9610 = vunpack.c.l.b16 %v9559
    %v9611 = vpack.c.b16 %v9603, %v9603
    %v9612 = vpack.c.b16 %v9604, %v9604
    %v9613 = vpack.c.b16 %v9605, %v9605
    %v9614 = vpack.c.b16 %v9606, %v9606
    %v9615 = vpack.c.b16 %v9607, %v9607
    %v9616 = vpack.c.b16 %v9608, %v9608
    %v9617 = vpack.c.b16 %v9609, %v9609
    %v9618 = vpack.c.b16 %v9610, %v9610
    %v9619 = vunpack.c.l.b16 %v9611
    %v9620 = vunpack.c.l.b16 %v9612
    %v9621 = vunpack.c.l.b16 %v9613
    %v9622 = vunpack.c.l.b16 %v9614
    %v9623 = vunpack.c.l.b16 %v9615
    %v9624 = vunpack.c.l.b16 %v9616
    %v9625 = vunpack.c.l.b16 %v9617
    %v9626 = vunpack.c.l.b16 %v9618
    %v9627 = vrot.slane %v9619, 7
    %v9628 = vrot.slane %v9620, 6
    %v9629 = vsel %vm7379, %v9628, %v9627
    %v9630 = vrot.slane %v9621, 7
    %v9631 = vrot.slane %v9622, 6
    %v9632 = vsel %vm7379, %v9631, %v9630
    %v9633 = vrot.slane %v9623, 7
    %v9634 = vrot.slane %v9624, 6
    %v9635 = vsel %vm7379, %v9634, %v9633
    %v9636 = vrot.slane %v9625, 7
    %v9637 = vrot.slane %v9626, 6
    %v9638 = vsel %vm7379, %v9637, %v9636
    %v9639 = vpack.c.b16 %v9629, %v9629
    %v9640 = vpack.c.b16 %v9632, %v9632
    %v9641 = vpack.c.b16 %v9635, %v9635
    %v9642 = vpack.c.b16 %v9638, %v9638
    %vm9647 = vcmask 123904
    %vm9648 = vsmask.f32 1282
    %vm9649 = vmand %vm9647, %vm9648
    %v9650 = vld [vmem:[%s79] sm:$0x3]
    %v9651 = vsel %vm9649, %v9639, %v9650
    %9652 = vst [vmem:[%s79] sm:$0x3] %v9651
    %v9653 = vld [vmem:[%s79 + $0x8] sm:$0x3]
    %v9654 = vsel %vm9649, %v9640, %v9653
    %9655 = vst [vmem:[%s79 + $0x8] sm:$0x3] %v9654
    %v9656 = vld [vmem:[%s79 + $0x50] sm:$0x3]
    %v9657 = vsel %vm9649, %v9641, %v9656
    %9658 = vst [vmem:[%s79 + $0x50] sm:$0x3] %v9657
    %v9659 = vld [vmem:[%s79 + $0x58] sm:$0x3]
    %v9660 = vsel %vm9649, %v9642, %v9659
    %9661 = vst [vmem:[%s79 + $0x58] sm:$0x3] %v9660
    %v9662 = vld [vmem:[#allocation2] sm:$0x1]
    %v9663 = vld [vmem:[#allocation2 + $0x8] sm:$0x1]
    %v9664 = vld [vmem:[#allocation2 + $0x50] sm:$0x1]
    %v9665 = vld [vmem:[#allocation2 + $0x58] sm:$0x1]
    %v9666 = vld [vmem:[%s10] sm:$0xf]
    %v9667 = vld [vmem:[%s10 + $0x4] sm:$0xf]
    %v9668 = vld [vmem:[#allocation2] sm:$0x3]
    %v9669 = vld [vmem:[#allocation2 + $0x8] sm:$0x3]
    %v9670 = vld [vmem:[#allocation2 + $0x50] sm:$0x3]
    %v9671 = vld [vmem:[#allocation2 + $0x58] sm:$0x3]
    %v9677 = vunpack.c.l.s4 1966171168
    %v9678 = vunpack.c.0.s8 %v9677
    %v9679 = vlaneseq
    %v9680 = vshrl.u32 %v9679, 7
    %v9681 = vsub.s32 %v9678, %v9680
    %v9682 = vrot.slane %v9668, %v9681
    %v9683 = vcombine.high %v9682, %v9682
    %v9685 = vunpack.c.l.s4 1966171168
    %v9686 = vunpack.c.0.s8 %v9685
    %v9687 = vlaneseq
    %v9688 = vshrl.u32 %v9687, 7
    %v9689 = vsub.s32 %v9686, %v9688
    %v9690 = vrot.slane %v9682, %v9689
    %v9692 = vunpack.c.l.s4 1966171168
    %v9693 = vunpack.c.0.s8 %v9692
    %v9694 = vlaneseq
    %v9695 = vshrl.u32 %v9694, 7
    %v9696 = vsub.s32 %v9693, %v9695
    %v9697 = vrot.slane %v9683, %v9696
    %v9699 = vunpack.c.l.s4 1966171168
    %v9700 = vunpack.c.0.s8 %v9699
    %v9701 = vlaneseq
    %v9702 = vshrl.u32 %v9701, 7
    %v9703 = vsub.s32 %v9700, %v9702
    %v9704 = vrot.slane %v9669, %v9703
    %v9705 = vcombine.high %v9704, %v9704
    %v9707 = vunpack.c.l.s4 1966171168
    %v9708 = vunpack.c.0.s8 %v9707
    %v9709 = vlaneseq
    %v9710 = vshrl.u32 %v9709, 7
    %v9711 = vsub.s32 %v9708, %v9710
    %v9712 = vrot.slane %v9704, %v9711
    %v9714 = vunpack.c.l.s4 1966171168
    %v9715 = vunpack.c.0.s8 %v9714
    %v9716 = vlaneseq
    %v9717 = vshrl.u32 %v9716, 7
    %v9718 = vsub.s32 %v9715, %v9717
    %v9719 = vrot.slane %v9705, %v9718
    %v9721 = vunpack.c.l.s4 1966171168
    %v9722 = vunpack.c.0.s8 %v9721
    %v9723 = vlaneseq
    %v9724 = vshrl.u32 %v9723, 7
    %v9725 = vsub.s32 %v9722, %v9724
    %v9726 = vrot.slane %v9670, %v9725
    %v9727 = vcombine.high %v9726, %v9726
    %v9729 = vunpack.c.l.s4 1966171168
    %v9730 = vunpack.c.0.s8 %v9729
    %v9731 = vlaneseq
    %v9732 = vshrl.u32 %v9731, 7
    %v9733 = vsub.s32 %v9730, %v9732
    %v9734 = vrot.slane %v9726, %v9733
    %v9736 = vunpack.c.l.s4 1966171168
    %v9737 = vunpack.c.0.s8 %v9736
    %v9738 = vlaneseq
    %v9739 = vshrl.u32 %v9738, 7
    %v9740 = vsub.s32 %v9737, %v9739
    %v9741 = vrot.slane %v9727, %v9740
    %v9743 = vunpack.c.l.s4 1966171168
    %v9744 = vunpack.c.0.s8 %v9743
    %v9745 = vlaneseq
    %v9746 = vshrl.u32 %v9745, 7
    %v9747 = vsub.s32 %v9744, %v9746
    %v9748 = vrot.slane %v9671, %v9747
    %v9749 = vcombine.high %v9748, %v9748
    %v9751 = vunpack.c.l.s4 1966171168
    %v9752 = vunpack.c.0.s8 %v9751
    %v9753 = vlaneseq
    %v9754 = vshrl.u32 %v9753, 7
    %v9755 = vsub.s32 %v9752, %v9754
    %v9756 = vrot.slane %v9748, %v9755
    %v9758 = vunpack.c.l.s4 1966171168
    %v9759 = vunpack.c.0.s8 %v9758
    %v9760 = vlaneseq
    %v9761 = vshrl.u32 %v9760, 7
    %v9762 = vsub.s32 %v9759, %v9761
    %v9763 = vrot.slane %v9749, %v9762
    %vm9764 = vsmask.f32 1284
    %vm9765 = vmor %vm81, %vm9764
    %vm9766 = vsmask.f32 2312
    %vm9767 = vmor %vm9765, %vm9766
    %vm9768 = vsmask.f32 3340
    %vm9769 = vmor %vm9767, %vm9768
    %vm9770 = vsmask.f32 4368
    %vm9771 = vmor %vm9769, %vm9770
    %vm9772 = vsmask.f32 5396
    %vm9773 = vmor %vm9771, %vm9772
    %vm9774 = vsmask.f32 6424
    %vm9775 = vmor %vm9773, %vm9774
    %vm9776 = vsmask.f32 7452
    %vm9777 = vmor %vm9775, %vm9776
    %v9779 = vshrl.u32 %v9690, 16
    %v9781 = vrot.slane %v9779, 7
    %v9782 = vrot.slane %v9781, 1
    %v9784 = vshll.u32 %v9697, 16
    %v9786 = vsel %vm9777, %v9782, %v9784
    %v9788 = vshrl.u32 %v9712, 16
    %v9790 = vrot.slane %v9788, 7
    %v9791 = vrot.slane %v9790, 1
    %v9793 = vshll.u32 %v9719, 16
    %v9795 = vsel %vm9777, %v9791, %v9793
    %v9797 = vshrl.u32 %v9734, 16
    %v9799 = vrot.slane %v9797, 7
    %v9800 = vrot.slane %v9799, 1
    %v9802 = vshll.u32 %v9741, 16
    %v9804 = vsel %vm9777, %v9800, %v9802
    %v9806 = vshrl.u32 %v9756, 16
    %v9808 = vrot.slane %v9806, 7
    %v9809 = vrot.slane %v9808, 1
    %v9811 = vshll.u32 %v9763, 16
    %v9813 = vsel %vm9777, %v9809, %v9811
    %s9814 = scalar_lea.vmem %s10, 8
    %v9815 = vld [vmem:[%s9814] sm:$0xf]
    %v9816 = vld [vmem:[%s9814 + $0x4] sm:$0xf]
    %v9817 = vcombine.low %v9786, %v9795
    %v9818 = vcombine.low %v9804, %v9813
    %v9820 = vunpack.c.l.s4 1966171168
    %v9821 = vunpack.c.0.s8 %v9820
    %v9822 = vlaneseq
    %v9823 = vshrl.u32 %v9822, 7
    %v9824 = vsub.s32 %v9821, %v9823
    %v9825 = vrot.slane %v9817, %v9824
    %v9827 = vunpack.c.l.s4 1966171168
    %v9828 = vunpack.c.0.s8 %v9827
    %v9829 = vlaneseq
    %v9830 = vshrl.u32 %v9829, 7
    %v9831 = vsub.s32 %v9828, %v9830
    %v9832 = vrot.slane %v9818, %v9831
    %v9833 = vcombine.low %v9825, %v9832
    %v9835 = vunpack.c.l.s4 1966171168
    %v9836 = vunpack.c.0.s8 %v9835
    %v9837 = vlaneseq
    %v9838 = vshrl.u32 %v9837, 7
    %v9839 = vsub.s32 %v9836, %v9838
    %v9840 = vrot.slane %v9833, %v9839
    %v9843 = vunpack.c.l.b16 %v9815
    %v9844 = vunpack.c.l.b16 %v9816
    %v9845 = vpack.c.b16 %v9844, %v9843
    %v9848 = vsel %vm9326, %v9840, 0
    %9850 = vmatprep.subr.bf16.mxu0 0
    %9851 = vmatpush1.bf16.msra.mxu0 0
    %9852 = vmatprep.subr.bf16.mxu0 0
    %9853 = vmatpush1.bf16.msra.mxu0 0
    %9854 = vmatprep.subr.bf16.mxu0 0
    %9855 = vmatpush1.bf16.msra.mxu0 0
    %9856 = vmatprep.subr.bf16.mxu0 0
    %9857 = vmatpush1.bf16.msra.mxu0 0
    %9858 = vmatprep.subr.bf16.mxu0 0
    %9859 = vmatpush1.bf16.msra.mxu0 0
    %9860 = vmatprep.subr.bf16.mxu0 0
    %9861 = vmatpush1.bf16.msra.mxu0 0
    %9862 = vmatprep.subr.bf16.mxu0 0
    %9863 = vmatpush1.bf16.msra.mxu0 0
    %9864 = vmatprep.subr.bf16.mxu0 0
    %9865 = vmatpush1.bf16.msra.mxu0 %v9845
    %9866 = vmatprep.subr.bf16.mxu0 0
    %9867 = vmatpush2.bf16.msra.mxu0 0
    %9868 = vmatprep.subr.bf16.mxu0 0
    %9869 = vmatpush2.bf16.msra.mxu0 0
    %9870 = vmatprep.subr.bf16.mxu0 0
    %9871 = vmatpush2.bf16.msra.mxu0 0
    %9872 = vmatprep.subr.bf16.mxu0 0
    %9873 = vmatpush2.bf16.msra.mxu0 0
    %9874 = vmatprep.subr.bf16.mxu0 0
    %9875 = vmatpush2.bf16.msra.mxu0 0
    %9876 = vmatprep.subr.bf16.mxu0 0
    %9877 = vmatpush2.bf16.msra.mxu0 0
    %9878 = vmatprep.subr.bf16.mxu0 0
    %9879 = vmatpush2.bf16.msra.mxu0 0
    %9880 = vmatprep.subr.bf16.mxu0 0
    %9881 = vmatpush2.bf16.msra.mxu0 0
    %9882 = vmatprep.mubr.bf16.mxu0 0
    %9883 = vmatmul.mubr.bf16.gmra.mxu0 %v9848
    %v9884 = vpop.f32.mrf.mxu0
    %v9885 = vadd.f32 0.0, %v9884
    %v9886 = vpop.f32.mrf.mxu0
    %v9887 = vpop.f32.mrf.mxu0
    %v9888 = vpop.f32.mrf.mxu0
    %9889 = vdwg.mxu0
    %v9894 = vcombine.low %v9662, %v9663
    %v9895 = vcombine.low %v9664, %v9665
    %v9897 = vunpack.c.l.s4 1966171168
    %v9898 = vunpack.c.0.s8 %v9897
    %v9899 = vlaneseq
    %v9900 = vshrl.u32 %v9899, 7
    %v9901 = vsub.s32 %v9898, %v9900
    %v9902 = vrot.slane %v9894, %v9901
    %v9904 = vunpack.c.l.s4 1966171168
    %v9905 = vunpack.c.0.s8 %v9904
    %v9906 = vlaneseq
    %v9907 = vshrl.u32 %v9906, 7
    %v9908 = vsub.s32 %v9905, %v9907
    %v9909 = vrot.slane %v9895, %v9908
    %v9910 = vcombine.low %v9902, %v9909
    %v9912 = vunpack.c.l.s4 1966171168
    %v9913 = vunpack.c.0.s8 %v9912
    %v9914 = vlaneseq
    %v9915 = vshrl.u32 %v9914, 7
    %v9916 = vsub.s32 %v9913, %v9915
    %v9917 = vrot.slane %v9910, %v9916
    %v9920 = vunpack.c.l.b16 %v9666
    %v9921 = vunpack.c.l.b16 %v9667
    %v9922 = vpack.c.b16 %v9921, %v9920
    %v9925 = vsel %vm9326, %v9917, 0
    %9927 = vmatprep.subr.bf16.mxu0 0
    %9928 = vmatpush1.bf16.msra.mxu0 0
    %9929 = vmatprep.subr.bf16.mxu0 0
    %9930 = vmatpush1.bf16.msra.mxu0 0
    %9931 = vmatprep.subr.bf16.mxu0 0
    %9932 = vmatpush1.bf16.msra.mxu0 0
    %9933 = vmatprep.subr.bf16.mxu0 0
    %9934 = vmatpush1.bf16.msra.mxu0 0
    %9935 = vmatprep.subr.bf16.mxu0 0
    %9936 = vmatpush1.bf16.msra.mxu0 0
    %9937 = vmatprep.subr.bf16.mxu0 0
    %9938 = vmatpush1.bf16.msra.mxu0 0
    %9939 = vmatprep.subr.bf16.mxu0 0
    %9940 = vmatpush1.bf16.msra.mxu0 0
    %9941 = vmatprep.subr.bf16.mxu0 0
    %9942 = vmatpush1.bf16.msra.mxu0 %v9922
    %9943 = vmatprep.subr.bf16.mxu0 0
    %9944 = vmatpush2.bf16.msra.mxu0 0
    %9945 = vmatprep.subr.bf16.mxu0 0
    %9946 = vmatpush2.bf16.msra.mxu0 0
    %9947 = vmatprep.subr.bf16.mxu0 0
    %9948 = vmatpush2.bf16.msra.mxu0 0
    %9949 = vmatprep.subr.bf16.mxu0 0
    %9950 = vmatpush2.bf16.msra.mxu0 0
    %9951 = vmatprep.subr.bf16.mxu0 0
    %9952 = vmatpush2.bf16.msra.mxu0 0
    %9953 = vmatprep.subr.bf16.mxu0 0
    %9954 = vmatpush2.bf16.msra.mxu0 0
    %9955 = vmatprep.subr.bf16.mxu0 0
    %9956 = vmatpush2.bf16.msra.mxu0 0
    %9957 = vmatprep.subr.bf16.mxu0 0
    %9958 = vmatpush2.bf16.msra.mxu0 0
    %9959 = vmatprep.mubr.bf16.mxu0 0
    %9960 = vmatmul.mubr.bf16.gmra.mxu0 %v9925
    %v9961 = vpop.f32.mrf.mxu0
    %v9962 = vadd.f32 %v9885, %v9961
    %v9963 = vpop.f32.mrf.mxu0
    %v9964 = vpop.f32.mrf.mxu0
    %v9965 = vpop.f32.mrf.mxu0
    %9966 = vdwg.mxu0
    %v9967 = vld [vmem:[#allocation2] sm:$0x2]
    %v9968 = vld [vmem:[#allocation2 + $0x8] sm:$0x2]
    %v9969 = vld [vmem:[#allocation2 + $0x50] sm:$0x2]
    %v9970 = vld [vmem:[#allocation2 + $0x58] sm:$0x2]
    %v9976 = vunpack.c.l.s4 1966171168
    %v9977 = vunpack.c.0.s8 %v9976
    %v9978 = vlaneseq
    %v9979 = vshrl.u32 %v9978, 7
    %v9980 = vsub.s32 %v9977, %v9979
    %v9981 = vrot.slane %v9967, %v9980
    %v9982 = vcombine.high %v9981, %v9981
    %v9984 = vunpack.c.l.s4 1966171168
    %v9985 = vunpack.c.0.s8 %v9984
    %v9986 = vlaneseq
    %v9987 = vshrl.u32 %v9986, 7
    %v9988 = vsub.s32 %v9985, %v9987
    %v9989 = vrot.slane %v9982, %v9988
    %v9991 = vunpack.c.l.s4 1966171168
    %v9992 = vunpack.c.0.s8 %v9991
    %v9993 = vlaneseq
    %v9994 = vshrl.u32 %v9993, 7
    %v9995 = vsub.s32 %v9992, %v9994
    %v9996 = vrot.slane %v9968, %v9995
    %v9997 = vcombine.high %v9996, %v9996
    %v9999 = vunpack.c.l.s4 1966171168
    %v10000 = vunpack.c.0.s8 %v9999
    %v10001 = vlaneseq
    %v10002 = vshrl.u32 %v10001, 7
    %v10003 = vsub.s32 %v10000, %v10002
    %v10004 = vrot.slane %v9997, %v10003
    %v10006 = vunpack.c.l.s4 1966171168
    %v10007 = vunpack.c.0.s8 %v10006
    %v10008 = vlaneseq
    %v10009 = vshrl.u32 %v10008, 7
    %v10010 = vsub.s32 %v10007, %v10009
    %v10011 = vrot.slane %v9969, %v10010
    %v10012 = vcombine.high %v10011, %v10011
    %v10014 = vunpack.c.l.s4 1966171168
    %v10015 = vunpack.c.0.s8 %v10014
    %v10016 = vlaneseq
    %v10017 = vshrl.u32 %v10016, 7
    %v10018 = vsub.s32 %v10015, %v10017
    %v10019 = vrot.slane %v10012, %v10018
    %v10021 = vunpack.c.l.s4 1966171168
    %v10022 = vunpack.c.0.s8 %v10021
    %v10023 = vlaneseq
    %v10024 = vshrl.u32 %v10023, 7
    %v10025 = vsub.s32 %v10022, %v10024
    %v10026 = vrot.slane %v9970, %v10025
    %v10027 = vcombine.high %v10026, %v10026
    %v10029 = vunpack.c.l.s4 1966171168
    %v10030 = vunpack.c.0.s8 %v10029
    %v10031 = vlaneseq
    %v10032 = vshrl.u32 %v10031, 7
    %v10033 = vsub.s32 %v10030, %v10032
    %v10034 = vrot.slane %v10027, %v10033
    %s10035 = scalar_lea.vmem %s10, 16
    %v10036 = vld [vmem:[%s10035] sm:$0xf]
    %v10037 = vld [vmem:[%s10035 + $0x4] sm:$0xf]
    %v10038 = vcombine.low %v9989, %v10004
    %v10039 = vcombine.low %v10019, %v10034
    %v10041 = vunpack.c.l.s4 1966171168
    %v10042 = vunpack.c.0.s8 %v10041
    %v10043 = vlaneseq
    %v10044 = vshrl.u32 %v10043, 7
    %v10045 = vsub.s32 %v10042, %v10044
    %v10046 = vrot.slane %v10038, %v10045
    %v10048 = vunpack.c.l.s4 1966171168
    %v10049 = vunpack.c.0.s8 %v10048
    %v10050 = vlaneseq
    %v10051 = vshrl.u32 %v10050, 7
    %v10052 = vsub.s32 %v10049, %v10051
    %v10053 = vrot.slane %v10039, %v10052
    %v10054 = vcombine.low %v10046, %v10053
    %v10056 = vunpack.c.l.s4 1966171168
    %v10057 = vunpack.c.0.s8 %v10056
    %v10058 = vlaneseq
    %v10059 = vshrl.u32 %v10058, 7
    %v10060 = vsub.s32 %v10057, %v10059
    %v10061 = vrot.slane %v10054, %v10060
    %v10064 = vunpack.c.l.b16 %v10036
    %v10065 = vunpack.c.l.b16 %v10037
    %v10066 = vpack.c.b16 %v10065, %v10064
    %v10069 = vsel %vm9326, %v10061, 0
    %10071 = vmatprep.subr.bf16.mxu0 0
    %10072 = vmatpush1.bf16.msra.mxu0 0
    %10073 = vmatprep.subr.bf16.mxu0 0
    %10074 = vmatpush1.bf16.msra.mxu0 0
    %10075 = vmatprep.subr.bf16.mxu0 0
    %10076 = vmatpush1.bf16.msra.mxu0 0
    %10077 = vmatprep.subr.bf16.mxu0 0
    %10078 = vmatpush1.bf16.msra.mxu0 0
    %10079 = vmatprep.subr.bf16.mxu0 0
    %10080 = vmatpush1.bf16.msra.mxu0 0
    %10081 = vmatprep.subr.bf16.mxu0 0
    %10082 = vmatpush1.bf16.msra.mxu0 0
    %10083 = vmatprep.subr.bf16.mxu0 0
    %10084 = vmatpush1.bf16.msra.mxu0 0
    %10085 = vmatprep.subr.bf16.mxu0 0
    %10086 = vmatpush1.bf16.msra.mxu0 %v10066
    %10087 = vmatprep.subr.bf16.mxu0 0
    %10088 = vmatpush2.bf16.msra.mxu0 0
    %10089 = vmatprep.subr.bf16.mxu0 0
    %10090 = vmatpush2.bf16.msra.mxu0 0
    %10091 = vmatprep.subr.bf16.mxu0 0
    %10092 = vmatpush2.bf16.msra.mxu0 0
    %10093 = vmatprep.subr.bf16.mxu0 0
    %10094 = vmatpush2.bf16.msra.mxu0 0
    %10095 = vmatprep.subr.bf16.mxu0 0
    %10096 = vmatpush2.bf16.msra.mxu0 0
    %10097 = vmatprep.subr.bf16.mxu0 0
    %10098 = vmatpush2.bf16.msra.mxu0 0
    %10099 = vmatprep.subr.bf16.mxu0 0
    %10100 = vmatpush2.bf16.msra.mxu0 0
    %10101 = vmatprep.subr.bf16.mxu0 0
    %10102 = vmatpush2.bf16.msra.mxu0 0
    %10103 = vmatprep.mubr.bf16.mxu0 0
    %10104 = vmatmul.mubr.bf16.gmra.mxu0 %v10069
    %v10105 = vpop.f32.mrf.mxu0
    %v10106 = vadd.f32 0.0, %v10105
    %v10107 = vpop.f32.mrf.mxu0
    %v10108 = vpop.f32.mrf.mxu0
    %v10109 = vpop.f32.mrf.mxu0
    %10110 = vdwg.mxu0
    %v10111 = vadd.f32 %v9962, %v10106
    %v10112 = vld [vmem:[%s79] sm:$0x1]
    %v10113 = vld [vmem:[%s79 + $0x8] sm:$0x1]
    %v10114 = vld [vmem:[%s79 + $0x50] sm:$0x1]
    %v10115 = vld [vmem:[%s79 + $0x58] sm:$0x1]
    %s10116 = scalar_lea.vmem %s10, 24
    %v10117 = vld [vmem:[%s10116] sm:$0xf]
    %v10118 = vld [vmem:[%s10116 + $0x4] sm:$0xf]
    %v10123 = vcombine.low %v10112, %v10113
    %v10124 = vcombine.low %v10114, %v10115
    %v10126 = vunpack.c.l.s4 1966171168
    %v10127 = vunpack.c.0.s8 %v10126
    %v10128 = vlaneseq
    %v10129 = vshrl.u32 %v10128, 7
    %v10130 = vsub.s32 %v10127, %v10129
    %v10131 = vrot.slane %v10123, %v10130
    %v10133 = vunpack.c.l.s4 1966171168
    %v10134 = vunpack.c.0.s8 %v10133
    %v10135 = vlaneseq
    %v10136 = vshrl.u32 %v10135, 7
    %v10137 = vsub.s32 %v10134, %v10136
    %v10138 = vrot.slane %v10124, %v10137
    %v10139 = vcombine.low %v10131, %v10138
    %v10141 = vunpack.c.l.s4 1966171168
    %v10142 = vunpack.c.0.s8 %v10141
    %v10143 = vlaneseq
    %v10144 = vshrl.u32 %v10143, 7
    %v10145 = vsub.s32 %v10142, %v10144
    %v10146 = vrot.slane %v10139, %v10145
    %v10149 = vunpack.c.l.b16 %v10117
    %v10150 = vunpack.c.l.b16 %v10118
    %v10151 = vpack.c.b16 %v10150, %v10149
    %v10154 = vsel %vm9326, %v10146, 0
    %10156 = vmatprep.subr.bf16.mxu0 0
    %10157 = vmatpush1.bf16.msra.mxu0 0
    %10158 = vmatprep.subr.bf16.mxu0 0
    %10159 = vmatpush1.bf16.msra.mxu0 0
    %10160 = vmatprep.subr.bf16.mxu0 0
    %10161 = vmatpush1.bf16.msra.mxu0 0
    %10162 = vmatprep.subr.bf16.mxu0 0
    %10163 = vmatpush1.bf16.msra.mxu0 0
    %10164 = vmatprep.subr.bf16.mxu0 0
    %10165 = vmatpush1.bf16.msra.mxu0 0
    %10166 = vmatprep.subr.bf16.mxu0 0
    %10167 = vmatpush1.bf16.msra.mxu0 0
    %10168 = vmatprep.subr.bf16.mxu0 0
    %10169 = vmatpush1.bf16.msra.mxu0 0
    %10170 = vmatprep.subr.bf16.mxu0 0
    %10171 = vmatpush1.bf16.msra.mxu0 %v10151
    %10172 = vmatprep.subr.bf16.mxu0 0
    %10173 = vmatpush2.bf16.msra.mxu0 0
    %10174 = vmatprep.subr.bf16.mxu0 0
    %10175 = vmatpush2.bf16.msra.mxu0 0
    %10176 = vmatprep.subr.bf16.mxu0 0
    %10177 = vmatpush2.bf16.msra.mxu0 0
    %10178 = vmatprep.subr.bf16.mxu0 0
    %10179 = vmatpush2.bf16.msra.mxu0 0
    %10180 = vmatprep.subr.bf16.mxu0 0
    %10181 = vmatpush2.bf16.msra.mxu0 0
    %10182 = vmatprep.subr.bf16.mxu0 0
    %10183 = vmatpush2.bf16.msra.mxu0 0
    %10184 = vmatprep.subr.bf16.mxu0 0
    %10185 = vmatpush2.bf16.msra.mxu0 0
    %10186 = vmatprep.subr.bf16.mxu0 0
    %10187 = vmatpush2.bf16.msra.mxu0 0
    %10188 = vmatprep.mubr.bf16.mxu0 0
    %10189 = vmatmul.mubr.bf16.gmra.mxu0 %v10154
    %v10190 = vpop.f32.mrf.mxu0
    %v10191 = vadd.f32 0.0, %v10190
    %v10192 = vpop.f32.mrf.mxu0
    %v10193 = vpop.f32.mrf.mxu0
    %v10194 = vpop.f32.mrf.mxu0
    %10195 = vdwg.mxu0
    %v10196 = vadd.f32 %v10111, %v10191
    %v10197 = vld [vmem:[%s79] sm:$0x3]
    %v10198 = vld [vmem:[%s79 + $0x8] sm:$0x3]
    %v10199 = vld [vmem:[%s79 + $0x50] sm:$0x3]
    %v10200 = vld [vmem:[%s79 + $0x58] sm:$0x3]
    %v10206 = vunpack.c.l.s4 1966171168
    %v10207 = vunpack.c.0.s8 %v10206
    %v10208 = vlaneseq
    %v10209 = vshrl.u32 %v10208, 7
    %v10210 = vsub.s32 %v10207, %v10209
    %v10211 = vrot.slane %v10197, %v10210
    %v10212 = vcombine.high %v10211, %v10211
    %v10214 = vunpack.c.l.s4 1966171168
    %v10215 = vunpack.c.0.s8 %v10214
    %v10216 = vlaneseq
    %v10217 = vshrl.u32 %v10216, 7
    %v10218 = vsub.s32 %v10215, %v10217
    %v10219 = vrot.slane %v10211, %v10218
    %v10221 = vunpack.c.l.s4 1966171168
    %v10222 = vunpack.c.0.s8 %v10221
    %v10223 = vlaneseq
    %v10224 = vshrl.u32 %v10223, 7
    %v10225 = vsub.s32 %v10222, %v10224
    %v10226 = vrot.slane %v10212, %v10225
    %v10228 = vunpack.c.l.s4 1966171168
    %v10229 = vunpack.c.0.s8 %v10228
    %v10230 = vlaneseq
    %v10231 = vshrl.u32 %v10230, 7
    %v10232 = vsub.s32 %v10229, %v10231
    %v10233 = vrot.slane %v10198, %v10232
    %v10234 = vcombine.high %v10233, %v10233
    %v10236 = vunpack.c.l.s4 1966171168
    %v10237 = vunpack.c.0.s8 %v10236
    %v10238 = vlaneseq
    %v10239 = vshrl.u32 %v10238, 7
    %v10240 = vsub.s32 %v10237, %v10239
    %v10241 = vrot.slane %v10233, %v10240
    %v10243 = vunpack.c.l.s4 1966171168
    %v10244 = vunpack.c.0.s8 %v10243
    %v10245 = vlaneseq
    %v10246 = vshrl.u32 %v10245, 7
    %v10247 = vsub.s32 %v10244, %v10246
    %v10248 = vrot.slane %v10234, %v10247
    %v10250 = vunpack.c.l.s4 1966171168
    %v10251 = vunpack.c.0.s8 %v10250
    %v10252 = vlaneseq
    %v10253 = vshrl.u32 %v10252, 7
    %v10254 = vsub.s32 %v10251, %v10253
    %v10255 = vrot.slane %v10199, %v10254
    %v10256 = vcombine.high %v10255, %v10255
    %v10258 = vunpack.c.l.s4 1966171168
    %v10259 = vunpack.c.0.s8 %v10258
    %v10260 = vlaneseq
    %v10261 = vshrl.u32 %v10260, 7
    %v10262 = vsub.s32 %v10259, %v10261
    %v10263 = vrot.slane %v10255, %v10262
    %v10265 = vunpack.c.l.s4 1966171168
    %v10266 = vunpack.c.0.s8 %v10265
    %v10267 = vlaneseq
    %v10268 = vshrl.u32 %v10267, 7
    %v10269 = vsub.s32 %v10266, %v10268
    %v10270 = vrot.slane %v10256, %v10269
    %v10272 = vunpack.c.l.s4 1966171168
    %v10273 = vunpack.c.0.s8 %v10272
    %v10274 = vlaneseq
    %v10275 = vshrl.u32 %v10274, 7
    %v10276 = vsub.s32 %v10273, %v10275
    %v10277 = vrot.slane %v10200, %v10276
    %v10278 = vcombine.high %v10277, %v10277
    %v10280 = vunpack.c.l.s4 1966171168
    %v10281 = vunpack.c.0.s8 %v10280
    %v10282 = vlaneseq
    %v10283 = vshrl.u32 %v10282, 7
    %v10284 = vsub.s32 %v10281, %v10283
    %v10285 = vrot.slane %v10277, %v10284
    %v10287 = vunpack.c.l.s4 1966171168
    %v10288 = vunpack.c.0.s8 %v10287
    %v10289 = vlaneseq
    %v10290 = vshrl.u32 %v10289, 7
    %v10291 = vsub.s32 %v10288, %v10290
    %v10292 = vrot.slane %v10278, %v10291
    %v10294 = vshrl.u32 %v10219, 16
    %v10296 = vrot.slane %v10294, 7
    %v10297 = vrot.slane %v10296, 1
    %v10299 = vshll.u32 %v10226, 16
    %v10301 = vsel %vm9777, %v10297, %v10299
    %v10303 = vshrl.u32 %v10241, 16
    %v10305 = vrot.slane %v10303, 7
    %v10306 = vrot.slane %v10305, 1
    %v10308 = vshll.u32 %v10248, 16
    %v10310 = vsel %vm9777, %v10306, %v10308
    %v10312 = vshrl.u32 %v10263, 16
    %v10314 = vrot.slane %v10312, 7
    %v10315 = vrot.slane %v10314, 1
    %v10317 = vshll.u32 %v10270, 16
    %v10319 = vsel %vm9777, %v10315, %v10317
    %v10321 = vshrl.u32 %v10285, 16
    %v10323 = vrot.slane %v10321, 7
    %v10324 = vrot.slane %v10323, 1
    %v10326 = vshll.u32 %v10292, 16
    %v10328 = vsel %vm9777, %v10324, %v10326
    %s10329 = scalar_lea.vmem %s10, 32
    %v10330 = vld [vmem:[%s10329] sm:$0xf]
    %v10331 = vld [vmem:[%s10329 + $0x4] sm:$0xf]
    %v10332 = vcombine.low %v10301, %v10310
    %v10333 = vcombine.low %v10319, %v10328
    %v10335 = vunpack.c.l.s4 1966171168
    %v10336 = vunpack.c.0.s8 %v10335
    %v10337 = vlaneseq
    %v10338 = vshrl.u32 %v10337, 7
    %v10339 = vsub.s32 %v10336, %v10338
    %v10340 = vrot.slane %v10332, %v10339
    %v10342 = vunpack.c.l.s4 1966171168
    %v10343 = vunpack.c.0.s8 %v10342
    %v10344 = vlaneseq
    %v10345 = vshrl.u32 %v10344, 7
    %v10346 = vsub.s32 %v10343, %v10345
    %v10347 = vrot.slane %v10333, %v10346
    %v10348 = vcombine.low %v10340, %v10347
    %v10350 = vunpack.c.l.s4 1966171168
    %v10351 = vunpack.c.0.s8 %v10350
    %v10352 = vlaneseq
    %v10353 = vshrl.u32 %v10352, 7
    %v10354 = vsub.s32 %v10351, %v10353
    %v10355 = vrot.slane %v10348, %v10354
    %v10358 = vunpack.c.l.b16 %v10330
    %v10359 = vunpack.c.l.b16 %v10331
    %v10360 = vpack.c.b16 %v10359, %v10358
    %v10363 = vsel %vm9326, %v10355, 0
    %10365 = vmatprep.subr.bf16.mxu0 0
    %10366 = vmatpush1.bf16.msra.mxu0 0
    %10367 = vmatprep.subr.bf16.mxu0 0
    %10368 = vmatpush1.bf16.msra.mxu0 0
    %10369 = vmatprep.subr.bf16.mxu0 0
    %10370 = vmatpush1.bf16.msra.mxu0 0
    %10371 = vmatprep.subr.bf16.mxu0 0
    %10372 = vmatpush1.bf16.msra.mxu0 0
    %10373 = vmatprep.subr.bf16.mxu0 0
    %10374 = vmatpush1.bf16.msra.mxu0 0
    %10375 = vmatprep.subr.bf16.mxu0 0
    %10376 = vmatpush1.bf16.msra.mxu0 0
    %10377 = vmatprep.subr.bf16.mxu0 0
    %10378 = vmatpush1.bf16.msra.mxu0 0
    %10379 = vmatprep.subr.bf16.mxu0 0
    %10380 = vmatpush1.bf16.msra.mxu0 %v10360
    %10381 = vmatprep.subr.bf16.mxu0 0
    %10382 = vmatpush2.bf16.msra.mxu0 0
    %10383 = vmatprep.subr.bf16.mxu0 0
    %10384 = vmatpush2.bf16.msra.mxu0 0
    %10385 = vmatprep.subr.bf16.mxu0 0
    %10386 = vmatpush2.bf16.msra.mxu0 0
    %10387 = vmatprep.subr.bf16.mxu0 0
    %10388 = vmatpush2.bf16.msra.mxu0 0
    %10389 = vmatprep.subr.bf16.mxu0 0
    %10390 = vmatpush2.bf16.msra.mxu0 0
    %10391 = vmatprep.subr.bf16.mxu0 0
    %10392 = vmatpush2.bf16.msra.mxu0 0
    %10393 = vmatprep.subr.bf16.mxu0 0
    %10394 = vmatpush2.bf16.msra.mxu0 0
    %10395 = vmatprep.subr.bf16.mxu0 0
    %10396 = vmatpush2.bf16.msra.mxu0 0
    %10397 = vmatprep.mubr.bf16.mxu0 0
    %10398 = vmatmul.mubr.bf16.gmra.mxu0 %v10363
    %v10399 = vpop.f32.mrf.mxu0
    %v10400 = vadd.f32 0.0, %v10399
    %v10401 = vpop.f32.mrf.mxu0
    %v10402 = vpop.f32.mrf.mxu0
    %v10403 = vpop.f32.mrf.mxu0
    %10404 = vdwg.mxu0
    %v10405 = vadd.f32 %v10196, %v10400
    %v10406 = vld [vmem:[%s79] sm:$0x2]
    %v10407 = vld [vmem:[%s79 + $0x8] sm:$0x2]
    %v10408 = vld [vmem:[%s79 + $0x50] sm:$0x2]
    %v10409 = vld [vmem:[%s79 + $0x58] sm:$0x2]
    %v10415 = vunpack.c.l.s4 1966171168
    %v10416 = vunpack.c.0.s8 %v10415
    %v10417 = vlaneseq
    %v10418 = vshrl.u32 %v10417, 7
    %v10419 = vsub.s32 %v10416, %v10418
    %v10420 = vrot.slane %v10406, %v10419
    %v10421 = vcombine.high %v10420, %v10420
    %v10423 = vunpack.c.l.s4 1966171168
    %v10424 = vunpack.c.0.s8 %v10423
    %v10425 = vlaneseq
    %v10426 = vshrl.u32 %v10425, 7
    %v10427 = vsub.s32 %v10424, %v10426
    %v10428 = vrot.slane %v10421, %v10427
    %v10430 = vunpack.c.l.s4 1966171168
    %v10431 = vunpack.c.0.s8 %v10430
    %v10432 = vlaneseq
    %v10433 = vshrl.u32 %v10432, 7
    %v10434 = vsub.s32 %v10431, %v10433
    %v10435 = vrot.slane %v10407, %v10434
    %v10436 = vcombine.high %v10435, %v10435
    %v10438 = vunpack.c.l.s4 1966171168
    %v10439 = vunpack.c.0.s8 %v10438
    %v10440 = vlaneseq
    %v10441 = vshrl.u32 %v10440, 7
    %v10442 = vsub.s32 %v10439, %v10441
    %v10443 = vrot.slane %v10436, %v10442
    %v10445 = vunpack.c.l.s4 1966171168
    %v10446 = vunpack.c.0.s8 %v10445
    %v10447 = vlaneseq
    %v10448 = vshrl.u32 %v10447, 7
    %v10449 = vsub.s32 %v10446, %v10448
    %v10450 = vrot.slane %v10408, %v10449
    %v10451 = vcombine.high %v10450, %v10450
    %v10453 = vunpack.c.l.s4 1966171168
    %v10454 = vunpack.c.0.s8 %v10453
    %v10455 = vlaneseq
    %v10456 = vshrl.u32 %v10455, 7
    %v10457 = vsub.s32 %v10454, %v10456
    %v10458 = vrot.slane %v10451, %v10457
    %v10460 = vunpack.c.l.s4 1966171168
    %v10461 = vunpack.c.0.s8 %v10460
    %v10462 = vlaneseq
    %v10463 = vshrl.u32 %v10462, 7
    %v10464 = vsub.s32 %v10461, %v10463
    %v10465 = vrot.slane %v10409, %v10464
    %v10466 = vcombine.high %v10465, %v10465
    %v10468 = vunpack.c.l.s4 1966171168
    %v10469 = vunpack.c.0.s8 %v10468
    %v10470 = vlaneseq
    %v10471 = vshrl.u32 %v10470, 7
    %v10472 = vsub.s32 %v10469, %v10471
    %v10473 = vrot.slane %v10466, %v10472
    %s10474 = scalar_lea.vmem %s10, 40
    %v10475 = vld [vmem:[%s10474] sm:$0xf]
    %v10476 = vld [vmem:[%s10474 + $0x4] sm:$0xf]
    %v10477 = vcombine.low %v10428, %v10443
    %v10478 = vcombine.low %v10458, %v10473
    %v10480 = vunpack.c.l.s4 1966171168
    %v10481 = vunpack.c.0.s8 %v10480
    %v10482 = vlaneseq
    %v10483 = vshrl.u32 %v10482, 7
    %v10484 = vsub.s32 %v10481, %v10483
    %v10485 = vrot.slane %v10477, %v10484
    %v10487 = vunpack.c.l.s4 1966171168
    %v10488 = vunpack.c.0.s8 %v10487
    %v10489 = vlaneseq
    %v10490 = vshrl.u32 %v10489, 7
    %v10491 = vsub.s32 %v10488, %v10490
    %v10492 = vrot.slane %v10478, %v10491
    %v10493 = vcombine.low %v10485, %v10492
    %v10495 = vunpack.c.l.s4 1966171168
    %v10496 = vunpack.c.0.s8 %v10495
    %v10497 = vlaneseq
    %v10498 = vshrl.u32 %v10497, 7
    %v10499 = vsub.s32 %v10496, %v10498
    %v10500 = vrot.slane %v10493, %v10499
    %v10503 = vunpack.c.l.b16 %v10475
    %v10504 = vunpack.c.l.b16 %v10476
    %v10505 = vpack.c.b16 %v10504, %v10503
    %v10508 = vsel %vm9326, %v10500, 0
    %10510 = vmatprep.subr.bf16.mxu0 0
    %10511 = vmatpush1.bf16.msra.mxu0 0
    %10512 = vmatprep.subr.bf16.mxu0 0
    %10513 = vmatpush1.bf16.msra.mxu0 0
    %10514 = vmatprep.subr.bf16.mxu0 0
    %10515 = vmatpush1.bf16.msra.mxu0 0
    %10516 = vmatprep.subr.bf16.mxu0 0
    %10517 = vmatpush1.bf16.msra.mxu0 0
    %10518 = vmatprep.subr.bf16.mxu0 0
    %10519 = vmatpush1.bf16.msra.mxu0 0
    %10520 = vmatprep.subr.bf16.mxu0 0
    %10521 = vmatpush1.bf16.msra.mxu0 0
    %10522 = vmatprep.subr.bf16.mxu0 0
    %10523 = vmatpush1.bf16.msra.mxu0 0
    %10524 = vmatprep.subr.bf16.mxu0 0
    %10525 = vmatpush1.bf16.msra.mxu0 %v10505
    %10526 = vmatprep.subr.bf16.mxu0 0
    %10527 = vmatpush2.bf16.msra.mxu0 0
    %10528 = vmatprep.subr.bf16.mxu0 0
    %10529 = vmatpush2.bf16.msra.mxu0 0
    %10530 = vmatprep.subr.bf16.mxu0 0
    %10531 = vmatpush2.bf16.msra.mxu0 0
    %10532 = vmatprep.subr.bf16.mxu0 0
    %10533 = vmatpush2.bf16.msra.mxu0 0
    %10534 = vmatprep.subr.bf16.mxu0 0
    %10535 = vmatpush2.bf16.msra.mxu0 0
    %10536 = vmatprep.subr.bf16.mxu0 0
    %10537 = vmatpush2.bf16.msra.mxu0 0
    %10538 = vmatprep.subr.bf16.mxu0 0
    %10539 = vmatpush2.bf16.msra.mxu0 0
    %10540 = vmatprep.subr.bf16.mxu0 0
    %10541 = vmatpush2.bf16.msra.mxu0 0
    %10542 = vmatprep.mubr.bf16.mxu0 0
    %10543 = vmatmul.mubr.bf16.gmra.mxu0 %v10508
    %v10544 = vpop.f32.mrf.mxu0
    %v10545 = vadd.f32 0.0, %v10544
    %v10546 = vpop.f32.mrf.mxu0
    %v10547 = vpop.f32.mrf.mxu0
    %v10548 = vpop.f32.mrf.mxu0
    %10549 = vdwg.mxu0
    %v10550 = vadd.f32 %v10405, %v10545
    %v10551 = vld [vmem:[%s2197] sm:$0x1]
    %v10552 = vld [vmem:[%s2197 + $0x8] sm:$0x1]
    %v10553 = vld [vmem:[%s2197 + $0x50] sm:$0x1]
    %v10554 = vld [vmem:[%s2197 + $0x58] sm:$0x1]
    %s10555 = scalar_lea.vmem %s10, 48
    %v10556 = vld [vmem:[%s10555] sm:$0xf]
    %v10557 = vld [vmem:[%s10555 + $0x4] sm:$0xf]
    %v10562 = vcombine.low %v10551, %v10552
    %v10563 = vcombine.low %v10553, %v10554
    %v10565 = vunpack.c.l.s4 1966171168
    %v10566 = vunpack.c.0.s8 %v10565
    %v10567 = vlaneseq
    %v10568 = vshrl.u32 %v10567, 7
    %v10569 = vsub.s32 %v10566, %v10568
    %v10570 = vrot.slane %v10562, %v10569
    %v10572 = vunpack.c.l.s4 1966171168
    %v10573 = vunpack.c.0.s8 %v10572
    %v10574 = vlaneseq
    %v10575 = vshrl.u32 %v10574, 7
    %v10576 = vsub.s32 %v10573, %v10575
    %v10577 = vrot.slane %v10563, %v10576
    %v10578 = vcombine.low %v10570, %v10577
    %v10580 = vunpack.c.l.s4 1966171168
    %v10581 = vunpack.c.0.s8 %v10580
    %v10582 = vlaneseq
    %v10583 = vshrl.u32 %v10582, 7
    %v10584 = vsub.s32 %v10581, %v10583
    %v10585 = vrot.slane %v10578, %v10584
    %v10588 = vunpack.c.l.b16 %v10556
    %v10589 = vunpack.c.l.b16 %v10557
    %v10590 = vpack.c.b16 %v10589, %v10588
    %v10593 = vsel %vm9326, %v10585, 0
    %10595 = vmatprep.subr.bf16.mxu0 0
    %10596 = vmatpush1.bf16.msra.mxu0 0
    %10597 = vmatprep.subr.bf16.mxu0 0
    %10598 = vmatpush1.bf16.msra.mxu0 0
    %10599 = vmatprep.subr.bf16.mxu0 0
    %10600 = vmatpush1.bf16.msra.mxu0 0
    %10601 = vmatprep.subr.bf16.mxu0 0
    %10602 = vmatpush1.bf16.msra.mxu0 0
    %10603 = vmatprep.subr.bf16.mxu0 0
    %10604 = vmatpush1.bf16.msra.mxu0 0
    %10605 = vmatprep.subr.bf16.mxu0 0
    %10606 = vmatpush1.bf16.msra.mxu0 0
    %10607 = vmatprep.subr.bf16.mxu0 0
    %10608 = vmatpush1.bf16.msra.mxu0 0
    %10609 = vmatprep.subr.bf16.mxu0 0
    %10610 = vmatpush1.bf16.msra.mxu0 %v10590
    %10611 = vmatprep.subr.bf16.mxu0 0
    %10612 = vmatpush2.bf16.msra.mxu0 0
    %10613 = vmatprep.subr.bf16.mxu0 0
    %10614 = vmatpush2.bf16.msra.mxu0 0
    %10615 = vmatprep.subr.bf16.mxu0 0
    %10616 = vmatpush2.bf16.msra.mxu0 0
    %10617 = vmatprep.subr.bf16.mxu0 0
    %10618 = vmatpush2.bf16.msra.mxu0 0
    %10619 = vmatprep.subr.bf16.mxu0 0
    %10620 = vmatpush2.bf16.msra.mxu0 0
    %10621 = vmatprep.subr.bf16.mxu0 0
    %10622 = vmatpush2.bf16.msra.mxu0 0
    %10623 = vmatprep.subr.bf16.mxu0 0
    %10624 = vmatpush2.bf16.msra.mxu0 0
    %10625 = vmatprep.subr.bf16.mxu0 0
    %10626 = vmatpush2.bf16.msra.mxu0 0
    %10627 = vmatprep.mubr.bf16.mxu0 0
    %10628 = vmatmul.mubr.bf16.gmra.mxu0 %v10593
    %v10629 = vpop.f32.mrf.mxu0
    %v10630 = vadd.f32 0.0, %v10629
    %v10631 = vpop.f32.mrf.mxu0
    %v10632 = vpop.f32.mrf.mxu0
    %v10633 = vpop.f32.mrf.mxu0
    %10634 = vdwg.mxu0
    %v10635 = vadd.f32 %v10550, %v10630
    %v10636 = vld [vmem:[%s2197] sm:$0x3]
    %v10637 = vld [vmem:[%s2197 + $0x8] sm:$0x3]
    %v10638 = vld [vmem:[%s2197 + $0x50] sm:$0x3]
    %v10639 = vld [vmem:[%s2197 + $0x58] sm:$0x3]
    %v10645 = vunpack.c.l.s4 1966171168
    %v10646 = vunpack.c.0.s8 %v10645
    %v10647 = vlaneseq
    %v10648 = vshrl.u32 %v10647, 7
    %v10649 = vsub.s32 %v10646, %v10648
    %v10650 = vrot.slane %v10636, %v10649
    %v10651 = vcombine.high %v10650, %v10650
    %v10653 = vunpack.c.l.s4 1966171168
    %v10654 = vunpack.c.0.s8 %v10653
    %v10655 = vlaneseq
    %v10656 = vshrl.u32 %v10655, 7
    %v10657 = vsub.s32 %v10654, %v10656
    %v10658 = vrot.slane %v10650, %v10657
    %v10660 = vunpack.c.l.s4 1966171168
    %v10661 = vunpack.c.0.s8 %v10660
    %v10662 = vlaneseq
    %v10663 = vshrl.u32 %v10662, 7
    %v10664 = vsub.s32 %v10661, %v10663
    %v10665 = vrot.slane %v10651, %v10664
    %v10667 = vunpack.c.l.s4 1966171168
    %v10668 = vunpack.c.0.s8 %v10667
    %v10669 = vlaneseq
    %v10670 = vshrl.u32 %v10669, 7
    %v10671 = vsub.s32 %v10668, %v10670
    %v10672 = vrot.slane %v10637, %v10671
    %v10673 = vcombine.high %v10672, %v10672
    %v10675 = vunpack.c.l.s4 1966171168
    %v10676 = vunpack.c.0.s8 %v10675
    %v10677 = vlaneseq
    %v10678 = vshrl.u32 %v10677, 7
    %v10679 = vsub.s32 %v10676, %v10678
    %v10680 = vrot.slane %v10672, %v10679
    %v10682 = vunpack.c.l.s4 1966171168
    %v10683 = vunpack.c.0.s8 %v10682
    %v10684 = vlaneseq
    %v10685 = vshrl.u32 %v10684, 7
    %v10686 = vsub.s32 %v10683, %v10685
    %v10687 = vrot.slane %v10673, %v10686
    %v10689 = vunpack.c.l.s4 1966171168
    %v10690 = vunpack.c.0.s8 %v10689
    %v10691 = vlaneseq
    %v10692 = vshrl.u32 %v10691, 7
    %v10693 = vsub.s32 %v10690, %v10692
    %v10694 = vrot.slane %v10638, %v10693
    %v10695 = vcombine.high %v10694, %v10694
    %v10697 = vunpack.c.l.s4 1966171168
    %v10698 = vunpack.c.0.s8 %v10697
    %v10699 = vlaneseq
    %v10700 = vshrl.u32 %v10699, 7
    %v10701 = vsub.s32 %v10698, %v10700
    %v10702 = vrot.slane %v10694, %v10701
    %v10704 = vunpack.c.l.s4 1966171168
    %v10705 = vunpack.c.0.s8 %v10704
    %v10706 = vlaneseq
    %v10707 = vshrl.u32 %v10706, 7
    %v10708 = vsub.s32 %v10705, %v10707
    %v10709 = vrot.slane %v10695, %v10708
    %v10711 = vunpack.c.l.s4 1966171168
    %v10712 = vunpack.c.0.s8 %v10711
    %v10713 = vlaneseq
    %v10714 = vshrl.u32 %v10713, 7
    %v10715 = vsub.s32 %v10712, %v10714
    %v10716 = vrot.slane %v10639, %v10715
    %v10717 = vcombine.high %v10716, %v10716
    %v10719 = vunpack.c.l.s4 1966171168
    %v10720 = vunpack.c.0.s8 %v10719
    %v10721 = vlaneseq
    %v10722 = vshrl.u32 %v10721, 7
    %v10723 = vsub.s32 %v10720, %v10722
    %v10724 = vrot.slane %v10716, %v10723
    %v10726 = vunpack.c.l.s4 1966171168
    %v10727 = vunpack.c.0.s8 %v10726
    %v10728 = vlaneseq
    %v10729 = vshrl.u32 %v10728, 7
    %v10730 = vsub.s32 %v10727, %v10729
    %v10731 = vrot.slane %v10717, %v10730
    %v10733 = vshrl.u32 %v10658, 16
    %v10735 = vrot.slane %v10733, 7
    %v10736 = vrot.slane %v10735, 1
    %v10738 = vshll.u32 %v10665, 16
    %v10740 = vsel %vm9777, %v10736, %v10738
    %v10742 = vshrl.u32 %v10680, 16
    %v10744 = vrot.slane %v10742, 7
    %v10745 = vrot.slane %v10744, 1
    %v10747 = vshll.u32 %v10687, 16
    %v10749 = vsel %vm9777, %v10745, %v10747
    %v10751 = vshrl.u32 %v10702, 16
    %v10753 = vrot.slane %v10751, 7
    %v10754 = vrot.slane %v10753, 1
    %v10756 = vshll.u32 %v10709, 16
    %v10758 = vsel %vm9777, %v10754, %v10756
    %v10760 = vshrl.u32 %v10724, 16
    %v10762 = vrot.slane %v10760, 7
    %v10763 = vrot.slane %v10762, 1
    %v10765 = vshll.u32 %v10731, 16
    %v10767 = vsel %vm9777, %v10763, %v10765
    %s10768 = scalar_lea.vmem %s10, 56
    %v10769 = vld [vmem:[%s10768] sm:$0xf]
    %v10770 = vld [vmem:[%s10768 + $0x4] sm:$0xf]
    %v10771 = vcombine.low %v10740, %v10749
    %v10772 = vcombine.low %v10758, %v10767
    %v10774 = vunpack.c.l.s4 1966171168
    %v10775 = vunpack.c.0.s8 %v10774
    %v10776 = vlaneseq
    %v10777 = vshrl.u32 %v10776, 7
    %v10778 = vsub.s32 %v10775, %v10777
    %v10779 = vrot.slane %v10771, %v10778
    %v10781 = vunpack.c.l.s4 1966171168
    %v10782 = vunpack.c.0.s8 %v10781
    %v10783 = vlaneseq
    %v10784 = vshrl.u32 %v10783, 7
    %v10785 = vsub.s32 %v10782, %v10784
    %v10786 = vrot.slane %v10772, %v10785
    %v10787 = vcombine.low %v10779, %v10786
    %v10789 = vunpack.c.l.s4 1966171168
    %v10790 = vunpack.c.0.s8 %v10789
    %v10791 = vlaneseq
    %v10792 = vshrl.u32 %v10791, 7
    %v10793 = vsub.s32 %v10790, %v10792
    %v10794 = vrot.slane %v10787, %v10793
    %v10797 = vunpack.c.l.b16 %v10769
    %v10798 = vunpack.c.l.b16 %v10770
    %v10799 = vpack.c.b16 %v10798, %v10797
    %v10802 = vsel %vm9326, %v10794, 0
    %10804 = vmatprep.subr.bf16.mxu0 0
    %10805 = vmatpush1.bf16.msra.mxu0 0
    %10806 = vmatprep.subr.bf16.mxu0 0
    %10807 = vmatpush1.bf16.msra.mxu0 0
    %10808 = vmatprep.subr.bf16.mxu0 0
    %10809 = vmatpush1.bf16.msra.mxu0 0
    %10810 = vmatprep.subr.bf16.mxu0 0
    %10811 = vmatpush1.bf16.msra.mxu0 0
    %10812 = vmatprep.subr.bf16.mxu0 0
    %10813 = vmatpush1.bf16.msra.mxu0 0
    %10814 = vmatprep.subr.bf16.mxu0 0
    %10815 = vmatpush1.bf16.msra.mxu0 0
    %10816 = vmatprep.subr.bf16.mxu0 0
    %10817 = vmatpush1.bf16.msra.mxu0 0
    %10818 = vmatprep.subr.bf16.mxu0 0
    %10819 = vmatpush1.bf16.msra.mxu0 %v10799
    %10820 = vmatprep.subr.bf16.mxu0 0
    %10821 = vmatpush2.bf16.msra.mxu0 0
    %10822 = vmatprep.subr.bf16.mxu0 0
    %10823 = vmatpush2.bf16.msra.mxu0 0
    %10824 = vmatprep.subr.bf16.mxu0 0
    %10825 = vmatpush2.bf16.msra.mxu0 0
    %10826 = vmatprep.subr.bf16.mxu0 0
    %10827 = vmatpush2.bf16.msra.mxu0 0
    %10828 = vmatprep.subr.bf16.mxu0 0
    %10829 = vmatpush2.bf16.msra.mxu0 0
    %10830 = vmatprep.subr.bf16.mxu0 0
    %10831 = vmatpush2.bf16.msra.mxu0 0
    %10832 = vmatprep.subr.bf16.mxu0 0
    %10833 = vmatpush2.bf16.msra.mxu0 0
    %10834 = vmatprep.subr.bf16.mxu0 0
    %10835 = vmatpush2.bf16.msra.mxu0 0
    %10836 = vmatprep.mubr.bf16.mxu0 0
    %10837 = vmatmul.mubr.bf16.gmra.mxu0 %v10802
    %v10838 = vpop.f32.mrf.mxu0
    %v10839 = vadd.f32 0.0, %v10838
    %v10840 = vpop.f32.mrf.mxu0
    %v10841 = vpop.f32.mrf.mxu0
    %v10842 = vpop.f32.mrf.mxu0
    %10843 = vdwg.mxu0
    %v10844 = vadd.f32 %v10635, %v10839
    %v10845 = vld [vmem:[%s2197] sm:$0x2]
    %v10846 = vld [vmem:[%s2197 + $0x8] sm:$0x2]
    %v10847 = vld [vmem:[%s2197 + $0x50] sm:$0x2]
    %v10848 = vld [vmem:[%s2197 + $0x58] sm:$0x2]
    %v10854 = vunpack.c.l.s4 1966171168
    %v10855 = vunpack.c.0.s8 %v10854
    %v10856 = vlaneseq
    %v10857 = vshrl.u32 %v10856, 7
    %v10858 = vsub.s32 %v10855, %v10857
    %v10859 = vrot.slane %v10845, %v10858
    %v10860 = vcombine.high %v10859, %v10859
    %v10862 = vunpack.c.l.s4 1966171168
    %v10863 = vunpack.c.0.s8 %v10862
    %v10864 = vlaneseq
    %v10865 = vshrl.u32 %v10864, 7
    %v10866 = vsub.s32 %v10863, %v10865
    %v10867 = vrot.slane %v10860, %v10866
    %v10869 = vunpack.c.l.s4 1966171168
    %v10870 = vunpack.c.0.s8 %v10869
    %v10871 = vlaneseq
    %v10872 = vshrl.u32 %v10871, 7
    %v10873 = vsub.s32 %v10870, %v10872
    %v10874 = vrot.slane %v10846, %v10873
    %v10875 = vcombine.high %v10874, %v10874
    %v10877 = vunpack.c.l.s4 1966171168
    %v10878 = vunpack.c.0.s8 %v10877
    %v10879 = vlaneseq
    %v10880 = vshrl.u32 %v10879, 7
    %v10881 = vsub.s32 %v10878, %v10880
    %v10882 = vrot.slane %v10875, %v10881
    %v10884 = vunpack.c.l.s4 1966171168
    %v10885 = vunpack.c.0.s8 %v10884
    %v10886 = vlaneseq
    %v10887 = vshrl.u32 %v10886, 7
    %v10888 = vsub.s32 %v10885, %v10887
    %v10889 = vrot.slane %v10847, %v10888
    %v10890 = vcombine.high %v10889, %v10889
    %v10892 = vunpack.c.l.s4 1966171168
    %v10893 = vunpack.c.0.s8 %v10892
    %v10894 = vlaneseq
    %v10895 = vshrl.u32 %v10894, 7
    %v10896 = vsub.s32 %v10893, %v10895
    %v10897 = vrot.slane %v10890, %v10896
    %v10899 = vunpack.c.l.s4 1966171168
    %v10900 = vunpack.c.0.s8 %v10899
    %v10901 = vlaneseq
    %v10902 = vshrl.u32 %v10901, 7
    %v10903 = vsub.s32 %v10900, %v10902
    %v10904 = vrot.slane %v10848, %v10903
    %v10905 = vcombine.high %v10904, %v10904
    %v10907 = vunpack.c.l.s4 1966171168
    %v10908 = vunpack.c.0.s8 %v10907
    %v10909 = vlaneseq
    %v10910 = vshrl.u32 %v10909, 7
    %v10911 = vsub.s32 %v10908, %v10910
    %v10912 = vrot.slane %v10905, %v10911
    %s10913 = scalar_lea.vmem %s10, 64
    %v10914 = vld [vmem:[%s10913] sm:$0xf]
    %v10915 = vld [vmem:[%s10913 + $0x4] sm:$0xf]
    %v10916 = vcombine.low %v10867, %v10882
    %v10917 = vcombine.low %v10897, %v10912
    %v10919 = vunpack.c.l.s4 1966171168
    %v10920 = vunpack.c.0.s8 %v10919
    %v10921 = vlaneseq
    %v10922 = vshrl.u32 %v10921, 7
    %v10923 = vsub.s32 %v10920, %v10922
    %v10924 = vrot.slane %v10916, %v10923
    %v10926 = vunpack.c.l.s4 1966171168
    %v10927 = vunpack.c.0.s8 %v10926
    %v10928 = vlaneseq
    %v10929 = vshrl.u32 %v10928, 7
    %v10930 = vsub.s32 %v10927, %v10929
    %v10931 = vrot.slane %v10917, %v10930
    %v10932 = vcombine.low %v10924, %v10931
    %v10934 = vunpack.c.l.s4 1966171168
    %v10935 = vunpack.c.0.s8 %v10934
    %v10936 = vlaneseq
    %v10937 = vshrl.u32 %v10936, 7
    %v10938 = vsub.s32 %v10935, %v10937
    %v10939 = vrot.slane %v10932, %v10938
    %v10942 = vunpack.c.l.b16 %v10914
    %v10943 = vunpack.c.l.b16 %v10915
    %v10944 = vpack.c.b16 %v10943, %v10942
    %v10947 = vsel %vm9326, %v10939, 0
    %10949 = vmatprep.subr.bf16.mxu0 0
    %10950 = vmatpush1.bf16.msra.mxu0 0
    %10951 = vmatprep.subr.bf16.mxu0 0
    %10952 = vmatpush1.bf16.msra.mxu0 0
    %10953 = vmatprep.subr.bf16.mxu0 0
    %10954 = vmatpush1.bf16.msra.mxu0 0
    %10955 = vmatprep.subr.bf16.mxu0 0
    %10956 = vmatpush1.bf16.msra.mxu0 0
    %10957 = vmatprep.subr.bf16.mxu0 0
    %10958 = vmatpush1.bf16.msra.mxu0 0
    %10959 = vmatprep.subr.bf16.mxu0 0
    %10960 = vmatpush1.bf16.msra.mxu0 0
    %10961 = vmatprep.subr.bf16.mxu0 0
    %10962 = vmatpush1.bf16.msra.mxu0 0
    %10963 = vmatprep.subr.bf16.mxu0 0
    %10964 = vmatpush1.bf16.msra.mxu0 %v10944
    %10965 = vmatprep.subr.bf16.mxu0 0
    %10966 = vmatpush2.bf16.msra.mxu0 0
    %10967 = vmatprep.subr.bf16.mxu0 0
    %10968 = vmatpush2.bf16.msra.mxu0 0
    %10969 = vmatprep.subr.bf16.mxu0 0
    %10970 = vmatpush2.bf16.msra.mxu0 0
    %10971 = vmatprep.subr.bf16.mxu0 0
    %10972 = vmatpush2.bf16.msra.mxu0 0
    %10973 = vmatprep.subr.bf16.mxu0 0
    %10974 = vmatpush2.bf16.msra.mxu0 0
    %10975 = vmatprep.subr.bf16.mxu0 0
    %10976 = vmatpush2.bf16.msra.mxu0 0
    %10977 = vmatprep.subr.bf16.mxu0 0
    %10978 = vmatpush2.bf16.msra.mxu0 0
    %10979 = vmatprep.subr.bf16.mxu0 0
    %10980 = vmatpush2.bf16.msra.mxu0 0
    %10981 = vmatprep.mubr.bf16.mxu0 0
    %10982 = vmatmul.mubr.bf16.gmra.mxu0 %v10947
    %v10983 = vpop.f32.mrf.mxu0
    %v10984 = vadd.f32 0.0, %v10983
    %v10985 = vpop.f32.mrf.mxu0
    %v10986 = vpop.f32.mrf.mxu0
    %v10987 = vpop.f32.mrf.mxu0
    %10988 = vdwg.mxu0
    %v10989 = vadd.f32 %v10844, %v10984
    %vm10990 = vcmask 261120
    %v10991 = vsel %vm10990, %v10989, 0.0
    %v10992 = vrot.slane %v10991, 4
    %v10993 = vadd.f32 %v10991, %v10992
    %v10994 = vrot.slane %v10993, 2
    %v10995 = vadd.f32 %v10993, %v10994
    %v10996 = vrot.slane %v10995, 1
    %v10997 = vadd.f32 %v10995, %v10996
    %v10998 = vmul.f32 %v10997, 0.125
    %v10999 = vsub.f32 %v10989, %v10998
    %v11000 = vmul.f32 %v10999, %v10999
    %v11001 = vsel %vm10990, %v11000, 0.0
    %v11002 = vrot.slane %v11001, 4
    %v11003 = vadd.f32 %v11001, %v11002
    %v11004 = vrot.slane %v11003, 2
    %v11005 = vadd.f32 %v11003, %v11004
    %v11006 = vrot.slane %v11005, 1
    %v11007 = vadd.f32 %v11005, %v11006
    %v11008 = vmul.f32 %v11007, 0.125
    %v11009 = vld [vmem:[%s11] sm:$0x1]
    %v11010 = vadd.f32 %v11008, 1e-05
    %v11011 = vrsqrt.pop %v11010
    %v11012 = vmul.f32 %v11009, %v11011
    %v11014 = vlaneseq
    %v11015 = vshrl.u32 %v11014, 7
    %v11016 = vsub.s32 0, %v11015
    %v11017 = vrot.slane %v11012, %v11016
    %v11019 = vmul.f32 %v10999, %v11017
    %v11020 = vld [vmem:[%s12] sm:$0x1]
    %v11022 = vlaneseq
    %v11023 = vshrl.u32 %v11022, 7
    %v11024 = vsub.s32 0, %v11023
    %v11025 = vrot.slane %v11020, %v11024
    %v11027 = vadd.f32 %v11019, %v11025
    %v11028 = vmax.f32 %v11027, 0.0
    %v11030 = vcombine.high %v11028, %v11028
    %v11032 = vunpack.c.l.s4 1983009808
    %v11033 = vunpack.c.0.s8 %v11032
    %v11034 = vlaneseq
    %v11035 = vshrl.u32 %v11034, 7
    %v11036 = vsub.s32 %v11033, %v11035
    %v11037 = vrot.slane %v11028, %v11036
    %v11039 = vunpack.c.l.s4 1983009808
    %v11040 = vunpack.c.0.s8 %v11039
    %v11041 = vlaneseq
    %v11042 = vshrl.u32 %v11041, 7
    %v11043 = vsub.s32 %v11040, %v11042
    %v11044 = vrot.slane %v11030, %v11043
    %v11045 = vcombine.high %v11037, %v11037
    %v11046 = vcombine.high %v11044, %v11044
    %v11051 = vpack.c.bf16 %v11037, %v11037
    %v11052 = vpack.c.bf16 %v11045, %v11045
    %v11053 = vpack.c.bf16 %v11044, %v11044
    %v11054 = vpack.c.bf16 %v11046, %v11046
    %v11055 = vunpack.c.l.bf16 %v11051
    %v11056 = vunpack.c.l.bf16 %v11052
    %v11057 = vunpack.c.l.bf16 %v11053
    %v11058 = vunpack.c.l.bf16 %v11054
    %v11063 = vcombine.low %v11055, %v11056
    %v11065 = vunpack.c.l.s4 1983009808
    %v11066 = vunpack.c.0.s8 %v11065
    %v11067 = vlaneseq
    %v11068 = vshrl.u32 %v11067, 7
    %v11069 = vsub.s32 %v11066, %v11068
    %v11070 = vrot.slane %v11063, %v11069
    %v11071 = vcombine.low %v11057, %v11058
    %v11073 = vunpack.c.l.s4 1983009808
    %v11074 = vunpack.c.0.s8 %v11073
    %v11075 = vlaneseq
    %v11076 = vshrl.u32 %v11075, 7
    %v11077 = vsub.s32 %v11074, %v11076
    %v11078 = vrot.slane %v11071, %v11077
    %vm11081 = vcmask 257024
    %v11082 = vsel %vm11081, %v11070, 0.0
    %v11083 = vrot.slane %v11082, 4
    %v11084 = vadd.f32 %v11082, %v11083
    %v11085 = vrot.slane %v11084, 2
    %v11086 = vadd.f32 %v11084, %v11085
    %v11087 = vrot.slane %v11086, 1
    %v11088 = vadd.f32 %v11086, %v11087
    %v11089 = vsel %vm11081, %v11078, 0.0
    %v11090 = vrot.slane %v11089, 4
    %v11091 = vadd.f32 %v11089, %v11090
    %v11092 = vrot.slane %v11091, 2
    %v11093 = vadd.f32 %v11091, %v11092
    %v11094 = vrot.slane %v11093, 1
    %v11095 = vadd.f32 %v11093, %v11094
    %v11096 = vrcp.pop 4.0
    %v11097 = vmul.f32 %v11088, %v11096
    %v11098 = vmul.f32 %v11095, %v11096
    %v11099 = vpack.c.bf16 %v11097, %v11097
    %v11100 = vpack.c.bf16 %v11098, %v11098
    %v11101 = vld [vmem:[%s13] sm:$0xf]
    %v11102 = vld [vmem:[%s13 + $0x4] sm:$0xf]
    %v11103 = vld [vmem:[%s13 + $0x8] sm:$0xf]
    %v11104 = vld [vmem:[%s13 + $0xc] sm:$0xf]
    %v11105 = vld [vmem:[%s14] sm:$0x1]
    %v11107 = vlaneseq
    %v11108 = vshrl.u32 %v11107, 7
    %v11109 = vsub.s32 0, %v11108
    %v11110 = vrot.slane %v11105, %v11109
    %v11114 = vunpack.c.l.b16 %v11099
    %v11115 = vunpack.c.l.b16 %v11100
    %vm11116 = vcmask 1041409
    %v11117 = vsel %vm11116, %v11115, %v11114
    %v11118 = vpack.c.b16 %v11117, %v11117
    %v11123 = vunpack.c.l.b16 %v11101
    %v11124 = vunpack.c.l.b16 %v11102
    %v11125 = vunpack.c.l.b16 %v11103
    %v11126 = vunpack.c.l.b16 %v11104
    %v11127 = vpack.c.b16 %v11124, %v11123
    %v11128 = vpack.c.b16 %v11126, %v11125
    %v11132 = vsel %vm10990, %v11118, 0
    %11134 = vmatprep.subr.bf16.mxu0 0
    %11135 = vmatpush1.bf16.msra.mxu0 0
    %11136 = vmatprep.subr.bf16.mxu0 0
    %11137 = vmatpush1.bf16.msra.mxu0 0
    %11138 = vmatprep.subr.bf16.mxu0 0
    %11139 = vmatpush1.bf16.msra.mxu0 0
    %11140 = vmatprep.subr.bf16.mxu0 0
    %11141 = vmatpush1.bf16.msra.mxu0 0
    %11142 = vmatprep.subr.bf16.mxu0 0
    %11143 = vmatpush1.bf16.msra.mxu0 0
    %11144 = vmatprep.subr.bf16.mxu0 0
    %11145 = vmatpush1.bf16.msra.mxu0 0
    %11146 = vmatprep.subr.bf16.mxu0 0
    %11147 = vmatpush1.bf16.msra.mxu0 %v11128
    %11148 = vmatprep.subr.bf16.mxu0 0
    %11149 = vmatpush1.bf16.msra.mxu0 %v11127
    %11150 = vmatprep.subr.bf16.mxu0 0
    %11151 = vmatpush2.bf16.msra.mxu0 0
    %11152 = vmatprep.subr.bf16.mxu0 0
    %11153 = vmatpush2.bf16.msra.mxu0 0
    %11154 = vmatprep.subr.bf16.mxu0 0
    %11155 = vmatpush2.bf16.msra.mxu0 0
    %11156 = vmatprep.subr.bf16.mxu0 0
    %11157 = vmatpush2.bf16.msra.mxu0 0
    %11158 = vmatprep.subr.bf16.mxu0 0
    %11159 = vmatpush2.bf16.msra.mxu0 0
    %11160 = vmatprep.subr.bf16.mxu0 0
    %11161 = vmatpush2.bf16.msra.mxu0 0
    %11162 = vmatprep.subr.bf16.mxu0 0
    %11163 = vmatpush2.bf16.msra.mxu0 0
    %11164 = vmatprep.subr.bf16.mxu0 0
    %11165 = vmatpush2.bf16.msra.mxu0 0
    %11166 = vmatprep.mubr.bf16.mxu0 0
    %11167 = vmatmul.mubr.bf16.gmra.mxu0 %v11132
    %v11168 = vpop.f32.mrf.mxu0
    %v11169 = vadd.f32 %v11110, %v11168
    %v11170 = vpop.f32.mrf.mxu0
    %v11171 = vpop.f32.mrf.mxu0
    %v11172 = vpop.f32.mrf.mxu0
    %11173 = vdwg.mxu0
    %vm11174 = vcmask 74752
    %11175 = vst.msk [vmem:[#allocation3] sm:$0x3] %vm11174, %v11169
    // Predicated region
    $region62: #{tpu_custom_call.1} parent=1 // pred_check
      _
    $region63: #{tpu_custom_call.1} parent=1 // pred_check_branch
      %11177 = sbr.rel (0) target = $region65
    $region64: #{tpu_custom_call.1} parent=1 // pred_region
      %s11179 = ssub.s32 32, 32
      %11180 = vsyncadd [#allocation4], %s11179
      %s11182 = sshll.u32 [#allocation3], 4
      %s11183 = int_to_ptr.vmem [resolvable:$true] %s11182
      %11185 = dma.vmem_to_hbm [thread:$0]  %s11183, 32, %s15, [#allocation4]
    $region65: #{tpu_custom_call.1} parent=1 // pred_fallthru
      _
    // Predicated region
    $region66: #{tpu_custom_call.1} parent=1 // pred_check
      _
    $region67: #{tpu_custom_call.1} parent=1 // pred_check_branch
      %11187 = sbr.rel (0) target = $region69
    $region68: #{tpu_custom_call.1} parent=1 // pred_region
      %11188 = dma.done [#allocation4], 32
    $region69: #{tpu_custom_call.1} parent=1 // pred_fallthru
      _
    %11189 = vsyncpa [#allocation4], 1

</llo_original>
